<compile_context>
chip_gen: v6e
topology: v6e:2x2x1
jax: 0.10.0
libtpu: 0.0.40
codegen_flags: <defaults>
</compile_context>

<pallas_src>
import functools

import jax
import jax.numpy as jnp
from jax.experimental import pallas as pl
from jax.experimental.pallas import tpu as pltpu


def _round_up(x, m):
    return ((x + m - 1) // m) * m


# ----------------------------------------------------------------------------
# Pallas kernels
# ----------------------------------------------------------------------------
def _conv_mm_kernel(x_ref, w_ref, b_ref, o_ref):
    # x: (TILE_M, K) bf16 im2col patches, w: (K, Cout) bf16, b: (1, Cout) f32
    acc = jnp.dot(x_ref[...], w_ref[...], preferred_element_type=jnp.float32)
    acc = acc + b_ref[...]
    o_ref[...] = jnp.maximum(acc, 0.0)


def _l1_partial_kernel(a_ref, s_ref, o_ref):
    # a: (TILE_M, C) f32 anchor tile
    # s: (S, TILE_M, C) f32 -- all P+N samples for the same tile
    # o: (S, 1) f32 resident accumulator of sum(|a - s|) per sample
    t = pl.program_id(0)

    @pl.when(t == 0)
    def _():
        o_ref[...] = jnp.zeros_like(o_ref)

    diff = jnp.abs(s_ref[...] - a_ref[...][None, :, :])   # (S, TILE_M, C)
    part = jnp.sum(diff, axis=2)                           # (S, TILE_M)
    o_ref[...] += jnp.sum(part, axis=1, keepdims=True)     # (S, 1)


# ----------------------------------------------------------------------------
# Wrappers
# ----------------------------------------------------------------------------
def conv3x3_relu(x_nhwc, w, b, tile_m=512):
    """3x3 conv, stride 1, pad 1, + ReLU.  x:(N,H,W,Cin)  w:(3,3,Cin,Cout)."""
    N, H, W, Cin = x_nhwc.shape
    Cout = w.shape[-1]

    # im2col in bf16 (halves HBM bytes of the 9x-expanded patch matrix).
    xp = jnp.pad(x_nhwc.astype(jnp.bfloat16), ((0, 0), (1, 1), (1, 1), (0, 0)))
    cols = [xp[:, kh:kh + H, kw:kw + W, :].reshape(N * H * W, Cin)
            for kh in range(3) for kw in range(3)]
    patches = jnp.concatenate(cols, axis=-1)            # (M, 9*Cin), (kh,kw,ci)
    wm = w.reshape(9 * Cin, Cout).astype(jnp.bfloat16)  # same row order
    bm = b.reshape(1, Cout).astype(jnp.float32)

    M, K = patches.shape
    tm = min(tile_m, _round_up(M, 8))
    Mp = _round_up(M, tm)
    if Mp != M:
        patches = jnp.pad(patches, ((0, Mp - M), (0, 0)))

    out = pl.pallas_call(
        _conv_mm_kernel,
        out_shape=jax.ShapeDtypeStruct((Mp, Cout), jnp.float32),
        grid=(Mp // tm,),
        in_specs=[
            pl.BlockSpec((tm, K), lambda i: (i, 0)),
            pl.BlockSpec((K, Cout), lambda i: (0, 0)),
            pl.BlockSpec((1, Cout), lambda i: (0, 0)),
        ],
        out_specs=pl.BlockSpec((tm, Cout), lambda i: (i, 0)),
        compiler_params=pltpu.CompilerParams(
            dimension_semantics=("parallel",),
            vmem_limit_bytes=32 * 1024 * 1024),
    )(patches, wm, bm)
    return out[:M].reshape(N, H, W, Cout)


def l1_means_per_sample(anchor, samples, tile_m=512):
    """mean(|anchor - samples[s]|) for every sample s, fused in one kernel.

    anchor:  (B, H, W, C) float32
    samples: (S, B, H, W, C) float32
    returns: (S,) float32 per-sample L1 means (== nn.L1Loss 'mean' per sample)
    """
    S = samples.shape[0]
    C = anchor.shape[-1]
    a2 = anchor.reshape(-1, C).astype(jnp.float32)
    s2 = samples.reshape(S, -1, C).astype(jnp.float32)
    M = a2.shape[0]

    tm = min(tile_m, _round_up(M, 8))
    Mp = _round_up(M, tm)
    if Mp != M:
        a2 = jnp.pad(a2, ((0, Mp - M), (0, 0)))
        s2 = jnp.pad(s2, ((0, 0), (0, Mp - M), (0, 0)))

    sums = pl.pallas_call(
        _l1_partial_kernel,
        out_shape=jax.ShapeDtypeStruct((S, 1), jnp.float32),
        grid=(Mp // tm,),
        in_specs=[
            pl.BlockSpec((tm, C), lambda t: (t, 0)),
            pl.BlockSpec((S, tm, C), lambda t: (0, t, 0)),
        ],
        out_specs=pl.BlockSpec((S, 1), lambda t: (0, 0)),
        compiler_params=pltpu.CompilerParams(
            dimension_semantics=("arbitrary",),
            vmem_limit_bytes=32 * 1024 * 1024),
    )(a2, s2)
    count = jnp.float32(anchor.size)   # B*H*W*C elements per L1 mean
    return sums[:, 0] / count


def maxpool2x2(x):
    B, H, W, C = x.shape
    return jnp.max(x.reshape(B, H // 2, 2, W // 2, 2, C), axis=(2, 4))


# ----------------------------------------------------------------------------
# Synthetic VGG-like feature extractor (stand-in for undefined `Net()`)
# ----------------------------------------------------------------------------
_CHANNELS = (8, 16, 16, 32, 32)


def init_vgg_params(key, in_ch=3):
    params = []
    cin = in_ch
    for cout in _CHANNELS:
        key, kw, kb = jax.random.split(key, 3)
        w = jax.random.normal(kw, (3, 3, cin, cout), jnp.float32) / jnp.sqrt(9.0 * cin)
        b = 0.01 * jax.random.normal(kb, (cout,), jnp.float32)
        params.append((w, b))
        cin = cout
    return params


def vgg_features(params, x_nchw):
    x = jnp.transpose(x_nchw, (0, 2, 3, 1)).astype(jnp.float32)  # NCHW -> NHWC
    feats = []
    for i, (w, b) in enumerate(params):
        x = conv3x3_relu(x, w, b)
        feats.append(x)
        if i < len(params) - 1:
            x = maxpool2x2(x)
    return feats


# TODO(synk): get_pos_samples / get_neg_samples are not defined in the source
# snippet; inputs are assumed to already be (B, K, C, H, W) sample stacks.
def get_pos_samples(p):
    return p


def get_neg_samples(n):
    return n


# ----------------------------------------------------------------------------
# ContrastLoss.forward (semantics mirrored exactly, incl. d_ap/d_an carry-over
# across scales, the weights, and the 1e-7 denominator epsilon)
# ----------------------------------------------------------------------------
def contrast_loss(params, a, p, n, ablation=False):
    weights = [1.0 / 32, 1.0 / 16, 1.0 / 8, 1.0 / 4, 1.0]
    p = get_pos_samples(p)
    n = get_neg_samples(n)
    B = a.shape[0]
    P = p.shape[1]
    N = n.shape[1]

    # One batched forward pass over anchor + all positive + all negative
    # samples: shape ((1+P+N)*B, C, H, W).
    groups = jnp.concatenate(
        [a[None],                                # (1, B, C, H, W)  anchor
         jnp.transpose(p, (1, 0, 2, 3, 4)),      # (P, B, C, H, W)
         jnp.transpose(n, (1, 0, 2, 3, 4))],     # (N, B, C, H, W)
        axis=0)
    x_all = groups.reshape((1 + P + N) * B, *a.shape[1:])
    feats_all = vgg_features(params, x_all)      # list of ((1+P+N)*B, Hk, Wk, Ck)

    loss = jnp.float32(0.0)
    d_ap = jnp.float32(0.0)
    d_an = jnp.float32(0.0)
    for k, fk in enumerate(feats_all):
        Hk, Wk, Ck = fk.shape[1:]
        fk = fk.reshape(1 + P + N, B, Hk, Wk, Ck)
        anchor_k = fk[0]                         # (B, Hk, Wk, Ck)
        samples_k = fk[1:]                       # (P+N, B, Hk, Wk, Ck)
        means = l1_means_per_sample(anchor_k, samples_k)   # (P+N,) f32
        pos_means = means[:P]
        neg_means = means[P:]

        d_ap = (d_ap + jnp.sum(pos_means)) / P
        if not ablation:
            d_an = (d_an + jnp.sum(neg_means)) / N
            contrastive = d_ap / (d_an + 1e-7)
        else:
            contrastive = d_ap
        loss = loss + weights[k] * contrastive
    return loss


if __name__ == "__main__":
    key = jax.random.PRNGKey(0)
    kparam, ka, kp, kn = jax.random.split(key, 4)

    params = init_vgg_params(kparam)

    B, C, H, W = 2, 3, 16, 16
    P, N = 2, 2
    a = jax.random.normal(ka, (B, C, H, W), jnp.float32)       # anchor (restored)
    p = jax.random.normal(kp, (B, P, C, H, W), jnp.float32)    # positive samples
    n = jax.random.normal(kn, (B, N, C, H, W), jnp.float32)    # negative samples

    loss_fn = jax.jit(functools.partial(contrast_loss, ablation=False))
    loss = loss_fn(params, a, p, n)
    jax.block_until_ready(loss)
    print("KERNEL_OK")
</pallas_src>

<mosaic_0001>
module attributes {stable_mosaic.version = 11 : i64} {
  func.func @_conv_mm_kernel(%arg0: i32, %arg1: memref<512x27xbf16, #tpu.memory_space<vmem>>, %arg2: memref<27x8xbf16, #tpu.memory_space<vmem>>, %arg3: memref<1x8xf32, #tpu.memory_space<vmem>>, %arg4: memref<512x8xf32, #tpu.memory_space<vmem>>) attributes {dimension_semantics = [#tpu.dimension_semantics<parallel>], iteration_bounds = array<i64: 5>, scalar_prefetch = 0 : i64, scratch_operands = 0 : i64, tpu.core_type = #tpu.core_type<tc>, window_params = [{transform_indices = @transform_0, window_bounds = array<i64: 512, 27>}, {pipeline_mode = #tpu.pipeline_mode<synchronous>, transform_indices = @transform_1, window_bounds = array<i64: 27, 8>}, {pipeline_mode = #tpu.pipeline_mode<synchronous>, transform_indices = @transform_2, window_bounds = array<i64: 1, 8>}, {transform_indices = @transform_3, window_bounds = array<i64: 512, 8>}]} {
    %c0 = arith.constant 0 : index
    %c0_0 = arith.constant 0 : index
    %0 = vector.load %arg1[%c0, %c0_0] : memref<512x27xbf16, #tpu.memory_space<vmem>>, vector<512x27xbf16>
    %c0_1 = arith.constant 0 : index
    %c0_2 = arith.constant 0 : index
    %1 = vector.load %arg2[%c0_1, %c0_2] : memref<27x8xbf16, #tpu.memory_space<vmem>>, vector<27x8xbf16>
    %cst = arith.constant dense<0.000000e+00> : vector<512x8xf32>
    %2 = tpu.matmul %0, %1, %cst {dimension_numbers = #tpu.dot_dimension_numbers<[1], [0], [0], [1], [0, 0, 1, 1], [], []>} : vector<512x27xbf16>, vector<27x8xbf16>, vector<512x8xf32> -> vector<512x8xf32>
    %c0_3 = arith.constant 0 : index
    %c0_4 = arith.constant 0 : index
    %3 = vector.load %arg3[%c0_3, %c0_4] : memref<1x8xf32, #tpu.memory_space<vmem>>, vector<1x8xf32>
    %4 = vector.broadcast %3 : vector<1x8xf32> to vector<512x8xf32>
    %5 = arith.addf %2, %4 : vector<512x8xf32>
    %cst_5 = arith.constant 0.000000e+00 : f32
    %6 = vector.broadcast %cst_5 : f32 to vector<512x8xf32>
    %7 = arith.maximumf %5, %6 : vector<512x8xf32>
    %c0_6 = arith.constant 0 : index
    %c0_7 = arith.constant 0 : index
    %8 = vector.load %arg4[%c0_6, %c0_7] : memref<512x8xf32, #tpu.memory_space<vmem>>, vector<512x8xf32>
    tpu.vector_store %arg4[%c0_6, %c0_7], %7 {strides = array<i32>} : memref<512x8xf32, #tpu.memory_space<vmem>>, vector<512x8xf32>,
    return
  }
  func.func @transform_0(%arg0: i32) -> (i32, i32) {
    %c0_i32 = arith.constant 0 : i32
    %c0_i32_0 = arith.constant 0 : i32
    return %arg0, %c0_i32 : i32, i32
  }
  func.func @transform_1(%arg0: i32) -> (i32, i32) {
    %c0_i32 = arith.constant 0 : i32
    %c0_i32_0 = arith.constant 0 : i32
    %c0_i32_1 = arith.constant 0 : i32
    return %c0_i32, %c0_i32_0 : i32, i32
  }
  func.func @transform_2(%arg0: i32) -> (i32, i32) {
    %c0_i32 = arith.constant 0 : i32
    %c0_i32_0 = arith.constant 0 : i32
    %c0_i32_1 = arith.constant 0 : i32
    return %c0_i32, %c0_i32_0 : i32, i32
  }
  func.func @transform_3(%arg0: i32) -> (i32, i32) {
    %c0_i32 = arith.constant 0 : i32
    %c0_i32_0 = arith.constant 0 : i32
    return %arg0, %c0_i32 : i32, i32
  }
}

module attributes {stable_mosaic.version = 11 : i64} {
  func.func @_l1_partial_kernel(%arg0: i32, %arg1: memref<512x8xf32, #tpu.memory_space<vmem>>, %arg2: memref<4x512x8xf32, #tpu.memory_space<vmem>>, %arg3: memref<4x1xf32, #tpu.memory_space<vmem>>) attributes {dimension_semantics = [#tpu.dimension_semantics<arbitrary>], iteration_bounds = array<i64: 1>, scalar_prefetch = 0 : i64, scratch_operands = 0 : i64, tpu.core_type = #tpu.core_type<tc>, window_params = [{transform_indices = @transform_0, window_bounds = array<i64: 512, 8>}, {transform_indices = @transform_1, window_bounds = array<i64: 4, 512, 8>}, {pipeline_mode = #tpu.pipeline_mode<synchronous>, transform_indices = @transform_2, window_bounds = array<i64: 4, 1>}]} {
    %c0_i32 = arith.constant 0 : i32
    %0 = arith.cmpi eq, %arg0, %c0_i32 : i32
    %1 = arith.extui %0 : i1 to i32
    %c0_i32_0 = arith.constant 0 : i32
    %2 = arith.cmpi ne, %1, %c0_i32_0 : i32
    scf.if %2 {
      %cst_10 = arith.constant 0.000000e+00 : f32
      %15 = vector.broadcast %cst_10 : f32 to vector<4x1xf32>
      %c0_11 = arith.constant 0 : index
      %c0_12 = arith.constant 0 : index
      %16 = vector.load %arg3[%c0_11, %c0_12] : memref<4x1xf32, #tpu.memory_space<vmem>>, vector<4x1xf32>
      tpu.vector_store %arg3[%c0_11, %c0_12], %15 {strides = array<i32>} : memref<4x1xf32, #tpu.memory_space<vmem>>, vector<4x1xf32>,
    } else {
    }
    %c0 = arith.constant 0 : index
    %c0_1 = arith.constant 0 : index
    %c0_2 = arith.constant 0 : index
    %3 = vector.load %arg2[%c0, %c0_1, %c0_2] : memref<4x512x8xf32, #tpu.memory_space<vmem>>, vector<4x512x8xf32>
    %c0_3 = arith.constant 0 : index
    %c0_4 = arith.constant 0 : index
    %4 = vector.load %arg1[%c0_3, %c0_4] : memref<512x8xf32, #tpu.memory_space<vmem>>, vector<512x8xf32>
    %5 = vector.shape_cast %4 : vector<512x8xf32> to vector<1x512x8xf32>
    %6 = vector.broadcast %5 : vector<1x512x8xf32> to vector<4x512x8xf32>
    %7 = arith.subf %3, %6 : vector<4x512x8xf32>
    %8 = math.absf %7 : vector<4x512x8xf32>
    %cst = arith.constant dense<0.000000e+00> : vector<4x512xf32>
    %9 = vector.multi_reduction <add>, %8, %cst [2] : vector<4x512x8xf32> to vector<4x512xf32>
    %c0_5 = arith.constant 0 : index
    %c0_6 = arith.constant 0 : index
    %10 = vector.load %arg3[%c0_5, %c0_6] : memref<4x1xf32, #tpu.memory_space<vmem>>, vector<4x1xf32>
    %cst_7 = arith.constant dense<0.000000e+00> : vector<4xf32>
    %11 = vector.multi_reduction <add>, %9, %cst_7 [1] : vector<4x512xf32> to vector<4xf32>
    %12 = vector.shape_cast %11 : vector<4xf32> to vector<4x1xf32>
    %13 = arith.addf %10, %12 : vector<4x1xf32>
    %c0_8 = arith.constant 0 : index
    %c0_9 = arith.constant 0 : index
    %14 = vector.load %arg3[%c0_8, %c0_9] : memref<4x1xf32, #tpu.memory_space<vmem>>, vector<4x1xf32>
    tpu.vector_store %arg3[%c0_8, %c0_9], %13 {strides = array<i32>} : memref<4x1xf32, #tpu.memory_space<vmem>>, vector<4x1xf32>,
    return
  }
  func.func @transform_0(%arg0: i32) -> (i32, i32) {
    %c0_i32 = arith.constant 0 : i32
    %c0_i32_0 = arith.constant 0 : i32
    return %arg0, %c0_i32 : i32, i32
  }
  func.func @transform_1(%arg0: i32) -> (i32, i32, i32) {
    %c0_i32 = arith.constant 0 : i32
    %c0_i32_0 = arith.constant 0 : i32
    %c0_i32_1 = arith.constant 0 : i32
    return %c0_i32, %arg0, %c0_i32_0 : i32, i32, i32
  }
  func.func @transform_2(%arg0: i32) -> (i32, i32) {
    %c0_i32 = arith.constant 0 : i32
    %c0_i32_0 = arith.constant 0 : i32
    %c0_i32_1 = arith.constant 0 : i32
    return %c0_i32, %c0_i32_0 : i32, i32
  }
}

module attributes {stable_mosaic.version = 11 : i64} {
  func.func @_conv_mm_kernel(%arg0: i32, %arg1: memref<512x72xbf16, #tpu.memory_space<vmem>>, %arg2: memref<72x16xbf16, #tpu.memory_space<vmem>>, %arg3: memref<1x16xf32, #tpu.memory_space<vmem>>, %arg4: memref<512x16xf32, #tpu.memory_space<vmem>>) attributes {dimension_semantics = [#tpu.dimension_semantics<parallel>], iteration_bounds = array<i64: 2>, scalar_prefetch = 0 : i64, scratch_operands = 0 : i64, tpu.core_type = #tpu.core_type<tc>, window_params = [{transform_indices = @transform_0, window_bounds = array<i64: 512, 72>}, {pipeline_mode = #tpu.pipeline_mode<synchronous>, transform_indices = @transform_1, window_bounds = array<i64: 72, 16>}, {pipeline_mode = #tpu.pipeline_mode<synchronous>, transform_indices = @transform_2, window_bounds = array<i64: 1, 16>}, {transform_indices = @transform_3, window_bounds = array<i64: 512, 16>}]} {
    %c0 = arith.constant 0 : index
    %c0_0 = arith.constant 0 : index
    %0 = vector.load %arg1[%c0, %c0_0] : memref<512x72xbf16, #tpu.memory_space<vmem>>, vector<512x72xbf16>
    %c0_1 = arith.constant 0 : index
    %c0_2 = arith.constant 0 : index
    %1 = vector.load %arg2[%c0_1, %c0_2] : memref<72x16xbf16, #tpu.memory_space<vmem>>, vector<72x16xbf16>
    %cst = arith.constant dense<0.000000e+00> : vector<512x16xf32>
    %2 = tpu.matmul %0, %1, %cst {dimension_numbers = #tpu.dot_dimension_numbers<[1], [0], [0], [1], [0, 0, 1, 1], [], []>} : vector<512x72xbf16>, vector<72x16xbf16>, vector<512x16xf32> -> vector<512x16xf32>
    %c0_3 = arith.constant 0 : index
    %c0_4 = arith.constant 0 : index
    %3 = vector.load %arg3[%c0_3, %c0_4] : memref<1x16xf32, #tpu.memory_space<vmem>>, vector<1x16xf32>
    %4 = vector.broadcast %3 : vector<1x16xf32> to vector<512x16xf32>
    %5 = arith.addf %2, %4 : vector<512x16xf32>
    %cst_5 = arith.constant 0.000000e+00 : f32
    %6 = vector.broadcast %cst_5 : f32 to vector<512x16xf32>
    %7 = arith.maximumf %5, %6 : vector<512x16xf32>
    %c0_6 = arith.constant 0 : index
    %c0_7 = arith.constant 0 : index
    %8 = vector.load %arg4[%c0_6, %c0_7] : memref<512x16xf32, #tpu.memory_space<vmem>>, vector<512x16xf32>
    tpu.vector_store %arg4[%c0_6, %c0_7], %7 {strides = array<i32>} : memref<512x16xf32, #tpu.memory_space<vmem>>, vector<512x16xf32>,
    return
  }
  func.func @transform_0(%arg0: i32) -> (i32, i32) {
    %c0_i32 = arith.constant 0 : i32
    %c0_i32_0 = arith.constant 0 : i32
    return %arg0, %c0_i32 : i32, i32
  }
  func.func @transform_1(%arg0: i32) -> (i32, i32) {
    %c0_i32 = arith.constant 0 : i32
    %c0_i32_0 = arith.constant 0 : i32
    %c0_i32_1 = arith.constant 0 : i32
    return %c0_i32, %c0_i32_0 : i32, i32
  }
  func.func @transform_2(%arg0: i32) -> (i32, i32) {
    %c0_i32 = arith.constant 0 : i32
    %c0_i32_0 = arith.constant 0 : i32
    %c0_i32_1 = arith.constant 0 : i32
    return %c0_i32, %c0_i32_0 : i32, i32
  }
  func.func @transform_3(%arg0: i32) -> (i32, i32) {
    %c0_i32 = arith.constant 0 : i32
    %c0_i32_0 = arith.constant 0 : i32
    return %arg0, %c0_i32 : i32, i32
  }
}

module attributes {stable_mosaic.version = 11 : i64} {
  func.func @_l1_partial_kernel(%arg0: i32, %arg1: memref<128x16xf32, #tpu.memory_space<vmem>>, %arg2: memref<4x128x16xf32, #tpu.memory_space<vmem>>, %arg3: memref<4x1xf32, #tpu.memory_space<vmem>>) attributes {dimension_semantics = [#tpu.dimension_semantics<arbitrary>], iteration_bounds = array<i64: 1>, scalar_prefetch = 0 : i64, scratch_operands = 0 : i64, tpu.core_type = #tpu.core_type<tc>, window_params = [{transform_indices = @transform_0, window_bounds = array<i64: 128, 16>}, {transform_indices = @transform_1, window_bounds = array<i64: 4, 128, 16>}, {pipeline_mode = #tpu.pipeline_mode<synchronous>, transform_indices = @transform_2, window_bounds = array<i64: 4, 1>}]} {
    %c0_i32 = arith.constant 0 : i32
    %0 = arith.cmpi eq, %arg0, %c0_i32 : i32
    %1 = arith.extui %0 : i1 to i32
    %c0_i32_0 = arith.constant 0 : i32
    %2 = arith.cmpi ne, %1, %c0_i32_0 : i32
    scf.if %2 {
      %cst_10 = arith.constant 0.000000e+00 : f32
      %15 = vector.broadcast %cst_10 : f32 to vector<4x1xf32>
      %c0_11 = arith.constant 0 : index
      %c0_12 = arith.constant 0 : index
      %16 = vector.load %arg3[%c0_11, %c0_12] : memref<4x1xf32, #tpu.memory_space<vmem>>, vector<4x1xf32>
      tpu.vector_store %arg3[%c0_11, %c0_12], %15 {strides = array<i32>} : memref<4x1xf32, #tpu.memory_space<vmem>>, vector<4x1xf32>,
    } else {
    }
    %c0 = arith.constant 0 : index
    %c0_1 = arith.constant 0 : index
    %c0_2 = arith.constant 0 : index
    %3 = vector.load %arg2[%c0, %c0_1, %c0_2] : memref<4x128x16xf32, #tpu.memory_space<vmem>>, vector<4x128x16xf32>
    %c0_3 = arith.constant 0 : index
    %c0_4 = arith.constant 0 : index
    %4 = vector.load %arg1[%c0_3, %c0_4] : memref<128x16xf32, #tpu.memory_space<vmem>>, vector<128x16xf32>
    %5 = vector.shape_cast %4 : vector<128x16xf32> to vector<1x128x16xf32>
    %6 = vector.broadcast %5 : vector<1x128x16xf32> to vector<4x128x16xf32>
    %7 = arith.subf %3, %6 : vector<4x128x16xf32>
    %8 = math.absf %7 : vector<4x128x16xf32>
    %cst = arith.constant dense<0.000000e+00> : vector<4x128xf32>
    %9 = vector.multi_reduction <add>, %8, %cst [2] : vector<4x128x16xf32> to vector<4x128xf32>
    %c0_5 = arith.constant 0 : index
    %c0_6 = arith.constant 0 : index
    %10 = vector.load %arg3[%c0_5, %c0_6] : memref<4x1xf32, #tpu.memory_space<vmem>>, vector<4x1xf32>
    %cst_7 = arith.constant dense<0.000000e+00> : vector<4xf32>
    %11 = vector.multi_reduction <add>, %9, %cst_7 [1] : vector<4x128xf32> to vector<4xf32>
    %12 = vector.shape_cast %11 : vector<4xf32> to vector<4x1xf32>
    %13 = arith.addf %10, %12 : vector<4x1xf32>
    %c0_8 = arith.constant 0 : index
    %c0_9 = arith.constant 0 : index
    %14 = vector.load %arg3[%c0_8, %c0_9] : memref<4x1xf32, #tpu.memory_space<vmem>>, vector<4x1xf32>
    tpu.vector_store %arg3[%c0_8, %c0_9], %13 {strides = array<i32>} : memref<4x1xf32, #tpu.memory_space<vmem>>, vector<4x1xf32>,
    return
  }
  func.func @transform_0(%arg0: i32) -> (i32, i32) {
    %c0_i32 = arith.constant 0 : i32
    %c0_i32_0 = arith.constant 0 : i32
    return %arg0, %c0_i32 : i32, i32
  }
  func.func @transform_1(%arg0: i32) -> (i32, i32, i32) {
    %c0_i32 = arith.constant 0 : i32
    %c0_i32_0 = arith.constant 0 : i32
    %c0_i32_1 = arith.constant 0 : i32
    return %c0_i32, %arg0, %c0_i32_0 : i32, i32, i32
  }
  func.func @transform_2(%arg0: i32) -> (i32, i32) {
    %c0_i32 = arith.constant 0 : i32
    %c0_i32_0 = arith.constant 0 : i32
    %c0_i32_1 = arith.constant 0 : i32
    return %c0_i32, %c0_i32_0 : i32, i32
  }
}

module attributes {stable_mosaic.version = 11 : i64} {
  func.func @_conv_mm_kernel(%arg0: i32, %arg1: memref<160x144xbf16, #tpu.memory_space<vmem>>, %arg2: memref<144x16xbf16, #tpu.memory_space<vmem>>, %arg3: memref<1x16xf32, #tpu.memory_space<vmem>>, %arg4: memref<160x16xf32, #tpu.memory_space<vmem>>) attributes {dimension_semantics = [#tpu.dimension_semantics<parallel>], iteration_bounds = array<i64: 1>, scalar_prefetch = 0 : i64, scratch_operands = 0 : i64, tpu.core_type = #tpu.core_type<tc>, window_params = [{transform_indices = @transform_0, window_bounds = array<i64: 160, 144>}, {pipeline_mode = #tpu.pipeline_mode<synchronous>, transform_indices = @transform_1, window_bounds = array<i64: 144, 16>}, {pipeline_mode = #tpu.pipeline_mode<synchronous>, transform_indices = @transform_2, window_bounds = array<i64: 1, 16>}, {transform_indices = @transform_3, window_bounds = array<i64: 160, 16>}]} {
    %c0 = arith.constant 0 : index
    %c0_0 = arith.constant 0 : index
    %0 = vector.load %arg1[%c0, %c0_0] : memref<160x144xbf16, #tpu.memory_space<vmem>>, vector<160x144xbf16>
    %c0_1 = arith.constant 0 : index
    %c0_2 = arith.constant 0 : index
    %1 = vector.load %arg2[%c0_1, %c0_2] : memref<144x16xbf16, #tpu.memory_space<vmem>>, vector<144x16xbf16>
    %cst = arith.constant dense<0.000000e+00> : vector<160x16xf32>
    %2 = tpu.matmul %0, %1, %cst {dimension_numbers = #tpu.dot_dimension_numbers<[1], [0], [0], [1], [0, 0, 1, 1], [], []>} : vector<160x144xbf16>, vector<144x16xbf16>, vector<160x16xf32> -> vector<160x16xf32>
    %c0_3 = arith.constant 0 : index
    %c0_4 = arith.constant 0 : index
    %3 = vector.load %arg3[%c0_3, %c0_4] : memref<1x16xf32, #tpu.memory_space<vmem>>, vector<1x16xf32>
    %4 = vector.broadcast %3 : vector<1x16xf32> to vector<160x16xf32>
    %5 = arith.addf %2, %4 : vector<160x16xf32>
    %cst_5 = arith.constant 0.000000e+00 : f32
    %6 = vector.broadcast %cst_5 : f32 to vector<160x16xf32>
    %7 = arith.maximumf %5, %6 : vector<160x16xf32>
    %c0_6 = arith.constant 0 : index
    %c0_7 = arith.constant 0 : index
    %8 = vector.load %arg4[%c0_6, %c0_7] : memref<160x16xf32, #tpu.memory_space<vmem>>, vector<160x16xf32>
    tpu.vector_store %arg4[%c0_6, %c0_7], %7 {strides = array<i32>} : memref<160x16xf32, #tpu.memory_space<vmem>>, vector<160x16xf32>,
    return
  }
  func.func @transform_0(%arg0: i32) -> (i32, i32) {
    %c0_i32 = arith.constant 0 : i32
    %c0_i32_0 = arith.constant 0 : i32
    return %arg0, %c0_i32 : i32, i32
  }
  func.func @transform_1(%arg0: i32) -> (i32, i32) {
    %c0_i32 = arith.constant 0 : i32
    %c0_i32_0 = arith.constant 0 : i32
    %c0_i32_1 = arith.constant 0 : i32
    return %c0_i32, %c0_i32_0 : i32, i32
  }
  func.func @transform_2(%arg0: i32) -> (i32, i32) {
    %c0_i32 = arith.constant 0 : i32
    %c0_i32_0 = arith.constant 0 : i32
    %c0_i32_1 = arith.constant 0 : i32
    return %c0_i32, %c0_i32_0 : i32, i32
  }
  func.func @transform_3(%arg0: i32) -> (i32, i32) {
    %c0_i32 = arith.constant 0 : i32
    %c0_i32_0 = arith.constant 0 : i32
    return %arg0, %c0_i32 : i32, i32
  }
}

module attributes {stable_mosaic.version = 11 : i64} {
  func.func @_l1_partial_kernel(%arg0: i32, %arg1: memref<32x16xf32, #tpu.memory_space<vmem>>, %arg2: memref<4x32x16xf32, #tpu.memory_space<vmem>>, %arg3: memref<4x1xf32, #tpu.memory_space<vmem>>) attributes {dimension_semantics = [#tpu.dimension_semantics<arbitrary>], iteration_bounds = array<i64: 1>, scalar_prefetch = 0 : i64, scratch_operands = 0 : i64, tpu.core_type = #tpu.core_type<tc>, window_params = [{transform_indices = @transform_0, window_bounds = array<i64: 32, 16>}, {transform_indices = @transform_1, window_bounds = array<i64: 4, 32, 16>}, {pipeline_mode = #tpu.pipeline_mode<synchronous>, transform_indices = @transform_2, window_bounds = array<i64: 4, 1>}]} {
    %c0_i32 = arith.constant 0 : i32
    %0 = arith.cmpi eq, %arg0, %c0_i32 : i32
    %1 = arith.extui %0 : i1 to i32
    %c0_i32_0 = arith.constant 0 : i32
    %2 = arith.cmpi ne, %1, %c0_i32_0 : i32
    scf.if %2 {
      %cst_10 = arith.constant 0.000000e+00 : f32
      %15 = vector.broadcast %cst_10 : f32 to vector<4x1xf32>
      %c0_11 = arith.constant 0 : index
      %c0_12 = arith.constant 0 : index
      %16 = vector.load %arg3[%c0_11, %c0_12] : memref<4x1xf32, #tpu.memory_space<vmem>>, vector<4x1xf32>
      tpu.vector_store %arg3[%c0_11, %c0_12], %15 {strides = array<i32>} : memref<4x1xf32, #tpu.memory_space<vmem>>, vector<4x1xf32>,
    } else {
    }
    %c0 = arith.constant 0 : index
    %c0_1 = arith.constant 0 : index
    %c0_2 = arith.constant 0 : index
    %3 = vector.load %arg2[%c0, %c0_1, %c0_2] : memref<4x32x16xf32, #tpu.memory_space<vmem>>, vector<4x32x16xf32>
    %c0_3 = arith.constant 0 : index
    %c0_4 = arith.constant 0 : index
    %4 = vector.load %arg1[%c0_3, %c0_4] : memref<32x16xf32, #tpu.memory_space<vmem>>, vector<32x16xf32>
    %5 = vector.shape_cast %4 : vector<32x16xf32> to vector<1x32x16xf32>
    %6 = vector.broadcast %5 : vector<1x32x16xf32> to vector<4x32x16xf32>
    %7 = arith.subf %3, %6 : vector<4x32x16xf32>
    %8 = math.absf %7 : vector<4x32x16xf32>
    %cst = arith.constant dense<0.000000e+00> : vector<4x32xf32>
    %9 = vector.multi_reduction <add>, %8, %cst [2] : vector<4x32x16xf32> to vector<4x32xf32>
    %c0_5 = arith.constant 0 : index
    %c0_6 = arith.constant 0 : index
    %10 = vector.load %arg3[%c0_5, %c0_6] : memref<4x1xf32, #tpu.memory_space<vmem>>, vector<4x1xf32>
    %cst_7 = arith.constant dense<0.000000e+00> : vector<4xf32>
    %11 = vector.multi_reduction <add>, %9, %cst_7 [1] : vector<4x32xf32> to vector<4xf32>
    %12 = vector.shape_cast %11 : vector<4xf32> to vector<4x1xf32>
    %13 = arith.addf %10, %12 : vector<4x1xf32>
    %c0_8 = arith.constant 0 : index
    %c0_9 = arith.constant 0 : index
    %14 = vector.load %arg3[%c0_8, %c0_9] : memref<4x1xf32, #tpu.memory_space<vmem>>, vector<4x1xf32>
    tpu.vector_store %arg3[%c0_8, %c0_9], %13 {strides = array<i32>} : memref<4x1xf32, #tpu.memory_space<vmem>>, vector<4x1xf32>,
    return
  }
  func.func @transform_0(%arg0: i32) -> (i32, i32) {
    %c0_i32 = arith.constant 0 : i32
    %c0_i32_0 = arith.constant 0 : i32
    return %arg0, %c0_i32 : i32, i32
  }
  func.func @transform_1(%arg0: i32) -> (i32, i32, i32) {
    %c0_i32 = arith.constant 0 : i32
    %c0_i32_0 = arith.constant 0 : i32
    %c0_i32_1 = arith.constant 0 : i32
    return %c0_i32, %arg0, %c0_i32_0 : i32, i32, i32
  }
  func.func @transform_2(%arg0: i32) -> (i32, i32) {
    %c0_i32 = arith.constant 0 : i32
    %c0_i32_0 = arith.constant 0 : i32
    %c0_i32_1 = arith.constant 0 : i32
    return %c0_i32, %c0_i32_0 : i32, i32
  }
}

module attributes {stable_mosaic.version = 11 : i64} {
  func.func @_l1_partial_kernel(%arg0: i32, %arg1: memref<8x32xf32, #tpu.memory_space<vmem>>, %arg2: memref<4x8x32xf32, #tpu.memory_space<vmem>>, %arg3: memref<4x1xf32, #tpu.memory_space<vmem>>) attributes {dimension_semantics = [#tpu.dimension_semantics<arbitrary>], iteration_bounds = array<i64: 1>, scalar_prefetch = 0 : i64, scratch_operands = 0 : i64, tpu.core_type = #tpu.core_type<tc>, window_params = [{transform_indices = @transform_0, window_bounds = array<i64: 8, 32>}, {transform_indices = @transform_1, window_bounds = array<i64: 4, 8, 32>}, {pipeline_mode = #tpu.pipeline_mode<synchronous>, transform_indices = @transform_2, window_bounds = array<i64: 4, 1>}]} {
    %c0_i32 = arith.constant 0 : i32
    %0 = arith.cmpi eq, %arg0, %c0_i32 : i32
    %1 = arith.extui %0 : i1 to i32
    %c0_i32_0 = arith.constant 0 : i32
    %2 = arith.cmpi ne, %1, %c0_i32_0 : i32
    scf.if %2 {
      %cst_10 = arith.constant 0.000000e+00 : f32
      %15 = vector.broadcast %cst_10 : f32 to vector<4x1xf32>
      %c0_11 = arith.constant 0 : index
      %c0_12 = arith.constant 0 : index
      %16 = vector.load %arg3[%c0_11, %c0_12] : memref<4x1xf32, #tpu.memory_space<vmem>>, vector<4x1xf32>
      tpu.vector_store %arg3[%c0_11, %c0_12], %15 {strides = array<i32>} : memref<4x1xf32, #tpu.memory_space<vmem>>, vector<4x1xf32>,
    } else {
    }
    %c0 = arith.constant 0 : index
    %c0_1 = arith.constant 0 : index
    %c0_2 = arith.constant 0 : index
    %3 = vector.load %arg2[%c0, %c0_1, %c0_2] : memref<4x8x32xf32, #tpu.memory_space<vmem>>, vector<4x8x32xf32>
    %c0_3 = arith.constant 0 : index
    %c0_4 = arith.constant 0 : index
    %4 = vector.load %arg1[%c0_3, %c0_4] : memref<8x32xf32, #tpu.memory_space<vmem>>, vector<8x32xf32>
    %5 = vector.shape_cast %4 : vector<8x32xf32> to vector<1x8x32xf32>
    %6 = vector.broadcast %5 : vector<1x8x32xf32> to vector<4x8x32xf32>
    %7 = arith.subf %3, %6 : vector<4x8x32xf32>
    %8 = math.absf %7 : vector<4x8x32xf32>
    %cst = arith.constant dense<0.000000e+00> : vector<4x8xf32>
    %9 = vector.multi_reduction <add>, %8, %cst [2] : vector<4x8x32xf32> to vector<4x8xf32>
    %c0_5 = arith.constant 0 : index
    %c0_6 = arith.constant 0 : index
    %10 = vector.load %arg3[%c0_5, %c0_6] : memref<4x1xf32, #tpu.memory_space<vmem>>, vector<4x1xf32>
    %cst_7 = arith.constant dense<0.000000e+00> : vector<4xf32>
    %11 = vector.multi_reduction <add>, %9, %cst_7 [1] : vector<4x8xf32> to vector<4xf32>
    %12 = vector.shape_cast %11 : vector<4xf32> to vector<4x1xf32>
    %13 = arith.addf %10, %12 : vector<4x1xf32>
    %c0_8 = arith.constant 0 : index
    %c0_9 = arith.constant 0 : index
    %14 = vector.load %arg3[%c0_8, %c0_9] : memref<4x1xf32, #tpu.memory_space<vmem>>, vector<4x1xf32>
    tpu.vector_store %arg3[%c0_8, %c0_9], %13 {strides = array<i32>} : memref<4x1xf32, #tpu.memory_space<vmem>>, vector<4x1xf32>,
    return
  }
  func.func @transform_0(%arg0: i32) -> (i32, i32) {
    %c0_i32 = arith.constant 0 : i32
    %c0_i32_0 = arith.constant 0 : i32
    return %arg0, %c0_i32 : i32, i32
  }
  func.func @transform_1(%arg0: i32) -> (i32, i32, i32) {
    %c0_i32 = arith.constant 0 : i32
    %c0_i32_0 = arith.constant 0 : i32
    %c0_i32_1 = arith.constant 0 : i32
    return %c0_i32, %arg0, %c0_i32_0 : i32, i32, i32
  }
  func.func @transform_2(%arg0: i32) -> (i32, i32) {
    %c0_i32 = arith.constant 0 : i32
    %c0_i32_0 = arith.constant 0 : i32
    %c0_i32_1 = arith.constant 0 : i32
    return %c0_i32, %c0_i32_0 : i32, i32
  }
}

module attributes {stable_mosaic.version = 11 : i64} {
  func.func @_conv_mm_kernel(%arg0: i32, %arg1: memref<40x144xbf16, #tpu.memory_space<vmem>>, %arg2: memref<144x32xbf16, #tpu.memory_space<vmem>>, %arg3: memref<1x32xf32, #tpu.memory_space<vmem>>, %arg4: memref<40x32xf32, #tpu.memory_space<vmem>>) attributes {dimension_semantics = [#tpu.dimension_semantics<parallel>], iteration_bounds = array<i64: 1>, scalar_prefetch = 0 : i64, scratch_operands = 0 : i64, tpu.core_type = #tpu.core_type<tc>, window_params = [{transform_indices = @transform_0, window_bounds = array<i64: 40, 144>}, {pipeline_mode = #tpu.pipeline_mode<synchronous>, transform_indices = @transform_1, window_bounds = array<i64: 144, 32>}, {pipeline_mode = #tpu.pipeline_mode<synchronous>, transform_indices = @transform_2, window_bounds = array<i64: 1, 32>}, {transform_indices = @transform_3, window_bounds = array<i64: 40, 32>}]} {
    %c0 = arith.constant 0 : index
    %c0_0 = arith.constant 0 : index
    %0 = vector.load %arg1[%c0, %c0_0] : memref<40x144xbf16, #tpu.memory_space<vmem>>, vector<40x144xbf16>
    %c0_1 = arith.constant 0 : index
    %c0_2 = arith.constant 0 : index
    %1 = vector.load %arg2[%c0_1, %c0_2] : memref<144x32xbf16, #tpu.memory_space<vmem>>, vector<144x32xbf16>
    %cst = arith.constant dense<0.000000e+00> : vector<40x32xf32>
    %2 = tpu.matmul %0, %1, %cst {dimension_numbers = #tpu.dot_dimension_numbers<[1], [0], [0], [1], [0, 0, 1, 1], [], []>} : vector<40x144xbf16>, vector<144x32xbf16>, vector<40x32xf32> -> vector<40x32xf32>
    %c0_3 = arith.constant 0 : index
    %c0_4 = arith.constant 0 : index
    %3 = vector.load %arg3[%c0_3, %c0_4] : memref<1x32xf32, #tpu.memory_space<vmem>>, vector<1x32xf32>
    %4 = vector.broadcast %3 : vector<1x32xf32> to vector<40x32xf32>
    %5 = arith.addf %2, %4 : vector<40x32xf32>
    %cst_5 = arith.constant 0.000000e+00 : f32
    %6 = vector.broadcast %cst_5 : f32 to vector<40x32xf32>
    %7 = arith.maximumf %5, %6 : vector<40x32xf32>
    %c0_6 = arith.constant 0 : index
    %c0_7 = arith.constant 0 : index
    %8 = vector.load %arg4[%c0_6, %c0_7] : memref<40x32xf32, #tpu.memory_space<vmem>>, vector<40x32xf32>
    tpu.vector_store %arg4[%c0_6, %c0_7], %7 {strides = array<i32>} : memref<40x32xf32, #tpu.memory_space<vmem>>, vector<40x32xf32>,
    return
  }
  func.func @transform_0(%arg0: i32) -> (i32, i32) {
    %c0_i32 = arith.constant 0 : i32
    %c0_i32_0 = arith.constant 0 : i32
    return %arg0, %c0_i32 : i32, i32
  }
  func.func @transform_1(%arg0: i32) -> (i32, i32) {
    %c0_i32 = arith.constant 0 : i32
    %c0_i32_0 = arith.constant 0 : i32
    %c0_i32_1 = arith.constant 0 : i32
    return %c0_i32, %c0_i32_0 : i32, i32
  }
  func.func @transform_2(%arg0: i32) -> (i32, i32) {
    %c0_i32 = arith.constant 0 : i32
    %c0_i32_0 = arith.constant 0 : i32
    %c0_i32_1 = arith.constant 0 : i32
    return %c0_i32, %c0_i32_0 : i32, i32
  }
  func.func @transform_3(%arg0: i32) -> (i32, i32) {
    %c0_i32 = arith.constant 0 : i32
    %c0_i32_0 = arith.constant 0 : i32
    return %arg0, %c0_i32 : i32, i32
  }
}

module attributes {stable_mosaic.version = 11 : i64} {
  func.func @_conv_mm_kernel(%arg0: i32, %arg1: memref<16x288xbf16, #tpu.memory_space<vmem>>, %arg2: memref<288x32xbf16, #tpu.memory_space<vmem>>, %arg3: memref<1x32xf32, #tpu.memory_space<vmem>>, %arg4: memref<16x32xf32, #tpu.memory_space<vmem>>) attributes {dimension_semantics = [#tpu.dimension_semantics<parallel>], iteration_bounds = array<i64: 1>, scalar_prefetch = 0 : i64, scratch_operands = 0 : i64, tpu.core_type = #tpu.core_type<tc>, window_params = [{transform_indices = @transform_0, window_bounds = array<i64: 16, 288>}, {pipeline_mode = #tpu.pipeline_mode<synchronous>, transform_indices = @transform_1, window_bounds = array<i64: 288, 32>}, {pipeline_mode = #tpu.pipeline_mode<synchronous>, transform_indices = @transform_2, window_bounds = array<i64: 1, 32>}, {transform_indices = @transform_3, window_bounds = array<i64: 16, 32>}]} {
    %c0 = arith.constant 0 : index
    %c0_0 = arith.constant 0 : index
    %0 = vector.load %arg1[%c0, %c0_0] : memref<16x288xbf16, #tpu.memory_space<vmem>>, vector<16x288xbf16>
    %c0_1 = arith.constant 0 : index
    %c0_2 = arith.constant 0 : index
    %1 = vector.load %arg2[%c0_1, %c0_2] : memref<288x32xbf16, #tpu.memory_space<vmem>>, vector<288x32xbf16>
    %cst = arith.constant dense<0.000000e+00> : vector<16x32xf32>
    %2 = tpu.matmul %0, %1, %cst {dimension_numbers = #tpu.dot_dimension_numbers<[1], [0], [0], [1], [0, 0, 1, 1], [], []>} : vector<16x288xbf16>, vector<288x32xbf16>, vector<16x32xf32> -> vector<16x32xf32>
    %c0_3 = arith.constant 0 : index
    %c0_4 = arith.constant 0 : index
    %3 = vector.load %arg3[%c0_3, %c0_4] : memref<1x32xf32, #tpu.memory_space<vmem>>, vector<1x32xf32>
    %4 = vector.broadcast %3 : vector<1x32xf32> to vector<16x32xf32>
    %5 = arith.addf %2, %4 : vector<16x32xf32>
    %cst_5 = arith.constant 0.000000e+00 : f32
    %6 = vector.broadcast %cst_5 : f32 to vector<16x32xf32>
    %7 = arith.maximumf %5, %6 : vector<16x32xf32>
    %c0_6 = arith.constant 0 : index
    %c0_7 = arith.constant 0 : index
    %8 = vector.load %arg4[%c0_6, %c0_7] : memref<16x32xf32, #tpu.memory_space<vmem>>, vector<16x32xf32>
    tpu.vector_store %arg4[%c0_6, %c0_7], %7 {strides = array<i32>} : memref<16x32xf32, #tpu.memory_space<vmem>>, vector<16x32xf32>,
    return
  }
  func.func @transform_0(%arg0: i32) -> (i32, i32) {
    %c0_i32 = arith.constant 0 : i32
    %c0_i32_0 = arith.constant 0 : i32
    return %arg0, %c0_i32 : i32, i32
  }
  func.func @transform_1(%arg0: i32) -> (i32, i32) {
    %c0_i32 = arith.constant 0 : i32
    %c0_i32_0 = arith.constant 0 : i32
    %c0_i32_1 = arith.constant 0 : i32
    return %c0_i32, %c0_i32_0 : i32, i32
  }
  func.func @transform_2(%arg0: i32) -> (i32, i32) {
    %c0_i32 = arith.constant 0 : i32
    %c0_i32_0 = arith.constant 0 : i32
    %c0_i32_1 = arith.constant 0 : i32
    return %c0_i32, %c0_i32_0 : i32, i32
  }
  func.func @transform_3(%arg0: i32) -> (i32, i32) {
    %c0_i32 = arith.constant 0 : i32
    %c0_i32_0 = arith.constant 0 : i32
    return %arg0, %c0_i32 : i32, i32
  }
}

</mosaic_0001>

<llo_original>
// kernel: contrast_loss.10
$region0: #{contrast_loss.10}
  #allocation0 [shape = 'u32[]', space=smem, size = 0x4, offset = 0x4, fixed_abs, tag = 'smem constant byte address 0x4 - core index']
  #allocation1 [shape = 'u32[144,128]{1,0:T(1,128)}', space=vmem, size = 0x12000, scoped, tag = 'internal scratch']
  %s0 = inlined_call_operand.vmem [shape: bf16[2560,27], index: 0, kind: input, shape index: {}]
  %s1 = inlined_call_operand.vmem [shape: bf16[27,8], index: 1, kind: input, shape index: {}]
  %s2 = inlined_call_operand.vmem [shape: f32[1,8], index: 2, kind: input, shape index: {}]
  %s3 = inlined_call_operand.vmem [shape: f32[2560,8], index: 3, kind: output, shape index: {}]
  %s4 = sld [smem:[#allocation0]]
  $region45: #{contrast_loss.10} parent=0
    _
  %s6 = ssub.s32 1, %s4
  %s7 = scalar_select 0, %s6, %s4
  loop: start=0, step=1, limit=7
  $region2: #{contrast_loss.10} parent=0 // loop_pre_header
    _
  $region3: #{contrast_loss.10} parent=0 // loop_header
    %s9 = sphi 0, %s13
    %p10 = scmp.ge.s32.totalorder %s9, 7
    %s19 = sphi 0, %s21
    %s22 = sphi 0, %s19
    %s23 = sphi 0, %s22
    %s39 = sphi 0, %s23
    %s43 = sphi 0, %s43
    %s45 = sphi 0, %s43
    %s46 = sphi 0, %s45
    %s60 = sphi 0, %s46
    %s64 = sphi 0, %s64
    %s66 = sphi 0, %s64
    %s67 = sphi 0, %s66
    %s81 = sphi 0, %s67
    %s87 = sphi 0, %s89
    %s90 = sphi 0, %s87
    %s91 = sphi 0, %s90
    %s107 = sphi 0, %s91
  $region4: #{contrast_loss.10} parent=0 // loop_header_branch
    %12 = sbr.rel (%p10) target = $region8
  $region5: #{contrast_loss.10} parent=0 // loop_body
    %s14 = ssub.s32 %s9, 1
    %s15 = ssub.s32 %s9, 2
    %s16 = sadd.s32 %s9, 1
    %s17 = ssub.s32 %s9, %s16
    %p18 = scmp.eq.s32.totalorder %s17, 0
    %s20 = sadd.s32 %s19, 1
    %s21 = scalar_select %p18, %s19, %s20
    %p24 = pneg %p18
    %p25 = scmp.eq.s32.totalorder %s9, 4
    %p26 = por %p24, %p25
    %p27 = scmp.ne.s32.totalorder %s19, %s22
    %p28 = scmp.eq.s32.totalorder %s9, 0
    %p29 = por %p27, %p28
    %p30 = scmp.ne.s32.totalorder %s19, %s22
    %p31 = scmp.eq.s32.totalorder %s14, 4
    %p32 = por %p30, %p31
    %p33 = scmp.ne.s32.totalorder %s22, %s23
    %p34 = scmp.eq.s32.totalorder %s14, 0
    %p35 = por %p33, %p34
    %p36 = scmp.ne.s32.totalorder %s22, %s23
    %p37 = scmp.eq.s32.totalorder %s15, 4
    %p38 = por %p36, %p37
    %p40 = scmp.ne.s32.totalorder %s23, %s39
    %p41 = scmp.eq.s32.totalorder %s15, 0
    %p42 = por %p40, %p41
    %s44 = sadd.s32 %s43, 1
    %p47 = scmp.eq.s32.totalorder %s9, 4
    %p48 = scmp.ne.s32.totalorder %s43, %s45
    %p49 = scmp.eq.s32.totalorder %s9, 0
    %p50 = por %p48, %p49
    %p51 = scmp.ne.s32.totalorder %s43, %s45
    %p52 = scmp.eq.s32.totalorder %s14, 4
    %p53 = por %p51, %p52
    %p54 = scmp.ne.s32.totalorder %s45, %s46
    %p55 = scmp.eq.s32.totalorder %s14, 0
    %p56 = por %p54, %p55
    %p57 = scmp.ne.s32.totalorder %s45, %s46
    %p58 = scmp.eq.s32.totalorder %s15, 4
    %p59 = por %p57, %p58
    %p61 = scmp.ne.s32.totalorder %s46, %s60
    %p62 = scmp.eq.s32.totalorder %s15, 0
    %p63 = por %p61, %p62
    %s65 = sadd.s32 %s64, 1
    %p68 = scmp.eq.s32.totalorder %s9, 4
    %p69 = scmp.ne.s32.totalorder %s64, %s66
    %p70 = scmp.eq.s32.totalorder %s9, 0
    %p71 = por %p69, %p70
    %p72 = scmp.ne.s32.totalorder %s64, %s66
    %p73 = scmp.eq.s32.totalorder %s14, 4
    %p74 = por %p72, %p73
    %p75 = scmp.ne.s32.totalorder %s66, %s67
    %p76 = scmp.eq.s32.totalorder %s14, 0
    %p77 = por %p75, %p76
    %p78 = scmp.ne.s32.totalorder %s66, %s67
    %p79 = scmp.eq.s32.totalorder %s15, 4
    %p80 = por %p78, %p79
    %p82 = scmp.ne.s32.totalorder %s67, %s81
    %p83 = scmp.eq.s32.totalorder %s15, 0
    %p84 = por %p82, %p83
    %s85 = ssub.s32 %s9, %s16
    %p86 = scmp.eq.s32.totalorder %s85, 0
    %s88 = sadd.s32 %s87, 1
    %s89 = scalar_select %p86, %s87, %s88
    %p92 = pneg %p86
    %p93 = scmp.eq.s32.totalorder %s9, 4
    %p94 = por %p92, %p93
    %p95 = scmp.ne.s32.totalorder %s87, %s90
    %p96 = scmp.eq.s32.totalorder %s9, 0
    %p97 = por %p95, %p96
    %p98 = scmp.ne.s32.totalorder %s87, %s90
    %p99 = scmp.eq.s32.totalorder %s14, 4
    %p100 = por %p98, %p99
    %p101 = scmp.ne.s32.totalorder %s90, %s91
    %p102 = scmp.eq.s32.totalorder %s14, 0
    %p103 = por %p101, %p102
    %p104 = scmp.ne.s32.totalorder %s90, %s91
    %p105 = scmp.eq.s32.totalorder %s15, 4
    %p106 = por %p104, %p105
    %p108 = scmp.ne.s32.totalorder %s91, %s107
    %p109 = scmp.eq.s32.totalorder %s15, 0
    %p110 = por %p108, %p109
    %p111 = scmp.le.s32.totalorder 1, %s9
    %p112 = scmp.lt.s32.totalorder %s9, 6
    %p113 = pnand %p111, %p112
    %p114 = pneg %p113
    // Predicated region
    $region9: #{contrast_loss.10} parent=5 // pred_check
      _
    $region10: #{contrast_loss.10} parent=5 // pred_check_branch
      %116 = sbr.rel (%p113) target = $region12
    $region11: #{contrast_loss.10} parent=5 // pred_region
      %s117 = ssub.s32 %s9, 1
      // Predicated region
      $region13: #{contrast_loss.10} parent=11 // pred_check
        %p118 = pneg %p56
      $region14: #{contrast_loss.10} parent=11 // pred_check_branch
        %120 = sbr.rel (%p118) target = $region16
      $region15: #{contrast_loss.10} parent=11 // pred_region
        _
      $region16: #{contrast_loss.10} parent=11 // pred_fallthru
        _
      // Predicated region
      $region17: #{contrast_loss.10} parent=11 // pred_check
        %p121 = pneg %p77
      $region18: #{contrast_loss.10} parent=11 // pred_check_branch
        %123 = sbr.rel (%p121) target = $region20
      $region19: #{contrast_loss.10} parent=11 // pred_region
        _
      $region20: #{contrast_loss.10} parent=11 // pred_fallthru
        _
    $region12: #{contrast_loss.10} parent=5 // pred_fallthru
      _
    %p124 = scmp.lt.s32.totalorder %s9, 5
    // Predicated region
    $region21: #{contrast_loss.10} parent=5 // pred_check
      %p125 = pneg %p124
    $region22: #{contrast_loss.10} parent=5 // pred_check_branch
      %127 = sbr.rel (%p125) target = $region24
    $region23: #{contrast_loss.10} parent=5 // pred_region
      // Predicated region
      $region25: #{contrast_loss.10} parent=23 // pred_check
        %p128 = pneg %p29
      $region26: #{contrast_loss.10} parent=23 // pred_check_branch
        %130 = sbr.rel (%p128) target = $region28
      $region27: #{contrast_loss.10} parent=23 // pred_region
        %s131 = smul.u32 64, %s9
        %p132 = scmp.lt.s32.totalorder %s131, 319
        %s133 = scalar_select %p132, %s131, 319
        %s134 = smul.addr %s133, 4
        %s135 = scalar_lea.vmem %s0, %s134
        %s136 = smul.u32 64, %s9
      $region28: #{contrast_loss.10} parent=23 // pred_fallthru
        _
    $region24: #{contrast_loss.10} parent=5 // pred_fallthru
      _
    %p137 = scmp.le.s32.totalorder 1, %s9
    %p138 = scmp.lt.s32.totalorder %s9, 6
    %p139 = pnand %p137, %p138
    %p140 = pneg %p139
    // Predicated region
    $region29: #{contrast_loss.10} parent=5 // pred_check
      _
    $region30: #{contrast_loss.10} parent=5 // pred_check_branch
      %142 = sbr.rel (%p139) target = $region32
    $region31: #{contrast_loss.10} parent=5 // pred_region
      %s143 = ssub.s32 %s9, 1
      %s144 = smul.u32 64, %s14
      %p145 = scmp.lt.s32.totalorder %s144, 319
      %s146 = scalar_select %p145, %s144, 319
      %s147 = smul.addr %s146, 4
      %s148 = scalar_lea.vmem %s0, %s147
      %p149 = pneg %p35
      %p150 = pneg %p32
      %p151 = pneg %p56
      %p152 = pneg %p53
      %p153 = pneg %p77
      %p154 = pneg %p74
      %p155 = pneg %p103
      %p156 = pneg %p100
      %s157 = smul.u32 64, %s14
      %p158 = scmp.lt.s32.totalorder %s157, 319
      %s159 = scalar_select %p158, %s157, 319
      %s160 = smul.addr %s159, 8
      %s161 = scalar_lea.vmem %s3, %s160
      %s162 = smul.u32 64, %s14
      %p163 = scmp.lt.s32.totalorder %s162, 319
      %s164 = scalar_select %p163, %s162, 319
      %s165 = smul.addr %s164, 4
      %s166 = scalar_lea.vmem %s0, %s165
      %s167 = smul.u32 64, %s14
      %s168 = smul.u32 64, %s14
      %p169 = scmp.lt.s32.totalorder %s168, 319
      %s170 = scalar_select %p169, %s168, 319
      %s171 = smul.addr %s170, 8
      %s172 = scalar_lea.vmem %s3, %s171
      %s173 = smul.u32 64, %s14
      %v175 = vld [vmem:[%s166] sm:$0xf]
      %v176 = vld [vmem:[%s166 + $0x4] sm:$0xf]
      %v177 = vld [vmem:[%s166 + $0x8] sm:$0xf]
      %v178 = vld [vmem:[%s166 + $0xc] sm:$0xf]
      %v179 = vld [vmem:[%s166 + $0x10] sm:$0xf]
      %v180 = vld [vmem:[%s166 + $0x14] sm:$0xf]
      %v181 = vld [vmem:[%s166 + $0x18] sm:$0xf]
      %v182 = vld [vmem:[%s166 + $0x1c] sm:$0xf]
      %v183 = vld [vmem:[%s166 + $0x20] sm:$0xf]
      %v184 = vld [vmem:[%s166 + $0x24] sm:$0xf]
      %v185 = vld [vmem:[%s166 + $0x28] sm:$0xf]
      %v186 = vld [vmem:[%s166 + $0x2c] sm:$0xf]
      %v187 = vld [vmem:[%s166 + $0x30] sm:$0xf]
      %v188 = vld [vmem:[%s166 + $0x34] sm:$0xf]
      %v189 = vld [vmem:[%s166 + $0x38] sm:$0xf]
      %v190 = vld [vmem:[%s166 + $0x3c] sm:$0xf]
      %v191 = vld [vmem:[%s166 + $0x40] sm:$0xf]
      %v192 = vld [vmem:[%s166 + $0x44] sm:$0xf]
      %v193 = vld [vmem:[%s166 + $0x48] sm:$0xf]
      %v194 = vld [vmem:[%s166 + $0x4c] sm:$0xf]
      %v195 = vld [vmem:[%s166 + $0x50] sm:$0xf]
      %v196 = vld [vmem:[%s166 + $0x54] sm:$0xf]
      %v197 = vld [vmem:[%s166 + $0x58] sm:$0xf]
      %v198 = vld [vmem:[%s166 + $0x5c] sm:$0xf]
      %v199 = vld [vmem:[%s166 + $0x60] sm:$0xf]
      %v200 = vld [vmem:[%s166 + $0x64] sm:$0xf]
      %v201 = vld [vmem:[%s166 + $0x68] sm:$0xf]
      %v202 = vld [vmem:[%s166 + $0x6c] sm:$0xf]
      %v203 = vld [vmem:[%s166 + $0x70] sm:$0xf]
      %v204 = vld [vmem:[%s166 + $0x74] sm:$0xf]
      %v205 = vld [vmem:[%s166 + $0x78] sm:$0xf]
      %v206 = vld [vmem:[%s166 + $0x7c] sm:$0xf]
      %v207 = vld [vmem:[%s166 + $0x80] sm:$0xf]
      %v208 = vld [vmem:[%s166 + $0x84] sm:$0xf]
      %v209 = vld [vmem:[%s166 + $0x88] sm:$0xf]
      %v210 = vld [vmem:[%s166 + $0x8c] sm:$0xf]
      %v211 = vld [vmem:[%s166 + $0x90] sm:$0xf]
      %v212 = vld [vmem:[%s166 + $0x94] sm:$0xf]
      %v213 = vld [vmem:[%s166 + $0x98] sm:$0xf]
      %v214 = vld [vmem:[%s166 + $0x9c] sm:$0xf]
      %v215 = vld [vmem:[%s166 + $0xa0] sm:$0xf]
      %v216 = vld [vmem:[%s166 + $0xa4] sm:$0xf]
      %v217 = vld [vmem:[%s166 + $0xa8] sm:$0xf]
      %v218 = vld [vmem:[%s166 + $0xac] sm:$0xf]
      %v219 = vld [vmem:[%s166 + $0xb0] sm:$0xf]
      %v220 = vld [vmem:[%s166 + $0xb4] sm:$0xf]
      %v221 = vld [vmem:[%s166 + $0xb8] sm:$0xf]
      %v222 = vld [vmem:[%s166 + $0xbc] sm:$0xf]
      %v223 = vld [vmem:[%s166 + $0xc0] sm:$0xf]
      %v224 = vld [vmem:[%s166 + $0xc4] sm:$0xf]
      %v225 = vld [vmem:[%s166 + $0xc8] sm:$0xf]
      %v226 = vld [vmem:[%s166 + $0xcc] sm:$0xf]
      %v227 = vld [vmem:[%s166 + $0xd0] sm:$0xf]
      %v228 = vld [vmem:[%s166 + $0xd4] sm:$0xf]
      %v229 = vld [vmem:[%s166 + $0xd8] sm:$0xf]
      %v230 = vld [vmem:[%s166 + $0xdc] sm:$0xf]
      %v231 = vld [vmem:[%s166 + $0xe0] sm:$0xf]
      %v232 = vld [vmem:[%s166 + $0xe4] sm:$0xf]
      %v233 = vld [vmem:[%s166 + $0xe8] sm:$0xf]
      %v234 = vld [vmem:[%s166 + $0xec] sm:$0xf]
      %v235 = vld [vmem:[%s166 + $0xf0] sm:$0xf]
      %v236 = vld [vmem:[%s166 + $0xf4] sm:$0xf]
      %v237 = vld [vmem:[%s166 + $0xf8] sm:$0xf]
      %v238 = vld [vmem:[%s166 + $0xfc] sm:$0xf]
      %v239 = vld [vmem:[%s1] sm:$0xf]
      %v240 = vld [vmem:[%s1 + $0x4] sm:$0xf]
      %v241 = vld [vmem:[%s1 + $0x8] sm:$0xf]
      %v242 = vld [vmem:[%s1 + $0xc] sm:$0x3]
      %v243 = vld [vmem:[%s2] sm:$0x1]
      %v245 = vlaneseq
      %v246 = vshrl.u32 %v245, 7
      %v247 = vsub.s32 0, %v246
      %v248 = vrot.slane %v243, %v247
      %v314 = vunpack.c.l.b16 %v175
      %v315 = vunpack.c.l.b16 %v176
      %v316 = vunpack.c.l.b16 %v177
      %v317 = vunpack.c.l.b16 %v178
      %v318 = vunpack.c.l.b16 %v179
      %v319 = vunpack.c.l.b16 %v180
      %v320 = vunpack.c.l.b16 %v181
      %v321 = vunpack.c.l.b16 %v182
      %v322 = vunpack.c.l.b16 %v183
      %v323 = vunpack.c.l.b16 %v184
      %v324 = vunpack.c.l.b16 %v185
      %v325 = vunpack.c.l.b16 %v186
      %v326 = vunpack.c.l.b16 %v187
      %v327 = vunpack.c.l.b16 %v188
      %v328 = vunpack.c.l.b16 %v189
      %v329 = vunpack.c.l.b16 %v190
      %v330 = vunpack.c.l.b16 %v191
      %v331 = vunpack.c.l.b16 %v192
      %v332 = vunpack.c.l.b16 %v193
      %v333 = vunpack.c.l.b16 %v194
      %v334 = vunpack.c.l.b16 %v195
      %v335 = vunpack.c.l.b16 %v196
      %v336 = vunpack.c.l.b16 %v197
      %v337 = vunpack.c.l.b16 %v198
      %v338 = vunpack.c.l.b16 %v199
      %v339 = vunpack.c.l.b16 %v200
      %v340 = vunpack.c.l.b16 %v201
      %v341 = vunpack.c.l.b16 %v202
      %v342 = vunpack.c.l.b16 %v203
      %v343 = vunpack.c.l.b16 %v204
      %v344 = vunpack.c.l.b16 %v205
      %v345 = vunpack.c.l.b16 %v206
      %v346 = vunpack.c.l.b16 %v207
      %v347 = vunpack.c.l.b16 %v208
      %v348 = vunpack.c.l.b16 %v209
      %v349 = vunpack.c.l.b16 %v210
      %v350 = vunpack.c.l.b16 %v211
      %v351 = vunpack.c.l.b16 %v212
      %v352 = vunpack.c.l.b16 %v213
      %v353 = vunpack.c.l.b16 %v214
      %v354 = vunpack.c.l.b16 %v215
      %v355 = vunpack.c.l.b16 %v216
      %v356 = vunpack.c.l.b16 %v217
      %v357 = vunpack.c.l.b16 %v218
      %v358 = vunpack.c.l.b16 %v219
      %v359 = vunpack.c.l.b16 %v220
      %v360 = vunpack.c.l.b16 %v221
      %v361 = vunpack.c.l.b16 %v222
      %v362 = vunpack.c.l.b16 %v223
      %v363 = vunpack.c.l.b16 %v224
      %v364 = vunpack.c.l.b16 %v225
      %v365 = vunpack.c.l.b16 %v226
      %v366 = vunpack.c.l.b16 %v227
      %v367 = vunpack.c.l.b16 %v228
      %v368 = vunpack.c.l.b16 %v229
      %v369 = vunpack.c.l.b16 %v230
      %v370 = vunpack.c.l.b16 %v231
      %v371 = vunpack.c.l.b16 %v232
      %v372 = vunpack.c.l.b16 %v233
      %v373 = vunpack.c.l.b16 %v234
      %v374 = vunpack.c.l.b16 %v235
      %v375 = vunpack.c.l.b16 %v236
      %v376 = vunpack.c.l.b16 %v237
      %v377 = vunpack.c.l.b16 %v238
      %v378 = vpack.c.b16 %v315, %v314
      %v379 = vpack.c.b16 %v317, %v316
      %v380 = vpack.c.b16 %v319, %v318
      %v381 = vpack.c.b16 %v321, %v320
      %v382 = vpack.c.b16 %v323, %v322
      %v383 = vpack.c.b16 %v325, %v324
      %v384 = vpack.c.b16 %v327, %v326
      %v385 = vpack.c.b16 %v329, %v328
      %v386 = vpack.c.b16 %v331, %v330
      %v387 = vpack.c.b16 %v333, %v332
      %v388 = vpack.c.b16 %v335, %v334
      %v389 = vpack.c.b16 %v337, %v336
      %v390 = vpack.c.b16 %v339, %v338
      %v391 = vpack.c.b16 %v341, %v340
      %v392 = vpack.c.b16 %v343, %v342
      %v393 = vpack.c.b16 %v345, %v344
      %v394 = vpack.c.b16 %v347, %v346
      %v395 = vpack.c.b16 %v349, %v348
      %v396 = vpack.c.b16 %v351, %v350
      %v397 = vpack.c.b16 %v353, %v352
      %v398 = vpack.c.b16 %v355, %v354
      %v399 = vpack.c.b16 %v357, %v356
      %v400 = vpack.c.b16 %v359, %v358
      %v401 = vpack.c.b16 %v361, %v360
      %v402 = vpack.c.b16 %v363, %v362
      %v403 = vpack.c.b16 %v365, %v364
      %v404 = vpack.c.b16 %v367, %v366
      %v405 = vpack.c.b16 %v369, %v368
      %v406 = vpack.c.b16 %v371, %v370
      %v407 = vpack.c.b16 %v373, %v372
      %v408 = vpack.c.b16 %v375, %v374
      %v409 = vpack.c.b16 %v377, %v376
      %v414 = vunpack.c.l.b16 %v239
      %v415 = vunpack.c.l.b16 %v240
      %v416 = vunpack.c.l.b16 %v241
      %v417 = vunpack.c.l.b16 %v242
      %v418 = vpack.c.b16 %v415, %v414
      %v419 = vpack.c.b16 %v417, %v416
      %vm421 = vcmask 220160
      %v423 = vsel %vm421, %v378, 0
      %v426 = vsel %vm421, %v379, 0
      %v429 = vsel %vm421, %v380, 0
      %v432 = vsel %vm421, %v381, 0
      %v435 = vsel %vm421, %v382, 0
      %v438 = vsel %vm421, %v383, 0
      %v441 = vsel %vm421, %v384, 0
      %v444 = vsel %vm421, %v385, 0
      %v447 = vsel %vm421, %v386, 0
      %v450 = vsel %vm421, %v387, 0
      %v453 = vsel %vm421, %v388, 0
      %v456 = vsel %vm421, %v389, 0
      %v459 = vsel %vm421, %v390, 0
      %v462 = vsel %vm421, %v391, 0
      %v465 = vsel %vm421, %v392, 0
      %v468 = vsel %vm421, %v393, 0
      %v471 = vsel %vm421, %v394, 0
      %v474 = vsel %vm421, %v395, 0
      %v477 = vsel %vm421, %v396, 0
      %v480 = vsel %vm421, %v397, 0
      %v483 = vsel %vm421, %v398, 0
      %v486 = vsel %vm421, %v399, 0
      %v489 = vsel %vm421, %v400, 0
      %v492 = vsel %vm421, %v401, 0
      %v495 = vsel %vm421, %v402, 0
      %v498 = vsel %vm421, %v403, 0
      %v501 = vsel %vm421, %v404, 0
      %v504 = vsel %vm421, %v405, 0
      %v507 = vsel %vm421, %v406, 0
      %v510 = vsel %vm421, %v407, 0
      %v513 = vsel %vm421, %v408, 0
      %v516 = vsel %vm421, %v409, 0
      %vm518 = vcmask 1044480
      %vm519 = vcmask 1045504
      %v520 = vsel %vm518, 4294967295, 65535
      %v521 = vsel %vm519, %v520, 0
      %v523 = vand.u32 %v419, %v521
      %525 = vmatprep.subr.bf16.mxu0 0
      %526 = vmatpush1.bf16.msra.mxu0 0
      %527 = vmatprep.subr.bf16.mxu0 0
      %528 = vmatpush1.bf16.msra.mxu0 0
      %529 = vmatprep.subr.bf16.mxu0 0
      %530 = vmatpush1.bf16.msra.mxu0 0
      %531 = vmatprep.subr.bf16.mxu0 0
      %532 = vmatpush1.bf16.msra.mxu0 0
      %533 = vmatprep.subr.bf16.mxu0 0
      %534 = vmatpush1.bf16.msra.mxu0 0
      %535 = vmatprep.subr.bf16.mxu0 0
      %536 = vmatpush1.bf16.msra.mxu0 0
      %537 = vmatprep.subr.bf16.mxu0 0
      %538 = vmatpush1.bf16.msra.mxu0 %v523
      %539 = vmatprep.subr.bf16.mxu0 0
      %540 = vmatpush1.bf16.msra.mxu0 %v418
      %541 = vmatprep.subr.bf16.mxu0 0
      %542 = vmatpush2.bf16.msra.mxu0 0
      %543 = vmatprep.subr.bf16.mxu0 0
      %544 = vmatpush2.bf16.msra.mxu0 0
      %545 = vmatprep.subr.bf16.mxu0 0
      %546 = vmatpush2.bf16.msra.mxu0 0
      %547 = vmatprep.subr.bf16.mxu0 0
      %548 = vmatpush2.bf16.msra.mxu0 0
      %549 = vmatprep.subr.bf16.mxu0 0
      %550 = vmatpush2.bf16.msra.mxu0 0
      %551 = vmatprep.subr.bf16.mxu0 0
      %552 = vmatpush2.bf16.msra.mxu0 0
      %553 = vmatprep.subr.bf16.mxu0 0
      %554 = vmatpush2.bf16.msra.mxu0 0
      %555 = vmatprep.subr.bf16.mxu0 0
      %556 = vmatpush2.bf16.msra.mxu0 0
      %557 = vmatprep.mubr.bf16.mxu0 0
      %558 = vmatmul.mubr.bf16.gmra.mxu0 %v423
      %v559 = vpop.f32.mrf.mxu0
      %v560 = vadd.f32 %v248, %v559
      %v561 = vpop.f32.mrf.mxu0
      %v562 = vpop.f32.mrf.mxu0
      %v563 = vadd.f32 %v248, %v562
      %v564 = vpop.f32.mrf.mxu0
      %565 = vmatprep.mubr.bf16.mxu0 0
      %566 = vmatmul.mubr.bf16.gmra.mxu0 %v426
      %v567 = vpop.f32.mrf.mxu0
      %v568 = vadd.f32 %v248, %v567
      %v569 = vpop.f32.mrf.mxu0
      %v570 = vpop.f32.mrf.mxu0
      %v571 = vadd.f32 %v248, %v570
      %v572 = vpop.f32.mrf.mxu0
      %573 = vmatprep.mubr.bf16.mxu0 0
      %574 = vmatmul.mubr.bf16.gmra.mxu0 %v429
      %v575 = vpop.f32.mrf.mxu0
      %v576 = vadd.f32 %v248, %v575
      %v577 = vpop.f32.mrf.mxu0
      %v578 = vpop.f32.mrf.mxu0
      %v579 = vadd.f32 %v248, %v578
      %v580 = vpop.f32.mrf.mxu0
      %581 = vmatprep.mubr.bf16.mxu0 0
      %582 = vmatmul.mubr.bf16.gmra.mxu0 %v432
      %v583 = vpop.f32.mrf.mxu0
      %v584 = vadd.f32 %v248, %v583
      %v585 = vpop.f32.mrf.mxu0
      %v586 = vpop.f32.mrf.mxu0
      %v587 = vadd.f32 %v248, %v586
      %v588 = vpop.f32.mrf.mxu0
      %589 = vmatprep.mubr.bf16.mxu0 0
      %590 = vmatmul.mubr.bf16.gmra.mxu0 %v435
      %v591 = vpop.f32.mrf.mxu0
      %v592 = vadd.f32 %v248, %v591
      %v593 = vpop.f32.mrf.mxu0
      %v594 = vpop.f32.mrf.mxu0
      %v595 = vadd.f32 %v248, %v594
      %v596 = vpop.f32.mrf.mxu0
      %597 = vmatprep.mubr.bf16.mxu0 0
      %598 = vmatmul.mubr.bf16.gmra.mxu0 %v438
      %v599 = vpop.f32.mrf.mxu0
      %v600 = vadd.f32 %v248, %v599
      %v601 = vpop.f32.mrf.mxu0
      %v602 = vpop.f32.mrf.mxu0
      %v603 = vadd.f32 %v248, %v602
      %v604 = vpop.f32.mrf.mxu0
      %605 = vmatprep.mubr.bf16.mxu0 0
      %606 = vmatmul.mubr.bf16.gmra.mxu0 %v441
      %v607 = vpop.f32.mrf.mxu0
      %v608 = vadd.f32 %v248, %v607
      %v609 = vpop.f32.mrf.mxu0
      %v610 = vpop.f32.mrf.mxu0
      %v611 = vadd.f32 %v248, %v610
      %v612 = vpop.f32.mrf.mxu0
      %613 = vmatprep.mubr.bf16.mxu0 0
      %614 = vmatmul.mubr.bf16.gmra.mxu0 %v444
      %v615 = vpop.f32.mrf.mxu0
      %v616 = vadd.f32 %v248, %v615
      %v617 = vpop.f32.mrf.mxu0
      %v618 = vpop.f32.mrf.mxu0
      %v619 = vadd.f32 %v248, %v618
      %v620 = vpop.f32.mrf.mxu0
      %621 = vmatprep.mubr.bf16.mxu0 0
      %622 = vmatmul.mubr.bf16.gmra.mxu0 %v447
      %v623 = vpop.f32.mrf.mxu0
      %v624 = vadd.f32 %v248, %v623
      %v625 = vpop.f32.mrf.mxu0
      %v626 = vpop.f32.mrf.mxu0
      %v627 = vadd.f32 %v248, %v626
      %v628 = vpop.f32.mrf.mxu0
      %629 = vmatprep.mubr.bf16.mxu0 0
      %630 = vmatmul.mubr.bf16.gmra.mxu0 %v450
      %v631 = vpop.f32.mrf.mxu0
      %v632 = vadd.f32 %v248, %v631
      %v633 = vpop.f32.mrf.mxu0
      %v634 = vpop.f32.mrf.mxu0
      %v635 = vadd.f32 %v248, %v634
      %v636 = vpop.f32.mrf.mxu0
      %637 = vmatprep.mubr.bf16.mxu0 0
      %638 = vmatmul.mubr.bf16.gmra.mxu0 %v453
      %v639 = vpop.f32.mrf.mxu0
      %v640 = vadd.f32 %v248, %v639
      %v641 = vpop.f32.mrf.mxu0
      %v642 = vpop.f32.mrf.mxu0
      %v643 = vadd.f32 %v248, %v642
      %v644 = vpop.f32.mrf.mxu0
      %645 = vmatprep.mubr.bf16.mxu0 0
      %646 = vmatmul.mubr.bf16.gmra.mxu0 %v456
      %v647 = vpop.f32.mrf.mxu0
      %v648 = vadd.f32 %v248, %v647
      %v649 = vpop.f32.mrf.mxu0
      %v650 = vpop.f32.mrf.mxu0
      %v651 = vadd.f32 %v248, %v650
      %v652 = vpop.f32.mrf.mxu0
      %653 = vmatprep.mubr.bf16.mxu0 0
      %654 = vmatmul.mubr.bf16.gmra.mxu0 %v459
      %v655 = vpop.f32.mrf.mxu0
      %v656 = vadd.f32 %v248, %v655
      %v657 = vpop.f32.mrf.mxu0
      %v658 = vpop.f32.mrf.mxu0
      %v659 = vadd.f32 %v248, %v658
      %v660 = vpop.f32.mrf.mxu0
      %661 = vmatprep.mubr.bf16.mxu0 0
      %662 = vmatmul.mubr.bf16.gmra.mxu0 %v462
      %v663 = vpop.f32.mrf.mxu0
      %v664 = vadd.f32 %v248, %v663
      %v665 = vpop.f32.mrf.mxu0
      %v666 = vpop.f32.mrf.mxu0
      %v667 = vadd.f32 %v248, %v666
      %v668 = vpop.f32.mrf.mxu0
      %669 = vmatprep.mubr.bf16.mxu0 0
      %670 = vmatmul.mubr.bf16.gmra.mxu0 %v465
      %v671 = vpop.f32.mrf.mxu0
      %v672 = vadd.f32 %v248, %v671
      %v673 = vpop.f32.mrf.mxu0
      %v674 = vpop.f32.mrf.mxu0
      %v675 = vadd.f32 %v248, %v674
      %v676 = vpop.f32.mrf.mxu0
      %677 = vmatprep.mubr.bf16.mxu0 0
      %678 = vmatmul.mubr.bf16.gmra.mxu0 %v468
      %v679 = vpop.f32.mrf.mxu0
      %v680 = vadd.f32 %v248, %v679
      %v681 = vpop.f32.mrf.mxu0
      %v682 = vpop.f32.mrf.mxu0
      %v683 = vadd.f32 %v248, %v682
      %v684 = vpop.f32.mrf.mxu0
      %685 = vmatprep.mubr.bf16.mxu0 0
      %686 = vmatmul.mubr.bf16.gmra.mxu0 %v471
      %v687 = vpop.f32.mrf.mxu0
      %v688 = vadd.f32 %v248, %v687
      %v689 = vpop.f32.mrf.mxu0
      %v690 = vpop.f32.mrf.mxu0
      %v691 = vadd.f32 %v248, %v690
      %v692 = vpop.f32.mrf.mxu0
      %693 = vmatprep.mubr.bf16.mxu0 0
      %694 = vmatmul.mubr.bf16.gmra.mxu0 %v474
      %v695 = vpop.f32.mrf.mxu0
      %v696 = vadd.f32 %v248, %v695
      %v697 = vpop.f32.mrf.mxu0
      %v698 = vpop.f32.mrf.mxu0
      %v699 = vadd.f32 %v248, %v698
      %v700 = vpop.f32.mrf.mxu0
      %701 = vmatprep.mubr.bf16.mxu0 0
      %702 = vmatmul.mubr.bf16.gmra.mxu0 %v477
      %v703 = vpop.f32.mrf.mxu0
      %v704 = vadd.f32 %v248, %v703
      %v705 = vpop.f32.mrf.mxu0
      %v706 = vpop.f32.mrf.mxu0
      %v707 = vadd.f32 %v248, %v706
      %v708 = vpop.f32.mrf.mxu0
      %709 = vmatprep.mubr.bf16.mxu0 0
      %710 = vmatmul.mubr.bf16.gmra.mxu0 %v480
      %v711 = vpop.f32.mrf.mxu0
      %v712 = vadd.f32 %v248, %v711
      %v713 = vpop.f32.mrf.mxu0
      %v714 = vpop.f32.mrf.mxu0
      %v715 = vadd.f32 %v248, %v714
      %v716 = vpop.f32.mrf.mxu0
      %717 = vmatprep.mubr.bf16.mxu0 0
      %718 = vmatmul.mubr.bf16.gmra.mxu0 %v483
      %v719 = vpop.f32.mrf.mxu0
      %v720 = vadd.f32 %v248, %v719
      %v721 = vpop.f32.mrf.mxu0
      %v722 = vpop.f32.mrf.mxu0
      %v723 = vadd.f32 %v248, %v722
      %v724 = vpop.f32.mrf.mxu0
      %725 = vmatprep.mubr.bf16.mxu0 0
      %726 = vmatmul.mubr.bf16.gmra.mxu0 %v486
      %v727 = vpop.f32.mrf.mxu0
      %v728 = vadd.f32 %v248, %v727
      %v729 = vpop.f32.mrf.mxu0
      %v730 = vpop.f32.mrf.mxu0
      %v731 = vadd.f32 %v248, %v730
      %v732 = vpop.f32.mrf.mxu0
      %733 = vmatprep.mubr.bf16.mxu0 0
      %734 = vmatmul.mubr.bf16.gmra.mxu0 %v489
      %v735 = vpop.f32.mrf.mxu0
      %v736 = vadd.f32 %v248, %v735
      %v737 = vpop.f32.mrf.mxu0
      %v738 = vpop.f32.mrf.mxu0
      %v739 = vadd.f32 %v248, %v738
      %v740 = vpop.f32.mrf.mxu0
      %741 = vmatprep.mubr.bf16.mxu0 0
      %742 = vmatmul.mubr.bf16.gmra.mxu0 %v492
      %v743 = vpop.f32.mrf.mxu0
      %v744 = vadd.f32 %v248, %v743
      %v745 = vpop.f32.mrf.mxu0
      %v746 = vpop.f32.mrf.mxu0
      %v747 = vadd.f32 %v248, %v746
      %v748 = vpop.f32.mrf.mxu0
      %749 = vmatprep.mubr.bf16.mxu0 0
      %750 = vmatmul.mubr.bf16.gmra.mxu0 %v495
      %v751 = vpop.f32.mrf.mxu0
      %v752 = vadd.f32 %v248, %v751
      %v753 = vpop.f32.mrf.mxu0
      %v754 = vpop.f32.mrf.mxu0
      %v755 = vadd.f32 %v248, %v754
      %v756 = vpop.f32.mrf.mxu0
      %757 = vmatprep.mubr.bf16.mxu0 0
      %758 = vmatmul.mubr.bf16.gmra.mxu0 %v498
      %v759 = vpop.f32.mrf.mxu0
      %v760 = vadd.f32 %v248, %v759
      %v761 = vpop.f32.mrf.mxu0
      %v762 = vpop.f32.mrf.mxu0
      %v763 = vadd.f32 %v248, %v762
      %v764 = vpop.f32.mrf.mxu0
      %765 = vmatprep.mubr.bf16.mxu0 0
      %766 = vmatmul.mubr.bf16.gmra.mxu0 %v501
      %v767 = vpop.f32.mrf.mxu0
      %v768 = vadd.f32 %v248, %v767
      %v769 = vpop.f32.mrf.mxu0
      %v770 = vpop.f32.mrf.mxu0
      %v771 = vadd.f32 %v248, %v770
      %v772 = vpop.f32.mrf.mxu0
      %773 = vmatprep.mubr.bf16.mxu0 0
      %774 = vmatmul.mubr.bf16.gmra.mxu0 %v504
      %v775 = vpop.f32.mrf.mxu0
      %v776 = vadd.f32 %v248, %v775
      %v777 = vpop.f32.mrf.mxu0
      %v778 = vpop.f32.mrf.mxu0
      %v779 = vadd.f32 %v248, %v778
      %v780 = vpop.f32.mrf.mxu0
      %781 = vmatprep.mubr.bf16.mxu0 0
      %782 = vmatmul.mubr.bf16.gmra.mxu0 %v507
      %v783 = vpop.f32.mrf.mxu0
      %v784 = vadd.f32 %v248, %v783
      %v785 = vpop.f32.mrf.mxu0
      %v786 = vpop.f32.mrf.mxu0
      %v787 = vadd.f32 %v248, %v786
      %v788 = vpop.f32.mrf.mxu0
      %789 = vmatprep.mubr.bf16.mxu0 0
      %790 = vmatmul.mubr.bf16.gmra.mxu0 %v510
      %v791 = vpop.f32.mrf.mxu0
      %v792 = vadd.f32 %v248, %v791
      %v793 = vpop.f32.mrf.mxu0
      %v794 = vpop.f32.mrf.mxu0
      %v795 = vadd.f32 %v248, %v794
      %v796 = vpop.f32.mrf.mxu0
      %797 = vmatprep.mubr.bf16.mxu0 0
      %798 = vmatmul.mubr.bf16.gmra.mxu0 %v513
      %v799 = vpop.f32.mrf.mxu0
      %v800 = vadd.f32 %v248, %v799
      %v801 = vpop.f32.mrf.mxu0
      %v802 = vpop.f32.mrf.mxu0
      %v803 = vadd.f32 %v248, %v802
      %v804 = vpop.f32.mrf.mxu0
      %805 = vmatprep.mubr.bf16.mxu0 0
      %806 = vmatmul.mubr.bf16.gmra.mxu0 %v516
      %v807 = vpop.f32.mrf.mxu0
      %v808 = vadd.f32 %v248, %v807
      %v809 = vpop.f32.mrf.mxu0
      %v810 = vpop.f32.mrf.mxu0
      %v811 = vadd.f32 %v248, %v810
      %v812 = vpop.f32.mrf.mxu0
      %813 = vdwg.mxu0
      %v814 = vmax.f32 %v560, 0.0
      %v815 = vmax.f32 %v563, 0.0
      %v816 = vmax.f32 %v568, 0.0
      %v817 = vmax.f32 %v571, 0.0
      %v818 = vmax.f32 %v576, 0.0
      %v819 = vmax.f32 %v579, 0.0
      %v820 = vmax.f32 %v584, 0.0
      %v821 = vmax.f32 %v587, 0.0
      %v822 = vmax.f32 %v592, 0.0
      %v823 = vmax.f32 %v595, 0.0
      %v824 = vmax.f32 %v600, 0.0
      %v825 = vmax.f32 %v603, 0.0
      %v826 = vmax.f32 %v608, 0.0
      %v827 = vmax.f32 %v611, 0.0
      %v828 = vmax.f32 %v616, 0.0
      %v829 = vmax.f32 %v619, 0.0
      %v830 = vmax.f32 %v624, 0.0
      %v831 = vmax.f32 %v627, 0.0
      %v832 = vmax.f32 %v632, 0.0
      %v833 = vmax.f32 %v635, 0.0
      %v834 = vmax.f32 %v640, 0.0
      %v835 = vmax.f32 %v643, 0.0
      %v836 = vmax.f32 %v648, 0.0
      %v837 = vmax.f32 %v651, 0.0
      %v838 = vmax.f32 %v656, 0.0
      %v839 = vmax.f32 %v659, 0.0
      %v840 = vmax.f32 %v664, 0.0
      %v841 = vmax.f32 %v667, 0.0
      %v842 = vmax.f32 %v672, 0.0
      %v843 = vmax.f32 %v675, 0.0
      %v844 = vmax.f32 %v680, 0.0
      %v845 = vmax.f32 %v683, 0.0
      %v846 = vmax.f32 %v688, 0.0
      %v847 = vmax.f32 %v691, 0.0
      %v848 = vmax.f32 %v696, 0.0
      %v849 = vmax.f32 %v699, 0.0
      %v850 = vmax.f32 %v704, 0.0
      %v851 = vmax.f32 %v707, 0.0
      %v852 = vmax.f32 %v712, 0.0
      %v853 = vmax.f32 %v715, 0.0
      %v854 = vmax.f32 %v720, 0.0
      %v855 = vmax.f32 %v723, 0.0
      %v856 = vmax.f32 %v728, 0.0
      %v857 = vmax.f32 %v731, 0.0
      %v858 = vmax.f32 %v736, 0.0
      %v859 = vmax.f32 %v739, 0.0
      %v860 = vmax.f32 %v744, 0.0
      %v861 = vmax.f32 %v747, 0.0
      %v862 = vmax.f32 %v752, 0.0
      %v863 = vmax.f32 %v755, 0.0
      %v864 = vmax.f32 %v760, 0.0
      %v865 = vmax.f32 %v763, 0.0
      %v866 = vmax.f32 %v768, 0.0
      %v867 = vmax.f32 %v771, 0.0
      %v868 = vmax.f32 %v776, 0.0
      %v869 = vmax.f32 %v779, 0.0
      %v870 = vmax.f32 %v784, 0.0
      %v871 = vmax.f32 %v787, 0.0
      %v872 = vmax.f32 %v792, 0.0
      %v873 = vmax.f32 %v795, 0.0
      %v874 = vmax.f32 %v800, 0.0
      %v875 = vmax.f32 %v803, 0.0
      %v876 = vmax.f32 %v808, 0.0
      %v877 = vmax.f32 %v811, 0.0
      %vm878 = vcmask 64512
      %879 = vst.msk [vmem:[%s172] sm:$0xff] %vm878, %v814
      %880 = vst.msk [vmem:[%s172 + $0x8] sm:$0xff] %vm878, %v815
      %881 = vst.msk [vmem:[%s172 + $0x10] sm:$0xff] %vm878, %v816
      %882 = vst.msk [vmem:[%s172 + $0x18] sm:$0xff] %vm878, %v817
      %883 = vst.msk [vmem:[%s172 + $0x20] sm:$0xff] %vm878, %v818
      %884 = vst.msk [vmem:[%s172 + $0x28] sm:$0xff] %vm878, %v819
      %885 = vst.msk [vmem:[%s172 + $0x30] sm:$0xff] %vm878, %v820
      %886 = vst.msk [vmem:[%s172 + $0x38] sm:$0xff] %vm878, %v821
      %887 = vst.msk [vmem:[%s172 + $0x40] sm:$0xff] %vm878, %v822
      %888 = vst.msk [vmem:[%s172 + $0x48] sm:$0xff] %vm878, %v823
      %889 = vst.msk [vmem:[%s172 + $0x50] sm:$0xff] %vm878, %v824
      %890 = vst.msk [vmem:[%s172 + $0x58] sm:$0xff] %vm878, %v825
      %891 = vst.msk [vmem:[%s172 + $0x60] sm:$0xff] %vm878, %v826
      %892 = vst.msk [vmem:[%s172 + $0x68] sm:$0xff] %vm878, %v827
      %893 = vst.msk [vmem:[%s172 + $0x70] sm:$0xff] %vm878, %v828
      %894 = vst.msk [vmem:[%s172 + $0x78] sm:$0xff] %vm878, %v829
      %895 = vst.msk [vmem:[%s172 + $0x80] sm:$0xff] %vm878, %v830
      %896 = vst.msk [vmem:[%s172 + $0x88] sm:$0xff] %vm878, %v831
      %897 = vst.msk [vmem:[%s172 + $0x90] sm:$0xff] %vm878, %v832
      %898 = vst.msk [vmem:[%s172 + $0x98] sm:$0xff] %vm878, %v833
      %899 = vst.msk [vmem:[%s172 + $0xa0] sm:$0xff] %vm878, %v834
      %900 = vst.msk [vmem:[%s172 + $0xa8] sm:$0xff] %vm878, %v835
      %901 = vst.msk [vmem:[%s172 + $0xb0] sm:$0xff] %vm878, %v836
      %902 = vst.msk [vmem:[%s172 + $0xb8] sm:$0xff] %vm878, %v837
      %903 = vst.msk [vmem:[%s172 + $0xc0] sm:$0xff] %vm878, %v838
      %904 = vst.msk [vmem:[%s172 + $0xc8] sm:$0xff] %vm878, %v839
      %905 = vst.msk [vmem:[%s172 + $0xd0] sm:$0xff] %vm878, %v840
      %906 = vst.msk [vmem:[%s172 + $0xd8] sm:$0xff] %vm878, %v841
      %907 = vst.msk [vmem:[%s172 + $0xe0] sm:$0xff] %vm878, %v842
      %908 = vst.msk [vmem:[%s172 + $0xe8] sm:$0xff] %vm878, %v843
      %909 = vst.msk [vmem:[%s172 + $0xf0] sm:$0xff] %vm878, %v844
      %910 = vst.msk [vmem:[%s172 + $0xf8] sm:$0xff] %vm878, %v845
      %911 = vst.msk [vmem:[%s172 + $0x100] sm:$0xff] %vm878, %v846
      %912 = vst.msk [vmem:[%s172 + $0x108] sm:$0xff] %vm878, %v847
      %913 = vst.msk [vmem:[%s172 + $0x110] sm:$0xff] %vm878, %v848
      %914 = vst.msk [vmem:[%s172 + $0x118] sm:$0xff] %vm878, %v849
      %915 = vst.msk [vmem:[%s172 + $0x120] sm:$0xff] %vm878, %v850
      %916 = vst.msk [vmem:[%s172 + $0x128] sm:$0xff] %vm878, %v851
      %917 = vst.msk [vmem:[%s172 + $0x130] sm:$0xff] %vm878, %v852
      %918 = vst.msk [vmem:[%s172 + $0x138] sm:$0xff] %vm878, %v853
      %919 = vst.msk [vmem:[%s172 + $0x140] sm:$0xff] %vm878, %v854
      %920 = vst.msk [vmem:[%s172 + $0x148] sm:$0xff] %vm878, %v855
      %921 = vst.msk [vmem:[%s172 + $0x150] sm:$0xff] %vm878, %v856
      %922 = vst.msk [vmem:[%s172 + $0x158] sm:$0xff] %vm878, %v857
      %923 = vst.msk [vmem:[%s172 + $0x160] sm:$0xff] %vm878, %v858
      %924 = vst.msk [vmem:[%s172 + $0x168] sm:$0xff] %vm878, %v859
      %925 = vst.msk [vmem:[%s172 + $0x170] sm:$0xff] %vm878, %v860
      %926 = vst.msk [vmem:[%s172 + $0x178] sm:$0xff] %vm878, %v861
      %927 = vst.msk [vmem:[%s172 + $0x180] sm:$0xff] %vm878, %v862
      %928 = vst.msk [vmem:[%s172 + $0x188] sm:$0xff] %vm878, %v863
      %929 = vst.msk [vmem:[%s172 + $0x190] sm:$0xff] %vm878, %v864
      %930 = vst.msk [vmem:[%s172 + $0x198] sm:$0xff] %vm878, %v865
      %931 = vst.msk [vmem:[%s172 + $0x1a0] sm:$0xff] %vm878, %v866
      %932 = vst.msk [vmem:[%s172 + $0x1a8] sm:$0xff] %vm878, %v867
      %933 = vst.msk [vmem:[%s172 + $0x1b0] sm:$0xff] %vm878, %v868
      %934 = vst.msk [vmem:[%s172 + $0x1b8] sm:$0xff] %vm878, %v869
      %935 = vst.msk [vmem:[%s172 + $0x1c0] sm:$0xff] %vm878, %v870
      %936 = vst.msk [vmem:[%s172 + $0x1c8] sm:$0xff] %vm878, %v871
      %937 = vst.msk [vmem:[%s172 + $0x1d0] sm:$0xff] %vm878, %v872
      %938 = vst.msk [vmem:[%s172 + $0x1d8] sm:$0xff] %vm878, %v873
      %939 = vst.msk [vmem:[%s172 + $0x1e0] sm:$0xff] %vm878, %v874
      %940 = vst.msk [vmem:[%s172 + $0x1e8] sm:$0xff] %vm878, %v875
      %941 = vst.msk [vmem:[%s172 + $0x1f0] sm:$0xff] %vm878, %v876
      %942 = vst.msk [vmem:[%s172 + $0x1f8] sm:$0xff] %vm878, %v877
      %s943 = smul.u32 64, %s14
      %p944 = scmp.lt.s32.totalorder %s943, 319
      %s945 = scalar_select %p944, %s943, 319
      %s946 = smul.addr %s945, 8
      %s947 = scalar_lea.vmem %s3, %s946
      // Predicated region
      $region33: #{contrast_loss.10} parent=31 // pred_check
        %p948 = pneg %p100
      $region34: #{contrast_loss.10} parent=31 // pred_check_branch
        %950 = sbr.rel (%p948) target = $region36
      $region35: #{contrast_loss.10} parent=31 // pred_region
        %s951 = smul.u32 64, %s14
      $region36: #{contrast_loss.10} parent=31 // pred_fallthru
        _
    $region32: #{contrast_loss.10} parent=5 // pred_fallthru
      _
    %p952 = scmp.le.s32.totalorder 2, %s9
    // Predicated region
    $region37: #{contrast_loss.10} parent=5 // pred_check
      %p953 = pneg %p952
    $region38: #{contrast_loss.10} parent=5 // pred_check_branch
      %955 = sbr.rel (%p953) target = $region40
    $region39: #{contrast_loss.10} parent=5 // pred_region
      %s956 = ssub.s32 %s9, 2
      // Predicated region
      $region41: #{contrast_loss.10} parent=39 // pred_check
        %p957 = pneg %p106
      $region42: #{contrast_loss.10} parent=39 // pred_check_branch
        %959 = sbr.rel (%p957) target = $region44
      $region43: #{contrast_loss.10} parent=39 // pred_region
        %s960 = smul.u32 64, %s15
        %p961 = scmp.lt.s32.totalorder %s960, 319
        %s962 = scalar_select %p961, %s960, 319
        %s963 = smul.addr %s962, 8
        %s964 = scalar_lea.vmem %s3, %s963
      $region44: #{contrast_loss.10} parent=39 // pred_fallthru
        _
    $region40: #{contrast_loss.10} parent=5 // pred_fallthru
      _
  $region6: #{contrast_loss.10} parent=0 // loop_footer
    %s13 = sadd.s32 1, %s9
  $region7: #{contrast_loss.10} parent=0 // loop_footer_branch
    %8 = sbr.rel target = $region3
  $region8: #{contrast_loss.10} parent=0 // loop_exit
    _

// kernel: contrast_loss.15
$region0: #{contrast_loss.15}
  #allocation0 [shape = 'u32[]', space=smem, size = 0x4, offset = 0x4, fixed_abs, tag = 'smem constant byte address 0x4 - core index']
  #allocation1 [shape = 'u32[144,128]{1,0:T(1,128)}', space=vmem, size = 0x12000, scoped, tag = 'internal scratch']
  %s0 = inlined_call_operand.vmem [shape: f32[512,8], index: 0, kind: input, shape index: {}]
  %s1 = inlined_call_operand.vmem [shape: f32[4,512,8], index: 1, kind: input, shape index: {}]
  %s2 = inlined_call_operand.vmem [shape: f32[4,1], index: 2, kind: output, shape index: {}]
  %s3 = sld [smem:[#allocation0]]
  $region22: #{contrast_loss.15} parent=0
    _
  %s5 = ssub.s32 1, %s3
  %s6 = scalar_select 0, %s5, %s3
  // Predicated region
  $region2: #{contrast_loss.15} parent=0 // pred_check
    _
  $region3: #{contrast_loss.15} parent=0 // pred_check_branch
    %8 = sbr.rel (0) target = $region5
  $region4: #{contrast_loss.15} parent=0 // pred_region
    _
  $region5: #{contrast_loss.15} parent=0 // pred_fallthru
    _
  // Predicated region
  $region6: #{contrast_loss.15} parent=0 // pred_check
    _
  $region7: #{contrast_loss.15} parent=0 // pred_check_branch
    %10 = sbr.rel (0) target = $region9
  $region8: #{contrast_loss.15} parent=0 // pred_region
    _
  $region9: #{contrast_loss.15} parent=0 // pred_fallthru
    _
  %p11 = scmp.eq.s32.totalorder 0, 0
  // Predicated region
  $region10: #{contrast_loss.15} parent=0 // pred_check
    %p12 = pneg %p11
  $region11: #{contrast_loss.15} parent=0 // pred_check_branch
    %14 = sbr.rel (%p12) target = $region13
  $region12: #{contrast_loss.15} parent=0 // pred_region
    %vm15 = vcmask 3072
    %16 = vst.msk [vmem:[%s2] sm:$0xf] %vm15, 0.0
  $region13: #{contrast_loss.15} parent=0 // pred_fallthru
    _
  %v17 = vld [vmem:[%s1] sm:$0xff]
  %v18 = vld [vmem:[%s1 + $0x8] sm:$0xff]
  %v19 = vld [vmem:[%s1 + $0x10] sm:$0xff]
  %v20 = vld [vmem:[%s1 + $0x18] sm:$0xff]
  %v21 = vld [vmem:[%s1 + $0x20] sm:$0xff]
  %v22 = vld [vmem:[%s1 + $0x28] sm:$0xff]
  %v23 = vld [vmem:[%s1 + $0x30] sm:$0xff]
  %v24 = vld [vmem:[%s1 + $0x38] sm:$0xff]
  %v25 = vld [vmem:[%s1 + $0x40] sm:$0xff]
  %v26 = vld [vmem:[%s1 + $0x48] sm:$0xff]
  %v27 = vld [vmem:[%s1 + $0x50] sm:$0xff]
  %v28 = vld [vmem:[%s1 + $0x58] sm:$0xff]
  %v29 = vld [vmem:[%s1 + $0x60] sm:$0xff]
  %v30 = vld [vmem:[%s1 + $0x68] sm:$0xff]
  %v31 = vld [vmem:[%s1 + $0x70] sm:$0xff]
  %v32 = vld [vmem:[%s1 + $0x78] sm:$0xff]
  %v33 = vld [vmem:[%s1 + $0x80] sm:$0xff]
  %v34 = vld [vmem:[%s1 + $0x88] sm:$0xff]
  %v35 = vld [vmem:[%s1 + $0x90] sm:$0xff]
  %v36 = vld [vmem:[%s1 + $0x98] sm:$0xff]
  %v37 = vld [vmem:[%s1 + $0xa0] sm:$0xff]
  %v38 = vld [vmem:[%s1 + $0xa8] sm:$0xff]
  %v39 = vld [vmem:[%s1 + $0xb0] sm:$0xff]
  %v40 = vld [vmem:[%s1 + $0xb8] sm:$0xff]
  %v41 = vld [vmem:[%s1 + $0xc0] sm:$0xff]
  %v42 = vld [vmem:[%s1 + $0xc8] sm:$0xff]
  %v43 = vld [vmem:[%s1 + $0xd0] sm:$0xff]
  %v44 = vld [vmem:[%s1 + $0xd8] sm:$0xff]
  %v45 = vld [vmem:[%s1 + $0xe0] sm:$0xff]
  %v46 = vld [vmem:[%s1 + $0xe8] sm:$0xff]
  %v47 = vld [vmem:[%s1 + $0xf0] sm:$0xff]
  %v48 = vld [vmem:[%s1 + $0xf8] sm:$0xff]
  %v49 = vld [vmem:[%s1 + $0x100] sm:$0xff]
  %v50 = vld [vmem:[%s1 + $0x108] sm:$0xff]
  %v51 = vld [vmem:[%s1 + $0x110] sm:$0xff]
  %v52 = vld [vmem:[%s1 + $0x118] sm:$0xff]
  %v53 = vld [vmem:[%s1 + $0x120] sm:$0xff]
  %v54 = vld [vmem:[%s1 + $0x128] sm:$0xff]
  %v55 = vld [vmem:[%s1 + $0x130] sm:$0xff]
  %v56 = vld [vmem:[%s1 + $0x138] sm:$0xff]
  %v57 = vld [vmem:[%s1 + $0x140] sm:$0xff]
  %v58 = vld [vmem:[%s1 + $0x148] sm:$0xff]
  %v59 = vld [vmem:[%s1 + $0x150] sm:$0xff]
  %v60 = vld [vmem:[%s1 + $0x158] sm:$0xff]
  %v61 = vld [vmem:[%s1 + $0x160] sm:$0xff]
  %v62 = vld [vmem:[%s1 + $0x168] sm:$0xff]
  %v63 = vld [vmem:[%s1 + $0x170] sm:$0xff]
  %v64 = vld [vmem:[%s1 + $0x178] sm:$0xff]
  %v65 = vld [vmem:[%s1 + $0x180] sm:$0xff]
  %v66 = vld [vmem:[%s1 + $0x188] sm:$0xff]
  %v67 = vld [vmem:[%s1 + $0x190] sm:$0xff]
  %v68 = vld [vmem:[%s1 + $0x198] sm:$0xff]
  %v69 = vld [vmem:[%s1 + $0x1a0] sm:$0xff]
  %v70 = vld [vmem:[%s1 + $0x1a8] sm:$0xff]
  %v71 = vld [vmem:[%s1 + $0x1b0] sm:$0xff]
  %v72 = vld [vmem:[%s1 + $0x1b8] sm:$0xff]
  %v73 = vld [vmem:[%s1 + $0x1c0] sm:$0xff]
  %v74 = vld [vmem:[%s1 + $0x1c8] sm:$0xff]
  %v75 = vld [vmem:[%s1 + $0x1d0] sm:$0xff]
  %v76 = vld [vmem:[%s1 + $0x1d8] sm:$0xff]
  %v77 = vld [vmem:[%s1 + $0x1e0] sm:$0xff]
  %v78 = vld [vmem:[%s1 + $0x1e8] sm:$0xff]
  %v79 = vld [vmem:[%s1 + $0x1f0] sm:$0xff]
  %v80 = vld [vmem:[%s1 + $0x1f8] sm:$0xff]
  %v81 = vld [vmem:[%s1 + $0x200] sm:$0xff]
  %v82 = vld [vmem:[%s1 + $0x208] sm:$0xff]
  %v83 = vld [vmem:[%s1 + $0x210] sm:$0xff]
  %v84 = vld [vmem:[%s1 + $0x218] sm:$0xff]
  %v85 = vld [vmem:[%s1 + $0x220] sm:$0xff]
  %v86 = vld [vmem:[%s1 + $0x228] sm:$0xff]
  %v87 = vld [vmem:[%s1 + $0x230] sm:$0xff]
  %v88 = vld [vmem:[%s1 + $0x238] sm:$0xff]
  %v89 = vld [vmem:[%s1 + $0x240] sm:$0xff]
  %v90 = vld [vmem:[%s1 + $0x248] sm:$0xff]
  %v91 = vld [vmem:[%s1 + $0x250] sm:$0xff]
  %v92 = vld [vmem:[%s1 + $0x258] sm:$0xff]
  %v93 = vld [vmem:[%s1 + $0x260] sm:$0xff]
  %v94 = vld [vmem:[%s1 + $0x268] sm:$0xff]
  %v95 = vld [vmem:[%s1 + $0x270] sm:$0xff]
  %v96 = vld [vmem:[%s1 + $0x278] sm:$0xff]
  %v97 = vld [vmem:[%s1 + $0x280] sm:$0xff]
  %v98 = vld [vmem:[%s1 + $0x288] sm:$0xff]
  %v99 = vld [vmem:[%s1 + $0x290] sm:$0xff]
  %v100 = vld [vmem:[%s1 + $0x298] sm:$0xff]
  %v101 = vld [vmem:[%s1 + $0x2a0] sm:$0xff]
  %v102 = vld [vmem:[%s1 + $0x2a8] sm:$0xff]
  %v103 = vld [vmem:[%s1 + $0x2b0] sm:$0xff]
  %v104 = vld [vmem:[%s1 + $0x2b8] sm:$0xff]
  %v105 = vld [vmem:[%s1 + $0x2c0] sm:$0xff]
  %v106 = vld [vmem:[%s1 + $0x2c8] sm:$0xff]
  %v107 = vld [vmem:[%s1 + $0x2d0] sm:$0xff]
  %v108 = vld [vmem:[%s1 + $0x2d8] sm:$0xff]
  %v109 = vld [vmem:[%s1 + $0x2e0] sm:$0xff]
  %v110 = vld [vmem:[%s1 + $0x2e8] sm:$0xff]
  %v111 = vld [vmem:[%s1 + $0x2f0] sm:$0xff]
  %v112 = vld [vmem:[%s1 + $0x2f8] sm:$0xff]
  %v113 = vld [vmem:[%s1 + $0x300] sm:$0xff]
  %v114 = vld [vmem:[%s1 + $0x308] sm:$0xff]
  %v115 = vld [vmem:[%s1 + $0x310] sm:$0xff]
  %v116 = vld [vmem:[%s1 + $0x318] sm:$0xff]
  %v117 = vld [vmem:[%s1 + $0x320] sm:$0xff]
  %v118 = vld [vmem:[%s1 + $0x328] sm:$0xff]
  %v119 = vld [vmem:[%s1 + $0x330] sm:$0xff]
  %v120 = vld [vmem:[%s1 + $0x338] sm:$0xff]
  %v121 = vld [vmem:[%s1 + $0x340] sm:$0xff]
  %v122 = vld [vmem:[%s1 + $0x348] sm:$0xff]
  %v123 = vld [vmem:[%s1 + $0x350] sm:$0xff]
  %v124 = vld [vmem:[%s1 + $0x358] sm:$0xff]
  %v125 = vld [vmem:[%s1 + $0x360] sm:$0xff]
  %v126 = vld [vmem:[%s1 + $0x368] sm:$0xff]
  %v127 = vld [vmem:[%s1 + $0x370] sm:$0xff]
  %v128 = vld [vmem:[%s1 + $0x378] sm:$0xff]
  %v129 = vld [vmem:[%s1 + $0x380] sm:$0xff]
  %v130 = vld [vmem:[%s1 + $0x388] sm:$0xff]
  %v131 = vld [vmem:[%s1 + $0x390] sm:$0xff]
  %v132 = vld [vmem:[%s1 + $0x398] sm:$0xff]
  %v133 = vld [vmem:[%s1 + $0x3a0] sm:$0xff]
  %v134 = vld [vmem:[%s1 + $0x3a8] sm:$0xff]
  %v135 = vld [vmem:[%s1 + $0x3b0] sm:$0xff]
  %v136 = vld [vmem:[%s1 + $0x3b8] sm:$0xff]
  %v137 = vld [vmem:[%s1 + $0x3c0] sm:$0xff]
  %v138 = vld [vmem:[%s1 + $0x3c8] sm:$0xff]
  %v139 = vld [vmem:[%s1 + $0x3d0] sm:$0xff]
  %v140 = vld [vmem:[%s1 + $0x3d8] sm:$0xff]
  %v141 = vld [vmem:[%s1 + $0x3e0] sm:$0xff]
  %v142 = vld [vmem:[%s1 + $0x3e8] sm:$0xff]
  %v143 = vld [vmem:[%s1 + $0x3f0] sm:$0xff]
  %v144 = vld [vmem:[%s1 + $0x3f8] sm:$0xff]
  %v145 = vld [vmem:[%s1 + $0x400] sm:$0xff]
  %v146 = vld [vmem:[%s1 + $0x408] sm:$0xff]
  %v147 = vld [vmem:[%s1 + $0x410] sm:$0xff]
  %v148 = vld [vmem:[%s1 + $0x418] sm:$0xff]
  %v149 = vld [vmem:[%s1 + $0x420] sm:$0xff]
  %v150 = vld [vmem:[%s1 + $0x428] sm:$0xff]
  %v151 = vld [vmem:[%s1 + $0x430] sm:$0xff]
  %v152 = vld [vmem:[%s1 + $0x438] sm:$0xff]
  %v153 = vld [vmem:[%s1 + $0x440] sm:$0xff]
  %v154 = vld [vmem:[%s1 + $0x448] sm:$0xff]
  %v155 = vld [vmem:[%s1 + $0x450] sm:$0xff]
  %v156 = vld [vmem:[%s1 + $0x458] sm:$0xff]
  %v157 = vld [vmem:[%s1 + $0x460] sm:$0xff]
  %v158 = vld [vmem:[%s1 + $0x468] sm:$0xff]
  %v159 = vld [vmem:[%s1 + $0x470] sm:$0xff]
  %v160 = vld [vmem:[%s1 + $0x478] sm:$0xff]
  %v161 = vld [vmem:[%s1 + $0x480] sm:$0xff]
  %v162 = vld [vmem:[%s1 + $0x488] sm:$0xff]
  %v163 = vld [vmem:[%s1 + $0x490] sm:$0xff]
  %v164 = vld [vmem:[%s1 + $0x498] sm:$0xff]
  %v165 = vld [vmem:[%s1 + $0x4a0] sm:$0xff]
  %v166 = vld [vmem:[%s1 + $0x4a8] sm:$0xff]
  %v167 = vld [vmem:[%s1 + $0x4b0] sm:$0xff]
  %v168 = vld [vmem:[%s1 + $0x4b8] sm:$0xff]
  %v169 = vld [vmem:[%s1 + $0x4c0] sm:$0xff]
  %v170 = vld [vmem:[%s1 + $0x4c8] sm:$0xff]
  %v171 = vld [vmem:[%s1 + $0x4d0] sm:$0xff]
  %v172 = vld [vmem:[%s1 + $0x4d8] sm:$0xff]
  %v173 = vld [vmem:[%s1 + $0x4e0] sm:$0xff]
  %v174 = vld [vmem:[%s1 + $0x4e8] sm:$0xff]
  %v175 = vld [vmem:[%s1 + $0x4f0] sm:$0xff]
  %v176 = vld [vmem:[%s1 + $0x4f8] sm:$0xff]
  %v177 = vld [vmem:[%s1 + $0x500] sm:$0xff]
  %v178 = vld [vmem:[%s1 + $0x508] sm:$0xff]
  %v179 = vld [vmem:[%s1 + $0x510] sm:$0xff]
  %v180 = vld [vmem:[%s1 + $0x518] sm:$0xff]
  %v181 = vld [vmem:[%s1 + $0x520] sm:$0xff]
  %v182 = vld [vmem:[%s1 + $0x528] sm:$0xff]
  %v183 = vld [vmem:[%s1 + $0x530] sm:$0xff]
  %v184 = vld [vmem:[%s1 + $0x538] sm:$0xff]
  %v185 = vld [vmem:[%s1 + $0x540] sm:$0xff]
  %v186 = vld [vmem:[%s1 + $0x548] sm:$0xff]
  %v187 = vld [vmem:[%s1 + $0x550] sm:$0xff]
  %v188 = vld [vmem:[%s1 + $0x558] sm:$0xff]
  %v189 = vld [vmem:[%s1 + $0x560] sm:$0xff]
  %v190 = vld [vmem:[%s1 + $0x568] sm:$0xff]
  %v191 = vld [vmem:[%s1 + $0x570] sm:$0xff]
  %v192 = vld [vmem:[%s1 + $0x578] sm:$0xff]
  %v193 = vld [vmem:[%s1 + $0x580] sm:$0xff]
  %v194 = vld [vmem:[%s1 + $0x588] sm:$0xff]
  %v195 = vld [vmem:[%s1 + $0x590] sm:$0xff]
  %v196 = vld [vmem:[%s1 + $0x598] sm:$0xff]
  %v197 = vld [vmem:[%s1 + $0x5a0] sm:$0xff]
  %v198 = vld [vmem:[%s1 + $0x5a8] sm:$0xff]
  %v199 = vld [vmem:[%s1 + $0x5b0] sm:$0xff]
  %v200 = vld [vmem:[%s1 + $0x5b8] sm:$0xff]
  %v201 = vld [vmem:[%s1 + $0x5c0] sm:$0xff]
  %v202 = vld [vmem:[%s1 + $0x5c8] sm:$0xff]
  %v203 = vld [vmem:[%s1 + $0x5d0] sm:$0xff]
  %v204 = vld [vmem:[%s1 + $0x5d8] sm:$0xff]
  %v205 = vld [vmem:[%s1 + $0x5e0] sm:$0xff]
  %v206 = vld [vmem:[%s1 + $0x5e8] sm:$0xff]
  %v207 = vld [vmem:[%s1 + $0x5f0] sm:$0xff]
  %v208 = vld [vmem:[%s1 + $0x5f8] sm:$0xff]
  %v209 = vld [vmem:[%s1 + $0x600] sm:$0xff]
  %v210 = vld [vmem:[%s1 + $0x608] sm:$0xff]
  %v211 = vld [vmem:[%s1 + $0x610] sm:$0xff]
  %v212 = vld [vmem:[%s1 + $0x618] sm:$0xff]
  %v213 = vld [vmem:[%s1 + $0x620] sm:$0xff]
  %v214 = vld [vmem:[%s1 + $0x628] sm:$0xff]
  %v215 = vld [vmem:[%s1 + $0x630] sm:$0xff]
  %v216 = vld [vmem:[%s1 + $0x638] sm:$0xff]
  %v217 = vld [vmem:[%s1 + $0x640] sm:$0xff]
  %v218 = vld [vmem:[%s1 + $0x648] sm:$0xff]
  %v219 = vld [vmem:[%s1 + $0x650] sm:$0xff]
  %v220 = vld [vmem:[%s1 + $0x658] sm:$0xff]
  %v221 = vld [vmem:[%s1 + $0x660] sm:$0xff]
  %v222 = vld [vmem:[%s1 + $0x668] sm:$0xff]
  %v223 = vld [vmem:[%s1 + $0x670] sm:$0xff]
  %v224 = vld [vmem:[%s1 + $0x678] sm:$0xff]
  %v225 = vld [vmem:[%s1 + $0x680] sm:$0xff]
  %v226 = vld [vmem:[%s1 + $0x688] sm:$0xff]
  %v227 = vld [vmem:[%s1 + $0x690] sm:$0xff]
  %v228 = vld [vmem:[%s1 + $0x698] sm:$0xff]
  %v229 = vld [vmem:[%s1 + $0x6a0] sm:$0xff]
  %v230 = vld [vmem:[%s1 + $0x6a8] sm:$0xff]
  %v231 = vld [vmem:[%s1 + $0x6b0] sm:$0xff]
  %v232 = vld [vmem:[%s1 + $0x6b8] sm:$0xff]
  %v233 = vld [vmem:[%s1 + $0x6c0] sm:$0xff]
  %v234 = vld [vmem:[%s1 + $0x6c8] sm:$0xff]
  %v235 = vld [vmem:[%s1 + $0x6d0] sm:$0xff]
  %v236 = vld [vmem:[%s1 + $0x6d8] sm:$0xff]
  %v237 = vld [vmem:[%s1 + $0x6e0] sm:$0xff]
  %v238 = vld [vmem:[%s1 + $0x6e8] sm:$0xff]
  %v239 = vld [vmem:[%s1 + $0x6f0] sm:$0xff]
  %v240 = vld [vmem:[%s1 + $0x6f8] sm:$0xff]
  %v241 = vld [vmem:[%s1 + $0x700] sm:$0xff]
  %v242 = vld [vmem:[%s1 + $0x708] sm:$0xff]
  %v243 = vld [vmem:[%s1 + $0x710] sm:$0xff]
  %v244 = vld [vmem:[%s1 + $0x718] sm:$0xff]
  %v245 = vld [vmem:[%s1 + $0x720] sm:$0xff]
  %v246 = vld [vmem:[%s1 + $0x728] sm:$0xff]
  %v247 = vld [vmem:[%s1 + $0x730] sm:$0xff]
  %v248 = vld [vmem:[%s1 + $0x738] sm:$0xff]
  %v249 = vld [vmem:[%s1 + $0x740] sm:$0xff]
  %v250 = vld [vmem:[%s1 + $0x748] sm:$0xff]
  %v251 = vld [vmem:[%s1 + $0x750] sm:$0xff]
  %v252 = vld [vmem:[%s1 + $0x758] sm:$0xff]
  %v253 = vld [vmem:[%s1 + $0x760] sm:$0xff]
  %v254 = vld [vmem:[%s1 + $0x768] sm:$0xff]
  %v255 = vld [vmem:[%s1 + $0x770] sm:$0xff]
  %v256 = vld [vmem:[%s1 + $0x778] sm:$0xff]
  %v257 = vld [vmem:[%s1 + $0x780] sm:$0xff]
  %v258 = vld [vmem:[%s1 + $0x788] sm:$0xff]
  %v259 = vld [vmem:[%s1 + $0x790] sm:$0xff]
  %v260 = vld [vmem:[%s1 + $0x798] sm:$0xff]
  %v261 = vld [vmem:[%s1 + $0x7a0] sm:$0xff]
  %v262 = vld [vmem:[%s1 + $0x7a8] sm:$0xff]
  %v263 = vld [vmem:[%s1 + $0x7b0] sm:$0xff]
  %v264 = vld [vmem:[%s1 + $0x7b8] sm:$0xff]
  %v265 = vld [vmem:[%s1 + $0x7c0] sm:$0xff]
  %v266 = vld [vmem:[%s1 + $0x7c8] sm:$0xff]
  %v267 = vld [vmem:[%s1 + $0x7d0] sm:$0xff]
  %v268 = vld [vmem:[%s1 + $0x7d8] sm:$0xff]
  %v269 = vld [vmem:[%s1 + $0x7e0] sm:$0xff]
  %v270 = vld [vmem:[%s1 + $0x7e8] sm:$0xff]
  %v271 = vld [vmem:[%s1 + $0x7f0] sm:$0xff]
  %v272 = vld [vmem:[%s1 + $0x7f8] sm:$0xff]
  %v273 = vld [vmem:[%s0] sm:$0xff]
  %v274 = vld [vmem:[%s0 + $0x8] sm:$0xff]
  %v275 = vld [vmem:[%s0 + $0x10] sm:$0xff]
  %v276 = vld [vmem:[%s0 + $0x18] sm:$0xff]
  %v277 = vld [vmem:[%s0 + $0x20] sm:$0xff]
  %v278 = vld [vmem:[%s0 + $0x28] sm:$0xff]
  %v279 = vld [vmem:[%s0 + $0x30] sm:$0xff]
  %v280 = vld [vmem:[%s0 + $0x38] sm:$0xff]
  %v281 = vld [vmem:[%s0 + $0x40] sm:$0xff]
  %v282 = vld [vmem:[%s0 + $0x48] sm:$0xff]
  %v283 = vld [vmem:[%s0 + $0x50] sm:$0xff]
  %v284 = vld [vmem:[%s0 + $0x58] sm:$0xff]
  %v285 = vld [vmem:[%s0 + $0x60] sm:$0xff]
  %v286 = vld [vmem:[%s0 + $0x68] sm:$0xff]
  %v287 = vld [vmem:[%s0 + $0x70] sm:$0xff]
  %v288 = vld [vmem:[%s0 + $0x78] sm:$0xff]
  %v289 = vld [vmem:[%s0 + $0x80] sm:$0xff]
  %v290 = vld [vmem:[%s0 + $0x88] sm:$0xff]
  %v291 = vld [vmem:[%s0 + $0x90] sm:$0xff]
  %v292 = vld [vmem:[%s0 + $0x98] sm:$0xff]
  %v293 = vld [vmem:[%s0 + $0xa0] sm:$0xff]
  %v294 = vld [vmem:[%s0 + $0xa8] sm:$0xff]
  %v295 = vld [vmem:[%s0 + $0xb0] sm:$0xff]
  %v296 = vld [vmem:[%s0 + $0xb8] sm:$0xff]
  %v297 = vld [vmem:[%s0 + $0xc0] sm:$0xff]
  %v298 = vld [vmem:[%s0 + $0xc8] sm:$0xff]
  %v299 = vld [vmem:[%s0 + $0xd0] sm:$0xff]
  %v300 = vld [vmem:[%s0 + $0xd8] sm:$0xff]
  %v301 = vld [vmem:[%s0 + $0xe0] sm:$0xff]
  %v302 = vld [vmem:[%s0 + $0xe8] sm:$0xff]
  %v303 = vld [vmem:[%s0 + $0xf0] sm:$0xff]
  %v304 = vld [vmem:[%s0 + $0xf8] sm:$0xff]
  %v305 = vld [vmem:[%s0 + $0x100] sm:$0xff]
  %v306 = vld [vmem:[%s0 + $0x108] sm:$0xff]
  %v307 = vld [vmem:[%s0 + $0x110] sm:$0xff]
  %v308 = vld [vmem:[%s0 + $0x118] sm:$0xff]
  %v309 = vld [vmem:[%s0 + $0x120] sm:$0xff]
  %v310 = vld [vmem:[%s0 + $0x128] sm:$0xff]
  %v311 = vld [vmem:[%s0 + $0x130] sm:$0xff]
  %v312 = vld [vmem:[%s0 + $0x138] sm:$0xff]
  %v313 = vld [vmem:[%s0 + $0x140] sm:$0xff]
  %v314 = vld [vmem:[%s0 + $0x148] sm:$0xff]
  %v315 = vld [vmem:[%s0 + $0x150] sm:$0xff]
  %v316 = vld [vmem:[%s0 + $0x158] sm:$0xff]
  %v317 = vld [vmem:[%s0 + $0x160] sm:$0xff]
  %v318 = vld [vmem:[%s0 + $0x168] sm:$0xff]
  %v319 = vld [vmem:[%s0 + $0x170] sm:$0xff]
  %v320 = vld [vmem:[%s0 + $0x178] sm:$0xff]
  %v321 = vld [vmem:[%s0 + $0x180] sm:$0xff]
  %v322 = vld [vmem:[%s0 + $0x188] sm:$0xff]
  %v323 = vld [vmem:[%s0 + $0x190] sm:$0xff]
  %v324 = vld [vmem:[%s0 + $0x198] sm:$0xff]
  %v325 = vld [vmem:[%s0 + $0x1a0] sm:$0xff]
  %v326 = vld [vmem:[%s0 + $0x1a8] sm:$0xff]
  %v327 = vld [vmem:[%s0 + $0x1b0] sm:$0xff]
  %v328 = vld [vmem:[%s0 + $0x1b8] sm:$0xff]
  %v329 = vld [vmem:[%s0 + $0x1c0] sm:$0xff]
  %v330 = vld [vmem:[%s0 + $0x1c8] sm:$0xff]
  %v331 = vld [vmem:[%s0 + $0x1d0] sm:$0xff]
  %v332 = vld [vmem:[%s0 + $0x1d8] sm:$0xff]
  %v333 = vld [vmem:[%s0 + $0x1e0] sm:$0xff]
  %v334 = vld [vmem:[%s0 + $0x1e8] sm:$0xff]
  %v335 = vld [vmem:[%s0 + $0x1f0] sm:$0xff]
  %v336 = vld [vmem:[%s0 + $0x1f8] sm:$0xff]
  %v337 = vsub.f32 %v17, %v273
  %v338 = vsub.f32 %v18, %v274
  %v339 = vsub.f32 %v19, %v275
  %v340 = vsub.f32 %v20, %v276
  %v341 = vsub.f32 %v21, %v277
  %v342 = vsub.f32 %v22, %v278
  %v343 = vsub.f32 %v23, %v279
  %v344 = vsub.f32 %v24, %v280
  %v345 = vsub.f32 %v25, %v281
  %v346 = vsub.f32 %v26, %v282
  %v347 = vsub.f32 %v27, %v283
  %v348 = vsub.f32 %v28, %v284
  %v349 = vsub.f32 %v29, %v285
  %v350 = vsub.f32 %v30, %v286
  %v351 = vsub.f32 %v31, %v287
  %v352 = vsub.f32 %v32, %v288
  %v353 = vsub.f32 %v33, %v289
  %v354 = vsub.f32 %v34, %v290
  %v355 = vsub.f32 %v35, %v291
  %v356 = vsub.f32 %v36, %v292
  %v357 = vsub.f32 %v37, %v293
  %v358 = vsub.f32 %v38, %v294
  %v359 = vsub.f32 %v39, %v295
  %v360 = vsub.f32 %v40, %v296
  %v361 = vsub.f32 %v41, %v297
  %v362 = vsub.f32 %v42, %v298
  %v363 = vsub.f32 %v43, %v299
  %v364 = vsub.f32 %v44, %v300
  %v365 = vsub.f32 %v45, %v301
  %v366 = vsub.f32 %v46, %v302
  %v367 = vsub.f32 %v47, %v303
  %v368 = vsub.f32 %v48, %v304
  %v369 = vsub.f32 %v49, %v305
  %v370 = vsub.f32 %v50, %v306
  %v371 = vsub.f32 %v51, %v307
  %v372 = vsub.f32 %v52, %v308
  %v373 = vsub.f32 %v53, %v309
  %v374 = vsub.f32 %v54, %v310
  %v375 = vsub.f32 %v55, %v311
  %v376 = vsub.f32 %v56, %v312
  %v377 = vsub.f32 %v57, %v313
  %v378 = vsub.f32 %v58, %v314
  %v379 = vsub.f32 %v59, %v315
  %v380 = vsub.f32 %v60, %v316
  %v381 = vsub.f32 %v61, %v317
  %v382 = vsub.f32 %v62, %v318
  %v383 = vsub.f32 %v63, %v319
  %v384 = vsub.f32 %v64, %v320
  %v385 = vsub.f32 %v65, %v321
  %v386 = vsub.f32 %v66, %v322
  %v387 = vsub.f32 %v67, %v323
  %v388 = vsub.f32 %v68, %v324
  %v389 = vsub.f32 %v69, %v325
  %v390 = vsub.f32 %v70, %v326
  %v391 = vsub.f32 %v71, %v327
  %v392 = vsub.f32 %v72, %v328
  %v393 = vsub.f32 %v73, %v329
  %v394 = vsub.f32 %v74, %v330
  %v395 = vsub.f32 %v75, %v331
  %v396 = vsub.f32 %v76, %v332
  %v397 = vsub.f32 %v77, %v333
  %v398 = vsub.f32 %v78, %v334
  %v399 = vsub.f32 %v79, %v335
  %v400 = vsub.f32 %v80, %v336
  %v401 = vsub.f32 %v81, %v273
  %v402 = vsub.f32 %v82, %v274
  %v403 = vsub.f32 %v83, %v275
  %v404 = vsub.f32 %v84, %v276
  %v405 = vsub.f32 %v85, %v277
  %v406 = vsub.f32 %v86, %v278
  %v407 = vsub.f32 %v87, %v279
  %v408 = vsub.f32 %v88, %v280
  %v409 = vsub.f32 %v89, %v281
  %v410 = vsub.f32 %v90, %v282
  %v411 = vsub.f32 %v91, %v283
  %v412 = vsub.f32 %v92, %v284
  %v413 = vsub.f32 %v93, %v285
  %v414 = vsub.f32 %v94, %v286
  %v415 = vsub.f32 %v95, %v287
  %v416 = vsub.f32 %v96, %v288
  %v417 = vsub.f32 %v97, %v289
  %v418 = vsub.f32 %v98, %v290
  %v419 = vsub.f32 %v99, %v291
  %v420 = vsub.f32 %v100, %v292
  %v421 = vsub.f32 %v101, %v293
  %v422 = vsub.f32 %v102, %v294
  %v423 = vsub.f32 %v103, %v295
  %v424 = vsub.f32 %v104, %v296
  %v425 = vsub.f32 %v105, %v297
  %v426 = vsub.f32 %v106, %v298
  %v427 = vsub.f32 %v107, %v299
  %v428 = vsub.f32 %v108, %v300
  %v429 = vsub.f32 %v109, %v301
  %v430 = vsub.f32 %v110, %v302
  %v431 = vsub.f32 %v111, %v303
  %v432 = vsub.f32 %v112, %v304
  %v433 = vsub.f32 %v113, %v305
  %v434 = vsub.f32 %v114, %v306
  %v435 = vsub.f32 %v115, %v307
  %v436 = vsub.f32 %v116, %v308
  %v437 = vsub.f32 %v117, %v309
  %v438 = vsub.f32 %v118, %v310
  %v439 = vsub.f32 %v119, %v311
  %v440 = vsub.f32 %v120, %v312
  %v441 = vsub.f32 %v121, %v313
  %v442 = vsub.f32 %v122, %v314
  %v443 = vsub.f32 %v123, %v315
  %v444 = vsub.f32 %v124, %v316
  %v445 = vsub.f32 %v125, %v317
  %v446 = vsub.f32 %v126, %v318
  %v447 = vsub.f32 %v127, %v319
  %v448 = vsub.f32 %v128, %v320
  %v449 = vsub.f32 %v129, %v321
  %v450 = vsub.f32 %v130, %v322
  %v451 = vsub.f32 %v131, %v323
  %v452 = vsub.f32 %v132, %v324
  %v453 = vsub.f32 %v133, %v325
  %v454 = vsub.f32 %v134, %v326
  %v455 = vsub.f32 %v135, %v327
  %v456 = vsub.f32 %v136, %v328
  %v457 = vsub.f32 %v137, %v329
  %v458 = vsub.f32 %v138, %v330
  %v459 = vsub.f32 %v139, %v331
  %v460 = vsub.f32 %v140, %v332
  %v461 = vsub.f32 %v141, %v333
  %v462 = vsub.f32 %v142, %v334
  %v463 = vsub.f32 %v143, %v335
  %v464 = vsub.f32 %v144, %v336
  %v465 = vsub.f32 %v145, %v273
  %v466 = vsub.f32 %v146, %v274
  %v467 = vsub.f32 %v147, %v275
  %v468 = vsub.f32 %v148, %v276
  %v469 = vsub.f32 %v149, %v277
  %v470 = vsub.f32 %v150, %v278
  %v471 = vsub.f32 %v151, %v279
  %v472 = vsub.f32 %v152, %v280
  %v473 = vsub.f32 %v153, %v281
  %v474 = vsub.f32 %v154, %v282
  %v475 = vsub.f32 %v155, %v283
  %v476 = vsub.f32 %v156, %v284
  %v477 = vsub.f32 %v157, %v285
  %v478 = vsub.f32 %v158, %v286
  %v479 = vsub.f32 %v159, %v287
  %v480 = vsub.f32 %v160, %v288
  %v481 = vsub.f32 %v161, %v289
  %v482 = vsub.f32 %v162, %v290
  %v483 = vsub.f32 %v163, %v291
  %v484 = vsub.f32 %v164, %v292
  %v485 = vsub.f32 %v165, %v293
  %v486 = vsub.f32 %v166, %v294
  %v487 = vsub.f32 %v167, %v295
  %v488 = vsub.f32 %v168, %v296
  %v489 = vsub.f32 %v169, %v297
  %v490 = vsub.f32 %v170, %v298
  %v491 = vsub.f32 %v171, %v299
  %v492 = vsub.f32 %v172, %v300
  %v493 = vsub.f32 %v173, %v301
  %v494 = vsub.f32 %v174, %v302
  %v495 = vsub.f32 %v175, %v303
  %v496 = vsub.f32 %v176, %v304
  %v497 = vsub.f32 %v177, %v305
  %v498 = vsub.f32 %v178, %v306
  %v499 = vsub.f32 %v179, %v307
  %v500 = vsub.f32 %v180, %v308
  %v501 = vsub.f32 %v181, %v309
  %v502 = vsub.f32 %v182, %v310
  %v503 = vsub.f32 %v183, %v311
  %v504 = vsub.f32 %v184, %v312
  %v505 = vsub.f32 %v185, %v313
  %v506 = vsub.f32 %v186, %v314
  %v507 = vsub.f32 %v187, %v315
  %v508 = vsub.f32 %v188, %v316
  %v509 = vsub.f32 %v189, %v317
  %v510 = vsub.f32 %v190, %v318
  %v511 = vsub.f32 %v191, %v319
  %v512 = vsub.f32 %v192, %v320
  %v513 = vsub.f32 %v193, %v321
  %v514 = vsub.f32 %v194, %v322
  %v515 = vsub.f32 %v195, %v323
  %v516 = vsub.f32 %v196, %v324
  %v517 = vsub.f32 %v197, %v325
  %v518 = vsub.f32 %v198, %v326
  %v519 = vsub.f32 %v199, %v327
  %v520 = vsub.f32 %v200, %v328
  %v521 = vsub.f32 %v201, %v329
  %v522 = vsub.f32 %v202, %v330
  %v523 = vsub.f32 %v203, %v331
  %v524 = vsub.f32 %v204, %v332
  %v525 = vsub.f32 %v205, %v333
  %v526 = vsub.f32 %v206, %v334
  %v527 = vsub.f32 %v207, %v335
  %v528 = vsub.f32 %v208, %v336
  %v529 = vsub.f32 %v209, %v273
  %v530 = vsub.f32 %v210, %v274
  %v531 = vsub.f32 %v211, %v275
  %v532 = vsub.f32 %v212, %v276
  %v533 = vsub.f32 %v213, %v277
  %v534 = vsub.f32 %v214, %v278
  %v535 = vsub.f32 %v215, %v279
  %v536 = vsub.f32 %v216, %v280
  %v537 = vsub.f32 %v217, %v281
  %v538 = vsub.f32 %v218, %v282
  %v539 = vsub.f32 %v219, %v283
  %v540 = vsub.f32 %v220, %v284
  %v541 = vsub.f32 %v221, %v285
  %v542 = vsub.f32 %v222, %v286
  %v543 = vsub.f32 %v223, %v287
  %v544 = vsub.f32 %v224, %v288
  %v545 = vsub.f32 %v225, %v289
  %v546 = vsub.f32 %v226, %v290
  %v547 = vsub.f32 %v227, %v291
  %v548 = vsub.f32 %v228, %v292
  %v549 = vsub.f32 %v229, %v293
  %v550 = vsub.f32 %v230, %v294
  %v551 = vsub.f32 %v231, %v295
  %v552 = vsub.f32 %v232, %v296
  %v553 = vsub.f32 %v233, %v297
  %v554 = vsub.f32 %v234, %v298
  %v555 = vsub.f32 %v235, %v299
  %v556 = vsub.f32 %v236, %v300
  %v557 = vsub.f32 %v237, %v301
  %v558 = vsub.f32 %v238, %v302
  %v559 = vsub.f32 %v239, %v303
  %v560 = vsub.f32 %v240, %v304
  %v561 = vsub.f32 %v241, %v305
  %v562 = vsub.f32 %v242, %v306
  %v563 = vsub.f32 %v243, %v307
  %v564 = vsub.f32 %v244, %v308
  %v565 = vsub.f32 %v245, %v309
  %v566 = vsub.f32 %v246, %v310
  %v567 = vsub.f32 %v247, %v311
  %v568 = vsub.f32 %v248, %v312
  %v569 = vsub.f32 %v249, %v313
  %v570 = vsub.f32 %v250, %v314
  %v571 = vsub.f32 %v251, %v315
  %v572 = vsub.f32 %v252, %v316
  %v573 = vsub.f32 %v253, %v317
  %v574 = vsub.f32 %v254, %v318
  %v575 = vsub.f32 %v255, %v319
  %v576 = vsub.f32 %v256, %v320
  %v577 = vsub.f32 %v257, %v321
  %v578 = vsub.f32 %v258, %v322
  %v579 = vsub.f32 %v259, %v323
  %v580 = vsub.f32 %v260, %v324
  %v581 = vsub.f32 %v261, %v325
  %v582 = vsub.f32 %v262, %v326
  %v583 = vsub.f32 %v263, %v327
  %v584 = vsub.f32 %v264, %v328
  %v585 = vsub.f32 %v265, %v329
  %v586 = vsub.f32 %v266, %v330
  %v587 = vsub.f32 %v267, %v331
  %v588 = vsub.f32 %v268, %v332
  %v589 = vsub.f32 %v269, %v333
  %v590 = vsub.f32 %v270, %v334
  %v591 = vsub.f32 %v271, %v335
  %v592 = vsub.f32 %v272, %v336
  %v593 = vand.u32 2147483647, %v337
  %v594 = vand.u32 2147483647, %v338
  %v595 = vand.u32 2147483647, %v339
  %v596 = vand.u32 2147483647, %v340
  %v597 = vand.u32 2147483647, %v341
  %v598 = vand.u32 2147483647, %v342
  %v599 = vand.u32 2147483647, %v343
  %v600 = vand.u32 2147483647, %v344
  %v601 = vand.u32 2147483647, %v345
  %v602 = vand.u32 2147483647, %v346
  %v603 = vand.u32 2147483647, %v347
  %v604 = vand.u32 2147483647, %v348
  %v605 = vand.u32 2147483647, %v349
  %v606 = vand.u32 2147483647, %v350
  %v607 = vand.u32 2147483647, %v351
  %v608 = vand.u32 2147483647, %v352
  %v609 = vand.u32 2147483647, %v353
  %v610 = vand.u32 2147483647, %v354
  %v611 = vand.u32 2147483647, %v355
  %v612 = vand.u32 2147483647, %v356
  %v613 = vand.u32 2147483647, %v357
  %v614 = vand.u32 2147483647, %v358
  %v615 = vand.u32 2147483647, %v359
  %v616 = vand.u32 2147483647, %v360
  %v617 = vand.u32 2147483647, %v361
  %v618 = vand.u32 2147483647, %v362
  %v619 = vand.u32 2147483647, %v363
  %v620 = vand.u32 2147483647, %v364
  %v621 = vand.u32 2147483647, %v365
  %v622 = vand.u32 2147483647, %v366
  %v623 = vand.u32 2147483647, %v367
  %v624 = vand.u32 2147483647, %v368
  %v625 = vand.u32 2147483647, %v369
  %v626 = vand.u32 2147483647, %v370
  %v627 = vand.u32 2147483647, %v371
  %v628 = vand.u32 2147483647, %v372
  %v629 = vand.u32 2147483647, %v373
  %v630 = vand.u32 2147483647, %v374
  %v631 = vand.u32 2147483647, %v375
  %v632 = vand.u32 2147483647, %v376
  %v633 = vand.u32 2147483647, %v377
  %v634 = vand.u32 2147483647, %v378
  %v635 = vand.u32 2147483647, %v379
  %v636 = vand.u32 2147483647, %v380
  %v637 = vand.u32 2147483647, %v381
  %v638 = vand.u32 2147483647, %v382
  %v639 = vand.u32 2147483647, %v383
  %v640 = vand.u32 2147483647, %v384
  %v641 = vand.u32 2147483647, %v385
  %v642 = vand.u32 2147483647, %v386
  %v643 = vand.u32 2147483647, %v387
  %v644 = vand.u32 2147483647, %v388
  %v645 = vand.u32 2147483647, %v389
  %v646 = vand.u32 2147483647, %v390
  %v647 = vand.u32 2147483647, %v391
  %v648 = vand.u32 2147483647, %v392
  %v649 = vand.u32 2147483647, %v393
  %v650 = vand.u32 2147483647, %v394
  %v651 = vand.u32 2147483647, %v395
  %v652 = vand.u32 2147483647, %v396
  %v653 = vand.u32 2147483647, %v397
  %v654 = vand.u32 2147483647, %v398
  %v655 = vand.u32 2147483647, %v399
  %v656 = vand.u32 2147483647, %v400
  %v657 = vand.u32 2147483647, %v401
  %v658 = vand.u32 2147483647, %v402
  %v659 = vand.u32 2147483647, %v403
  %v660 = vand.u32 2147483647, %v404
  %v661 = vand.u32 2147483647, %v405
  %v662 = vand.u32 2147483647, %v406
  %v663 = vand.u32 2147483647, %v407
  %v664 = vand.u32 2147483647, %v408
  %v665 = vand.u32 2147483647, %v409
  %v666 = vand.u32 2147483647, %v410
  %v667 = vand.u32 2147483647, %v411
  %v668 = vand.u32 2147483647, %v412
  %v669 = vand.u32 2147483647, %v413
  %v670 = vand.u32 2147483647, %v414
  %v671 = vand.u32 2147483647, %v415
  %v672 = vand.u32 2147483647, %v416
  %v673 = vand.u32 2147483647, %v417
  %v674 = vand.u32 2147483647, %v418
  %v675 = vand.u32 2147483647, %v419
  %v676 = vand.u32 2147483647, %v420
  %v677 = vand.u32 2147483647, %v421
  %v678 = vand.u32 2147483647, %v422
  %v679 = vand.u32 2147483647, %v423
  %v680 = vand.u32 2147483647, %v424
  %v681 = vand.u32 2147483647, %v425
  %v682 = vand.u32 2147483647, %v426
  %v683 = vand.u32 2147483647, %v427
  %v684 = vand.u32 2147483647, %v428
  %v685 = vand.u32 2147483647, %v429
  %v686 = vand.u32 2147483647, %v430
  %v687 = vand.u32 2147483647, %v431
  %v688 = vand.u32 2147483647, %v432
  %v689 = vand.u32 2147483647, %v433
  %v690 = vand.u32 2147483647, %v434
  %v691 = vand.u32 2147483647, %v435
  %v692 = vand.u32 2147483647, %v436
  %v693 = vand.u32 2147483647, %v437
  %v694 = vand.u32 2147483647, %v438
  %v695 = vand.u32 2147483647, %v439
  %v696 = vand.u32 2147483647, %v440
  %v697 = vand.u32 2147483647, %v441
  %v698 = vand.u32 2147483647, %v442
  %v699 = vand.u32 2147483647, %v443
  %v700 = vand.u32 2147483647, %v444
  %v701 = vand.u32 2147483647, %v445
  %v702 = vand.u32 2147483647, %v446
  %v703 = vand.u32 2147483647, %v447
  %v704 = vand.u32 2147483647, %v448
  %v705 = vand.u32 2147483647, %v449
  %v706 = vand.u32 2147483647, %v450
  %v707 = vand.u32 2147483647, %v451
  %v708 = vand.u32 2147483647, %v452
  %v709 = vand.u32 2147483647, %v453
  %v710 = vand.u32 2147483647, %v454
  %v711 = vand.u32 2147483647, %v455
  %v712 = vand.u32 2147483647, %v456
  %v713 = vand.u32 2147483647, %v457
  %v714 = vand.u32 2147483647, %v458
  %v715 = vand.u32 2147483647, %v459
  %v716 = vand.u32 2147483647, %v460
  %v717 = vand.u32 2147483647, %v461
  %v718 = vand.u32 2147483647, %v462
  %v719 = vand.u32 2147483647, %v463
  %v720 = vand.u32 2147483647, %v464
  %v721 = vand.u32 2147483647, %v465
  %v722 = vand.u32 2147483647, %v466
  %v723 = vand.u32 2147483647, %v467
  %v724 = vand.u32 2147483647, %v468
  %v725 = vand.u32 2147483647, %v469
  %v726 = vand.u32 2147483647, %v470
  %v727 = vand.u32 2147483647, %v471
  %v728 = vand.u32 2147483647, %v472
  %v729 = vand.u32 2147483647, %v473
  %v730 = vand.u32 2147483647, %v474
  %v731 = vand.u32 2147483647, %v475
  %v732 = vand.u32 2147483647, %v476
  %v733 = vand.u32 2147483647, %v477
  %v734 = vand.u32 2147483647, %v478
  %v735 = vand.u32 2147483647, %v479
  %v736 = vand.u32 2147483647, %v480
  %v737 = vand.u32 2147483647, %v481
  %v738 = vand.u32 2147483647, %v482
  %v739 = vand.u32 2147483647, %v483
  %v740 = vand.u32 2147483647, %v484
  %v741 = vand.u32 2147483647, %v485
  %v742 = vand.u32 2147483647, %v486
  %v743 = vand.u32 2147483647, %v487
  %v744 = vand.u32 2147483647, %v488
  %v745 = vand.u32 2147483647, %v489
  %v746 = vand.u32 2147483647, %v490
  %v747 = vand.u32 2147483647, %v491
  %v748 = vand.u32 2147483647, %v492
  %v749 = vand.u32 2147483647, %v493
  %v750 = vand.u32 2147483647, %v494
  %v751 = vand.u32 2147483647, %v495
  %v752 = vand.u32 2147483647, %v496
  %v753 = vand.u32 2147483647, %v497
  %v754 = vand.u32 2147483647, %v498
  %v755 = vand.u32 2147483647, %v499
  %v756 = vand.u32 2147483647, %v500
  %v757 = vand.u32 2147483647, %v501
  %v758 = vand.u32 2147483647, %v502
  %v759 = vand.u32 2147483647, %v503
  %v760 = vand.u32 2147483647, %v504
  %v761 = vand.u32 2147483647, %v505
  %v762 = vand.u32 2147483647, %v506
  %v763 = vand.u32 2147483647, %v507
  %v764 = vand.u32 2147483647, %v508
  %v765 = vand.u32 2147483647, %v509
  %v766 = vand.u32 2147483647, %v510
  %v767 = vand.u32 2147483647, %v511
  %v768 = vand.u32 2147483647, %v512
  %v769 = vand.u32 2147483647, %v513
  %v770 = vand.u32 2147483647, %v514
  %v771 = vand.u32 2147483647, %v515
  %v772 = vand.u32 2147483647, %v516
  %v773 = vand.u32 2147483647, %v517
  %v774 = vand.u32 2147483647, %v518
  %v775 = vand.u32 2147483647, %v519
  %v776 = vand.u32 2147483647, %v520
  %v777 = vand.u32 2147483647, %v521
  %v778 = vand.u32 2147483647, %v522
  %v779 = vand.u32 2147483647, %v523
  %v780 = vand.u32 2147483647, %v524
  %v781 = vand.u32 2147483647, %v525
  %v782 = vand.u32 2147483647, %v526
  %v783 = vand.u32 2147483647, %v527
  %v784 = vand.u32 2147483647, %v528
  %v785 = vand.u32 2147483647, %v529
  %v786 = vand.u32 2147483647, %v530
  %v787 = vand.u32 2147483647, %v531
  %v788 = vand.u32 2147483647, %v532
  %v789 = vand.u32 2147483647, %v533
  %v790 = vand.u32 2147483647, %v534
  %v791 = vand.u32 2147483647, %v535
  %v792 = vand.u32 2147483647, %v536
  %v793 = vand.u32 2147483647, %v537
  %v794 = vand.u32 2147483647, %v538
  %v795 = vand.u32 2147483647, %v539
  %v796 = vand.u32 2147483647, %v540
  %v797 = vand.u32 2147483647, %v541
  %v798 = vand.u32 2147483647, %v542
  %v799 = vand.u32 2147483647, %v543
  %v800 = vand.u32 2147483647, %v544
  %v801 = vand.u32 2147483647, %v545
  %v802 = vand.u32 2147483647, %v546
  %v803 = vand.u32 2147483647, %v547
  %v804 = vand.u32 2147483647, %v548
  %v805 = vand.u32 2147483647, %v549
  %v806 = vand.u32 2147483647, %v550
  %v807 = vand.u32 2147483647, %v551
  %v808 = vand.u32 2147483647, %v552
  %v809 = vand.u32 2147483647, %v553
  %v810 = vand.u32 2147483647, %v554
  %v811 = vand.u32 2147483647, %v555
  %v812 = vand.u32 2147483647, %v556
  %v813 = vand.u32 2147483647, %v557
  %v814 = vand.u32 2147483647, %v558
  %v815 = vand.u32 2147483647, %v559
  %v816 = vand.u32 2147483647, %v560
  %v817 = vand.u32 2147483647, %v561
  %v818 = vand.u32 2147483647, %v562
  %v819 = vand.u32 2147483647, %v563
  %v820 = vand.u32 2147483647, %v564
  %v821 = vand.u32 2147483647, %v565
  %v822 = vand.u32 2147483647, %v566
  %v823 = vand.u32 2147483647, %v567
  %v824 = vand.u32 2147483647, %v568
  %v825 = vand.u32 2147483647, %v569
  %v826 = vand.u32 2147483647, %v570
  %v827 = vand.u32 2147483647, %v571
  %v828 = vand.u32 2147483647, %v572
  %v829 = vand.u32 2147483647, %v573
  %v830 = vand.u32 2147483647, %v574
  %v831 = vand.u32 2147483647, %v575
  %v832 = vand.u32 2147483647, %v576
  %v833 = vand.u32 2147483647, %v577
  %v834 = vand.u32 2147483647, %v578
  %v835 = vand.u32 2147483647, %v579
  %v836 = vand.u32 2147483647, %v580
  %v837 = vand.u32 2147483647, %v581
  %v838 = vand.u32 2147483647, %v582
  %v839 = vand.u32 2147483647, %v583
  %v840 = vand.u32 2147483647, %v584
  %v841 = vand.u32 2147483647, %v585
  %v842 = vand.u32 2147483647, %v586
  %v843 = vand.u32 2147483647, %v587
  %v844 = vand.u32 2147483647, %v588
  %v845 = vand.u32 2147483647, %v589
  %v846 = vand.u32 2147483647, %v590
  %v847 = vand.u32 2147483647, %v591
  %v848 = vand.u32 2147483647, %v592
  %vm849 = vcmask 64512
  %v850 = vsel %vm849, %v593, 0.0
  %851 = vadd.xlane.f32.xlu0 %v850
  %v852 = vpop.xlane.xlu0 %851
  %v853 = vsel %vm849, %v594, 0.0
  %854 = vadd.xlane.f32.xlu0 %v853
  %v855 = vpop.xlane.xlu0 %854
  %v856 = vsel %vm849, %v595, 0.0
  %857 = vadd.xlane.f32.xlu0 %v856
  %v858 = vpop.xlane.xlu0 %857
  %v859 = vsel %vm849, %v596, 0.0
  %860 = vadd.xlane.f32.xlu0 %v859
  %v861 = vpop.xlane.xlu0 %860
  %v862 = vsel %vm849, %v597, 0.0
  %863 = vadd.xlane.f32.xlu0 %v862
  %v864 = vpop.xlane.xlu0 %863
  %v865 = vsel %vm849, %v598, 0.0
  %866 = vadd.xlane.f32.xlu0 %v865
  %v867 = vpop.xlane.xlu0 %866
  %v868 = vsel %vm849, %v599, 0.0
  %869 = vadd.xlane.f32.xlu0 %v868
  %v870 = vpop.xlane.xlu0 %869
  %v871 = vsel %vm849, %v600, 0.0
  %872 = vadd.xlane.f32.xlu0 %v871
  %v873 = vpop.xlane.xlu0 %872
  %v874 = vsel %vm849, %v601, 0.0
  %875 = vadd.xlane.f32.xlu0 %v874
  %v876 = vpop.xlane.xlu0 %875
  %v877 = vsel %vm849, %v602, 0.0
  %878 = vadd.xlane.f32.xlu0 %v877
  %v879 = vpop.xlane.xlu0 %878
  %v880 = vsel %vm849, %v603, 0.0
  %881 = vadd.xlane.f32.xlu0 %v880
  %v882 = vpop.xlane.xlu0 %881
  %v883 = vsel %vm849, %v604, 0.0
  %884 = vadd.xlane.f32.xlu0 %v883
  %v885 = vpop.xlane.xlu0 %884
  %v886 = vsel %vm849, %v605, 0.0
  %887 = vadd.xlane.f32.xlu0 %v886
  %v888 = vpop.xlane.xlu0 %887
  %v889 = vsel %vm849, %v606, 0.0
  %890 = vadd.xlane.f32.xlu0 %v889
  %v891 = vpop.xlane.xlu0 %890
  %v892 = vsel %vm849, %v607, 0.0
  %893 = vadd.xlane.f32.xlu0 %v892
  %v894 = vpop.xlane.xlu0 %893
  %v895 = vsel %vm849, %v608, 0.0
  %896 = vadd.xlane.f32.xlu0 %v895
  %v897 = vpop.xlane.xlu0 %896
  %v898 = vsel %vm849, %v609, 0.0
  %899 = vadd.xlane.f32.xlu0 %v898
  %v900 = vpop.xlane.xlu0 %899
  %v901 = vsel %vm849, %v610, 0.0
  %902 = vadd.xlane.f32.xlu0 %v901
  %v903 = vpop.xlane.xlu0 %902
  %v904 = vsel %vm849, %v611, 0.0
  %905 = vadd.xlane.f32.xlu0 %v904
  %v906 = vpop.xlane.xlu0 %905
  %v907 = vsel %vm849, %v612, 0.0
  %908 = vadd.xlane.f32.xlu0 %v907
  %v909 = vpop.xlane.xlu0 %908
  %v910 = vsel %vm849, %v613, 0.0
  %911 = vadd.xlane.f32.xlu0 %v910
  %v912 = vpop.xlane.xlu0 %911
  %v913 = vsel %vm849, %v614, 0.0
  %914 = vadd.xlane.f32.xlu0 %v913
  %v915 = vpop.xlane.xlu0 %914
  %v916 = vsel %vm849, %v615, 0.0
  %917 = vadd.xlane.f32.xlu0 %v916
  %v918 = vpop.xlane.xlu0 %917
  %v919 = vsel %vm849, %v616, 0.0
  %920 = vadd.xlane.f32.xlu0 %v919
  %v921 = vpop.xlane.xlu0 %920
  %v922 = vsel %vm849, %v617, 0.0
  %923 = vadd.xlane.f32.xlu0 %v922
  %v924 = vpop.xlane.xlu0 %923
  %v925 = vsel %vm849, %v618, 0.0
  %926 = vadd.xlane.f32.xlu0 %v925
  %v927 = vpop.xlane.xlu0 %926
  %v928 = vsel %vm849, %v619, 0.0
  %929 = vadd.xlane.f32.xlu0 %v928
  %v930 = vpop.xlane.xlu0 %929
  %v931 = vsel %vm849, %v620, 0.0
  %932 = vadd.xlane.f32.xlu0 %v931
  %v933 = vpop.xlane.xlu0 %932
  %v934 = vsel %vm849, %v621, 0.0
  %935 = vadd.xlane.f32.xlu0 %v934
  %v936 = vpop.xlane.xlu0 %935
  %v937 = vsel %vm849, %v622, 0.0
  %938 = vadd.xlane.f32.xlu0 %v937
  %v939 = vpop.xlane.xlu0 %938
  %v940 = vsel %vm849, %v623, 0.0
  %941 = vadd.xlane.f32.xlu0 %v940
  %v942 = vpop.xlane.xlu0 %941
  %v943 = vsel %vm849, %v624, 0.0
  %944 = vadd.xlane.f32.xlu0 %v943
  %v945 = vpop.xlane.xlu0 %944
  %v946 = vsel %vm849, %v625, 0.0
  %947 = vadd.xlane.f32.xlu0 %v946
  %v948 = vpop.xlane.xlu0 %947
  %v949 = vsel %vm849, %v626, 0.0
  %950 = vadd.xlane.f32.xlu0 %v949
  %v951 = vpop.xlane.xlu0 %950
  %v952 = vsel %vm849, %v627, 0.0
  %953 = vadd.xlane.f32.xlu0 %v952
  %v954 = vpop.xlane.xlu0 %953
  %v955 = vsel %vm849, %v628, 0.0
  %956 = vadd.xlane.f32.xlu0 %v955
  %v957 = vpop.xlane.xlu0 %956
  %v958 = vsel %vm849, %v629, 0.0
  %959 = vadd.xlane.f32.xlu0 %v958
  %v960 = vpop.xlane.xlu0 %959
  %v961 = vsel %vm849, %v630, 0.0
  %962 = vadd.xlane.f32.xlu0 %v961
  %v963 = vpop.xlane.xlu0 %962
  %v964 = vsel %vm849, %v631, 0.0
  %965 = vadd.xlane.f32.xlu0 %v964
  %v966 = vpop.xlane.xlu0 %965
  %v967 = vsel %vm849, %v632, 0.0
  %968 = vadd.xlane.f32.xlu0 %v967
  %v969 = vpop.xlane.xlu0 %968
  %v970 = vsel %vm849, %v633, 0.0
  %971 = vadd.xlane.f32.xlu0 %v970
  %v972 = vpop.xlane.xlu0 %971
  %v973 = vsel %vm849, %v634, 0.0
  %974 = vadd.xlane.f32.xlu0 %v973
  %v975 = vpop.xlane.xlu0 %974
  %v976 = vsel %vm849, %v635, 0.0
  %977 = vadd.xlane.f32.xlu0 %v976
  %v978 = vpop.xlane.xlu0 %977
  %v979 = vsel %vm849, %v636, 0.0
  %980 = vadd.xlane.f32.xlu0 %v979
  %v981 = vpop.xlane.xlu0 %980
  %v982 = vsel %vm849, %v637, 0.0
  %983 = vadd.xlane.f32.xlu0 %v982
  %v984 = vpop.xlane.xlu0 %983
  %v985 = vsel %vm849, %v638, 0.0
  %986 = vadd.xlane.f32.xlu0 %v985
  %v987 = vpop.xlane.xlu0 %986
  %v988 = vsel %vm849, %v639, 0.0
  %989 = vadd.xlane.f32.xlu0 %v988
  %v990 = vpop.xlane.xlu0 %989
  %v991 = vsel %vm849, %v640, 0.0
  %992 = vadd.xlane.f32.xlu0 %v991
  %v993 = vpop.xlane.xlu0 %992
  %v994 = vsel %vm849, %v641, 0.0
  %995 = vadd.xlane.f32.xlu0 %v994
  %v996 = vpop.xlane.xlu0 %995
  %v997 = vsel %vm849, %v642, 0.0
  %998 = vadd.xlane.f32.xlu0 %v997
  %v999 = vpop.xlane.xlu0 %998
  %v1000 = vsel %vm849, %v643, 0.0
  %1001 = vadd.xlane.f32.xlu0 %v1000
  %v1002 = vpop.xlane.xlu0 %1001
  %v1003 = vsel %vm849, %v644, 0.0
  %1004 = vadd.xlane.f32.xlu0 %v1003
  %v1005 = vpop.xlane.xlu0 %1004
  %v1006 = vsel %vm849, %v645, 0.0
  %1007 = vadd.xlane.f32.xlu0 %v1006
  %v1008 = vpop.xlane.xlu0 %1007
  %v1009 = vsel %vm849, %v646, 0.0
  %1010 = vadd.xlane.f32.xlu0 %v1009
  %v1011 = vpop.xlane.xlu0 %1010
  %v1012 = vsel %vm849, %v647, 0.0
  %1013 = vadd.xlane.f32.xlu0 %v1012
  %v1014 = vpop.xlane.xlu0 %1013
  %v1015 = vsel %vm849, %v648, 0.0
  %1016 = vadd.xlane.f32.xlu0 %v1015
  %v1017 = vpop.xlane.xlu0 %1016
  %v1018 = vsel %vm849, %v649, 0.0
  %1019 = vadd.xlane.f32.xlu0 %v1018
  %v1020 = vpop.xlane.xlu0 %1019
  %v1021 = vsel %vm849, %v650, 0.0
  %1022 = vadd.xlane.f32.xlu0 %v1021
  %v1023 = vpop.xlane.xlu0 %1022
  %v1024 = vsel %vm849, %v651, 0.0
  %1025 = vadd.xlane.f32.xlu0 %v1024
  %v1026 = vpop.xlane.xlu0 %1025
  %v1027 = vsel %vm849, %v652, 0.0
  %1028 = vadd.xlane.f32.xlu0 %v1027
  %v1029 = vpop.xlane.xlu0 %1028
  %v1030 = vsel %vm849, %v653, 0.0
  %1031 = vadd.xlane.f32.xlu0 %v1030
  %v1032 = vpop.xlane.xlu0 %1031
  %v1033 = vsel %vm849, %v654, 0.0
  %1034 = vadd.xlane.f32.xlu0 %v1033
  %v1035 = vpop.xlane.xlu0 %1034
  %v1036 = vsel %vm849, %v655, 0.0
  %1037 = vadd.xlane.f32.xlu0 %v1036
  %v1038 = vpop.xlane.xlu0 %1037
  %v1039 = vsel %vm849, %v656, 0.0
  %1040 = vadd.xlane.f32.xlu0 %v1039
  %v1041 = vpop.xlane.xlu0 %1040
  %v1042 = vsel %vm849, %v657, 0.0
  %1043 = vadd.xlane.f32.xlu0 %v1042
  %v1044 = vpop.xlane.xlu0 %1043
  %v1045 = vsel %vm849, %v658, 0.0
  %1046 = vadd.xlane.f32.xlu0 %v1045
  %v1047 = vpop.xlane.xlu0 %1046
  %v1048 = vsel %vm849, %v659, 0.0
  %1049 = vadd.xlane.f32.xlu0 %v1048
  %v1050 = vpop.xlane.xlu0 %1049
  %v1051 = vsel %vm849, %v660, 0.0
  %1052 = vadd.xlane.f32.xlu0 %v1051
  %v1053 = vpop.xlane.xlu0 %1052
  %v1054 = vsel %vm849, %v661, 0.0
  %1055 = vadd.xlane.f32.xlu0 %v1054
  %v1056 = vpop.xlane.xlu0 %1055
  %v1057 = vsel %vm849, %v662, 0.0
  %1058 = vadd.xlane.f32.xlu0 %v1057
  %v1059 = vpop.xlane.xlu0 %1058
  %v1060 = vsel %vm849, %v663, 0.0
  %1061 = vadd.xlane.f32.xlu0 %v1060
  %v1062 = vpop.xlane.xlu0 %1061
  %v1063 = vsel %vm849, %v664, 0.0
  %1064 = vadd.xlane.f32.xlu0 %v1063
  %v1065 = vpop.xlane.xlu0 %1064
  %v1066 = vsel %vm849, %v665, 0.0
  %1067 = vadd.xlane.f32.xlu0 %v1066
  %v1068 = vpop.xlane.xlu0 %1067
  %v1069 = vsel %vm849, %v666, 0.0
  %1070 = vadd.xlane.f32.xlu0 %v1069
  %v1071 = vpop.xlane.xlu0 %1070
  %v1072 = vsel %vm849, %v667, 0.0
  %1073 = vadd.xlane.f32.xlu0 %v1072
  %v1074 = vpop.xlane.xlu0 %1073
  %v1075 = vsel %vm849, %v668, 0.0
  %1076 = vadd.xlane.f32.xlu0 %v1075
  %v1077 = vpop.xlane.xlu0 %1076
  %v1078 = vsel %vm849, %v669, 0.0
  %1079 = vadd.xlane.f32.xlu0 %v1078
  %v1080 = vpop.xlane.xlu0 %1079
  %v1081 = vsel %vm849, %v670, 0.0
  %1082 = vadd.xlane.f32.xlu0 %v1081
  %v1083 = vpop.xlane.xlu0 %1082
  %v1084 = vsel %vm849, %v671, 0.0
  %1085 = vadd.xlane.f32.xlu0 %v1084
  %v1086 = vpop.xlane.xlu0 %1085
  %v1087 = vsel %vm849, %v672, 0.0
  %1088 = vadd.xlane.f32.xlu0 %v1087
  %v1089 = vpop.xlane.xlu0 %1088
  %v1090 = vsel %vm849, %v673, 0.0
  %1091 = vadd.xlane.f32.xlu0 %v1090
  %v1092 = vpop.xlane.xlu0 %1091
  %v1093 = vsel %vm849, %v674, 0.0
  %1094 = vadd.xlane.f32.xlu0 %v1093
  %v1095 = vpop.xlane.xlu0 %1094
  %v1096 = vsel %vm849, %v675, 0.0
  %1097 = vadd.xlane.f32.xlu0 %v1096
  %v1098 = vpop.xlane.xlu0 %1097
  %v1099 = vsel %vm849, %v676, 0.0
  %1100 = vadd.xlane.f32.xlu0 %v1099
  %v1101 = vpop.xlane.xlu0 %1100
  %v1102 = vsel %vm849, %v677, 0.0
  %1103 = vadd.xlane.f32.xlu0 %v1102
  %v1104 = vpop.xlane.xlu0 %1103
  %v1105 = vsel %vm849, %v678, 0.0
  %1106 = vadd.xlane.f32.xlu0 %v1105
  %v1107 = vpop.xlane.xlu0 %1106
  %v1108 = vsel %vm849, %v679, 0.0
  %1109 = vadd.xlane.f32.xlu0 %v1108
  %v1110 = vpop.xlane.xlu0 %1109
  %v1111 = vsel %vm849, %v680, 0.0
  %1112 = vadd.xlane.f32.xlu0 %v1111
  %v1113 = vpop.xlane.xlu0 %1112
  %v1114 = vsel %vm849, %v681, 0.0
  %1115 = vadd.xlane.f32.xlu0 %v1114
  %v1116 = vpop.xlane.xlu0 %1115
  %v1117 = vsel %vm849, %v682, 0.0
  %1118 = vadd.xlane.f32.xlu0 %v1117
  %v1119 = vpop.xlane.xlu0 %1118
  %v1120 = vsel %vm849, %v683, 0.0
  %1121 = vadd.xlane.f32.xlu0 %v1120
  %v1122 = vpop.xlane.xlu0 %1121
  %v1123 = vsel %vm849, %v684, 0.0
  %1124 = vadd.xlane.f32.xlu0 %v1123
  %v1125 = vpop.xlane.xlu0 %1124
  %v1126 = vsel %vm849, %v685, 0.0
  %1127 = vadd.xlane.f32.xlu0 %v1126
  %v1128 = vpop.xlane.xlu0 %1127
  %v1129 = vsel %vm849, %v686, 0.0
  %1130 = vadd.xlane.f32.xlu0 %v1129
  %v1131 = vpop.xlane.xlu0 %1130
  %v1132 = vsel %vm849, %v687, 0.0
  %1133 = vadd.xlane.f32.xlu0 %v1132
  %v1134 = vpop.xlane.xlu0 %1133
  %v1135 = vsel %vm849, %v688, 0.0
  %1136 = vadd.xlane.f32.xlu0 %v1135
  %v1137 = vpop.xlane.xlu0 %1136
  %v1138 = vsel %vm849, %v689, 0.0
  %1139 = vadd.xlane.f32.xlu0 %v1138
  %v1140 = vpop.xlane.xlu0 %1139
  %v1141 = vsel %vm849, %v690, 0.0
  %1142 = vadd.xlane.f32.xlu0 %v1141
  %v1143 = vpop.xlane.xlu0 %1142
  %v1144 = vsel %vm849, %v691, 0.0
  %1145 = vadd.xlane.f32.xlu0 %v1144
  %v1146 = vpop.xlane.xlu0 %1145
  %v1147 = vsel %vm849, %v692, 0.0
  %1148 = vadd.xlane.f32.xlu0 %v1147
  %v1149 = vpop.xlane.xlu0 %1148
  %v1150 = vsel %vm849, %v693, 0.0
  %1151 = vadd.xlane.f32.xlu0 %v1150
  %v1152 = vpop.xlane.xlu0 %1151
  %v1153 = vsel %vm849, %v694, 0.0
  %1154 = vadd.xlane.f32.xlu0 %v1153
  %v1155 = vpop.xlane.xlu0 %1154
  %v1156 = vsel %vm849, %v695, 0.0
  %1157 = vadd.xlane.f32.xlu0 %v1156
  %v1158 = vpop.xlane.xlu0 %1157
  %v1159 = vsel %vm849, %v696, 0.0
  %1160 = vadd.xlane.f32.xlu0 %v1159
  %v1161 = vpop.xlane.xlu0 %1160
  %v1162 = vsel %vm849, %v697, 0.0
  %1163 = vadd.xlane.f32.xlu0 %v1162
  %v1164 = vpop.xlane.xlu0 %1163
  %v1165 = vsel %vm849, %v698, 0.0
  %1166 = vadd.xlane.f32.xlu0 %v1165
  %v1167 = vpop.xlane.xlu0 %1166
  %v1168 = vsel %vm849, %v699, 0.0
  %1169 = vadd.xlane.f32.xlu0 %v1168
  %v1170 = vpop.xlane.xlu0 %1169
  %v1171 = vsel %vm849, %v700, 0.0
  %1172 = vadd.xlane.f32.xlu0 %v1171
  %v1173 = vpop.xlane.xlu0 %1172
  %v1174 = vsel %vm849, %v701, 0.0
  %1175 = vadd.xlane.f32.xlu0 %v1174
  %v1176 = vpop.xlane.xlu0 %1175
  %v1177 = vsel %vm849, %v702, 0.0
  %1178 = vadd.xlane.f32.xlu0 %v1177
  %v1179 = vpop.xlane.xlu0 %1178
  %v1180 = vsel %vm849, %v703, 0.0
  %1181 = vadd.xlane.f32.xlu0 %v1180
  %v1182 = vpop.xlane.xlu0 %1181
  %v1183 = vsel %vm849, %v704, 0.0
  %1184 = vadd.xlane.f32.xlu0 %v1183
  %v1185 = vpop.xlane.xlu0 %1184
  %v1186 = vsel %vm849, %v705, 0.0
  %1187 = vadd.xlane.f32.xlu0 %v1186
  %v1188 = vpop.xlane.xlu0 %1187
  %v1189 = vsel %vm849, %v706, 0.0
  %1190 = vadd.xlane.f32.xlu0 %v1189
  %v1191 = vpop.xlane.xlu0 %1190
  %v1192 = vsel %vm849, %v707, 0.0
  %1193 = vadd.xlane.f32.xlu0 %v1192
  %v1194 = vpop.xlane.xlu0 %1193
  %v1195 = vsel %vm849, %v708, 0.0
  %1196 = vadd.xlane.f32.xlu0 %v1195
  %v1197 = vpop.xlane.xlu0 %1196
  %v1198 = vsel %vm849, %v709, 0.0
  %1199 = vadd.xlane.f32.xlu0 %v1198
  %v1200 = vpop.xlane.xlu0 %1199
  %v1201 = vsel %vm849, %v710, 0.0
  %1202 = vadd.xlane.f32.xlu0 %v1201
  %v1203 = vpop.xlane.xlu0 %1202
  %v1204 = vsel %vm849, %v711, 0.0
  %1205 = vadd.xlane.f32.xlu0 %v1204
  %v1206 = vpop.xlane.xlu0 %1205
  %v1207 = vsel %vm849, %v712, 0.0
  %1208 = vadd.xlane.f32.xlu0 %v1207
  %v1209 = vpop.xlane.xlu0 %1208
  %v1210 = vsel %vm849, %v713, 0.0
  %1211 = vadd.xlane.f32.xlu0 %v1210
  %v1212 = vpop.xlane.xlu0 %1211
  %v1213 = vsel %vm849, %v714, 0.0
  %1214 = vadd.xlane.f32.xlu0 %v1213
  %v1215 = vpop.xlane.xlu0 %1214
  %v1216 = vsel %vm849, %v715, 0.0
  %1217 = vadd.xlane.f32.xlu0 %v1216
  %v1218 = vpop.xlane.xlu0 %1217
  %v1219 = vsel %vm849, %v716, 0.0
  %1220 = vadd.xlane.f32.xlu0 %v1219
  %v1221 = vpop.xlane.xlu0 %1220
  %v1222 = vsel %vm849, %v717, 0.0
  %1223 = vadd.xlane.f32.xlu0 %v1222
  %v1224 = vpop.xlane.xlu0 %1223
  %v1225 = vsel %vm849, %v718, 0.0
  %1226 = vadd.xlane.f32.xlu0 %v1225
  %v1227 = vpop.xlane.xlu0 %1226
  %v1228 = vsel %vm849, %v719, 0.0
  %1229 = vadd.xlane.f32.xlu0 %v1228
  %v1230 = vpop.xlane.xlu0 %1229
  %v1231 = vsel %vm849, %v720, 0.0
  %1232 = vadd.xlane.f32.xlu0 %v1231
  %v1233 = vpop.xlane.xlu0 %1232
  %v1234 = vsel %vm849, %v721, 0.0
  %1235 = vadd.xlane.f32.xlu0 %v1234
  %v1236 = vpop.xlane.xlu0 %1235
  %v1237 = vsel %vm849, %v722, 0.0
  %1238 = vadd.xlane.f32.xlu0 %v1237
  %v1239 = vpop.xlane.xlu0 %1238
  %v1240 = vsel %vm849, %v723, 0.0
  %1241 = vadd.xlane.f32.xlu0 %v1240
  %v1242 = vpop.xlane.xlu0 %1241
  %v1243 = vsel %vm849, %v724, 0.0
  %1244 = vadd.xlane.f32.xlu0 %v1243
  %v1245 = vpop.xlane.xlu0 %1244
  %v1246 = vsel %vm849, %v725, 0.0
  %1247 = vadd.xlane.f32.xlu0 %v1246
  %v1248 = vpop.xlane.xlu0 %1247
  %v1249 = vsel %vm849, %v726, 0.0
  %1250 = vadd.xlane.f32.xlu0 %v1249
  %v1251 = vpop.xlane.xlu0 %1250
  %v1252 = vsel %vm849, %v727, 0.0
  %1253 = vadd.xlane.f32.xlu0 %v1252
  %v1254 = vpop.xlane.xlu0 %1253
  %v1255 = vsel %vm849, %v728, 0.0
  %1256 = vadd.xlane.f32.xlu0 %v1255
  %v1257 = vpop.xlane.xlu0 %1256
  %v1258 = vsel %vm849, %v729, 0.0
  %1259 = vadd.xlane.f32.xlu0 %v1258
  %v1260 = vpop.xlane.xlu0 %1259
  %v1261 = vsel %vm849, %v730, 0.0
  %1262 = vadd.xlane.f32.xlu0 %v1261
  %v1263 = vpop.xlane.xlu0 %1262
  %v1264 = vsel %vm849, %v731, 0.0
  %1265 = vadd.xlane.f32.xlu0 %v1264
  %v1266 = vpop.xlane.xlu0 %1265
  %v1267 = vsel %vm849, %v732, 0.0
  %1268 = vadd.xlane.f32.xlu0 %v1267
  %v1269 = vpop.xlane.xlu0 %1268
  %v1270 = vsel %vm849, %v733, 0.0
  %1271 = vadd.xlane.f32.xlu0 %v1270
  %v1272 = vpop.xlane.xlu0 %1271
  %v1273 = vsel %vm849, %v734, 0.0
  %1274 = vadd.xlane.f32.xlu0 %v1273
  %v1275 = vpop.xlane.xlu0 %1274
  %v1276 = vsel %vm849, %v735, 0.0
  %1277 = vadd.xlane.f32.xlu0 %v1276
  %v1278 = vpop.xlane.xlu0 %1277
  %v1279 = vsel %vm849, %v736, 0.0
  %1280 = vadd.xlane.f32.xlu0 %v1279
  %v1281 = vpop.xlane.xlu0 %1280
  %v1282 = vsel %vm849, %v737, 0.0
  %1283 = vadd.xlane.f32.xlu0 %v1282
  %v1284 = vpop.xlane.xlu0 %1283
  %v1285 = vsel %vm849, %v738, 0.0
  %1286 = vadd.xlane.f32.xlu0 %v1285
  %v1287 = vpop.xlane.xlu0 %1286
  %v1288 = vsel %vm849, %v739, 0.0
  %1289 = vadd.xlane.f32.xlu0 %v1288
  %v1290 = vpop.xlane.xlu0 %1289
  %v1291 = vsel %vm849, %v740, 0.0
  %1292 = vadd.xlane.f32.xlu0 %v1291
  %v1293 = vpop.xlane.xlu0 %1292
  %v1294 = vsel %vm849, %v741, 0.0
  %1295 = vadd.xlane.f32.xlu0 %v1294
  %v1296 = vpop.xlane.xlu0 %1295
  %v1297 = vsel %vm849, %v742, 0.0
  %1298 = vadd.xlane.f32.xlu0 %v1297
  %v1299 = vpop.xlane.xlu0 %1298
  %v1300 = vsel %vm849, %v743, 0.0
  %1301 = vadd.xlane.f32.xlu0 %v1300
  %v1302 = vpop.xlane.xlu0 %1301
  %v1303 = vsel %vm849, %v744, 0.0
  %1304 = vadd.xlane.f32.xlu0 %v1303
  %v1305 = vpop.xlane.xlu0 %1304
  %v1306 = vsel %vm849, %v745, 0.0
  %1307 = vadd.xlane.f32.xlu0 %v1306
  %v1308 = vpop.xlane.xlu0 %1307
  %v1309 = vsel %vm849, %v746, 0.0
  %1310 = vadd.xlane.f32.xlu0 %v1309
  %v1311 = vpop.xlane.xlu0 %1310
  %v1312 = vsel %vm849, %v747, 0.0
  %1313 = vadd.xlane.f32.xlu0 %v1312
  %v1314 = vpop.xlane.xlu0 %1313
  %v1315 = vsel %vm849, %v748, 0.0
  %1316 = vadd.xlane.f32.xlu0 %v1315
  %v1317 = vpop.xlane.xlu0 %1316
  %v1318 = vsel %vm849, %v749, 0.0
  %1319 = vadd.xlane.f32.xlu0 %v1318
  %v1320 = vpop.xlane.xlu0 %1319
  %v1321 = vsel %vm849, %v750, 0.0
  %1322 = vadd.xlane.f32.xlu0 %v1321
  %v1323 = vpop.xlane.xlu0 %1322
  %v1324 = vsel %vm849, %v751, 0.0
  %1325 = vadd.xlane.f32.xlu0 %v1324
  %v1326 = vpop.xlane.xlu0 %1325
  %v1327 = vsel %vm849, %v752, 0.0
  %1328 = vadd.xlane.f32.xlu0 %v1327
  %v1329 = vpop.xlane.xlu0 %1328
  %v1330 = vsel %vm849, %v753, 0.0
  %1331 = vadd.xlane.f32.xlu0 %v1330
  %v1332 = vpop.xlane.xlu0 %1331
  %v1333 = vsel %vm849, %v754, 0.0
  %1334 = vadd.xlane.f32.xlu0 %v1333
  %v1335 = vpop.xlane.xlu0 %1334
  %v1336 = vsel %vm849, %v755, 0.0
  %1337 = vadd.xlane.f32.xlu0 %v1336
  %v1338 = vpop.xlane.xlu0 %1337
  %v1339 = vsel %vm849, %v756, 0.0
  %1340 = vadd.xlane.f32.xlu0 %v1339
  %v1341 = vpop.xlane.xlu0 %1340
  %v1342 = vsel %vm849, %v757, 0.0
  %1343 = vadd.xlane.f32.xlu0 %v1342
  %v1344 = vpop.xlane.xlu0 %1343
  %v1345 = vsel %vm849, %v758, 0.0
  %1346 = vadd.xlane.f32.xlu0 %v1345
  %v1347 = vpop.xlane.xlu0 %1346
  %v1348 = vsel %vm849, %v759, 0.0
  %1349 = vadd.xlane.f32.xlu0 %v1348
  %v1350 = vpop.xlane.xlu0 %1349
  %v1351 = vsel %vm849, %v760, 0.0
  %1352 = vadd.xlane.f32.xlu0 %v1351
  %v1353 = vpop.xlane.xlu0 %1352
  %v1354 = vsel %vm849, %v761, 0.0
  %1355 = vadd.xlane.f32.xlu0 %v1354
  %v1356 = vpop.xlane.xlu0 %1355
  %v1357 = vsel %vm849, %v762, 0.0
  %1358 = vadd.xlane.f32.xlu0 %v1357
  %v1359 = vpop.xlane.xlu0 %1358
  %v1360 = vsel %vm849, %v763, 0.0
  %1361 = vadd.xlane.f32.xlu0 %v1360
  %v1362 = vpop.xlane.xlu0 %1361
  %v1363 = vsel %vm849, %v764, 0.0
  %1364 = vadd.xlane.f32.xlu0 %v1363
  %v1365 = vpop.xlane.xlu0 %1364
  %v1366 = vsel %vm849, %v765, 0.0
  %1367 = vadd.xlane.f32.xlu0 %v1366
  %v1368 = vpop.xlane.xlu0 %1367
  %v1369 = vsel %vm849, %v766, 0.0
  %1370 = vadd.xlane.f32.xlu0 %v1369
  %v1371 = vpop.xlane.xlu0 %1370
  %v1372 = vsel %vm849, %v767, 0.0
  %1373 = vadd.xlane.f32.xlu0 %v1372
  %v1374 = vpop.xlane.xlu0 %1373
  %v1375 = vsel %vm849, %v768, 0.0
  %1376 = vadd.xlane.f32.xlu0 %v1375
  %v1377 = vpop.xlane.xlu0 %1376
  %v1378 = vsel %vm849, %v769, 0.0
  %1379 = vadd.xlane.f32.xlu0 %v1378
  %v1380 = vpop.xlane.xlu0 %1379
  %v1381 = vsel %vm849, %v770, 0.0
  %1382 = vadd.xlane.f32.xlu0 %v1381
  %v1383 = vpop.xlane.xlu0 %1382
  %v1384 = vsel %vm849, %v771, 0.0
  %1385 = vadd.xlane.f32.xlu0 %v1384
  %v1386 = vpop.xlane.xlu0 %1385
  %v1387 = vsel %vm849, %v772, 0.0
  %1388 = vadd.xlane.f32.xlu0 %v1387
  %v1389 = vpop.xlane.xlu0 %1388
  %v1390 = vsel %vm849, %v773, 0.0
  %1391 = vadd.xlane.f32.xlu0 %v1390
  %v1392 = vpop.xlane.xlu0 %1391
  %v1393 = vsel %vm849, %v774, 0.0
  %1394 = vadd.xlane.f32.xlu0 %v1393
  %v1395 = vpop.xlane.xlu0 %1394
  %v1396 = vsel %vm849, %v775, 0.0
  %1397 = vadd.xlane.f32.xlu0 %v1396
  %v1398 = vpop.xlane.xlu0 %1397
  %v1399 = vsel %vm849, %v776, 0.0
  %1400 = vadd.xlane.f32.xlu0 %v1399
  %v1401 = vpop.xlane.xlu0 %1400
  %v1402 = vsel %vm849, %v777, 0.0
  %1403 = vadd.xlane.f32.xlu0 %v1402
  %v1404 = vpop.xlane.xlu0 %1403
  %v1405 = vsel %vm849, %v778, 0.0
  %1406 = vadd.xlane.f32.xlu0 %v1405
  %v1407 = vpop.xlane.xlu0 %1406
  %v1408 = vsel %vm849, %v779, 0.0
  %1409 = vadd.xlane.f32.xlu0 %v1408
  %v1410 = vpop.xlane.xlu0 %1409
  %v1411 = vsel %vm849, %v780, 0.0
  %1412 = vadd.xlane.f32.xlu0 %v1411
  %v1413 = vpop.xlane.xlu0 %1412
  %v1414 = vsel %vm849, %v781, 0.0
  %1415 = vadd.xlane.f32.xlu0 %v1414
  %v1416 = vpop.xlane.xlu0 %1415
  %v1417 = vsel %vm849, %v782, 0.0
  %1418 = vadd.xlane.f32.xlu0 %v1417
  %v1419 = vpop.xlane.xlu0 %1418
  %v1420 = vsel %vm849, %v783, 0.0
  %1421 = vadd.xlane.f32.xlu0 %v1420
  %v1422 = vpop.xlane.xlu0 %1421
  %v1423 = vsel %vm849, %v784, 0.0
  %1424 = vadd.xlane.f32.xlu0 %v1423
  %v1425 = vpop.xlane.xlu0 %1424
  %v1426 = vsel %vm849, %v785, 0.0
  %1427 = vadd.xlane.f32.xlu0 %v1426
  %v1428 = vpop.xlane.xlu0 %1427
  %v1429 = vsel %vm849, %v786, 0.0
  %1430 = vadd.xlane.f32.xlu0 %v1429
  %v1431 = vpop.xlane.xlu0 %1430
  %v1432 = vsel %vm849, %v787, 0.0
  %1433 = vadd.xlane.f32.xlu0 %v1432
  %v1434 = vpop.xlane.xlu0 %1433
  %v1435 = vsel %vm849, %v788, 0.0
  %1436 = vadd.xlane.f32.xlu0 %v1435
  %v1437 = vpop.xlane.xlu0 %1436
  %v1438 = vsel %vm849, %v789, 0.0
  %1439 = vadd.xlane.f32.xlu0 %v1438
  %v1440 = vpop.xlane.xlu0 %1439
  %v1441 = vsel %vm849, %v790, 0.0
  %1442 = vadd.xlane.f32.xlu0 %v1441
  %v1443 = vpop.xlane.xlu0 %1442
  %v1444 = vsel %vm849, %v791, 0.0
  %1445 = vadd.xlane.f32.xlu0 %v1444
  %v1446 = vpop.xlane.xlu0 %1445
  %v1447 = vsel %vm849, %v792, 0.0
  %1448 = vadd.xlane.f32.xlu0 %v1447
  %v1449 = vpop.xlane.xlu0 %1448
  %v1450 = vsel %vm849, %v793, 0.0
  %1451 = vadd.xlane.f32.xlu0 %v1450
  %v1452 = vpop.xlane.xlu0 %1451
  %v1453 = vsel %vm849, %v794, 0.0
  %1454 = vadd.xlane.f32.xlu0 %v1453
  %v1455 = vpop.xlane.xlu0 %1454
  %v1456 = vsel %vm849, %v795, 0.0
  %1457 = vadd.xlane.f32.xlu0 %v1456
  %v1458 = vpop.xlane.xlu0 %1457
  %v1459 = vsel %vm849, %v796, 0.0
  %1460 = vadd.xlane.f32.xlu0 %v1459
  %v1461 = vpop.xlane.xlu0 %1460
  %v1462 = vsel %vm849, %v797, 0.0
  %1463 = vadd.xlane.f32.xlu0 %v1462
  %v1464 = vpop.xlane.xlu0 %1463
  %v1465 = vsel %vm849, %v798, 0.0
  %1466 = vadd.xlane.f32.xlu0 %v1465
  %v1467 = vpop.xlane.xlu0 %1466
  %v1468 = vsel %vm849, %v799, 0.0
  %1469 = vadd.xlane.f32.xlu0 %v1468
  %v1470 = vpop.xlane.xlu0 %1469
  %v1471 = vsel %vm849, %v800, 0.0
  %1472 = vadd.xlane.f32.xlu0 %v1471
  %v1473 = vpop.xlane.xlu0 %1472
  %v1474 = vsel %vm849, %v801, 0.0
  %1475 = vadd.xlane.f32.xlu0 %v1474
  %v1476 = vpop.xlane.xlu0 %1475
  %v1477 = vsel %vm849, %v802, 0.0
  %1478 = vadd.xlane.f32.xlu0 %v1477
  %v1479 = vpop.xlane.xlu0 %1478
  %v1480 = vsel %vm849, %v803, 0.0
  %1481 = vadd.xlane.f32.xlu0 %v1480
  %v1482 = vpop.xlane.xlu0 %1481
  %v1483 = vsel %vm849, %v804, 0.0
  %1484 = vadd.xlane.f32.xlu0 %v1483
  %v1485 = vpop.xlane.xlu0 %1484
  %v1486 = vsel %vm849, %v805, 0.0
  %1487 = vadd.xlane.f32.xlu0 %v1486
  %v1488 = vpop.xlane.xlu0 %1487
  %v1489 = vsel %vm849, %v806, 0.0
  %1490 = vadd.xlane.f32.xlu0 %v1489
  %v1491 = vpop.xlane.xlu0 %1490
  %v1492 = vsel %vm849, %v807, 0.0
  %1493 = vadd.xlane.f32.xlu0 %v1492
  %v1494 = vpop.xlane.xlu0 %1493
  %v1495 = vsel %vm849, %v808, 0.0
  %1496 = vadd.xlane.f32.xlu0 %v1495
  %v1497 = vpop.xlane.xlu0 %1496
  %v1498 = vsel %vm849, %v809, 0.0
  %1499 = vadd.xlane.f32.xlu0 %v1498
  %v1500 = vpop.xlane.xlu0 %1499
  %v1501 = vsel %vm849, %v810, 0.0
  %1502 = vadd.xlane.f32.xlu0 %v1501
  %v1503 = vpop.xlane.xlu0 %1502
  %v1504 = vsel %vm849, %v811, 0.0
  %1505 = vadd.xlane.f32.xlu0 %v1504
  %v1506 = vpop.xlane.xlu0 %1505
  %v1507 = vsel %vm849, %v812, 0.0
  %1508 = vadd.xlane.f32.xlu0 %v1507
  %v1509 = vpop.xlane.xlu0 %1508
  %v1510 = vsel %vm849, %v813, 0.0
  %1511 = vadd.xlane.f32.xlu0 %v1510
  %v1512 = vpop.xlane.xlu0 %1511
  %v1513 = vsel %vm849, %v814, 0.0
  %1514 = vadd.xlane.f32.xlu0 %v1513
  %v1515 = vpop.xlane.xlu0 %1514
  %v1516 = vsel %vm849, %v815, 0.0
  %1517 = vadd.xlane.f32.xlu0 %v1516
  %v1518 = vpop.xlane.xlu0 %1517
  %v1519 = vsel %vm849, %v816, 0.0
  %1520 = vadd.xlane.f32.xlu0 %v1519
  %v1521 = vpop.xlane.xlu0 %1520
  %v1522 = vsel %vm849, %v817, 0.0
  %1523 = vadd.xlane.f32.xlu0 %v1522
  %v1524 = vpop.xlane.xlu0 %1523
  %v1525 = vsel %vm849, %v818, 0.0
  %1526 = vadd.xlane.f32.xlu0 %v1525
  %v1527 = vpop.xlane.xlu0 %1526
  %v1528 = vsel %vm849, %v819, 0.0
  %1529 = vadd.xlane.f32.xlu0 %v1528
  %v1530 = vpop.xlane.xlu0 %1529
  %v1531 = vsel %vm849, %v820, 0.0
  %1532 = vadd.xlane.f32.xlu0 %v1531
  %v1533 = vpop.xlane.xlu0 %1532
  %v1534 = vsel %vm849, %v821, 0.0
  %1535 = vadd.xlane.f32.xlu0 %v1534
  %v1536 = vpop.xlane.xlu0 %1535
  %v1537 = vsel %vm849, %v822, 0.0
  %1538 = vadd.xlane.f32.xlu0 %v1537
  %v1539 = vpop.xlane.xlu0 %1538
  %v1540 = vsel %vm849, %v823, 0.0
  %1541 = vadd.xlane.f32.xlu0 %v1540
  %v1542 = vpop.xlane.xlu0 %1541
  %v1543 = vsel %vm849, %v824, 0.0
  %1544 = vadd.xlane.f32.xlu0 %v1543
  %v1545 = vpop.xlane.xlu0 %1544
  %v1546 = vsel %vm849, %v825, 0.0
  %1547 = vadd.xlane.f32.xlu0 %v1546
  %v1548 = vpop.xlane.xlu0 %1547
  %v1549 = vsel %vm849, %v826, 0.0
  %1550 = vadd.xlane.f32.xlu0 %v1549
  %v1551 = vpop.xlane.xlu0 %1550
  %v1552 = vsel %vm849, %v827, 0.0
  %1553 = vadd.xlane.f32.xlu0 %v1552
  %v1554 = vpop.xlane.xlu0 %1553
  %v1555 = vsel %vm849, %v828, 0.0
  %1556 = vadd.xlane.f32.xlu0 %v1555
  %v1557 = vpop.xlane.xlu0 %1556
  %v1558 = vsel %vm849, %v829, 0.0
  %1559 = vadd.xlane.f32.xlu0 %v1558
  %v1560 = vpop.xlane.xlu0 %1559
  %v1561 = vsel %vm849, %v830, 0.0
  %1562 = vadd.xlane.f32.xlu0 %v1561
  %v1563 = vpop.xlane.xlu0 %1562
  %v1564 = vsel %vm849, %v831, 0.0
  %1565 = vadd.xlane.f32.xlu0 %v1564
  %v1566 = vpop.xlane.xlu0 %1565
  %v1567 = vsel %vm849, %v832, 0.0
  %1568 = vadd.xlane.f32.xlu0 %v1567
  %v1569 = vpop.xlane.xlu0 %1568
  %v1570 = vsel %vm849, %v833, 0.0
  %1571 = vadd.xlane.f32.xlu0 %v1570
  %v1572 = vpop.xlane.xlu0 %1571
  %v1573 = vsel %vm849, %v834, 0.0
  %1574 = vadd.xlane.f32.xlu0 %v1573
  %v1575 = vpop.xlane.xlu0 %1574
  %v1576 = vsel %vm849, %v835, 0.0
  %1577 = vadd.xlane.f32.xlu0 %v1576
  %v1578 = vpop.xlane.xlu0 %1577
  %v1579 = vsel %vm849, %v836, 0.0
  %1580 = vadd.xlane.f32.xlu0 %v1579
  %v1581 = vpop.xlane.xlu0 %1580
  %v1582 = vsel %vm849, %v837, 0.0
  %1583 = vadd.xlane.f32.xlu0 %v1582
  %v1584 = vpop.xlane.xlu0 %1583
  %v1585 = vsel %vm849, %v838, 0.0
  %1586 = vadd.xlane.f32.xlu0 %v1585
  %v1587 = vpop.xlane.xlu0 %1586
  %v1588 = vsel %vm849, %v839, 0.0
  %1589 = vadd.xlane.f32.xlu0 %v1588
  %v1590 = vpop.xlane.xlu0 %1589
  %v1591 = vsel %vm849, %v840, 0.0
  %1592 = vadd.xlane.f32.xlu0 %v1591
  %v1593 = vpop.xlane.xlu0 %1592
  %v1594 = vsel %vm849, %v841, 0.0
  %1595 = vadd.xlane.f32.xlu0 %v1594
  %v1596 = vpop.xlane.xlu0 %1595
  %v1597 = vsel %vm849, %v842, 0.0
  %1598 = vadd.xlane.f32.xlu0 %v1597
  %v1599 = vpop.xlane.xlu0 %1598
  %v1600 = vsel %vm849, %v843, 0.0
  %1601 = vadd.xlane.f32.xlu0 %v1600
  %v1602 = vpop.xlane.xlu0 %1601
  %v1603 = vsel %vm849, %v844, 0.0
  %1604 = vadd.xlane.f32.xlu0 %v1603
  %v1605 = vpop.xlane.xlu0 %1604
  %v1606 = vsel %vm849, %v845, 0.0
  %1607 = vadd.xlane.f32.xlu0 %v1606
  %v1608 = vpop.xlane.xlu0 %1607
  %v1609 = vsel %vm849, %v846, 0.0
  %1610 = vadd.xlane.f32.xlu0 %v1609
  %v1611 = vpop.xlane.xlu0 %1610
  %v1612 = vsel %vm849, %v847, 0.0
  %1613 = vadd.xlane.f32.xlu0 %v1612
  %v1614 = vpop.xlane.xlu0 %1613
  %v1615 = vsel %vm849, %v848, 0.0
  %1616 = vadd.xlane.f32.xlu0 %v1615
  %v1617 = vpop.xlane.xlu0 %1616
  %v1618 = vld [vmem:[%s2] sm:$0xf]
  %v1875 = vlaneseq
  %v1876 = vand.u32 %v1875, 127
  %v1877 = vlaneseq
  %v1878 = vshrl.u32 %v1877, 7
  %v1879 = vsub.s32 %v1876, %v1878
  %v1880 = vrot.slane %v852, %v1879
  %v1881 = vadd.s32 %v1876, 4294967288
  %v1882 = vlaneseq
  %v1883 = vshrl.u32 %v1882, 7
  %v1884 = vsub.s32 %v1881, %v1883
  %v1885 = vrot.slane %v855, %v1884
  %vm1886 = vcmask 130112
  %v1887 = vsel %vm1886, %v1885, %v1880
  %v1888 = vadd.s32 %v1876, 4294967280
  %v1889 = vlaneseq
  %v1890 = vshrl.u32 %v1889, 7
  %v1891 = vsub.s32 %v1888, %v1890
  %v1892 = vrot.slane %v858, %v1891
  %vm1893 = vcmask 195712
  %v1894 = vsel %vm1893, %v1892, %v1887
  %v1895 = vadd.s32 %v1876, 4294967272
  %v1896 = vlaneseq
  %v1897 = vshrl.u32 %v1896, 7
  %v1898 = vsub.s32 %v1895, %v1897
  %v1899 = vrot.slane %v861, %v1898
  %vm1900 = vcmask 261312
  %v1901 = vsel %vm1900, %v1899, %v1894
  %v1902 = vadd.s32 %v1876, 4294967264
  %v1903 = vlaneseq
  %v1904 = vshrl.u32 %v1903, 7
  %v1905 = vsub.s32 %v1902, %v1904
  %v1906 = vrot.slane %v864, %v1905
  %vm1907 = vcmask 326912
  %v1908 = vsel %vm1907, %v1906, %v1901
  %v1909 = vadd.s32 %v1876, 4294967256
  %v1910 = vlaneseq
  %v1911 = vshrl.u32 %v1910, 7
  %v1912 = vsub.s32 %v1909, %v1911
  %v1913 = vrot.slane %v867, %v1912
  %vm1914 = vcmask 392512
  %v1915 = vsel %vm1914, %v1913, %v1908
  %v1916 = vadd.s32 %v1876, 4294967248
  %v1917 = vlaneseq
  %v1918 = vshrl.u32 %v1917, 7
  %v1919 = vsub.s32 %v1916, %v1918
  %v1920 = vrot.slane %v870, %v1919
  %vm1921 = vcmask 458112
  %v1922 = vsel %vm1921, %v1920, %v1915
  %v1923 = vadd.s32 %v1876, 4294967240
  %v1924 = vlaneseq
  %v1925 = vshrl.u32 %v1924, 7
  %v1926 = vsub.s32 %v1923, %v1925
  %v1927 = vrot.slane %v873, %v1926
  %vm1928 = vcmask 523712
  %v1929 = vsel %vm1928, %v1927, %v1922
  %v1930 = vadd.s32 %v1876, 4294967232
  %v1931 = vlaneseq
  %v1932 = vshrl.u32 %v1931, 7
  %v1933 = vsub.s32 %v1930, %v1932
  %v1934 = vrot.slane %v876, %v1933
  %vm1935 = vcmask 589312
  %v1936 = vsel %vm1935, %v1934, %v1929
  %v1937 = vadd.s32 %v1876, 4294967224
  %v1938 = vlaneseq
  %v1939 = vshrl.u32 %v1938, 7
  %v1940 = vsub.s32 %v1937, %v1939
  %v1941 = vrot.slane %v879, %v1940
  %vm1942 = vcmask 654912
  %v1943 = vsel %vm1942, %v1941, %v1936
  %v1944 = vadd.s32 %v1876, 4294967216
  %v1945 = vlaneseq
  %v1946 = vshrl.u32 %v1945, 7
  %v1947 = vsub.s32 %v1944, %v1946
  %v1948 = vrot.slane %v882, %v1947
  %vm1949 = vcmask 720512
  %v1950 = vsel %vm1949, %v1948, %v1943
  %v1951 = vadd.s32 %v1876, 4294967208
  %v1952 = vlaneseq
  %v1953 = vshrl.u32 %v1952, 7
  %v1954 = vsub.s32 %v1951, %v1953
  %v1955 = vrot.slane %v885, %v1954
  %vm1956 = vcmask 786112
  %v1957 = vsel %vm1956, %v1955, %v1950
  %v1958 = vadd.s32 %v1876, 4294967200
  %v1959 = vlaneseq
  %v1960 = vshrl.u32 %v1959, 7
  %v1961 = vsub.s32 %v1958, %v1960
  %v1962 = vrot.slane %v888, %v1961
  %vm1963 = vcmask 851712
  %v1964 = vsel %vm1963, %v1962, %v1957
  %v1965 = vadd.s32 %v1876, 4294967192
  %v1966 = vlaneseq
  %v1967 = vshrl.u32 %v1966, 7
  %v1968 = vsub.s32 %v1965, %v1967
  %v1969 = vrot.slane %v891, %v1968
  %vm1970 = vcmask 917312
  %v1971 = vsel %vm1970, %v1969, %v1964
  %v1972 = vadd.s32 %v1876, 4294967184
  %v1973 = vlaneseq
  %v1974 = vshrl.u32 %v1973, 7
  %v1975 = vsub.s32 %v1972, %v1974
  %v1976 = vrot.slane %v894, %v1975
  %vm1977 = vcmask 982912
  %v1978 = vsel %vm1977, %v1976, %v1971
  %v1979 = vadd.s32 %v1876, 4294967176
  %v1980 = vlaneseq
  %v1981 = vshrl.u32 %v1980, 7
  %v1982 = vsub.s32 %v1979, %v1981
  %v1983 = vrot.slane %v897, %v1982
  %vm1984 = vcmask 1048512
  %v1985 = vsel %vm1984, %v1983, %v1978
  %v1986 = vlaneseq
  %v1987 = vshrl.u32 %v1986, 7
  %v1988 = vsub.s32 %v1876, %v1987
  %v1989 = vrot.slane %v900, %v1988
  %v1990 = vlaneseq
  %v1991 = vshrl.u32 %v1990, 7
  %v1992 = vsub.s32 %v1881, %v1991
  %v1993 = vrot.slane %v903, %v1992
  %v1994 = vsel %vm1886, %v1993, %v1989
  %v1995 = vlaneseq
  %v1996 = vshrl.u32 %v1995, 7
  %v1997 = vsub.s32 %v1888, %v1996
  %v1998 = vrot.slane %v906, %v1997
  %v1999 = vsel %vm1893, %v1998, %v1994
  %v2000 = vlaneseq
  %v2001 = vshrl.u32 %v2000, 7
  %v2002 = vsub.s32 %v1895, %v2001
  %v2003 = vrot.slane %v909, %v2002
  %v2004 = vsel %vm1900, %v2003, %v1999
  %v2005 = vlaneseq
  %v2006 = vshrl.u32 %v2005, 7
  %v2007 = vsub.s32 %v1902, %v2006
  %v2008 = vrot.slane %v912, %v2007
  %v2009 = vsel %vm1907, %v2008, %v2004
  %v2010 = vlaneseq
  %v2011 = vshrl.u32 %v2010, 7
  %v2012 = vsub.s32 %v1909, %v2011
  %v2013 = vrot.slane %v915, %v2012
  %v2014 = vsel %vm1914, %v2013, %v2009
  %v2015 = vlaneseq
  %v2016 = vshrl.u32 %v2015, 7
  %v2017 = vsub.s32 %v1916, %v2016
  %v2018 = vrot.slane %v918, %v2017
  %v2019 = vsel %vm1921, %v2018, %v2014
  %v2020 = vlaneseq
  %v2021 = vshrl.u32 %v2020, 7
  %v2022 = vsub.s32 %v1923, %v2021
  %v2023 = vrot.slane %v921, %v2022
  %v2024 = vsel %vm1928, %v2023, %v2019
  %v2025 = vlaneseq
  %v2026 = vshrl.u32 %v2025, 7
  %v2027 = vsub.s32 %v1930, %v2026
  %v2028 = vrot.slane %v924, %v2027
  %v2029 = vsel %vm1935, %v2028, %v2024
  %v2030 = vlaneseq
  %v2031 = vshrl.u32 %v2030, 7
  %v2032 = vsub.s32 %v1937, %v2031
  %v2033 = vrot.slane %v927, %v2032
  %v2034 = vsel %vm1942, %v2033, %v2029
  %v2035 = vlaneseq
  %v2036 = vshrl.u32 %v2035, 7
  %v2037 = vsub.s32 %v1944, %v2036
  %v2038 = vrot.slane %v930, %v2037
  %v2039 = vsel %vm1949, %v2038, %v2034
  %v2040 = vlaneseq
  %v2041 = vshrl.u32 %v2040, 7
  %v2042 = vsub.s32 %v1951, %v2041
  %v2043 = vrot.slane %v933, %v2042
  %v2044 = vsel %vm1956, %v2043, %v2039
  %v2045 = vlaneseq
  %v2046 = vshrl.u32 %v2045, 7
  %v2047 = vsub.s32 %v1958, %v2046
  %v2048 = vrot.slane %v936, %v2047
  %v2049 = vsel %vm1963, %v2048, %v2044
  %v2050 = vlaneseq
  %v2051 = vshrl.u32 %v2050, 7
  %v2052 = vsub.s32 %v1965, %v2051
  %v2053 = vrot.slane %v939, %v2052
  %v2054 = vsel %vm1970, %v2053, %v2049
  %v2055 = vlaneseq
  %v2056 = vshrl.u32 %v2055, 7
  %v2057 = vsub.s32 %v1972, %v2056
  %v2058 = vrot.slane %v942, %v2057
  %v2059 = vsel %vm1977, %v2058, %v2054
  %v2060 = vlaneseq
  %v2061 = vshrl.u32 %v2060, 7
  %v2062 = vsub.s32 %v1979, %v2061
  %v2063 = vrot.slane %v945, %v2062
  %v2064 = vsel %vm1984, %v2063, %v2059
  %v2065 = vlaneseq
  %v2066 = vshrl.u32 %v2065, 7
  %v2067 = vsub.s32 %v1876, %v2066
  %v2068 = vrot.slane %v948, %v2067
  %v2069 = vlaneseq
  %v2070 = vshrl.u32 %v2069, 7
  %v2071 = vsub.s32 %v1881, %v2070
  %v2072 = vrot.slane %v951, %v2071
  %v2073 = vsel %vm1886, %v2072, %v2068
  %v2074 = vlaneseq
  %v2075 = vshrl.u32 %v2074, 7
  %v2076 = vsub.s32 %v1888, %v2075
  %v2077 = vrot.slane %v954, %v2076
  %v2078 = vsel %vm1893, %v2077, %v2073
  %v2079 = vlaneseq
  %v2080 = vshrl.u32 %v2079, 7
  %v2081 = vsub.s32 %v1895, %v2080
  %v2082 = vrot.slane %v957, %v2081
  %v2083 = vsel %vm1900, %v2082, %v2078
  %v2084 = vlaneseq
  %v2085 = vshrl.u32 %v2084, 7
  %v2086 = vsub.s32 %v1902, %v2085
  %v2087 = vrot.slane %v960, %v2086
  %v2088 = vsel %vm1907, %v2087, %v2083
  %v2089 = vlaneseq
  %v2090 = vshrl.u32 %v2089, 7
  %v2091 = vsub.s32 %v1909, %v2090
  %v2092 = vrot.slane %v963, %v2091
  %v2093 = vsel %vm1914, %v2092, %v2088
  %v2094 = vlaneseq
  %v2095 = vshrl.u32 %v2094, 7
  %v2096 = vsub.s32 %v1916, %v2095
  %v2097 = vrot.slane %v966, %v2096
  %v2098 = vsel %vm1921, %v2097, %v2093
  %v2099 = vlaneseq
  %v2100 = vshrl.u32 %v2099, 7
  %v2101 = vsub.s32 %v1923, %v2100
  %v2102 = vrot.slane %v969, %v2101
  %v2103 = vsel %vm1928, %v2102, %v2098
  %v2104 = vlaneseq
  %v2105 = vshrl.u32 %v2104, 7
  %v2106 = vsub.s32 %v1930, %v2105
  %v2107 = vrot.slane %v972, %v2106
  %v2108 = vsel %vm1935, %v2107, %v2103
  %v2109 = vlaneseq
  %v2110 = vshrl.u32 %v2109, 7
  %v2111 = vsub.s32 %v1937, %v2110
  %v2112 = vrot.slane %v975, %v2111
  %v2113 = vsel %vm1942, %v2112, %v2108
  %v2114 = vlaneseq
  %v2115 = vshrl.u32 %v2114, 7
  %v2116 = vsub.s32 %v1944, %v2115
  %v2117 = vrot.slane %v978, %v2116
  %v2118 = vsel %vm1949, %v2117, %v2113
  %v2119 = vlaneseq
  %v2120 = vshrl.u32 %v2119, 7
  %v2121 = vsub.s32 %v1951, %v2120
  %v2122 = vrot.slane %v981, %v2121
  %v2123 = vsel %vm1956, %v2122, %v2118
  %v2124 = vlaneseq
  %v2125 = vshrl.u32 %v2124, 7
  %v2126 = vsub.s32 %v1958, %v2125
  %v2127 = vrot.slane %v984, %v2126
  %v2128 = vsel %vm1963, %v2127, %v2123
  %v2129 = vlaneseq
  %v2130 = vshrl.u32 %v2129, 7
  %v2131 = vsub.s32 %v1965, %v2130
  %v2132 = vrot.slane %v987, %v2131
  %v2133 = vsel %vm1970, %v2132, %v2128
  %v2134 = vlaneseq
  %v2135 = vshrl.u32 %v2134, 7
  %v2136 = vsub.s32 %v1972, %v2135
  %v2137 = vrot.slane %v990, %v2136
  %v2138 = vsel %vm1977, %v2137, %v2133
  %v2139 = vlaneseq
  %v2140 = vshrl.u32 %v2139, 7
  %v2141 = vsub.s32 %v1979, %v2140
  %v2142 = vrot.slane %v993, %v2141
  %v2143 = vsel %vm1984, %v2142, %v2138
  %v2144 = vlaneseq
  %v2145 = vshrl.u32 %v2144, 7
  %v2146 = vsub.s32 %v1876, %v2145
  %v2147 = vrot.slane %v996, %v2146
  %v2148 = vlaneseq
  %v2149 = vshrl.u32 %v2148, 7
  %v2150 = vsub.s32 %v1881, %v2149
  %v2151 = vrot.slane %v999, %v2150
  %v2152 = vsel %vm1886, %v2151, %v2147
  %v2153 = vlaneseq
  %v2154 = vshrl.u32 %v2153, 7
  %v2155 = vsub.s32 %v1888, %v2154
  %v2156 = vrot.slane %v1002, %v2155
  %v2157 = vsel %vm1893, %v2156, %v2152
  %v2158 = vlaneseq
  %v2159 = vshrl.u32 %v2158, 7
  %v2160 = vsub.s32 %v1895, %v2159
  %v2161 = vrot.slane %v1005, %v2160
  %v2162 = vsel %vm1900, %v2161, %v2157
  %v2163 = vlaneseq
  %v2164 = vshrl.u32 %v2163, 7
  %v2165 = vsub.s32 %v1902, %v2164
  %v2166 = vrot.slane %v1008, %v2165
  %v2167 = vsel %vm1907, %v2166, %v2162
  %v2168 = vlaneseq
  %v2169 = vshrl.u32 %v2168, 7
  %v2170 = vsub.s32 %v1909, %v2169
  %v2171 = vrot.slane %v1011, %v2170
  %v2172 = vsel %vm1914, %v2171, %v2167
  %v2173 = vlaneseq
  %v2174 = vshrl.u32 %v2173, 7
  %v2175 = vsub.s32 %v1916, %v2174
  %v2176 = vrot.slane %v1014, %v2175
  %v2177 = vsel %vm1921, %v2176, %v2172
  %v2178 = vlaneseq
  %v2179 = vshrl.u32 %v2178, 7
  %v2180 = vsub.s32 %v1923, %v2179
  %v2181 = vrot.slane %v1017, %v2180
  %v2182 = vsel %vm1928, %v2181, %v2177
  %v2183 = vlaneseq
  %v2184 = vshrl.u32 %v2183, 7
  %v2185 = vsub.s32 %v1930, %v2184
  %v2186 = vrot.slane %v1020, %v2185
  %v2187 = vsel %vm1935, %v2186, %v2182
  %v2188 = vlaneseq
  %v2189 = vshrl.u32 %v2188, 7
  %v2190 = vsub.s32 %v1937, %v2189
  %v2191 = vrot.slane %v1023, %v2190
  %v2192 = vsel %vm1942, %v2191, %v2187
  %v2193 = vlaneseq
  %v2194 = vshrl.u32 %v2193, 7
  %v2195 = vsub.s32 %v1944, %v2194
  %v2196 = vrot.slane %v1026, %v2195
  %v2197 = vsel %vm1949, %v2196, %v2192
  %v2198 = vlaneseq
  %v2199 = vshrl.u32 %v2198, 7
  %v2200 = vsub.s32 %v1951, %v2199
  %v2201 = vrot.slane %v1029, %v2200
  %v2202 = vsel %vm1956, %v2201, %v2197
  %v2203 = vlaneseq
  %v2204 = vshrl.u32 %v2203, 7
  %v2205 = vsub.s32 %v1958, %v2204
  %v2206 = vrot.slane %v1032, %v2205
  %v2207 = vsel %vm1963, %v2206, %v2202
  %v2208 = vlaneseq
  %v2209 = vshrl.u32 %v2208, 7
  %v2210 = vsub.s32 %v1965, %v2209
  %v2211 = vrot.slane %v1035, %v2210
  %v2212 = vsel %vm1970, %v2211, %v2207
  %v2213 = vlaneseq
  %v2214 = vshrl.u32 %v2213, 7
  %v2215 = vsub.s32 %v1972, %v2214
  %v2216 = vrot.slane %v1038, %v2215
  %v2217 = vsel %vm1977, %v2216, %v2212
  %v2218 = vlaneseq
  %v2219 = vshrl.u32 %v2218, 7
  %v2220 = vsub.s32 %v1979, %v2219
  %v2221 = vrot.slane %v1041, %v2220
  %v2222 = vsel %vm1984, %v2221, %v2217
  %v2223 = vlaneseq
  %v2224 = vshrl.u32 %v2223, 7
  %v2225 = vsub.s32 %v1876, %v2224
  %v2226 = vrot.slane %v1044, %v2225
  %v2227 = vlaneseq
  %v2228 = vshrl.u32 %v2227, 7
  %v2229 = vsub.s32 %v1881, %v2228
  %v2230 = vrot.slane %v1047, %v2229
  %v2231 = vsel %vm1886, %v2230, %v2226
  %v2232 = vlaneseq
  %v2233 = vshrl.u32 %v2232, 7
  %v2234 = vsub.s32 %v1888, %v2233
  %v2235 = vrot.slane %v1050, %v2234
  %v2236 = vsel %vm1893, %v2235, %v2231
  %v2237 = vlaneseq
  %v2238 = vshrl.u32 %v2237, 7
  %v2239 = vsub.s32 %v1895, %v2238
  %v2240 = vrot.slane %v1053, %v2239
  %v2241 = vsel %vm1900, %v2240, %v2236
  %v2242 = vlaneseq
  %v2243 = vshrl.u32 %v2242, 7
  %v2244 = vsub.s32 %v1902, %v2243
  %v2245 = vrot.slane %v1056, %v2244
  %v2246 = vsel %vm1907, %v2245, %v2241
  %v2247 = vlaneseq
  %v2248 = vshrl.u32 %v2247, 7
  %v2249 = vsub.s32 %v1909, %v2248
  %v2250 = vrot.slane %v1059, %v2249
  %v2251 = vsel %vm1914, %v2250, %v2246
  %v2252 = vlaneseq
  %v2253 = vshrl.u32 %v2252, 7
  %v2254 = vsub.s32 %v1916, %v2253
  %v2255 = vrot.slane %v1062, %v2254
  %v2256 = vsel %vm1921, %v2255, %v2251
  %v2257 = vlaneseq
  %v2258 = vshrl.u32 %v2257, 7
  %v2259 = vsub.s32 %v1923, %v2258
  %v2260 = vrot.slane %v1065, %v2259
  %v2261 = vsel %vm1928, %v2260, %v2256
  %v2262 = vlaneseq
  %v2263 = vshrl.u32 %v2262, 7
  %v2264 = vsub.s32 %v1930, %v2263
  %v2265 = vrot.slane %v1068, %v2264
  %v2266 = vsel %vm1935, %v2265, %v2261
  %v2267 = vlaneseq
  %v2268 = vshrl.u32 %v2267, 7
  %v2269 = vsub.s32 %v1937, %v2268
  %v2270 = vrot.slane %v1071, %v2269
  %v2271 = vsel %vm1942, %v2270, %v2266
  %v2272 = vlaneseq
  %v2273 = vshrl.u32 %v2272, 7
  %v2274 = vsub.s32 %v1944, %v2273
  %v2275 = vrot.slane %v1074, %v2274
  %v2276 = vsel %vm1949, %v2275, %v2271
  %v2277 = vlaneseq
  %v2278 = vshrl.u32 %v2277, 7
  %v2279 = vsub.s32 %v1951, %v2278
  %v2280 = vrot.slane %v1077, %v2279
  %v2281 = vsel %vm1956, %v2280, %v2276
  %v2282 = vlaneseq
  %v2283 = vshrl.u32 %v2282, 7
  %v2284 = vsub.s32 %v1958, %v2283
  %v2285 = vrot.slane %v1080, %v2284
  %v2286 = vsel %vm1963, %v2285, %v2281
  %v2287 = vlaneseq
  %v2288 = vshrl.u32 %v2287, 7
  %v2289 = vsub.s32 %v1965, %v2288
  %v2290 = vrot.slane %v1083, %v2289
  %v2291 = vsel %vm1970, %v2290, %v2286
  %v2292 = vlaneseq
  %v2293 = vshrl.u32 %v2292, 7
  %v2294 = vsub.s32 %v1972, %v2293
  %v2295 = vrot.slane %v1086, %v2294
  %v2296 = vsel %vm1977, %v2295, %v2291
  %v2297 = vlaneseq
  %v2298 = vshrl.u32 %v2297, 7
  %v2299 = vsub.s32 %v1979, %v2298
  %v2300 = vrot.slane %v1089, %v2299
  %v2301 = vsel %vm1984, %v2300, %v2296
  %v2302 = vlaneseq
  %v2303 = vshrl.u32 %v2302, 7
  %v2304 = vsub.s32 %v1876, %v2303
  %v2305 = vrot.slane %v1092, %v2304
  %v2306 = vlaneseq
  %v2307 = vshrl.u32 %v2306, 7
  %v2308 = vsub.s32 %v1881, %v2307
  %v2309 = vrot.slane %v1095, %v2308
  %v2310 = vsel %vm1886, %v2309, %v2305
  %v2311 = vlaneseq
  %v2312 = vshrl.u32 %v2311, 7
  %v2313 = vsub.s32 %v1888, %v2312
  %v2314 = vrot.slane %v1098, %v2313
  %v2315 = vsel %vm1893, %v2314, %v2310
  %v2316 = vlaneseq
  %v2317 = vshrl.u32 %v2316, 7
  %v2318 = vsub.s32 %v1895, %v2317
  %v2319 = vrot.slane %v1101, %v2318
  %v2320 = vsel %vm1900, %v2319, %v2315
  %v2321 = vlaneseq
  %v2322 = vshrl.u32 %v2321, 7
  %v2323 = vsub.s32 %v1902, %v2322
  %v2324 = vrot.slane %v1104, %v2323
  %v2325 = vsel %vm1907, %v2324, %v2320
  %v2326 = vlaneseq
  %v2327 = vshrl.u32 %v2326, 7
  %v2328 = vsub.s32 %v1909, %v2327
  %v2329 = vrot.slane %v1107, %v2328
  %v2330 = vsel %vm1914, %v2329, %v2325
  %v2331 = vlaneseq
  %v2332 = vshrl.u32 %v2331, 7
  %v2333 = vsub.s32 %v1916, %v2332
  %v2334 = vrot.slane %v1110, %v2333
  %v2335 = vsel %vm1921, %v2334, %v2330
  %v2336 = vlaneseq
  %v2337 = vshrl.u32 %v2336, 7
  %v2338 = vsub.s32 %v1923, %v2337
  %v2339 = vrot.slane %v1113, %v2338
  %v2340 = vsel %vm1928, %v2339, %v2335
  %v2341 = vlaneseq
  %v2342 = vshrl.u32 %v2341, 7
  %v2343 = vsub.s32 %v1930, %v2342
  %v2344 = vrot.slane %v1116, %v2343
  %v2345 = vsel %vm1935, %v2344, %v2340
  %v2346 = vlaneseq
  %v2347 = vshrl.u32 %v2346, 7
  %v2348 = vsub.s32 %v1937, %v2347
  %v2349 = vrot.slane %v1119, %v2348
  %v2350 = vsel %vm1942, %v2349, %v2345
  %v2351 = vlaneseq
  %v2352 = vshrl.u32 %v2351, 7
  %v2353 = vsub.s32 %v1944, %v2352
  %v2354 = vrot.slane %v1122, %v2353
  %v2355 = vsel %vm1949, %v2354, %v2350
  %v2356 = vlaneseq
  %v2357 = vshrl.u32 %v2356, 7
  %v2358 = vsub.s32 %v1951, %v2357
  %v2359 = vrot.slane %v1125, %v2358
  %v2360 = vsel %vm1956, %v2359, %v2355
  %v2361 = vlaneseq
  %v2362 = vshrl.u32 %v2361, 7
  %v2363 = vsub.s32 %v1958, %v2362
  %v2364 = vrot.slane %v1128, %v2363
  %v2365 = vsel %vm1963, %v2364, %v2360
  %v2366 = vlaneseq
  %v2367 = vshrl.u32 %v2366, 7
  %v2368 = vsub.s32 %v1965, %v2367
  %v2369 = vrot.slane %v1131, %v2368
  %v2370 = vsel %vm1970, %v2369, %v2365
  %v2371 = vlaneseq
  %v2372 = vshrl.u32 %v2371, 7
  %v2373 = vsub.s32 %v1972, %v2372
  %v2374 = vrot.slane %v1134, %v2373
  %v2375 = vsel %vm1977, %v2374, %v2370
  %v2376 = vlaneseq
  %v2377 = vshrl.u32 %v2376, 7
  %v2378 = vsub.s32 %v1979, %v2377
  %v2379 = vrot.slane %v1137, %v2378
  %v2380 = vsel %vm1984, %v2379, %v2375
  %v2381 = vlaneseq
  %v2382 = vshrl.u32 %v2381, 7
  %v2383 = vsub.s32 %v1876, %v2382
  %v2384 = vrot.slane %v1140, %v2383
  %v2385 = vlaneseq
  %v2386 = vshrl.u32 %v2385, 7
  %v2387 = vsub.s32 %v1881, %v2386
  %v2388 = vrot.slane %v1143, %v2387
  %v2389 = vsel %vm1886, %v2388, %v2384
  %v2390 = vlaneseq
  %v2391 = vshrl.u32 %v2390, 7
  %v2392 = vsub.s32 %v1888, %v2391
  %v2393 = vrot.slane %v1146, %v2392
  %v2394 = vsel %vm1893, %v2393, %v2389
  %v2395 = vlaneseq
  %v2396 = vshrl.u32 %v2395, 7
  %v2397 = vsub.s32 %v1895, %v2396
  %v2398 = vrot.slane %v1149, %v2397
  %v2399 = vsel %vm1900, %v2398, %v2394
  %v2400 = vlaneseq
  %v2401 = vshrl.u32 %v2400, 7
  %v2402 = vsub.s32 %v1902, %v2401
  %v2403 = vrot.slane %v1152, %v2402
  %v2404 = vsel %vm1907, %v2403, %v2399
  %v2405 = vlaneseq
  %v2406 = vshrl.u32 %v2405, 7
  %v2407 = vsub.s32 %v1909, %v2406
  %v2408 = vrot.slane %v1155, %v2407
  %v2409 = vsel %vm1914, %v2408, %v2404
  %v2410 = vlaneseq
  %v2411 = vshrl.u32 %v2410, 7
  %v2412 = vsub.s32 %v1916, %v2411
  %v2413 = vrot.slane %v1158, %v2412
  %v2414 = vsel %vm1921, %v2413, %v2409
  %v2415 = vlaneseq
  %v2416 = vshrl.u32 %v2415, 7
  %v2417 = vsub.s32 %v1923, %v2416
  %v2418 = vrot.slane %v1161, %v2417
  %v2419 = vsel %vm1928, %v2418, %v2414
  %v2420 = vlaneseq
  %v2421 = vshrl.u32 %v2420, 7
  %v2422 = vsub.s32 %v1930, %v2421
  %v2423 = vrot.slane %v1164, %v2422
  %v2424 = vsel %vm1935, %v2423, %v2419
  %v2425 = vlaneseq
  %v2426 = vshrl.u32 %v2425, 7
  %v2427 = vsub.s32 %v1937, %v2426
  %v2428 = vrot.slane %v1167, %v2427
  %v2429 = vsel %vm1942, %v2428, %v2424
  %v2430 = vlaneseq
  %v2431 = vshrl.u32 %v2430, 7
  %v2432 = vsub.s32 %v1944, %v2431
  %v2433 = vrot.slane %v1170, %v2432
  %v2434 = vsel %vm1949, %v2433, %v2429
  %v2435 = vlaneseq
  %v2436 = vshrl.u32 %v2435, 7
  %v2437 = vsub.s32 %v1951, %v2436
  %v2438 = vrot.slane %v1173, %v2437
  %v2439 = vsel %vm1956, %v2438, %v2434
  %v2440 = vlaneseq
  %v2441 = vshrl.u32 %v2440, 7
  %v2442 = vsub.s32 %v1958, %v2441
  %v2443 = vrot.slane %v1176, %v2442
  %v2444 = vsel %vm1963, %v2443, %v2439
  %v2445 = vlaneseq
  %v2446 = vshrl.u32 %v2445, 7
  %v2447 = vsub.s32 %v1965, %v2446
  %v2448 = vrot.slane %v1179, %v2447
  %v2449 = vsel %vm1970, %v2448, %v2444
  %v2450 = vlaneseq
  %v2451 = vshrl.u32 %v2450, 7
  %v2452 = vsub.s32 %v1972, %v2451
  %v2453 = vrot.slane %v1182, %v2452
  %v2454 = vsel %vm1977, %v2453, %v2449
  %v2455 = vlaneseq
  %v2456 = vshrl.u32 %v2455, 7
  %v2457 = vsub.s32 %v1979, %v2456
  %v2458 = vrot.slane %v1185, %v2457
  %v2459 = vsel %vm1984, %v2458, %v2454
  %v2460 = vlaneseq
  %v2461 = vshrl.u32 %v2460, 7
  %v2462 = vsub.s32 %v1876, %v2461
  %v2463 = vrot.slane %v1188, %v2462
  %v2464 = vlaneseq
  %v2465 = vshrl.u32 %v2464, 7
  %v2466 = vsub.s32 %v1881, %v2465
  %v2467 = vrot.slane %v1191, %v2466
  %v2468 = vsel %vm1886, %v2467, %v2463
  %v2469 = vlaneseq
  %v2470 = vshrl.u32 %v2469, 7
  %v2471 = vsub.s32 %v1888, %v2470
  %v2472 = vrot.slane %v1194, %v2471
  %v2473 = vsel %vm1893, %v2472, %v2468
  %v2474 = vlaneseq
  %v2475 = vshrl.u32 %v2474, 7
  %v2476 = vsub.s32 %v1895, %v2475
  %v2477 = vrot.slane %v1197, %v2476
  %v2478 = vsel %vm1900, %v2477, %v2473
  %v2479 = vlaneseq
  %v2480 = vshrl.u32 %v2479, 7
  %v2481 = vsub.s32 %v1902, %v2480
  %v2482 = vrot.slane %v1200, %v2481
  %v2483 = vsel %vm1907, %v2482, %v2478
  %v2484 = vlaneseq
  %v2485 = vshrl.u32 %v2484, 7
  %v2486 = vsub.s32 %v1909, %v2485
  %v2487 = vrot.slane %v1203, %v2486
  %v2488 = vsel %vm1914, %v2487, %v2483
  %v2489 = vlaneseq
  %v2490 = vshrl.u32 %v2489, 7
  %v2491 = vsub.s32 %v1916, %v2490
  %v2492 = vrot.slane %v1206, %v2491
  %v2493 = vsel %vm1921, %v2492, %v2488
  %v2494 = vlaneseq
  %v2495 = vshrl.u32 %v2494, 7
  %v2496 = vsub.s32 %v1923, %v2495
  %v2497 = vrot.slane %v1209, %v2496
  %v2498 = vsel %vm1928, %v2497, %v2493
  %v2499 = vlaneseq
  %v2500 = vshrl.u32 %v2499, 7
  %v2501 = vsub.s32 %v1930, %v2500
  %v2502 = vrot.slane %v1212, %v2501
  %v2503 = vsel %vm1935, %v2502, %v2498
  %v2504 = vlaneseq
  %v2505 = vshrl.u32 %v2504, 7
  %v2506 = vsub.s32 %v1937, %v2505
  %v2507 = vrot.slane %v1215, %v2506
  %v2508 = vsel %vm1942, %v2507, %v2503
  %v2509 = vlaneseq
  %v2510 = vshrl.u32 %v2509, 7
  %v2511 = vsub.s32 %v1944, %v2510
  %v2512 = vrot.slane %v1218, %v2511
  %v2513 = vsel %vm1949, %v2512, %v2508
  %v2514 = vlaneseq
  %v2515 = vshrl.u32 %v2514, 7
  %v2516 = vsub.s32 %v1951, %v2515
  %v2517 = vrot.slane %v1221, %v2516
  %v2518 = vsel %vm1956, %v2517, %v2513
  %v2519 = vlaneseq
  %v2520 = vshrl.u32 %v2519, 7
  %v2521 = vsub.s32 %v1958, %v2520
  %v2522 = vrot.slane %v1224, %v2521
  %v2523 = vsel %vm1963, %v2522, %v2518
  %v2524 = vlaneseq
  %v2525 = vshrl.u32 %v2524, 7
  %v2526 = vsub.s32 %v1965, %v2525
  %v2527 = vrot.slane %v1227, %v2526
  %v2528 = vsel %vm1970, %v2527, %v2523
  %v2529 = vlaneseq
  %v2530 = vshrl.u32 %v2529, 7
  %v2531 = vsub.s32 %v1972, %v2530
  %v2532 = vrot.slane %v1230, %v2531
  %v2533 = vsel %vm1977, %v2532, %v2528
  %v2534 = vlaneseq
  %v2535 = vshrl.u32 %v2534, 7
  %v2536 = vsub.s32 %v1979, %v2535
  %v2537 = vrot.slane %v1233, %v2536
  %v2538 = vsel %vm1984, %v2537, %v2533
  %v2539 = vlaneseq
  %v2540 = vshrl.u32 %v2539, 7
  %v2541 = vsub.s32 %v1876, %v2540
  %v2542 = vrot.slane %v1236, %v2541
  %v2543 = vlaneseq
  %v2544 = vshrl.u32 %v2543, 7
  %v2545 = vsub.s32 %v1881, %v2544
  %v2546 = vrot.slane %v1239, %v2545
  %v2547 = vsel %vm1886, %v2546, %v2542
  %v2548 = vlaneseq
  %v2549 = vshrl.u32 %v2548, 7
  %v2550 = vsub.s32 %v1888, %v2549
  %v2551 = vrot.slane %v1242, %v2550
  %v2552 = vsel %vm1893, %v2551, %v2547
  %v2553 = vlaneseq
  %v2554 = vshrl.u32 %v2553, 7
  %v2555 = vsub.s32 %v1895, %v2554
  %v2556 = vrot.slane %v1245, %v2555
  %v2557 = vsel %vm1900, %v2556, %v2552
  %v2558 = vlaneseq
  %v2559 = vshrl.u32 %v2558, 7
  %v2560 = vsub.s32 %v1902, %v2559
  %v2561 = vrot.slane %v1248, %v2560
  %v2562 = vsel %vm1907, %v2561, %v2557
  %v2563 = vlaneseq
  %v2564 = vshrl.u32 %v2563, 7
  %v2565 = vsub.s32 %v1909, %v2564
  %v2566 = vrot.slane %v1251, %v2565
  %v2567 = vsel %vm1914, %v2566, %v2562
  %v2568 = vlaneseq
  %v2569 = vshrl.u32 %v2568, 7
  %v2570 = vsub.s32 %v1916, %v2569
  %v2571 = vrot.slane %v1254, %v2570
  %v2572 = vsel %vm1921, %v2571, %v2567
  %v2573 = vlaneseq
  %v2574 = vshrl.u32 %v2573, 7
  %v2575 = vsub.s32 %v1923, %v2574
  %v2576 = vrot.slane %v1257, %v2575
  %v2577 = vsel %vm1928, %v2576, %v2572
  %v2578 = vlaneseq
  %v2579 = vshrl.u32 %v2578, 7
  %v2580 = vsub.s32 %v1930, %v2579
  %v2581 = vrot.slane %v1260, %v2580
  %v2582 = vsel %vm1935, %v2581, %v2577
  %v2583 = vlaneseq
  %v2584 = vshrl.u32 %v2583, 7
  %v2585 = vsub.s32 %v1937, %v2584
  %v2586 = vrot.slane %v1263, %v2585
  %v2587 = vsel %vm1942, %v2586, %v2582
  %v2588 = vlaneseq
  %v2589 = vshrl.u32 %v2588, 7
  %v2590 = vsub.s32 %v1944, %v2589
  %v2591 = vrot.slane %v1266, %v2590
  %v2592 = vsel %vm1949, %v2591, %v2587
  %v2593 = vlaneseq
  %v2594 = vshrl.u32 %v2593, 7
  %v2595 = vsub.s32 %v1951, %v2594
  %v2596 = vrot.slane %v1269, %v2595
  %v2597 = vsel %vm1956, %v2596, %v2592
  %v2598 = vlaneseq
  %v2599 = vshrl.u32 %v2598, 7
  %v2600 = vsub.s32 %v1958, %v2599
  %v2601 = vrot.slane %v1272, %v2600
  %v2602 = vsel %vm1963, %v2601, %v2597
  %v2603 = vlaneseq
  %v2604 = vshrl.u32 %v2603, 7
  %v2605 = vsub.s32 %v1965, %v2604
  %v2606 = vrot.slane %v1275, %v2605
  %v2607 = vsel %vm1970, %v2606, %v2602
  %v2608 = vlaneseq
  %v2609 = vshrl.u32 %v2608, 7
  %v2610 = vsub.s32 %v1972, %v2609
  %v2611 = vrot.slane %v1278, %v2610
  %v2612 = vsel %vm1977, %v2611, %v2607
  %v2613 = vlaneseq
  %v2614 = vshrl.u32 %v2613, 7
  %v2615 = vsub.s32 %v1979, %v2614
  %v2616 = vrot.slane %v1281, %v2615
  %v2617 = vsel %vm1984, %v2616, %v2612
  %v2618 = vlaneseq
  %v2619 = vshrl.u32 %v2618, 7
  %v2620 = vsub.s32 %v1876, %v2619
  %v2621 = vrot.slane %v1284, %v2620
  %v2622 = vlaneseq
  %v2623 = vshrl.u32 %v2622, 7
  %v2624 = vsub.s32 %v1881, %v2623
  %v2625 = vrot.slane %v1287, %v2624
  %v2626 = vsel %vm1886, %v2625, %v2621
  %v2627 = vlaneseq
  %v2628 = vshrl.u32 %v2627, 7
  %v2629 = vsub.s32 %v1888, %v2628
  %v2630 = vrot.slane %v1290, %v2629
  %v2631 = vsel %vm1893, %v2630, %v2626
  %v2632 = vlaneseq
  %v2633 = vshrl.u32 %v2632, 7
  %v2634 = vsub.s32 %v1895, %v2633
  %v2635 = vrot.slane %v1293, %v2634
  %v2636 = vsel %vm1900, %v2635, %v2631
  %v2637 = vlaneseq
  %v2638 = vshrl.u32 %v2637, 7
  %v2639 = vsub.s32 %v1902, %v2638
  %v2640 = vrot.slane %v1296, %v2639
  %v2641 = vsel %vm1907, %v2640, %v2636
  %v2642 = vlaneseq
  %v2643 = vshrl.u32 %v2642, 7
  %v2644 = vsub.s32 %v1909, %v2643
  %v2645 = vrot.slane %v1299, %v2644
  %v2646 = vsel %vm1914, %v2645, %v2641
  %v2647 = vlaneseq
  %v2648 = vshrl.u32 %v2647, 7
  %v2649 = vsub.s32 %v1916, %v2648
  %v2650 = vrot.slane %v1302, %v2649
  %v2651 = vsel %vm1921, %v2650, %v2646
  %v2652 = vlaneseq
  %v2653 = vshrl.u32 %v2652, 7
  %v2654 = vsub.s32 %v1923, %v2653
  %v2655 = vrot.slane %v1305, %v2654
  %v2656 = vsel %vm1928, %v2655, %v2651
  %v2657 = vlaneseq
  %v2658 = vshrl.u32 %v2657, 7
  %v2659 = vsub.s32 %v1930, %v2658
  %v2660 = vrot.slane %v1308, %v2659
  %v2661 = vsel %vm1935, %v2660, %v2656
  %v2662 = vlaneseq
  %v2663 = vshrl.u32 %v2662, 7
  %v2664 = vsub.s32 %v1937, %v2663
  %v2665 = vrot.slane %v1311, %v2664
  %v2666 = vsel %vm1942, %v2665, %v2661
  %v2667 = vlaneseq
  %v2668 = vshrl.u32 %v2667, 7
  %v2669 = vsub.s32 %v1944, %v2668
  %v2670 = vrot.slane %v1314, %v2669
  %v2671 = vsel %vm1949, %v2670, %v2666
  %v2672 = vlaneseq
  %v2673 = vshrl.u32 %v2672, 7
  %v2674 = vsub.s32 %v1951, %v2673
  %v2675 = vrot.slane %v1317, %v2674
  %v2676 = vsel %vm1956, %v2675, %v2671
  %v2677 = vlaneseq
  %v2678 = vshrl.u32 %v2677, 7
  %v2679 = vsub.s32 %v1958, %v2678
  %v2680 = vrot.slane %v1320, %v2679
  %v2681 = vsel %vm1963, %v2680, %v2676
  %v2682 = vlaneseq
  %v2683 = vshrl.u32 %v2682, 7
  %v2684 = vsub.s32 %v1965, %v2683
  %v2685 = vrot.slane %v1323, %v2684
  %v2686 = vsel %vm1970, %v2685, %v2681
  %v2687 = vlaneseq
  %v2688 = vshrl.u32 %v2687, 7
  %v2689 = vsub.s32 %v1972, %v2688
  %v2690 = vrot.slane %v1326, %v2689
  %v2691 = vsel %vm1977, %v2690, %v2686
  %v2692 = vlaneseq
  %v2693 = vshrl.u32 %v2692, 7
  %v2694 = vsub.s32 %v1979, %v2693
  %v2695 = vrot.slane %v1329, %v2694
  %v2696 = vsel %vm1984, %v2695, %v2691
  %v2697 = vlaneseq
  %v2698 = vshrl.u32 %v2697, 7
  %v2699 = vsub.s32 %v1876, %v2698
  %v2700 = vrot.slane %v1332, %v2699
  %v2701 = vlaneseq
  %v2702 = vshrl.u32 %v2701, 7
  %v2703 = vsub.s32 %v1881, %v2702
  %v2704 = vrot.slane %v1335, %v2703
  %v2705 = vsel %vm1886, %v2704, %v2700
  %v2706 = vlaneseq
  %v2707 = vshrl.u32 %v2706, 7
  %v2708 = vsub.s32 %v1888, %v2707
  %v2709 = vrot.slane %v1338, %v2708
  %v2710 = vsel %vm1893, %v2709, %v2705
  %v2711 = vlaneseq
  %v2712 = vshrl.u32 %v2711, 7
  %v2713 = vsub.s32 %v1895, %v2712
  %v2714 = vrot.slane %v1341, %v2713
  %v2715 = vsel %vm1900, %v2714, %v2710
  %v2716 = vlaneseq
  %v2717 = vshrl.u32 %v2716, 7
  %v2718 = vsub.s32 %v1902, %v2717
  %v2719 = vrot.slane %v1344, %v2718
  %v2720 = vsel %vm1907, %v2719, %v2715
  %v2721 = vlaneseq
  %v2722 = vshrl.u32 %v2721, 7
  %v2723 = vsub.s32 %v1909, %v2722
  %v2724 = vrot.slane %v1347, %v2723
  %v2725 = vsel %vm1914, %v2724, %v2720
  %v2726 = vlaneseq
  %v2727 = vshrl.u32 %v2726, 7
  %v2728 = vsub.s32 %v1916, %v2727
  %v2729 = vrot.slane %v1350, %v2728
  %v2730 = vsel %vm1921, %v2729, %v2725
  %v2731 = vlaneseq
  %v2732 = vshrl.u32 %v2731, 7
  %v2733 = vsub.s32 %v1923, %v2732
  %v2734 = vrot.slane %v1353, %v2733
  %v2735 = vsel %vm1928, %v2734, %v2730
  %v2736 = vlaneseq
  %v2737 = vshrl.u32 %v2736, 7
  %v2738 = vsub.s32 %v1930, %v2737
  %v2739 = vrot.slane %v1356, %v2738
  %v2740 = vsel %vm1935, %v2739, %v2735
  %v2741 = vlaneseq
  %v2742 = vshrl.u32 %v2741, 7
  %v2743 = vsub.s32 %v1937, %v2742
  %v2744 = vrot.slane %v1359, %v2743
  %v2745 = vsel %vm1942, %v2744, %v2740
  %v2746 = vlaneseq
  %v2747 = vshrl.u32 %v2746, 7
  %v2748 = vsub.s32 %v1944, %v2747
  %v2749 = vrot.slane %v1362, %v2748
  %v2750 = vsel %vm1949, %v2749, %v2745
  %v2751 = vlaneseq
  %v2752 = vshrl.u32 %v2751, 7
  %v2753 = vsub.s32 %v1951, %v2752
  %v2754 = vrot.slane %v1365, %v2753
  %v2755 = vsel %vm1956, %v2754, %v2750
  %v2756 = vlaneseq
  %v2757 = vshrl.u32 %v2756, 7
  %v2758 = vsub.s32 %v1958, %v2757
  %v2759 = vrot.slane %v1368, %v2758
  %v2760 = vsel %vm1963, %v2759, %v2755
  %v2761 = vlaneseq
  %v2762 = vshrl.u32 %v2761, 7
  %v2763 = vsub.s32 %v1965, %v2762
  %v2764 = vrot.slane %v1371, %v2763
  %v2765 = vsel %vm1970, %v2764, %v2760
  %v2766 = vlaneseq
  %v2767 = vshrl.u32 %v2766, 7
  %v2768 = vsub.s32 %v1972, %v2767
  %v2769 = vrot.slane %v1374, %v2768
  %v2770 = vsel %vm1977, %v2769, %v2765
  %v2771 = vlaneseq
  %v2772 = vshrl.u32 %v2771, 7
  %v2773 = vsub.s32 %v1979, %v2772
  %v2774 = vrot.slane %v1377, %v2773
  %v2775 = vsel %vm1984, %v2774, %v2770
  %v2776 = vlaneseq
  %v2777 = vshrl.u32 %v2776, 7
  %v2778 = vsub.s32 %v1876, %v2777
  %v2779 = vrot.slane %v1380, %v2778
  %v2780 = vlaneseq
  %v2781 = vshrl.u32 %v2780, 7
  %v2782 = vsub.s32 %v1881, %v2781
  %v2783 = vrot.slane %v1383, %v2782
  %v2784 = vsel %vm1886, %v2783, %v2779
  %v2785 = vlaneseq
  %v2786 = vshrl.u32 %v2785, 7
  %v2787 = vsub.s32 %v1888, %v2786
  %v2788 = vrot.slane %v1386, %v2787
  %v2789 = vsel %vm1893, %v2788, %v2784
  %v2790 = vlaneseq
  %v2791 = vshrl.u32 %v2790, 7
  %v2792 = vsub.s32 %v1895, %v2791
  %v2793 = vrot.slane %v1389, %v2792
  %v2794 = vsel %vm1900, %v2793, %v2789
  %v2795 = vlaneseq
  %v2796 = vshrl.u32 %v2795, 7
  %v2797 = vsub.s32 %v1902, %v2796
  %v2798 = vrot.slane %v1392, %v2797
  %v2799 = vsel %vm1907, %v2798, %v2794
  %v2800 = vlaneseq
  %v2801 = vshrl.u32 %v2800, 7
  %v2802 = vsub.s32 %v1909, %v2801
  %v2803 = vrot.slane %v1395, %v2802
  %v2804 = vsel %vm1914, %v2803, %v2799
  %v2805 = vlaneseq
  %v2806 = vshrl.u32 %v2805, 7
  %v2807 = vsub.s32 %v1916, %v2806
  %v2808 = vrot.slane %v1398, %v2807
  %v2809 = vsel %vm1921, %v2808, %v2804
  %v2810 = vlaneseq
  %v2811 = vshrl.u32 %v2810, 7
  %v2812 = vsub.s32 %v1923, %v2811
  %v2813 = vrot.slane %v1401, %v2812
  %v2814 = vsel %vm1928, %v2813, %v2809
  %v2815 = vlaneseq
  %v2816 = vshrl.u32 %v2815, 7
  %v2817 = vsub.s32 %v1930, %v2816
  %v2818 = vrot.slane %v1404, %v2817
  %v2819 = vsel %vm1935, %v2818, %v2814
  %v2820 = vlaneseq
  %v2821 = vshrl.u32 %v2820, 7
  %v2822 = vsub.s32 %v1937, %v2821
  %v2823 = vrot.slane %v1407, %v2822
  %v2824 = vsel %vm1942, %v2823, %v2819
  %v2825 = vlaneseq
  %v2826 = vshrl.u32 %v2825, 7
  %v2827 = vsub.s32 %v1944, %v2826
  %v2828 = vrot.slane %v1410, %v2827
  %v2829 = vsel %vm1949, %v2828, %v2824
  %v2830 = vlaneseq
  %v2831 = vshrl.u32 %v2830, 7
  %v2832 = vsub.s32 %v1951, %v2831
  %v2833 = vrot.slane %v1413, %v2832
  %v2834 = vsel %vm1956, %v2833, %v2829
  %v2835 = vlaneseq
  %v2836 = vshrl.u32 %v2835, 7
  %v2837 = vsub.s32 %v1958, %v2836
  %v2838 = vrot.slane %v1416, %v2837
  %v2839 = vsel %vm1963, %v2838, %v2834
  %v2840 = vlaneseq
  %v2841 = vshrl.u32 %v2840, 7
  %v2842 = vsub.s32 %v1965, %v2841
  %v2843 = vrot.slane %v1419, %v2842
  %v2844 = vsel %vm1970, %v2843, %v2839
  %v2845 = vlaneseq
  %v2846 = vshrl.u32 %v2845, 7
  %v2847 = vsub.s32 %v1972, %v2846
  %v2848 = vrot.slane %v1422, %v2847
  %v2849 = vsel %vm1977, %v2848, %v2844
  %v2850 = vlaneseq
  %v2851 = vshrl.u32 %v2850, 7
  %v2852 = vsub.s32 %v1979, %v2851
  %v2853 = vrot.slane %v1425, %v2852
  %v2854 = vsel %vm1984, %v2853, %v2849
  %v2855 = vlaneseq
  %v2856 = vshrl.u32 %v2855, 7
  %v2857 = vsub.s32 %v1876, %v2856
  %v2858 = vrot.slane %v1428, %v2857
  %v2859 = vlaneseq
  %v2860 = vshrl.u32 %v2859, 7
  %v2861 = vsub.s32 %v1881, %v2860
  %v2862 = vrot.slane %v1431, %v2861
  %v2863 = vsel %vm1886, %v2862, %v2858
  %v2864 = vlaneseq
  %v2865 = vshrl.u32 %v2864, 7
  %v2866 = vsub.s32 %v1888, %v2865
  %v2867 = vrot.slane %v1434, %v2866
  %v2868 = vsel %vm1893, %v2867, %v2863
  %v2869 = vlaneseq
  %v2870 = vshrl.u32 %v2869, 7
  %v2871 = vsub.s32 %v1895, %v2870
  %v2872 = vrot.slane %v1437, %v2871
  %v2873 = vsel %vm1900, %v2872, %v2868
  %v2874 = vlaneseq
  %v2875 = vshrl.u32 %v2874, 7
  %v2876 = vsub.s32 %v1902, %v2875
  %v2877 = vrot.slane %v1440, %v2876
  %v2878 = vsel %vm1907, %v2877, %v2873
  %v2879 = vlaneseq
  %v2880 = vshrl.u32 %v2879, 7
  %v2881 = vsub.s32 %v1909, %v2880
  %v2882 = vrot.slane %v1443, %v2881
  %v2883 = vsel %vm1914, %v2882, %v2878
  %v2884 = vlaneseq
  %v2885 = vshrl.u32 %v2884, 7
  %v2886 = vsub.s32 %v1916, %v2885
  %v2887 = vrot.slane %v1446, %v2886
  %v2888 = vsel %vm1921, %v2887, %v2883
  %v2889 = vlaneseq
  %v2890 = vshrl.u32 %v2889, 7
  %v2891 = vsub.s32 %v1923, %v2890
  %v2892 = vrot.slane %v1449, %v2891
  %v2893 = vsel %vm1928, %v2892, %v2888
  %v2894 = vlaneseq
  %v2895 = vshrl.u32 %v2894, 7
  %v2896 = vsub.s32 %v1930, %v2895
  %v2897 = vrot.slane %v1452, %v2896
  %v2898 = vsel %vm1935, %v2897, %v2893
  %v2899 = vlaneseq
  %v2900 = vshrl.u32 %v2899, 7
  %v2901 = vsub.s32 %v1937, %v2900
  %v2902 = vrot.slane %v1455, %v2901
  %v2903 = vsel %vm1942, %v2902, %v2898
  %v2904 = vlaneseq
  %v2905 = vshrl.u32 %v2904, 7
  %v2906 = vsub.s32 %v1944, %v2905
  %v2907 = vrot.slane %v1458, %v2906
  %v2908 = vsel %vm1949, %v2907, %v2903
  %v2909 = vlaneseq
  %v2910 = vshrl.u32 %v2909, 7
  %v2911 = vsub.s32 %v1951, %v2910
  %v2912 = vrot.slane %v1461, %v2911
  %v2913 = vsel %vm1956, %v2912, %v2908
  %v2914 = vlaneseq
  %v2915 = vshrl.u32 %v2914, 7
  %v2916 = vsub.s32 %v1958, %v2915
  %v2917 = vrot.slane %v1464, %v2916
  %v2918 = vsel %vm1963, %v2917, %v2913
  %v2919 = vlaneseq
  %v2920 = vshrl.u32 %v2919, 7
  %v2921 = vsub.s32 %v1965, %v2920
  %v2922 = vrot.slane %v1467, %v2921
  %v2923 = vsel %vm1970, %v2922, %v2918
  %v2924 = vlaneseq
  %v2925 = vshrl.u32 %v2924, 7
  %v2926 = vsub.s32 %v1972, %v2925
  %v2927 = vrot.slane %v1470, %v2926
  %v2928 = vsel %vm1977, %v2927, %v2923
  %v2929 = vlaneseq
  %v2930 = vshrl.u32 %v2929, 7
  %v2931 = vsub.s32 %v1979, %v2930
  %v2932 = vrot.slane %v1473, %v2931
  %v2933 = vsel %vm1984, %v2932, %v2928
  %v2934 = vlaneseq
  %v2935 = vshrl.u32 %v2934, 7
  %v2936 = vsub.s32 %v1876, %v2935
  %v2937 = vrot.slane %v1476, %v2936
  %v2938 = vlaneseq
  %v2939 = vshrl.u32 %v2938, 7
  %v2940 = vsub.s32 %v1881, %v2939
  %v2941 = vrot.slane %v1479, %v2940
  %v2942 = vsel %vm1886, %v2941, %v2937
  %v2943 = vlaneseq
  %v2944 = vshrl.u32 %v2943, 7
  %v2945 = vsub.s32 %v1888, %v2944
  %v2946 = vrot.slane %v1482, %v2945
  %v2947 = vsel %vm1893, %v2946, %v2942
  %v2948 = vlaneseq
  %v2949 = vshrl.u32 %v2948, 7
  %v2950 = vsub.s32 %v1895, %v2949
  %v2951 = vrot.slane %v1485, %v2950
  %v2952 = vsel %vm1900, %v2951, %v2947
  %v2953 = vlaneseq
  %v2954 = vshrl.u32 %v2953, 7
  %v2955 = vsub.s32 %v1902, %v2954
  %v2956 = vrot.slane %v1488, %v2955
  %v2957 = vsel %vm1907, %v2956, %v2952
  %v2958 = vlaneseq
  %v2959 = vshrl.u32 %v2958, 7
  %v2960 = vsub.s32 %v1909, %v2959
  %v2961 = vrot.slane %v1491, %v2960
  %v2962 = vsel %vm1914, %v2961, %v2957
  %v2963 = vlaneseq
  %v2964 = vshrl.u32 %v2963, 7
  %v2965 = vsub.s32 %v1916, %v2964
  %v2966 = vrot.slane %v1494, %v2965
  %v2967 = vsel %vm1921, %v2966, %v2962
  %v2968 = vlaneseq
  %v2969 = vshrl.u32 %v2968, 7
  %v2970 = vsub.s32 %v1923, %v2969
  %v2971 = vrot.slane %v1497, %v2970
  %v2972 = vsel %vm1928, %v2971, %v2967
  %v2973 = vlaneseq
  %v2974 = vshrl.u32 %v2973, 7
  %v2975 = vsub.s32 %v1930, %v2974
  %v2976 = vrot.slane %v1500, %v2975
  %v2977 = vsel %vm1935, %v2976, %v2972
  %v2978 = vlaneseq
  %v2979 = vshrl.u32 %v2978, 7
  %v2980 = vsub.s32 %v1937, %v2979
  %v2981 = vrot.slane %v1503, %v2980
  %v2982 = vsel %vm1942, %v2981, %v2977
  %v2983 = vlaneseq
  %v2984 = vshrl.u32 %v2983, 7
  %v2985 = vsub.s32 %v1944, %v2984
  %v2986 = vrot.slane %v1506, %v2985
  %v2987 = vsel %vm1949, %v2986, %v2982
  %v2988 = vlaneseq
  %v2989 = vshrl.u32 %v2988, 7
  %v2990 = vsub.s32 %v1951, %v2989
  %v2991 = vrot.slane %v1509, %v2990
  %v2992 = vsel %vm1956, %v2991, %v2987
  %v2993 = vlaneseq
  %v2994 = vshrl.u32 %v2993, 7
  %v2995 = vsub.s32 %v1958, %v2994
  %v2996 = vrot.slane %v1512, %v2995
  %v2997 = vsel %vm1963, %v2996, %v2992
  %v2998 = vlaneseq
  %v2999 = vshrl.u32 %v2998, 7
  %v3000 = vsub.s32 %v1965, %v2999
  %v3001 = vrot.slane %v1515, %v3000
  %v3002 = vsel %vm1970, %v3001, %v2997
  %v3003 = vlaneseq
  %v3004 = vshrl.u32 %v3003, 7
  %v3005 = vsub.s32 %v1972, %v3004
  %v3006 = vrot.slane %v1518, %v3005
  %v3007 = vsel %vm1977, %v3006, %v3002
  %v3008 = vlaneseq
  %v3009 = vshrl.u32 %v3008, 7
  %v3010 = vsub.s32 %v1979, %v3009
  %v3011 = vrot.slane %v1521, %v3010
  %v3012 = vsel %vm1984, %v3011, %v3007
  %v3013 = vlaneseq
  %v3014 = vshrl.u32 %v3013, 7
  %v3015 = vsub.s32 %v1876, %v3014
  %v3016 = vrot.slane %v1524, %v3015
  %v3017 = vlaneseq
  %v3018 = vshrl.u32 %v3017, 7
  %v3019 = vsub.s32 %v1881, %v3018
  %v3020 = vrot.slane %v1527, %v3019
  %v3021 = vsel %vm1886, %v3020, %v3016
  %v3022 = vlaneseq
  %v3023 = vshrl.u32 %v3022, 7
  %v3024 = vsub.s32 %v1888, %v3023
  %v3025 = vrot.slane %v1530, %v3024
  %v3026 = vsel %vm1893, %v3025, %v3021
  %v3027 = vlaneseq
  %v3028 = vshrl.u32 %v3027, 7
  %v3029 = vsub.s32 %v1895, %v3028
  %v3030 = vrot.slane %v1533, %v3029
  %v3031 = vsel %vm1900, %v3030, %v3026
  %v3032 = vlaneseq
  %v3033 = vshrl.u32 %v3032, 7
  %v3034 = vsub.s32 %v1902, %v3033
  %v3035 = vrot.slane %v1536, %v3034
  %v3036 = vsel %vm1907, %v3035, %v3031
  %v3037 = vlaneseq
  %v3038 = vshrl.u32 %v3037, 7
  %v3039 = vsub.s32 %v1909, %v3038
  %v3040 = vrot.slane %v1539, %v3039
  %v3041 = vsel %vm1914, %v3040, %v3036
  %v3042 = vlaneseq
  %v3043 = vshrl.u32 %v3042, 7
  %v3044 = vsub.s32 %v1916, %v3043
  %v3045 = vrot.slane %v1542, %v3044
  %v3046 = vsel %vm1921, %v3045, %v3041
  %v3047 = vlaneseq
  %v3048 = vshrl.u32 %v3047, 7
  %v3049 = vsub.s32 %v1923, %v3048
  %v3050 = vrot.slane %v1545, %v3049
  %v3051 = vsel %vm1928, %v3050, %v3046
  %v3052 = vlaneseq
  %v3053 = vshrl.u32 %v3052, 7
  %v3054 = vsub.s32 %v1930, %v3053
  %v3055 = vrot.slane %v1548, %v3054
  %v3056 = vsel %vm1935, %v3055, %v3051
  %v3057 = vlaneseq
  %v3058 = vshrl.u32 %v3057, 7
  %v3059 = vsub.s32 %v1937, %v3058
  %v3060 = vrot.slane %v1551, %v3059
  %v3061 = vsel %vm1942, %v3060, %v3056
  %v3062 = vlaneseq
  %v3063 = vshrl.u32 %v3062, 7
  %v3064 = vsub.s32 %v1944, %v3063
  %v3065 = vrot.slane %v1554, %v3064
  %v3066 = vsel %vm1949, %v3065, %v3061
  %v3067 = vlaneseq
  %v3068 = vshrl.u32 %v3067, 7
  %v3069 = vsub.s32 %v1951, %v3068
  %v3070 = vrot.slane %v1557, %v3069
  %v3071 = vsel %vm1956, %v3070, %v3066
  %v3072 = vlaneseq
  %v3073 = vshrl.u32 %v3072, 7
  %v3074 = vsub.s32 %v1958, %v3073
  %v3075 = vrot.slane %v1560, %v3074
  %v3076 = vsel %vm1963, %v3075, %v3071
  %v3077 = vlaneseq
  %v3078 = vshrl.u32 %v3077, 7
  %v3079 = vsub.s32 %v1965, %v3078
  %v3080 = vrot.slane %v1563, %v3079
  %v3081 = vsel %vm1970, %v3080, %v3076
  %v3082 = vlaneseq
  %v3083 = vshrl.u32 %v3082, 7
  %v3084 = vsub.s32 %v1972, %v3083
  %v3085 = vrot.slane %v1566, %v3084
  %v3086 = vsel %vm1977, %v3085, %v3081
  %v3087 = vlaneseq
  %v3088 = vshrl.u32 %v3087, 7
  %v3089 = vsub.s32 %v1979, %v3088
  %v3090 = vrot.slane %v1569, %v3089
  %v3091 = vsel %vm1984, %v3090, %v3086
  %v3092 = vlaneseq
  %v3093 = vshrl.u32 %v3092, 7
  %v3094 = vsub.s32 %v1876, %v3093
  %v3095 = vrot.slane %v1572, %v3094
  %v3096 = vlaneseq
  %v3097 = vshrl.u32 %v3096, 7
  %v3098 = vsub.s32 %v1881, %v3097
  %v3099 = vrot.slane %v1575, %v3098
  %v3100 = vsel %vm1886, %v3099, %v3095
  %v3101 = vlaneseq
  %v3102 = vshrl.u32 %v3101, 7
  %v3103 = vsub.s32 %v1888, %v3102
  %v3104 = vrot.slane %v1578, %v3103
  %v3105 = vsel %vm1893, %v3104, %v3100
  %v3106 = vlaneseq
  %v3107 = vshrl.u32 %v3106, 7
  %v3108 = vsub.s32 %v1895, %v3107
  %v3109 = vrot.slane %v1581, %v3108
  %v3110 = vsel %vm1900, %v3109, %v3105
  %v3111 = vlaneseq
  %v3112 = vshrl.u32 %v3111, 7
  %v3113 = vsub.s32 %v1902, %v3112
  %v3114 = vrot.slane %v1584, %v3113
  %v3115 = vsel %vm1907, %v3114, %v3110
  %v3116 = vlaneseq
  %v3117 = vshrl.u32 %v3116, 7
  %v3118 = vsub.s32 %v1909, %v3117
  %v3119 = vrot.slane %v1587, %v3118
  %v3120 = vsel %vm1914, %v3119, %v3115
  %v3121 = vlaneseq
  %v3122 = vshrl.u32 %v3121, 7
  %v3123 = vsub.s32 %v1916, %v3122
  %v3124 = vrot.slane %v1590, %v3123
  %v3125 = vsel %vm1921, %v3124, %v3120
  %v3126 = vlaneseq
  %v3127 = vshrl.u32 %v3126, 7
  %v3128 = vsub.s32 %v1923, %v3127
  %v3129 = vrot.slane %v1593, %v3128
  %v3130 = vsel %vm1928, %v3129, %v3125
  %v3131 = vlaneseq
  %v3132 = vshrl.u32 %v3131, 7
  %v3133 = vsub.s32 %v1930, %v3132
  %v3134 = vrot.slane %v1596, %v3133
  %v3135 = vsel %vm1935, %v3134, %v3130
  %v3136 = vlaneseq
  %v3137 = vshrl.u32 %v3136, 7
  %v3138 = vsub.s32 %v1937, %v3137
  %v3139 = vrot.slane %v1599, %v3138
  %v3140 = vsel %vm1942, %v3139, %v3135
  %v3141 = vlaneseq
  %v3142 = vshrl.u32 %v3141, 7
  %v3143 = vsub.s32 %v1944, %v3142
  %v3144 = vrot.slane %v1602, %v3143
  %v3145 = vsel %vm1949, %v3144, %v3140
  %v3146 = vlaneseq
  %v3147 = vshrl.u32 %v3146, 7
  %v3148 = vsub.s32 %v1951, %v3147
  %v3149 = vrot.slane %v1605, %v3148
  %v3150 = vsel %vm1956, %v3149, %v3145
  %v3151 = vlaneseq
  %v3152 = vshrl.u32 %v3151, 7
  %v3153 = vsub.s32 %v1958, %v3152
  %v3154 = vrot.slane %v1608, %v3153
  %v3155 = vsel %vm1963, %v3154, %v3150
  %v3156 = vlaneseq
  %v3157 = vshrl.u32 %v3156, 7
  %v3158 = vsub.s32 %v1965, %v3157
  %v3159 = vrot.slane %v1611, %v3158
  %v3160 = vsel %vm1970, %v3159, %v3155
  %v3161 = vlaneseq
  %v3162 = vshrl.u32 %v3161, 7
  %v3163 = vsub.s32 %v1972, %v3162
  %v3164 = vrot.slane %v1614, %v3163
  %v3165 = vsel %vm1977, %v3164, %v3160
  %v3166 = vlaneseq
  %v3167 = vshrl.u32 %v3166, 7
  %v3168 = vsub.s32 %v1979, %v3167
  %v3169 = vrot.slane %v1617, %v3168
  %v3170 = vsel %vm1984, %v3169, %v3165
  %vm3171 = vcmask 1041409
  %v3172 = vsel %vm3171, %v2301, %v1985
  %vm3173 = vcmask 1042434
  %v3174 = vsel %vm3173, %v2617, %v3172
  %vm3175 = vcmask 1043459
  %v3176 = vsel %vm3175, %v2933, %v3174
  %v3177 = vsel %vm3171, %v2380, %v2064
  %v3178 = vsel %vm3173, %v2696, %v3177
  %v3179 = vsel %vm3175, %v3012, %v3178
  %v3180 = vsel %vm3171, %v2459, %v2143
  %v3181 = vsel %vm3173, %v2775, %v3180
  %v3182 = vsel %vm3175, %v3091, %v3181
  %v3183 = vsel %vm3171, %v2538, %v2222
  %v3184 = vsel %vm3173, %v2854, %v3183
  %v3185 = vsel %vm3175, %v3170, %v3184
  %vm3190 = vcmask 1043456
  %v3191 = vsel %vm3190, %v3176, 0.0
  %v3192 = vsel %vm3190, %v3179, 0.0
  %v3193 = vadd.f32 %v3191, %v3192
  %v3194 = vsel %vm3190, %v3182, 0.0
  %v3195 = vadd.f32 %v3193, %v3194
  %v3196 = vsel %vm3190, %v3185, 0.0
  %v3197 = vadd.f32 %v3195, %v3196
  %3198 = vadd.xlane.f32.xlu0 %v3197
  %v3199 = vpop.xlane.xlu0 %3198
  %v3200 = vadd.f32 %v1618, %v3199
  %vm3201 = vcmask 3072
  %3202 = vst.msk [vmem:[%s2] sm:$0xf] %vm3201, %v3200
  // Predicated region
  $region14: #{contrast_loss.15} parent=0 // pred_check
    _
  $region15: #{contrast_loss.15} parent=0 // pred_check_branch
    %3204 = sbr.rel (0) target = $region17
  $region16: #{contrast_loss.15} parent=0 // pred_region
    _
  $region17: #{contrast_loss.15} parent=0 // pred_fallthru
    _
  // Predicated region
  $region18: #{contrast_loss.15} parent=0 // pred_check
    _
  $region19: #{contrast_loss.15} parent=0 // pred_check_branch
    %3206 = sbr.rel (0) target = $region21
  $region20: #{contrast_loss.15} parent=0 // pred_region
    _
  $region21: #{contrast_loss.15} parent=0 // pred_fallthru
    _

// kernel: contrast_loss.11
$region0: #{contrast_loss.11}
  #allocation0 [shape = 'u32[]', space=smem, size = 0x4, offset = 0x4, fixed_abs, tag = 'smem constant byte address 0x4 - core index']
  #allocation1 [shape = 'u32[144,128]{1,0:T(1,128)}', space=vmem, size = 0x12000, scoped, tag = 'internal scratch']
  %s0 = inlined_call_operand.vmem [shape: bf16[1024,72], index: 0, kind: input, shape index: {}]
  %s1 = inlined_call_operand.vmem [shape: bf16[72,16], index: 1, kind: input, shape index: {}]
  %s2 = inlined_call_operand.vmem [shape: f32[1,16], index: 2, kind: input, shape index: {}]
  %s3 = inlined_call_operand.vmem [shape: f32[1024,16], index: 3, kind: output, shape index: {}]
  %s4 = sld [smem:[#allocation0]]
  $region45: #{contrast_loss.11} parent=0
    _
  %s6 = ssub.s32 1, %s4
  %s7 = scalar_select 0, %s6, %s4
  loop: start=0, step=1, limit=4
  $region2: #{contrast_loss.11} parent=0 // loop_pre_header
    _
  $region3: #{contrast_loss.11} parent=0 // loop_header
    %s9 = sphi 0, %s13
    %p10 = scmp.ge.s32.totalorder %s9, 4
    %s19 = sphi 0, %s21
    %s22 = sphi 0, %s19
    %s23 = sphi 0, %s22
    %s39 = sphi 0, %s23
    %s43 = sphi 0, %s43
    %s45 = sphi 0, %s43
    %s46 = sphi 0, %s45
    %s60 = sphi 0, %s46
    %s64 = sphi 0, %s64
    %s66 = sphi 0, %s64
    %s67 = sphi 0, %s66
    %s81 = sphi 0, %s67
    %s87 = sphi 0, %s89
    %s90 = sphi 0, %s87
    %s91 = sphi 0, %s90
    %s107 = sphi 0, %s91
  $region4: #{contrast_loss.11} parent=0 // loop_header_branch
    %12 = sbr.rel (%p10) target = $region8
  $region5: #{contrast_loss.11} parent=0 // loop_body
    %s14 = ssub.s32 %s9, 1
    %s15 = ssub.s32 %s9, 2
    %s16 = sadd.s32 %s9, 1
    %s17 = ssub.s32 %s9, %s16
    %p18 = scmp.eq.s32.totalorder %s17, 0
    %s20 = sadd.s32 %s19, 1
    %s21 = scalar_select %p18, %s19, %s20
    %p24 = pneg %p18
    %p25 = scmp.eq.s32.totalorder %s9, 1
    %p26 = por %p24, %p25
    %p27 = scmp.ne.s32.totalorder %s19, %s22
    %p28 = scmp.eq.s32.totalorder %s9, 0
    %p29 = por %p27, %p28
    %p30 = scmp.ne.s32.totalorder %s19, %s22
    %p31 = scmp.eq.s32.totalorder %s14, 1
    %p32 = por %p30, %p31
    %p33 = scmp.ne.s32.totalorder %s22, %s23
    %p34 = scmp.eq.s32.totalorder %s14, 0
    %p35 = por %p33, %p34
    %p36 = scmp.ne.s32.totalorder %s22, %s23
    %p37 = scmp.eq.s32.totalorder %s15, 1
    %p38 = por %p36, %p37
    %p40 = scmp.ne.s32.totalorder %s23, %s39
    %p41 = scmp.eq.s32.totalorder %s15, 0
    %p42 = por %p40, %p41
    %s44 = sadd.s32 %s43, 1
    %p47 = scmp.eq.s32.totalorder %s9, 1
    %p48 = scmp.ne.s32.totalorder %s43, %s45
    %p49 = scmp.eq.s32.totalorder %s9, 0
    %p50 = por %p48, %p49
    %p51 = scmp.ne.s32.totalorder %s43, %s45
    %p52 = scmp.eq.s32.totalorder %s14, 1
    %p53 = por %p51, %p52
    %p54 = scmp.ne.s32.totalorder %s45, %s46
    %p55 = scmp.eq.s32.totalorder %s14, 0
    %p56 = por %p54, %p55
    %p57 = scmp.ne.s32.totalorder %s45, %s46
    %p58 = scmp.eq.s32.totalorder %s15, 1
    %p59 = por %p57, %p58
    %p61 = scmp.ne.s32.totalorder %s46, %s60
    %p62 = scmp.eq.s32.totalorder %s15, 0
    %p63 = por %p61, %p62
    %s65 = sadd.s32 %s64, 1
    %p68 = scmp.eq.s32.totalorder %s9, 1
    %p69 = scmp.ne.s32.totalorder %s64, %s66
    %p70 = scmp.eq.s32.totalorder %s9, 0
    %p71 = por %p69, %p70
    %p72 = scmp.ne.s32.totalorder %s64, %s66
    %p73 = scmp.eq.s32.totalorder %s14, 1
    %p74 = por %p72, %p73
    %p75 = scmp.ne.s32.totalorder %s66, %s67
    %p76 = scmp.eq.s32.totalorder %s14, 0
    %p77 = por %p75, %p76
    %p78 = scmp.ne.s32.totalorder %s66, %s67
    %p79 = scmp.eq.s32.totalorder %s15, 1
    %p80 = por %p78, %p79
    %p82 = scmp.ne.s32.totalorder %s67, %s81
    %p83 = scmp.eq.s32.totalorder %s15, 0
    %p84 = por %p82, %p83
    %s85 = ssub.s32 %s9, %s16
    %p86 = scmp.eq.s32.totalorder %s85, 0
    %s88 = sadd.s32 %s87, 1
    %s89 = scalar_select %p86, %s87, %s88
    %p92 = pneg %p86
    %p93 = scmp.eq.s32.totalorder %s9, 1
    %p94 = por %p92, %p93
    %p95 = scmp.ne.s32.totalorder %s87, %s90
    %p96 = scmp.eq.s32.totalorder %s9, 0
    %p97 = por %p95, %p96
    %p98 = scmp.ne.s32.totalorder %s87, %s90
    %p99 = scmp.eq.s32.totalorder %s14, 1
    %p100 = por %p98, %p99
    %p101 = scmp.ne.s32.totalorder %s90, %s91
    %p102 = scmp.eq.s32.totalorder %s14, 0
    %p103 = por %p101, %p102
    %p104 = scmp.ne.s32.totalorder %s90, %s91
    %p105 = scmp.eq.s32.totalorder %s15, 1
    %p106 = por %p104, %p105
    %p108 = scmp.ne.s32.totalorder %s91, %s107
    %p109 = scmp.eq.s32.totalorder %s15, 0
    %p110 = por %p108, %p109
    %p111 = scmp.le.s32.totalorder 1, %s9
    %p112 = scmp.lt.s32.totalorder %s9, 3
    %p113 = pnand %p111, %p112
    %p114 = pneg %p113
    // Predicated region
    $region9: #{contrast_loss.11} parent=5 // pred_check
      _
    $region10: #{contrast_loss.11} parent=5 // pred_check_branch
      %116 = sbr.rel (%p113) target = $region12
    $region11: #{contrast_loss.11} parent=5 // pred_region
      %s117 = ssub.s32 %s9, 1
      // Predicated region
      $region13: #{contrast_loss.11} parent=11 // pred_check
        %p118 = pneg %p56
      $region14: #{contrast_loss.11} parent=11 // pred_check_branch
        %120 = sbr.rel (%p118) target = $region16
      $region15: #{contrast_loss.11} parent=11 // pred_region
        _
      $region16: #{contrast_loss.11} parent=11 // pred_fallthru
        _
      // Predicated region
      $region17: #{contrast_loss.11} parent=11 // pred_check
        %p121 = pneg %p77
      $region18: #{contrast_loss.11} parent=11 // pred_check_branch
        %123 = sbr.rel (%p121) target = $region20
      $region19: #{contrast_loss.11} parent=11 // pred_region
        _
      $region20: #{contrast_loss.11} parent=11 // pred_fallthru
        _
    $region12: #{contrast_loss.11} parent=5 // pred_fallthru
      _
    %p124 = scmp.lt.s32.totalorder %s9, 2
    // Predicated region
    $region21: #{contrast_loss.11} parent=5 // pred_check
      %p125 = pneg %p124
    $region22: #{contrast_loss.11} parent=5 // pred_check_branch
      %127 = sbr.rel (%p125) target = $region24
    $region23: #{contrast_loss.11} parent=5 // pred_region
      // Predicated region
      $region25: #{contrast_loss.11} parent=23 // pred_check
        %p128 = pneg %p29
      $region26: #{contrast_loss.11} parent=23 // pred_check_branch
        %130 = sbr.rel (%p128) target = $region28
      $region27: #{contrast_loss.11} parent=23 // pred_region
        %s131 = smul.u32 64, %s9
        %p132 = scmp.lt.s32.totalorder %s131, 127
        %s133 = scalar_select %p132, %s131, 127
        %s134 = smul.addr %s133, 4
        %s135 = scalar_lea.vmem %s0, %s134
        %s136 = smul.u32 64, %s9
      $region28: #{contrast_loss.11} parent=23 // pred_fallthru
        _
    $region24: #{contrast_loss.11} parent=5 // pred_fallthru
      _
    %p137 = scmp.le.s32.totalorder 1, %s9
    %p138 = scmp.lt.s32.totalorder %s9, 3
    %p139 = pnand %p137, %p138
    %p140 = pneg %p139
    // Predicated region
    $region29: #{contrast_loss.11} parent=5 // pred_check
      _
    $region30: #{contrast_loss.11} parent=5 // pred_check_branch
      %142 = sbr.rel (%p139) target = $region32
    $region31: #{contrast_loss.11} parent=5 // pred_region
      %s143 = ssub.s32 %s9, 1
      %s144 = smul.u32 64, %s14
      %p145 = scmp.lt.s32.totalorder %s144, 127
      %s146 = scalar_select %p145, %s144, 127
      %s147 = smul.addr %s146, 4
      %s148 = scalar_lea.vmem %s0, %s147
      %p149 = pneg %p35
      %p150 = pneg %p32
      %p151 = pneg %p56
      %p152 = pneg %p53
      %p153 = pneg %p77
      %p154 = pneg %p74
      %p155 = pneg %p103
      %p156 = pneg %p100
      %s157 = smul.u32 64, %s14
      %p158 = scmp.lt.s32.totalorder %s157, 127
      %s159 = scalar_select %p158, %s157, 127
      %s160 = smul.addr %s159, 8
      %s161 = scalar_lea.vmem %s3, %s160
      %s162 = smul.u32 64, %s14
      %p163 = scmp.lt.s32.totalorder %s162, 127
      %s164 = scalar_select %p163, %s162, 127
      %s165 = smul.addr %s164, 4
      %s166 = scalar_lea.vmem %s0, %s165
      %s167 = smul.u32 64, %s14
      %s168 = smul.u32 64, %s14
      %p169 = scmp.lt.s32.totalorder %s168, 127
      %s170 = scalar_select %p169, %s168, 127
      %s171 = smul.addr %s170, 8
      %s172 = scalar_lea.vmem %s3, %s171
      %s173 = smul.u32 64, %s14
      %v175 = vld [vmem:[%s166] sm:$0xf]
      %v176 = vld [vmem:[%s166 + $0x4] sm:$0xf]
      %v177 = vld [vmem:[%s166 + $0x8] sm:$0xf]
      %v178 = vld [vmem:[%s166 + $0xc] sm:$0xf]
      %v179 = vld [vmem:[%s166 + $0x10] sm:$0xf]
      %v180 = vld [vmem:[%s166 + $0x14] sm:$0xf]
      %v181 = vld [vmem:[%s166 + $0x18] sm:$0xf]
      %v182 = vld [vmem:[%s166 + $0x1c] sm:$0xf]
      %v183 = vld [vmem:[%s166 + $0x20] sm:$0xf]
      %v184 = vld [vmem:[%s166 + $0x24] sm:$0xf]
      %v185 = vld [vmem:[%s166 + $0x28] sm:$0xf]
      %v186 = vld [vmem:[%s166 + $0x2c] sm:$0xf]
      %v187 = vld [vmem:[%s166 + $0x30] sm:$0xf]
      %v188 = vld [vmem:[%s166 + $0x34] sm:$0xf]
      %v189 = vld [vmem:[%s166 + $0x38] sm:$0xf]
      %v190 = vld [vmem:[%s166 + $0x3c] sm:$0xf]
      %v191 = vld [vmem:[%s166 + $0x40] sm:$0xf]
      %v192 = vld [vmem:[%s166 + $0x44] sm:$0xf]
      %v193 = vld [vmem:[%s166 + $0x48] sm:$0xf]
      %v194 = vld [vmem:[%s166 + $0x4c] sm:$0xf]
      %v195 = vld [vmem:[%s166 + $0x50] sm:$0xf]
      %v196 = vld [vmem:[%s166 + $0x54] sm:$0xf]
      %v197 = vld [vmem:[%s166 + $0x58] sm:$0xf]
      %v198 = vld [vmem:[%s166 + $0x5c] sm:$0xf]
      %v199 = vld [vmem:[%s166 + $0x60] sm:$0xf]
      %v200 = vld [vmem:[%s166 + $0x64] sm:$0xf]
      %v201 = vld [vmem:[%s166 + $0x68] sm:$0xf]
      %v202 = vld [vmem:[%s166 + $0x6c] sm:$0xf]
      %v203 = vld [vmem:[%s166 + $0x70] sm:$0xf]
      %v204 = vld [vmem:[%s166 + $0x74] sm:$0xf]
      %v205 = vld [vmem:[%s166 + $0x78] sm:$0xf]
      %v206 = vld [vmem:[%s166 + $0x7c] sm:$0xf]
      %v207 = vld [vmem:[%s166 + $0x80] sm:$0xf]
      %v208 = vld [vmem:[%s166 + $0x84] sm:$0xf]
      %v209 = vld [vmem:[%s166 + $0x88] sm:$0xf]
      %v210 = vld [vmem:[%s166 + $0x8c] sm:$0xf]
      %v211 = vld [vmem:[%s166 + $0x90] sm:$0xf]
      %v212 = vld [vmem:[%s166 + $0x94] sm:$0xf]
      %v213 = vld [vmem:[%s166 + $0x98] sm:$0xf]
      %v214 = vld [vmem:[%s166 + $0x9c] sm:$0xf]
      %v215 = vld [vmem:[%s166 + $0xa0] sm:$0xf]
      %v216 = vld [vmem:[%s166 + $0xa4] sm:$0xf]
      %v217 = vld [vmem:[%s166 + $0xa8] sm:$0xf]
      %v218 = vld [vmem:[%s166 + $0xac] sm:$0xf]
      %v219 = vld [vmem:[%s166 + $0xb0] sm:$0xf]
      %v220 = vld [vmem:[%s166 + $0xb4] sm:$0xf]
      %v221 = vld [vmem:[%s166 + $0xb8] sm:$0xf]
      %v222 = vld [vmem:[%s166 + $0xbc] sm:$0xf]
      %v223 = vld [vmem:[%s166 + $0xc0] sm:$0xf]
      %v224 = vld [vmem:[%s166 + $0xc4] sm:$0xf]
      %v225 = vld [vmem:[%s166 + $0xc8] sm:$0xf]
      %v226 = vld [vmem:[%s166 + $0xcc] sm:$0xf]
      %v227 = vld [vmem:[%s166 + $0xd0] sm:$0xf]
      %v228 = vld [vmem:[%s166 + $0xd4] sm:$0xf]
      %v229 = vld [vmem:[%s166 + $0xd8] sm:$0xf]
      %v230 = vld [vmem:[%s166 + $0xdc] sm:$0xf]
      %v231 = vld [vmem:[%s166 + $0xe0] sm:$0xf]
      %v232 = vld [vmem:[%s166 + $0xe4] sm:$0xf]
      %v233 = vld [vmem:[%s166 + $0xe8] sm:$0xf]
      %v234 = vld [vmem:[%s166 + $0xec] sm:$0xf]
      %v235 = vld [vmem:[%s166 + $0xf0] sm:$0xf]
      %v236 = vld [vmem:[%s166 + $0xf4] sm:$0xf]
      %v237 = vld [vmem:[%s166 + $0xf8] sm:$0xf]
      %v238 = vld [vmem:[%s166 + $0xfc] sm:$0xf]
      %v239 = vld [vmem:[%s1] sm:$0xf]
      %v240 = vld [vmem:[%s1 + $0x4] sm:$0xf]
      %v241 = vld [vmem:[%s1 + $0x8] sm:$0xf]
      %v242 = vld [vmem:[%s1 + $0xc] sm:$0xf]
      %v243 = vld [vmem:[%s1 + $0x10] sm:$0xf]
      %v244 = vld [vmem:[%s1 + $0x14] sm:$0xf]
      %v245 = vld [vmem:[%s1 + $0x18] sm:$0xf]
      %v246 = vld [vmem:[%s1 + $0x1c] sm:$0xf]
      %v247 = vld [vmem:[%s1 + $0x20] sm:$0xf]
      %v248 = vld [vmem:[%s2] sm:$0x1]
      %v250 = vlaneseq
      %v251 = vshrl.u32 %v250, 7
      %v252 = vsub.s32 0, %v251
      %v253 = vrot.slane %v248, %v252
      %v319 = vunpack.c.l.b16 %v175
      %v320 = vunpack.c.l.b16 %v176
      %v321 = vunpack.c.l.b16 %v177
      %v322 = vunpack.c.l.b16 %v178
      %v323 = vunpack.c.l.b16 %v179
      %v324 = vunpack.c.l.b16 %v180
      %v325 = vunpack.c.l.b16 %v181
      %v326 = vunpack.c.l.b16 %v182
      %v327 = vunpack.c.l.b16 %v183
      %v328 = vunpack.c.l.b16 %v184
      %v329 = vunpack.c.l.b16 %v185
      %v330 = vunpack.c.l.b16 %v186
      %v331 = vunpack.c.l.b16 %v187
      %v332 = vunpack.c.l.b16 %v188
      %v333 = vunpack.c.l.b16 %v189
      %v334 = vunpack.c.l.b16 %v190
      %v335 = vunpack.c.l.b16 %v191
      %v336 = vunpack.c.l.b16 %v192
      %v337 = vunpack.c.l.b16 %v193
      %v338 = vunpack.c.l.b16 %v194
      %v339 = vunpack.c.l.b16 %v195
      %v340 = vunpack.c.l.b16 %v196
      %v341 = vunpack.c.l.b16 %v197
      %v342 = vunpack.c.l.b16 %v198
      %v343 = vunpack.c.l.b16 %v199
      %v344 = vunpack.c.l.b16 %v200
      %v345 = vunpack.c.l.b16 %v201
      %v346 = vunpack.c.l.b16 %v202
      %v347 = vunpack.c.l.b16 %v203
      %v348 = vunpack.c.l.b16 %v204
      %v349 = vunpack.c.l.b16 %v205
      %v350 = vunpack.c.l.b16 %v206
      %v351 = vunpack.c.l.b16 %v207
      %v352 = vunpack.c.l.b16 %v208
      %v353 = vunpack.c.l.b16 %v209
      %v354 = vunpack.c.l.b16 %v210
      %v355 = vunpack.c.l.b16 %v211
      %v356 = vunpack.c.l.b16 %v212
      %v357 = vunpack.c.l.b16 %v213
      %v358 = vunpack.c.l.b16 %v214
      %v359 = vunpack.c.l.b16 %v215
      %v360 = vunpack.c.l.b16 %v216
      %v361 = vunpack.c.l.b16 %v217
      %v362 = vunpack.c.l.b16 %v218
      %v363 = vunpack.c.l.b16 %v219
      %v364 = vunpack.c.l.b16 %v220
      %v365 = vunpack.c.l.b16 %v221
      %v366 = vunpack.c.l.b16 %v222
      %v367 = vunpack.c.l.b16 %v223
      %v368 = vunpack.c.l.b16 %v224
      %v369 = vunpack.c.l.b16 %v225
      %v370 = vunpack.c.l.b16 %v226
      %v371 = vunpack.c.l.b16 %v227
      %v372 = vunpack.c.l.b16 %v228
      %v373 = vunpack.c.l.b16 %v229
      %v374 = vunpack.c.l.b16 %v230
      %v375 = vunpack.c.l.b16 %v231
      %v376 = vunpack.c.l.b16 %v232
      %v377 = vunpack.c.l.b16 %v233
      %v378 = vunpack.c.l.b16 %v234
      %v379 = vunpack.c.l.b16 %v235
      %v380 = vunpack.c.l.b16 %v236
      %v381 = vunpack.c.l.b16 %v237
      %v382 = vunpack.c.l.b16 %v238
      %v383 = vpack.c.b16 %v320, %v319
      %v384 = vpack.c.b16 %v322, %v321
      %v385 = vpack.c.b16 %v324, %v323
      %v386 = vpack.c.b16 %v326, %v325
      %v387 = vpack.c.b16 %v328, %v327
      %v388 = vpack.c.b16 %v330, %v329
      %v389 = vpack.c.b16 %v332, %v331
      %v390 = vpack.c.b16 %v334, %v333
      %v391 = vpack.c.b16 %v336, %v335
      %v392 = vpack.c.b16 %v338, %v337
      %v393 = vpack.c.b16 %v340, %v339
      %v394 = vpack.c.b16 %v342, %v341
      %v395 = vpack.c.b16 %v344, %v343
      %v396 = vpack.c.b16 %v346, %v345
      %v397 = vpack.c.b16 %v348, %v347
      %v398 = vpack.c.b16 %v350, %v349
      %v399 = vpack.c.b16 %v352, %v351
      %v400 = vpack.c.b16 %v354, %v353
      %v401 = vpack.c.b16 %v356, %v355
      %v402 = vpack.c.b16 %v358, %v357
      %v403 = vpack.c.b16 %v360, %v359
      %v404 = vpack.c.b16 %v362, %v361
      %v405 = vpack.c.b16 %v364, %v363
      %v406 = vpack.c.b16 %v366, %v365
      %v407 = vpack.c.b16 %v368, %v367
      %v408 = vpack.c.b16 %v370, %v369
      %v409 = vpack.c.b16 %v372, %v371
      %v410 = vpack.c.b16 %v374, %v373
      %v411 = vpack.c.b16 %v376, %v375
      %v412 = vpack.c.b16 %v378, %v377
      %v413 = vpack.c.b16 %v380, %v379
      %v414 = vpack.c.b16 %v382, %v381
      %v424 = vunpack.c.l.b16 %v239
      %v425 = vunpack.c.l.b16 %v240
      %v426 = vunpack.c.l.b16 %v241
      %v427 = vunpack.c.l.b16 %v242
      %v428 = vunpack.c.l.b16 %v243
      %v429 = vunpack.c.l.b16 %v244
      %v430 = vunpack.c.l.b16 %v245
      %v431 = vunpack.c.l.b16 %v246
      %v432 = vunpack.c.l.b16 %v247
      %v433 = vpack.c.b16 %v425, %v424
      %v434 = vpack.c.b16 %v427, %v426
      %v435 = vpack.c.b16 %v429, %v428
      %v436 = vpack.c.b16 %v431, %v430
      %v437 = vpack.c.b16 %v432, %v432
      %vm442 = vcmask 588800
      %v444 = vsel %vm442, %v383, 0
      %v447 = vsel %vm442, %v384, 0
      %v450 = vsel %vm442, %v385, 0
      %v453 = vsel %vm442, %v386, 0
      %v456 = vsel %vm442, %v387, 0
      %v459 = vsel %vm442, %v388, 0
      %v462 = vsel %vm442, %v389, 0
      %v465 = vsel %vm442, %v390, 0
      %v468 = vsel %vm442, %v391, 0
      %v471 = vsel %vm442, %v392, 0
      %v474 = vsel %vm442, %v393, 0
      %v477 = vsel %vm442, %v394, 0
      %v480 = vsel %vm442, %v395, 0
      %v483 = vsel %vm442, %v396, 0
      %v486 = vsel %vm442, %v397, 0
      %v489 = vsel %vm442, %v398, 0
      %v492 = vsel %vm442, %v399, 0
      %v495 = vsel %vm442, %v400, 0
      %v498 = vsel %vm442, %v401, 0
      %v501 = vsel %vm442, %v402, 0
      %v504 = vsel %vm442, %v403, 0
      %v507 = vsel %vm442, %v404, 0
      %v510 = vsel %vm442, %v405, 0
      %v513 = vsel %vm442, %v406, 0
      %v516 = vsel %vm442, %v407, 0
      %v519 = vsel %vm442, %v408, 0
      %v522 = vsel %vm442, %v409, 0
      %v525 = vsel %vm442, %v410, 0
      %v528 = vsel %vm442, %v411, 0
      %v531 = vsel %vm442, %v412, 0
      %v534 = vsel %vm442, %v413, 0
      %v537 = vsel %vm442, %v414, 0
      %vm539 = vcmask 1043456
      %v541 = vsel %vm539, %v437, 0
      %543 = vmatprep.subr.bf16.mxu0 0
      %544 = vmatpush1.bf16.msra.mxu0 0
      %545 = vmatprep.subr.bf16.mxu0 0
      %546 = vmatpush1.bf16.msra.mxu0 0
      %547 = vmatprep.subr.bf16.mxu0 0
      %548 = vmatpush1.bf16.msra.mxu0 0
      %549 = vmatprep.subr.bf16.mxu0 0
      %550 = vmatpush1.bf16.msra.mxu0 %v541
      %551 = vmatprep.subr.bf16.mxu0 0
      %552 = vmatpush1.bf16.msra.mxu0 %v436
      %553 = vmatprep.subr.bf16.mxu0 0
      %554 = vmatpush1.bf16.msra.mxu0 %v435
      %555 = vmatprep.subr.bf16.mxu0 0
      %556 = vmatpush1.bf16.msra.mxu0 %v434
      %557 = vmatprep.subr.bf16.mxu0 0
      %558 = vmatpush1.bf16.msra.mxu0 %v433
      %559 = vmatprep.subr.bf16.mxu0 0
      %560 = vmatpush2.bf16.msra.mxu0 0
      %561 = vmatprep.subr.bf16.mxu0 0
      %562 = vmatpush2.bf16.msra.mxu0 0
      %563 = vmatprep.subr.bf16.mxu0 0
      %564 = vmatpush2.bf16.msra.mxu0 0
      %565 = vmatprep.subr.bf16.mxu0 0
      %566 = vmatpush2.bf16.msra.mxu0 0
      %567 = vmatprep.subr.bf16.mxu0 0
      %568 = vmatpush2.bf16.msra.mxu0 0
      %569 = vmatprep.subr.bf16.mxu0 0
      %570 = vmatpush2.bf16.msra.mxu0 0
      %571 = vmatprep.subr.bf16.mxu0 0
      %572 = vmatpush2.bf16.msra.mxu0 0
      %573 = vmatprep.subr.bf16.mxu0 0
      %574 = vmatpush2.bf16.msra.mxu0 0
      %575 = vmatprep.mubr.bf16.mxu0 0
      %576 = vmatmul.mubr.bf16.gmra.mxu0 %v444
      %v577 = vpop.f32.mrf.mxu0
      %v578 = vadd.f32 %v253, %v577
      %v579 = vpop.f32.mrf.mxu0
      %v580 = vpop.f32.mrf.mxu0
      %v581 = vadd.f32 %v253, %v580
      %v582 = vpop.f32.mrf.mxu0
      %583 = vmatprep.mubr.bf16.mxu0 0
      %584 = vmatmul.mubr.bf16.gmra.mxu0 %v447
      %v585 = vpop.f32.mrf.mxu0
      %v586 = vadd.f32 %v253, %v585
      %v587 = vpop.f32.mrf.mxu0
      %v588 = vpop.f32.mrf.mxu0
      %v589 = vadd.f32 %v253, %v588
      %v590 = vpop.f32.mrf.mxu0
      %591 = vmatprep.mubr.bf16.mxu0 0
      %592 = vmatmul.mubr.bf16.gmra.mxu0 %v450
      %v593 = vpop.f32.mrf.mxu0
      %v594 = vadd.f32 %v253, %v593
      %v595 = vpop.f32.mrf.mxu0
      %v596 = vpop.f32.mrf.mxu0
      %v597 = vadd.f32 %v253, %v596
      %v598 = vpop.f32.mrf.mxu0
      %599 = vmatprep.mubr.bf16.mxu0 0
      %600 = vmatmul.mubr.bf16.gmra.mxu0 %v453
      %v601 = vpop.f32.mrf.mxu0
      %v602 = vadd.f32 %v253, %v601
      %v603 = vpop.f32.mrf.mxu0
      %v604 = vpop.f32.mrf.mxu0
      %v605 = vadd.f32 %v253, %v604
      %v606 = vpop.f32.mrf.mxu0
      %607 = vmatprep.mubr.bf16.mxu0 0
      %608 = vmatmul.mubr.bf16.gmra.mxu0 %v456
      %v609 = vpop.f32.mrf.mxu0
      %v610 = vadd.f32 %v253, %v609
      %v611 = vpop.f32.mrf.mxu0
      %v612 = vpop.f32.mrf.mxu0
      %v613 = vadd.f32 %v253, %v612
      %v614 = vpop.f32.mrf.mxu0
      %615 = vmatprep.mubr.bf16.mxu0 0
      %616 = vmatmul.mubr.bf16.gmra.mxu0 %v459
      %v617 = vpop.f32.mrf.mxu0
      %v618 = vadd.f32 %v253, %v617
      %v619 = vpop.f32.mrf.mxu0
      %v620 = vpop.f32.mrf.mxu0
      %v621 = vadd.f32 %v253, %v620
      %v622 = vpop.f32.mrf.mxu0
      %623 = vmatprep.mubr.bf16.mxu0 0
      %624 = vmatmul.mubr.bf16.gmra.mxu0 %v462
      %v625 = vpop.f32.mrf.mxu0
      %v626 = vadd.f32 %v253, %v625
      %v627 = vpop.f32.mrf.mxu0
      %v628 = vpop.f32.mrf.mxu0
      %v629 = vadd.f32 %v253, %v628
      %v630 = vpop.f32.mrf.mxu0
      %631 = vmatprep.mubr.bf16.mxu0 0
      %632 = vmatmul.mubr.bf16.gmra.mxu0 %v465
      %v633 = vpop.f32.mrf.mxu0
      %v634 = vadd.f32 %v253, %v633
      %v635 = vpop.f32.mrf.mxu0
      %v636 = vpop.f32.mrf.mxu0
      %v637 = vadd.f32 %v253, %v636
      %v638 = vpop.f32.mrf.mxu0
      %639 = vmatprep.mubr.bf16.mxu0 0
      %640 = vmatmul.mubr.bf16.gmra.mxu0 %v468
      %v641 = vpop.f32.mrf.mxu0
      %v642 = vadd.f32 %v253, %v641
      %v643 = vpop.f32.mrf.mxu0
      %v644 = vpop.f32.mrf.mxu0
      %v645 = vadd.f32 %v253, %v644
      %v646 = vpop.f32.mrf.mxu0
      %647 = vmatprep.mubr.bf16.mxu0 0
      %648 = vmatmul.mubr.bf16.gmra.mxu0 %v471
      %v649 = vpop.f32.mrf.mxu0
      %v650 = vadd.f32 %v253, %v649
      %v651 = vpop.f32.mrf.mxu0
      %v652 = vpop.f32.mrf.mxu0
      %v653 = vadd.f32 %v253, %v652
      %v654 = vpop.f32.mrf.mxu0
      %655 = vmatprep.mubr.bf16.mxu0 0
      %656 = vmatmul.mubr.bf16.gmra.mxu0 %v474
      %v657 = vpop.f32.mrf.mxu0
      %v658 = vadd.f32 %v253, %v657
      %v659 = vpop.f32.mrf.mxu0
      %v660 = vpop.f32.mrf.mxu0
      %v661 = vadd.f32 %v253, %v660
      %v662 = vpop.f32.mrf.mxu0
      %663 = vmatprep.mubr.bf16.mxu0 0
      %664 = vmatmul.mubr.bf16.gmra.mxu0 %v477
      %v665 = vpop.f32.mrf.mxu0
      %v666 = vadd.f32 %v253, %v665
      %v667 = vpop.f32.mrf.mxu0
      %v668 = vpop.f32.mrf.mxu0
      %v669 = vadd.f32 %v253, %v668
      %v670 = vpop.f32.mrf.mxu0
      %671 = vmatprep.mubr.bf16.mxu0 0
      %672 = vmatmul.mubr.bf16.gmra.mxu0 %v480
      %v673 = vpop.f32.mrf.mxu0
      %v674 = vadd.f32 %v253, %v673
      %v675 = vpop.f32.mrf.mxu0
      %v676 = vpop.f32.mrf.mxu0
      %v677 = vadd.f32 %v253, %v676
      %v678 = vpop.f32.mrf.mxu0
      %679 = vmatprep.mubr.bf16.mxu0 0
      %680 = vmatmul.mubr.bf16.gmra.mxu0 %v483
      %v681 = vpop.f32.mrf.mxu0
      %v682 = vadd.f32 %v253, %v681
      %v683 = vpop.f32.mrf.mxu0
      %v684 = vpop.f32.mrf.mxu0
      %v685 = vadd.f32 %v253, %v684
      %v686 = vpop.f32.mrf.mxu0
      %687 = vmatprep.mubr.bf16.mxu0 0
      %688 = vmatmul.mubr.bf16.gmra.mxu0 %v486
      %v689 = vpop.f32.mrf.mxu0
      %v690 = vadd.f32 %v253, %v689
      %v691 = vpop.f32.mrf.mxu0
      %v692 = vpop.f32.mrf.mxu0
      %v693 = vadd.f32 %v253, %v692
      %v694 = vpop.f32.mrf.mxu0
      %695 = vmatprep.mubr.bf16.mxu0 0
      %696 = vmatmul.mubr.bf16.gmra.mxu0 %v489
      %v697 = vpop.f32.mrf.mxu0
      %v698 = vadd.f32 %v253, %v697
      %v699 = vpop.f32.mrf.mxu0
      %v700 = vpop.f32.mrf.mxu0
      %v701 = vadd.f32 %v253, %v700
      %v702 = vpop.f32.mrf.mxu0
      %703 = vmatprep.mubr.bf16.mxu0 0
      %704 = vmatmul.mubr.bf16.gmra.mxu0 %v492
      %v705 = vpop.f32.mrf.mxu0
      %v706 = vadd.f32 %v253, %v705
      %v707 = vpop.f32.mrf.mxu0
      %v708 = vpop.f32.mrf.mxu0
      %v709 = vadd.f32 %v253, %v708
      %v710 = vpop.f32.mrf.mxu0
      %711 = vmatprep.mubr.bf16.mxu0 0
      %712 = vmatmul.mubr.bf16.gmra.mxu0 %v495
      %v713 = vpop.f32.mrf.mxu0
      %v714 = vadd.f32 %v253, %v713
      %v715 = vpop.f32.mrf.mxu0
      %v716 = vpop.f32.mrf.mxu0
      %v717 = vadd.f32 %v253, %v716
      %v718 = vpop.f32.mrf.mxu0
      %719 = vmatprep.mubr.bf16.mxu0 0
      %720 = vmatmul.mubr.bf16.gmra.mxu0 %v498
      %v721 = vpop.f32.mrf.mxu0
      %v722 = vadd.f32 %v253, %v721
      %v723 = vpop.f32.mrf.mxu0
      %v724 = vpop.f32.mrf.mxu0
      %v725 = vadd.f32 %v253, %v724
      %v726 = vpop.f32.mrf.mxu0
      %727 = vmatprep.mubr.bf16.mxu0 0
      %728 = vmatmul.mubr.bf16.gmra.mxu0 %v501
      %v729 = vpop.f32.mrf.mxu0
      %v730 = vadd.f32 %v253, %v729
      %v731 = vpop.f32.mrf.mxu0
      %v732 = vpop.f32.mrf.mxu0
      %v733 = vadd.f32 %v253, %v732
      %v734 = vpop.f32.mrf.mxu0
      %735 = vmatprep.mubr.bf16.mxu0 0
      %736 = vmatmul.mubr.bf16.gmra.mxu0 %v504
      %v737 = vpop.f32.mrf.mxu0
      %v738 = vadd.f32 %v253, %v737
      %v739 = vpop.f32.mrf.mxu0
      %v740 = vpop.f32.mrf.mxu0
      %v741 = vadd.f32 %v253, %v740
      %v742 = vpop.f32.mrf.mxu0
      %743 = vmatprep.mubr.bf16.mxu0 0
      %744 = vmatmul.mubr.bf16.gmra.mxu0 %v507
      %v745 = vpop.f32.mrf.mxu0
      %v746 = vadd.f32 %v253, %v745
      %v747 = vpop.f32.mrf.mxu0
      %v748 = vpop.f32.mrf.mxu0
      %v749 = vadd.f32 %v253, %v748
      %v750 = vpop.f32.mrf.mxu0
      %751 = vmatprep.mubr.bf16.mxu0 0
      %752 = vmatmul.mubr.bf16.gmra.mxu0 %v510
      %v753 = vpop.f32.mrf.mxu0
      %v754 = vadd.f32 %v253, %v753
      %v755 = vpop.f32.mrf.mxu0
      %v756 = vpop.f32.mrf.mxu0
      %v757 = vadd.f32 %v253, %v756
      %v758 = vpop.f32.mrf.mxu0
      %759 = vmatprep.mubr.bf16.mxu0 0
      %760 = vmatmul.mubr.bf16.gmra.mxu0 %v513
      %v761 = vpop.f32.mrf.mxu0
      %v762 = vadd.f32 %v253, %v761
      %v763 = vpop.f32.mrf.mxu0
      %v764 = vpop.f32.mrf.mxu0
      %v765 = vadd.f32 %v253, %v764
      %v766 = vpop.f32.mrf.mxu0
      %767 = vmatprep.mubr.bf16.mxu0 0
      %768 = vmatmul.mubr.bf16.gmra.mxu0 %v516
      %v769 = vpop.f32.mrf.mxu0
      %v770 = vadd.f32 %v253, %v769
      %v771 = vpop.f32.mrf.mxu0
      %v772 = vpop.f32.mrf.mxu0
      %v773 = vadd.f32 %v253, %v772
      %v774 = vpop.f32.mrf.mxu0
      %775 = vmatprep.mubr.bf16.mxu0 0
      %776 = vmatmul.mubr.bf16.gmra.mxu0 %v519
      %v777 = vpop.f32.mrf.mxu0
      %v778 = vadd.f32 %v253, %v777
      %v779 = vpop.f32.mrf.mxu0
      %v780 = vpop.f32.mrf.mxu0
      %v781 = vadd.f32 %v253, %v780
      %v782 = vpop.f32.mrf.mxu0
      %783 = vmatprep.mubr.bf16.mxu0 0
      %784 = vmatmul.mubr.bf16.gmra.mxu0 %v522
      %v785 = vpop.f32.mrf.mxu0
      %v786 = vadd.f32 %v253, %v785
      %v787 = vpop.f32.mrf.mxu0
      %v788 = vpop.f32.mrf.mxu0
      %v789 = vadd.f32 %v253, %v788
      %v790 = vpop.f32.mrf.mxu0
      %791 = vmatprep.mubr.bf16.mxu0 0
      %792 = vmatmul.mubr.bf16.gmra.mxu0 %v525
      %v793 = vpop.f32.mrf.mxu0
      %v794 = vadd.f32 %v253, %v793
      %v795 = vpop.f32.mrf.mxu0
      %v796 = vpop.f32.mrf.mxu0
      %v797 = vadd.f32 %v253, %v796
      %v798 = vpop.f32.mrf.mxu0
      %799 = vmatprep.mubr.bf16.mxu0 0
      %800 = vmatmul.mubr.bf16.gmra.mxu0 %v528
      %v801 = vpop.f32.mrf.mxu0
      %v802 = vadd.f32 %v253, %v801
      %v803 = vpop.f32.mrf.mxu0
      %v804 = vpop.f32.mrf.mxu0
      %v805 = vadd.f32 %v253, %v804
      %v806 = vpop.f32.mrf.mxu0
      %807 = vmatprep.mubr.bf16.mxu0 0
      %808 = vmatmul.mubr.bf16.gmra.mxu0 %v531
      %v809 = vpop.f32.mrf.mxu0
      %v810 = vadd.f32 %v253, %v809
      %v811 = vpop.f32.mrf.mxu0
      %v812 = vpop.f32.mrf.mxu0
      %v813 = vadd.f32 %v253, %v812
      %v814 = vpop.f32.mrf.mxu0
      %815 = vmatprep.mubr.bf16.mxu0 0
      %816 = vmatmul.mubr.bf16.gmra.mxu0 %v534
      %v817 = vpop.f32.mrf.mxu0
      %v818 = vadd.f32 %v253, %v817
      %v819 = vpop.f32.mrf.mxu0
      %v820 = vpop.f32.mrf.mxu0
      %v821 = vadd.f32 %v253, %v820
      %v822 = vpop.f32.mrf.mxu0
      %823 = vmatprep.mubr.bf16.mxu0 0
      %824 = vmatmul.mubr.bf16.gmra.mxu0 %v537
      %v825 = vpop.f32.mrf.mxu0
      %v826 = vadd.f32 %v253, %v825
      %v827 = vpop.f32.mrf.mxu0
      %v828 = vpop.f32.mrf.mxu0
      %v829 = vadd.f32 %v253, %v828
      %v830 = vpop.f32.mrf.mxu0
      %831 = vdwg.mxu0
      %v832 = vmax.f32 %v578, 0.0
      %v833 = vmax.f32 %v581, 0.0
      %v834 = vmax.f32 %v586, 0.0
      %v835 = vmax.f32 %v589, 0.0
      %v836 = vmax.f32 %v594, 0.0
      %v837 = vmax.f32 %v597, 0.0
      %v838 = vmax.f32 %v602, 0.0
      %v839 = vmax.f32 %v605, 0.0
      %v840 = vmax.f32 %v610, 0.0
      %v841 = vmax.f32 %v613, 0.0
      %v842 = vmax.f32 %v618, 0.0
      %v843 = vmax.f32 %v621, 0.0
      %v844 = vmax.f32 %v626, 0.0
      %v845 = vmax.f32 %v629, 0.0
      %v846 = vmax.f32 %v634, 0.0
      %v847 = vmax.f32 %v637, 0.0
      %v848 = vmax.f32 %v642, 0.0
      %v849 = vmax.f32 %v645, 0.0
      %v850 = vmax.f32 %v650, 0.0
      %v851 = vmax.f32 %v653, 0.0
      %v852 = vmax.f32 %v658, 0.0
      %v853 = vmax.f32 %v661, 0.0
      %v854 = vmax.f32 %v666, 0.0
      %v855 = vmax.f32 %v669, 0.0
      %v856 = vmax.f32 %v674, 0.0
      %v857 = vmax.f32 %v677, 0.0
      %v858 = vmax.f32 %v682, 0.0
      %v859 = vmax.f32 %v685, 0.0
      %v860 = vmax.f32 %v690, 0.0
      %v861 = vmax.f32 %v693, 0.0
      %v862 = vmax.f32 %v698, 0.0
      %v863 = vmax.f32 %v701, 0.0
      %v864 = vmax.f32 %v706, 0.0
      %v865 = vmax.f32 %v709, 0.0
      %v866 = vmax.f32 %v714, 0.0
      %v867 = vmax.f32 %v717, 0.0
      %v868 = vmax.f32 %v722, 0.0
      %v869 = vmax.f32 %v725, 0.0
      %v870 = vmax.f32 %v730, 0.0
      %v871 = vmax.f32 %v733, 0.0
      %v872 = vmax.f32 %v738, 0.0
      %v873 = vmax.f32 %v741, 0.0
      %v874 = vmax.f32 %v746, 0.0
      %v875 = vmax.f32 %v749, 0.0
      %v876 = vmax.f32 %v754, 0.0
      %v877 = vmax.f32 %v757, 0.0
      %v878 = vmax.f32 %v762, 0.0
      %v879 = vmax.f32 %v765, 0.0
      %v880 = vmax.f32 %v770, 0.0
      %v881 = vmax.f32 %v773, 0.0
      %v882 = vmax.f32 %v778, 0.0
      %v883 = vmax.f32 %v781, 0.0
      %v884 = vmax.f32 %v786, 0.0
      %v885 = vmax.f32 %v789, 0.0
      %v886 = vmax.f32 %v794, 0.0
      %v887 = vmax.f32 %v797, 0.0
      %v888 = vmax.f32 %v802, 0.0
      %v889 = vmax.f32 %v805, 0.0
      %v890 = vmax.f32 %v810, 0.0
      %v891 = vmax.f32 %v813, 0.0
      %v892 = vmax.f32 %v818, 0.0
      %v893 = vmax.f32 %v821, 0.0
      %v894 = vmax.f32 %v826, 0.0
      %v895 = vmax.f32 %v829, 0.0
      %vm896 = vcmask 130048
      %897 = vst.msk [vmem:[%s172] sm:$0xff] %vm896, %v832
      %898 = vst.msk [vmem:[%s172 + $0x8] sm:$0xff] %vm896, %v833
      %899 = vst.msk [vmem:[%s172 + $0x10] sm:$0xff] %vm896, %v834
      %900 = vst.msk [vmem:[%s172 + $0x18] sm:$0xff] %vm896, %v835
      %901 = vst.msk [vmem:[%s172 + $0x20] sm:$0xff] %vm896, %v836
      %902 = vst.msk [vmem:[%s172 + $0x28] sm:$0xff] %vm896, %v837
      %903 = vst.msk [vmem:[%s172 + $0x30] sm:$0xff] %vm896, %v838
      %904 = vst.msk [vmem:[%s172 + $0x38] sm:$0xff] %vm896, %v839
      %905 = vst.msk [vmem:[%s172 + $0x40] sm:$0xff] %vm896, %v840
      %906 = vst.msk [vmem:[%s172 + $0x48] sm:$0xff] %vm896, %v841
      %907 = vst.msk [vmem:[%s172 + $0x50] sm:$0xff] %vm896, %v842
      %908 = vst.msk [vmem:[%s172 + $0x58] sm:$0xff] %vm896, %v843
      %909 = vst.msk [vmem:[%s172 + $0x60] sm:$0xff] %vm896, %v844
      %910 = vst.msk [vmem:[%s172 + $0x68] sm:$0xff] %vm896, %v845
      %911 = vst.msk [vmem:[%s172 + $0x70] sm:$0xff] %vm896, %v846
      %912 = vst.msk [vmem:[%s172 + $0x78] sm:$0xff] %vm896, %v847
      %913 = vst.msk [vmem:[%s172 + $0x80] sm:$0xff] %vm896, %v848
      %914 = vst.msk [vmem:[%s172 + $0x88] sm:$0xff] %vm896, %v849
      %915 = vst.msk [vmem:[%s172 + $0x90] sm:$0xff] %vm896, %v850
      %916 = vst.msk [vmem:[%s172 + $0x98] sm:$0xff] %vm896, %v851
      %917 = vst.msk [vmem:[%s172 + $0xa0] sm:$0xff] %vm896, %v852
      %918 = vst.msk [vmem:[%s172 + $0xa8] sm:$0xff] %vm896, %v853
      %919 = vst.msk [vmem:[%s172 + $0xb0] sm:$0xff] %vm896, %v854
      %920 = vst.msk [vmem:[%s172 + $0xb8] sm:$0xff] %vm896, %v855
      %921 = vst.msk [vmem:[%s172 + $0xc0] sm:$0xff] %vm896, %v856
      %922 = vst.msk [vmem:[%s172 + $0xc8] sm:$0xff] %vm896, %v857
      %923 = vst.msk [vmem:[%s172 + $0xd0] sm:$0xff] %vm896, %v858
      %924 = vst.msk [vmem:[%s172 + $0xd8] sm:$0xff] %vm896, %v859
      %925 = vst.msk [vmem:[%s172 + $0xe0] sm:$0xff] %vm896, %v860
      %926 = vst.msk [vmem:[%s172 + $0xe8] sm:$0xff] %vm896, %v861
      %927 = vst.msk [vmem:[%s172 + $0xf0] sm:$0xff] %vm896, %v862
      %928 = vst.msk [vmem:[%s172 + $0xf8] sm:$0xff] %vm896, %v863
      %929 = vst.msk [vmem:[%s172 + $0x100] sm:$0xff] %vm896, %v864
      %930 = vst.msk [vmem:[%s172 + $0x108] sm:$0xff] %vm896, %v865
      %931 = vst.msk [vmem:[%s172 + $0x110] sm:$0xff] %vm896, %v866
      %932 = vst.msk [vmem:[%s172 + $0x118] sm:$0xff] %vm896, %v867
      %933 = vst.msk [vmem:[%s172 + $0x120] sm:$0xff] %vm896, %v868
      %934 = vst.msk [vmem:[%s172 + $0x128] sm:$0xff] %vm896, %v869
      %935 = vst.msk [vmem:[%s172 + $0x130] sm:$0xff] %vm896, %v870
      %936 = vst.msk [vmem:[%s172 + $0x138] sm:$0xff] %vm896, %v871
      %937 = vst.msk [vmem:[%s172 + $0x140] sm:$0xff] %vm896, %v872
      %938 = vst.msk [vmem:[%s172 + $0x148] sm:$0xff] %vm896, %v873
      %939 = vst.msk [vmem:[%s172 + $0x150] sm:$0xff] %vm896, %v874
      %940 = vst.msk [vmem:[%s172 + $0x158] sm:$0xff] %vm896, %v875
      %941 = vst.msk [vmem:[%s172 + $0x160] sm:$0xff] %vm896, %v876
      %942 = vst.msk [vmem:[%s172 + $0x168] sm:$0xff] %vm896, %v877
      %943 = vst.msk [vmem:[%s172 + $0x170] sm:$0xff] %vm896, %v878
      %944 = vst.msk [vmem:[%s172 + $0x178] sm:$0xff] %vm896, %v879
      %945 = vst.msk [vmem:[%s172 + $0x180] sm:$0xff] %vm896, %v880
      %946 = vst.msk [vmem:[%s172 + $0x188] sm:$0xff] %vm896, %v881
      %947 = vst.msk [vmem:[%s172 + $0x190] sm:$0xff] %vm896, %v882
      %948 = vst.msk [vmem:[%s172 + $0x198] sm:$0xff] %vm896, %v883
      %949 = vst.msk [vmem:[%s172 + $0x1a0] sm:$0xff] %vm896, %v884
      %950 = vst.msk [vmem:[%s172 + $0x1a8] sm:$0xff] %vm896, %v885
      %951 = vst.msk [vmem:[%s172 + $0x1b0] sm:$0xff] %vm896, %v886
      %952 = vst.msk [vmem:[%s172 + $0x1b8] sm:$0xff] %vm896, %v887
      %953 = vst.msk [vmem:[%s172 + $0x1c0] sm:$0xff] %vm896, %v888
      %954 = vst.msk [vmem:[%s172 + $0x1c8] sm:$0xff] %vm896, %v889
      %955 = vst.msk [vmem:[%s172 + $0x1d0] sm:$0xff] %vm896, %v890
      %956 = vst.msk [vmem:[%s172 + $0x1d8] sm:$0xff] %vm896, %v891
      %957 = vst.msk [vmem:[%s172 + $0x1e0] sm:$0xff] %vm896, %v892
      %958 = vst.msk [vmem:[%s172 + $0x1e8] sm:$0xff] %vm896, %v893
      %959 = vst.msk [vmem:[%s172 + $0x1f0] sm:$0xff] %vm896, %v894
      %960 = vst.msk [vmem:[%s172 + $0x1f8] sm:$0xff] %vm896, %v895
      %s961 = smul.u32 64, %s14
      %p962 = scmp.lt.s32.totalorder %s961, 127
      %s963 = scalar_select %p962, %s961, 127
      %s964 = smul.addr %s963, 8
      %s965 = scalar_lea.vmem %s3, %s964
      // Predicated region
      $region33: #{contrast_loss.11} parent=31 // pred_check
        %p966 = pneg %p100
      $region34: #{contrast_loss.11} parent=31 // pred_check_branch
        %968 = sbr.rel (%p966) target = $region36
      $region35: #{contrast_loss.11} parent=31 // pred_region
        %s969 = smul.u32 64, %s14
      $region36: #{contrast_loss.11} parent=31 // pred_fallthru
        _
    $region32: #{contrast_loss.11} parent=5 // pred_fallthru
      _
    %p970 = scmp.le.s32.totalorder 2, %s9
    // Predicated region
    $region37: #{contrast_loss.11} parent=5 // pred_check
      %p971 = pneg %p970
    $region38: #{contrast_loss.11} parent=5 // pred_check_branch
      %973 = sbr.rel (%p971) target = $region40
    $region39: #{contrast_loss.11} parent=5 // pred_region
      %s974 = ssub.s32 %s9, 2
      // Predicated region
      $region41: #{contrast_loss.11} parent=39 // pred_check
        %p975 = pneg %p106
      $region42: #{contrast_loss.11} parent=39 // pred_check_branch
        %977 = sbr.rel (%p975) target = $region44
      $region43: #{contrast_loss.11} parent=39 // pred_region
        %s978 = smul.u32 64, %s15
        %p979 = scmp.lt.s32.totalorder %s978, 127
        %s980 = scalar_select %p979, %s978, 127
        %s981 = smul.addr %s980, 8
        %s982 = scalar_lea.vmem %s3, %s981
      $region44: #{contrast_loss.11} parent=39 // pred_fallthru
        _
    $region40: #{contrast_loss.11} parent=5 // pred_fallthru
      _
  $region6: #{contrast_loss.11} parent=0 // loop_footer
    %s13 = sadd.s32 1, %s9
  $region7: #{contrast_loss.11} parent=0 // loop_footer_branch
    %8 = sbr.rel target = $region3
  $region8: #{contrast_loss.11} parent=0 // loop_exit
    _

// kernel: contrast_loss.16
$region0: #{contrast_loss.16}
  #allocation0 [shape = 'u32[]', space=smem, size = 0x4, offset = 0x4, fixed_abs, tag = 'smem constant byte address 0x4 - core index']
  #allocation1 [shape = 'u32[144,128]{1,0:T(1,128)}', space=vmem, size = 0x12000, scoped, tag = 'internal scratch']
  %s0 = inlined_call_operand.vmem [shape: f32[128,16], index: 0, kind: input, shape index: {}]
  %s1 = inlined_call_operand.vmem [shape: f32[4,128,16], index: 1, kind: input, shape index: {}]
  %s2 = inlined_call_operand.vmem [shape: f32[4,1], index: 2, kind: output, shape index: {}]
  %s3 = sld [smem:[#allocation0]]
  $region22: #{contrast_loss.16} parent=0
    _
  %s5 = ssub.s32 1, %s3
  %s6 = scalar_select 0, %s5, %s3
  // Predicated region
  $region2: #{contrast_loss.16} parent=0 // pred_check
    _
  $region3: #{contrast_loss.16} parent=0 // pred_check_branch
    %8 = sbr.rel (0) target = $region5
  $region4: #{contrast_loss.16} parent=0 // pred_region
    _
  $region5: #{contrast_loss.16} parent=0 // pred_fallthru
    _
  // Predicated region
  $region6: #{contrast_loss.16} parent=0 // pred_check
    _
  $region7: #{contrast_loss.16} parent=0 // pred_check_branch
    %10 = sbr.rel (0) target = $region9
  $region8: #{contrast_loss.16} parent=0 // pred_region
    _
  $region9: #{contrast_loss.16} parent=0 // pred_fallthru
    _
  %p11 = scmp.eq.s32.totalorder 0, 0
  // Predicated region
  $region10: #{contrast_loss.16} parent=0 // pred_check
    %p12 = pneg %p11
  $region11: #{contrast_loss.16} parent=0 // pred_check_branch
    %14 = sbr.rel (%p12) target = $region13
  $region12: #{contrast_loss.16} parent=0 // pred_region
    %vm15 = vcmask 3072
    %16 = vst.msk [vmem:[%s2] sm:$0xf] %vm15, 0.0
  $region13: #{contrast_loss.16} parent=0 // pred_fallthru
    _
  %v17 = vld [vmem:[%s1] sm:$0xff]
  %v18 = vld [vmem:[%s1 + $0x8] sm:$0xff]
  %v19 = vld [vmem:[%s1 + $0x10] sm:$0xff]
  %v20 = vld [vmem:[%s1 + $0x18] sm:$0xff]
  %v21 = vld [vmem:[%s1 + $0x20] sm:$0xff]
  %v22 = vld [vmem:[%s1 + $0x28] sm:$0xff]
  %v23 = vld [vmem:[%s1 + $0x30] sm:$0xff]
  %v24 = vld [vmem:[%s1 + $0x38] sm:$0xff]
  %v25 = vld [vmem:[%s1 + $0x40] sm:$0xff]
  %v26 = vld [vmem:[%s1 + $0x48] sm:$0xff]
  %v27 = vld [vmem:[%s1 + $0x50] sm:$0xff]
  %v28 = vld [vmem:[%s1 + $0x58] sm:$0xff]
  %v29 = vld [vmem:[%s1 + $0x60] sm:$0xff]
  %v30 = vld [vmem:[%s1 + $0x68] sm:$0xff]
  %v31 = vld [vmem:[%s1 + $0x70] sm:$0xff]
  %v32 = vld [vmem:[%s1 + $0x78] sm:$0xff]
  %v33 = vld [vmem:[%s1 + $0x80] sm:$0xff]
  %v34 = vld [vmem:[%s1 + $0x88] sm:$0xff]
  %v35 = vld [vmem:[%s1 + $0x90] sm:$0xff]
  %v36 = vld [vmem:[%s1 + $0x98] sm:$0xff]
  %v37 = vld [vmem:[%s1 + $0xa0] sm:$0xff]
  %v38 = vld [vmem:[%s1 + $0xa8] sm:$0xff]
  %v39 = vld [vmem:[%s1 + $0xb0] sm:$0xff]
  %v40 = vld [vmem:[%s1 + $0xb8] sm:$0xff]
  %v41 = vld [vmem:[%s1 + $0xc0] sm:$0xff]
  %v42 = vld [vmem:[%s1 + $0xc8] sm:$0xff]
  %v43 = vld [vmem:[%s1 + $0xd0] sm:$0xff]
  %v44 = vld [vmem:[%s1 + $0xd8] sm:$0xff]
  %v45 = vld [vmem:[%s1 + $0xe0] sm:$0xff]
  %v46 = vld [vmem:[%s1 + $0xe8] sm:$0xff]
  %v47 = vld [vmem:[%s1 + $0xf0] sm:$0xff]
  %v48 = vld [vmem:[%s1 + $0xf8] sm:$0xff]
  %v49 = vld [vmem:[%s1 + $0x100] sm:$0xff]
  %v50 = vld [vmem:[%s1 + $0x108] sm:$0xff]
  %v51 = vld [vmem:[%s1 + $0x110] sm:$0xff]
  %v52 = vld [vmem:[%s1 + $0x118] sm:$0xff]
  %v53 = vld [vmem:[%s1 + $0x120] sm:$0xff]
  %v54 = vld [vmem:[%s1 + $0x128] sm:$0xff]
  %v55 = vld [vmem:[%s1 + $0x130] sm:$0xff]
  %v56 = vld [vmem:[%s1 + $0x138] sm:$0xff]
  %v57 = vld [vmem:[%s1 + $0x140] sm:$0xff]
  %v58 = vld [vmem:[%s1 + $0x148] sm:$0xff]
  %v59 = vld [vmem:[%s1 + $0x150] sm:$0xff]
  %v60 = vld [vmem:[%s1 + $0x158] sm:$0xff]
  %v61 = vld [vmem:[%s1 + $0x160] sm:$0xff]
  %v62 = vld [vmem:[%s1 + $0x168] sm:$0xff]
  %v63 = vld [vmem:[%s1 + $0x170] sm:$0xff]
  %v64 = vld [vmem:[%s1 + $0x178] sm:$0xff]
  %v65 = vld [vmem:[%s1 + $0x180] sm:$0xff]
  %v66 = vld [vmem:[%s1 + $0x188] sm:$0xff]
  %v67 = vld [vmem:[%s1 + $0x190] sm:$0xff]
  %v68 = vld [vmem:[%s1 + $0x198] sm:$0xff]
  %v69 = vld [vmem:[%s1 + $0x1a0] sm:$0xff]
  %v70 = vld [vmem:[%s1 + $0x1a8] sm:$0xff]
  %v71 = vld [vmem:[%s1 + $0x1b0] sm:$0xff]
  %v72 = vld [vmem:[%s1 + $0x1b8] sm:$0xff]
  %v73 = vld [vmem:[%s1 + $0x1c0] sm:$0xff]
  %v74 = vld [vmem:[%s1 + $0x1c8] sm:$0xff]
  %v75 = vld [vmem:[%s1 + $0x1d0] sm:$0xff]
  %v76 = vld [vmem:[%s1 + $0x1d8] sm:$0xff]
  %v77 = vld [vmem:[%s1 + $0x1e0] sm:$0xff]
  %v78 = vld [vmem:[%s1 + $0x1e8] sm:$0xff]
  %v79 = vld [vmem:[%s1 + $0x1f0] sm:$0xff]
  %v80 = vld [vmem:[%s1 + $0x1f8] sm:$0xff]
  %v81 = vld [vmem:[%s0] sm:$0xff]
  %v82 = vld [vmem:[%s0 + $0x8] sm:$0xff]
  %v83 = vld [vmem:[%s0 + $0x10] sm:$0xff]
  %v84 = vld [vmem:[%s0 + $0x18] sm:$0xff]
  %v85 = vld [vmem:[%s0 + $0x20] sm:$0xff]
  %v86 = vld [vmem:[%s0 + $0x28] sm:$0xff]
  %v87 = vld [vmem:[%s0 + $0x30] sm:$0xff]
  %v88 = vld [vmem:[%s0 + $0x38] sm:$0xff]
  %v89 = vld [vmem:[%s0 + $0x40] sm:$0xff]
  %v90 = vld [vmem:[%s0 + $0x48] sm:$0xff]
  %v91 = vld [vmem:[%s0 + $0x50] sm:$0xff]
  %v92 = vld [vmem:[%s0 + $0x58] sm:$0xff]
  %v93 = vld [vmem:[%s0 + $0x60] sm:$0xff]
  %v94 = vld [vmem:[%s0 + $0x68] sm:$0xff]
  %v95 = vld [vmem:[%s0 + $0x70] sm:$0xff]
  %v96 = vld [vmem:[%s0 + $0x78] sm:$0xff]
  %v97 = vsub.f32 %v17, %v81
  %v98 = vsub.f32 %v18, %v82
  %v99 = vsub.f32 %v19, %v83
  %v100 = vsub.f32 %v20, %v84
  %v101 = vsub.f32 %v21, %v85
  %v102 = vsub.f32 %v22, %v86
  %v103 = vsub.f32 %v23, %v87
  %v104 = vsub.f32 %v24, %v88
  %v105 = vsub.f32 %v25, %v89
  %v106 = vsub.f32 %v26, %v90
  %v107 = vsub.f32 %v27, %v91
  %v108 = vsub.f32 %v28, %v92
  %v109 = vsub.f32 %v29, %v93
  %v110 = vsub.f32 %v30, %v94
  %v111 = vsub.f32 %v31, %v95
  %v112 = vsub.f32 %v32, %v96
  %v113 = vsub.f32 %v33, %v81
  %v114 = vsub.f32 %v34, %v82
  %v115 = vsub.f32 %v35, %v83
  %v116 = vsub.f32 %v36, %v84
  %v117 = vsub.f32 %v37, %v85
  %v118 = vsub.f32 %v38, %v86
  %v119 = vsub.f32 %v39, %v87
  %v120 = vsub.f32 %v40, %v88
  %v121 = vsub.f32 %v41, %v89
  %v122 = vsub.f32 %v42, %v90
  %v123 = vsub.f32 %v43, %v91
  %v124 = vsub.f32 %v44, %v92
  %v125 = vsub.f32 %v45, %v93
  %v126 = vsub.f32 %v46, %v94
  %v127 = vsub.f32 %v47, %v95
  %v128 = vsub.f32 %v48, %v96
  %v129 = vsub.f32 %v49, %v81
  %v130 = vsub.f32 %v50, %v82
  %v131 = vsub.f32 %v51, %v83
  %v132 = vsub.f32 %v52, %v84
  %v133 = vsub.f32 %v53, %v85
  %v134 = vsub.f32 %v54, %v86
  %v135 = vsub.f32 %v55, %v87
  %v136 = vsub.f32 %v56, %v88
  %v137 = vsub.f32 %v57, %v89
  %v138 = vsub.f32 %v58, %v90
  %v139 = vsub.f32 %v59, %v91
  %v140 = vsub.f32 %v60, %v92
  %v141 = vsub.f32 %v61, %v93
  %v142 = vsub.f32 %v62, %v94
  %v143 = vsub.f32 %v63, %v95
  %v144 = vsub.f32 %v64, %v96
  %v145 = vsub.f32 %v65, %v81
  %v146 = vsub.f32 %v66, %v82
  %v147 = vsub.f32 %v67, %v83
  %v148 = vsub.f32 %v68, %v84
  %v149 = vsub.f32 %v69, %v85
  %v150 = vsub.f32 %v70, %v86
  %v151 = vsub.f32 %v71, %v87
  %v152 = vsub.f32 %v72, %v88
  %v153 = vsub.f32 %v73, %v89
  %v154 = vsub.f32 %v74, %v90
  %v155 = vsub.f32 %v75, %v91
  %v156 = vsub.f32 %v76, %v92
  %v157 = vsub.f32 %v77, %v93
  %v158 = vsub.f32 %v78, %v94
  %v159 = vsub.f32 %v79, %v95
  %v160 = vsub.f32 %v80, %v96
  %v161 = vand.u32 2147483647, %v97
  %v162 = vand.u32 2147483647, %v98
  %v163 = vand.u32 2147483647, %v99
  %v164 = vand.u32 2147483647, %v100
  %v165 = vand.u32 2147483647, %v101
  %v166 = vand.u32 2147483647, %v102
  %v167 = vand.u32 2147483647, %v103
  %v168 = vand.u32 2147483647, %v104
  %v169 = vand.u32 2147483647, %v105
  %v170 = vand.u32 2147483647, %v106
  %v171 = vand.u32 2147483647, %v107
  %v172 = vand.u32 2147483647, %v108
  %v173 = vand.u32 2147483647, %v109
  %v174 = vand.u32 2147483647, %v110
  %v175 = vand.u32 2147483647, %v111
  %v176 = vand.u32 2147483647, %v112
  %v177 = vand.u32 2147483647, %v113
  %v178 = vand.u32 2147483647, %v114
  %v179 = vand.u32 2147483647, %v115
  %v180 = vand.u32 2147483647, %v116
  %v181 = vand.u32 2147483647, %v117
  %v182 = vand.u32 2147483647, %v118
  %v183 = vand.u32 2147483647, %v119
  %v184 = vand.u32 2147483647, %v120
  %v185 = vand.u32 2147483647, %v121
  %v186 = vand.u32 2147483647, %v122
  %v187 = vand.u32 2147483647, %v123
  %v188 = vand.u32 2147483647, %v124
  %v189 = vand.u32 2147483647, %v125
  %v190 = vand.u32 2147483647, %v126
  %v191 = vand.u32 2147483647, %v127
  %v192 = vand.u32 2147483647, %v128
  %v193 = vand.u32 2147483647, %v129
  %v194 = vand.u32 2147483647, %v130
  %v195 = vand.u32 2147483647, %v131
  %v196 = vand.u32 2147483647, %v132
  %v197 = vand.u32 2147483647, %v133
  %v198 = vand.u32 2147483647, %v134
  %v199 = vand.u32 2147483647, %v135
  %v200 = vand.u32 2147483647, %v136
  %v201 = vand.u32 2147483647, %v137
  %v202 = vand.u32 2147483647, %v138
  %v203 = vand.u32 2147483647, %v139
  %v204 = vand.u32 2147483647, %v140
  %v205 = vand.u32 2147483647, %v141
  %v206 = vand.u32 2147483647, %v142
  %v207 = vand.u32 2147483647, %v143
  %v208 = vand.u32 2147483647, %v144
  %v209 = vand.u32 2147483647, %v145
  %v210 = vand.u32 2147483647, %v146
  %v211 = vand.u32 2147483647, %v147
  %v212 = vand.u32 2147483647, %v148
  %v213 = vand.u32 2147483647, %v149
  %v214 = vand.u32 2147483647, %v150
  %v215 = vand.u32 2147483647, %v151
  %v216 = vand.u32 2147483647, %v152
  %v217 = vand.u32 2147483647, %v153
  %v218 = vand.u32 2147483647, %v154
  %v219 = vand.u32 2147483647, %v155
  %v220 = vand.u32 2147483647, %v156
  %v221 = vand.u32 2147483647, %v157
  %v222 = vand.u32 2147483647, %v158
  %v223 = vand.u32 2147483647, %v159
  %v224 = vand.u32 2147483647, %v160
  %vm225 = vcmask 130048
  %v226 = vsel %vm225, %v161, 0.0
  %227 = vadd.xlane.f32.xlu0 %v226
  %v228 = vpop.xlane.xlu0 %227
  %v229 = vsel %vm225, %v162, 0.0
  %230 = vadd.xlane.f32.xlu0 %v229
  %v231 = vpop.xlane.xlu0 %230
  %v232 = vsel %vm225, %v163, 0.0
  %233 = vadd.xlane.f32.xlu0 %v232
  %v234 = vpop.xlane.xlu0 %233
  %v235 = vsel %vm225, %v164, 0.0
  %236 = vadd.xlane.f32.xlu0 %v235
  %v237 = vpop.xlane.xlu0 %236
  %v238 = vsel %vm225, %v165, 0.0
  %239 = vadd.xlane.f32.xlu0 %v238
  %v240 = vpop.xlane.xlu0 %239
  %v241 = vsel %vm225, %v166, 0.0
  %242 = vadd.xlane.f32.xlu0 %v241
  %v243 = vpop.xlane.xlu0 %242
  %v244 = vsel %vm225, %v167, 0.0
  %245 = vadd.xlane.f32.xlu0 %v244
  %v246 = vpop.xlane.xlu0 %245
  %v247 = vsel %vm225, %v168, 0.0
  %248 = vadd.xlane.f32.xlu0 %v247
  %v249 = vpop.xlane.xlu0 %248
  %v250 = vsel %vm225, %v169, 0.0
  %251 = vadd.xlane.f32.xlu0 %v250
  %v252 = vpop.xlane.xlu0 %251
  %v253 = vsel %vm225, %v170, 0.0
  %254 = vadd.xlane.f32.xlu0 %v253
  %v255 = vpop.xlane.xlu0 %254
  %v256 = vsel %vm225, %v171, 0.0
  %257 = vadd.xlane.f32.xlu0 %v256
  %v258 = vpop.xlane.xlu0 %257
  %v259 = vsel %vm225, %v172, 0.0
  %260 = vadd.xlane.f32.xlu0 %v259
  %v261 = vpop.xlane.xlu0 %260
  %v262 = vsel %vm225, %v173, 0.0
  %263 = vadd.xlane.f32.xlu0 %v262
  %v264 = vpop.xlane.xlu0 %263
  %v265 = vsel %vm225, %v174, 0.0
  %266 = vadd.xlane.f32.xlu0 %v265
  %v267 = vpop.xlane.xlu0 %266
  %v268 = vsel %vm225, %v175, 0.0
  %269 = vadd.xlane.f32.xlu0 %v268
  %v270 = vpop.xlane.xlu0 %269
  %v271 = vsel %vm225, %v176, 0.0
  %272 = vadd.xlane.f32.xlu0 %v271
  %v273 = vpop.xlane.xlu0 %272
  %v274 = vsel %vm225, %v177, 0.0
  %275 = vadd.xlane.f32.xlu0 %v274
  %v276 = vpop.xlane.xlu0 %275
  %v277 = vsel %vm225, %v178, 0.0
  %278 = vadd.xlane.f32.xlu0 %v277
  %v279 = vpop.xlane.xlu0 %278
  %v280 = vsel %vm225, %v179, 0.0
  %281 = vadd.xlane.f32.xlu0 %v280
  %v282 = vpop.xlane.xlu0 %281
  %v283 = vsel %vm225, %v180, 0.0
  %284 = vadd.xlane.f32.xlu0 %v283
  %v285 = vpop.xlane.xlu0 %284
  %v286 = vsel %vm225, %v181, 0.0
  %287 = vadd.xlane.f32.xlu0 %v286
  %v288 = vpop.xlane.xlu0 %287
  %v289 = vsel %vm225, %v182, 0.0
  %290 = vadd.xlane.f32.xlu0 %v289
  %v291 = vpop.xlane.xlu0 %290
  %v292 = vsel %vm225, %v183, 0.0
  %293 = vadd.xlane.f32.xlu0 %v292
  %v294 = vpop.xlane.xlu0 %293
  %v295 = vsel %vm225, %v184, 0.0
  %296 = vadd.xlane.f32.xlu0 %v295
  %v297 = vpop.xlane.xlu0 %296
  %v298 = vsel %vm225, %v185, 0.0
  %299 = vadd.xlane.f32.xlu0 %v298
  %v300 = vpop.xlane.xlu0 %299
  %v301 = vsel %vm225, %v186, 0.0
  %302 = vadd.xlane.f32.xlu0 %v301
  %v303 = vpop.xlane.xlu0 %302
  %v304 = vsel %vm225, %v187, 0.0
  %305 = vadd.xlane.f32.xlu0 %v304
  %v306 = vpop.xlane.xlu0 %305
  %v307 = vsel %vm225, %v188, 0.0
  %308 = vadd.xlane.f32.xlu0 %v307
  %v309 = vpop.xlane.xlu0 %308
  %v310 = vsel %vm225, %v189, 0.0
  %311 = vadd.xlane.f32.xlu0 %v310
  %v312 = vpop.xlane.xlu0 %311
  %v313 = vsel %vm225, %v190, 0.0
  %314 = vadd.xlane.f32.xlu0 %v313
  %v315 = vpop.xlane.xlu0 %314
  %v316 = vsel %vm225, %v191, 0.0
  %317 = vadd.xlane.f32.xlu0 %v316
  %v318 = vpop.xlane.xlu0 %317
  %v319 = vsel %vm225, %v192, 0.0
  %320 = vadd.xlane.f32.xlu0 %v319
  %v321 = vpop.xlane.xlu0 %320
  %v322 = vsel %vm225, %v193, 0.0
  %323 = vadd.xlane.f32.xlu0 %v322
  %v324 = vpop.xlane.xlu0 %323
  %v325 = vsel %vm225, %v194, 0.0
  %326 = vadd.xlane.f32.xlu0 %v325
  %v327 = vpop.xlane.xlu0 %326
  %v328 = vsel %vm225, %v195, 0.0
  %329 = vadd.xlane.f32.xlu0 %v328
  %v330 = vpop.xlane.xlu0 %329
  %v331 = vsel %vm225, %v196, 0.0
  %332 = vadd.xlane.f32.xlu0 %v331
  %v333 = vpop.xlane.xlu0 %332
  %v334 = vsel %vm225, %v197, 0.0
  %335 = vadd.xlane.f32.xlu0 %v334
  %v336 = vpop.xlane.xlu0 %335
  %v337 = vsel %vm225, %v198, 0.0
  %338 = vadd.xlane.f32.xlu0 %v337
  %v339 = vpop.xlane.xlu0 %338
  %v340 = vsel %vm225, %v199, 0.0
  %341 = vadd.xlane.f32.xlu0 %v340
  %v342 = vpop.xlane.xlu0 %341
  %v343 = vsel %vm225, %v200, 0.0
  %344 = vadd.xlane.f32.xlu0 %v343
  %v345 = vpop.xlane.xlu0 %344
  %v346 = vsel %vm225, %v201, 0.0
  %347 = vadd.xlane.f32.xlu0 %v346
  %v348 = vpop.xlane.xlu0 %347
  %v349 = vsel %vm225, %v202, 0.0
  %350 = vadd.xlane.f32.xlu0 %v349
  %v351 = vpop.xlane.xlu0 %350
  %v352 = vsel %vm225, %v203, 0.0
  %353 = vadd.xlane.f32.xlu0 %v352
  %v354 = vpop.xlane.xlu0 %353
  %v355 = vsel %vm225, %v204, 0.0
  %356 = vadd.xlane.f32.xlu0 %v355
  %v357 = vpop.xlane.xlu0 %356
  %v358 = vsel %vm225, %v205, 0.0
  %359 = vadd.xlane.f32.xlu0 %v358
  %v360 = vpop.xlane.xlu0 %359
  %v361 = vsel %vm225, %v206, 0.0
  %362 = vadd.xlane.f32.xlu0 %v361
  %v363 = vpop.xlane.xlu0 %362
  %v364 = vsel %vm225, %v207, 0.0
  %365 = vadd.xlane.f32.xlu0 %v364
  %v366 = vpop.xlane.xlu0 %365
  %v367 = vsel %vm225, %v208, 0.0
  %368 = vadd.xlane.f32.xlu0 %v367
  %v369 = vpop.xlane.xlu0 %368
  %v370 = vsel %vm225, %v209, 0.0
  %371 = vadd.xlane.f32.xlu0 %v370
  %v372 = vpop.xlane.xlu0 %371
  %v373 = vsel %vm225, %v210, 0.0
  %374 = vadd.xlane.f32.xlu0 %v373
  %v375 = vpop.xlane.xlu0 %374
  %v376 = vsel %vm225, %v211, 0.0
  %377 = vadd.xlane.f32.xlu0 %v376
  %v378 = vpop.xlane.xlu0 %377
  %v379 = vsel %vm225, %v212, 0.0
  %380 = vadd.xlane.f32.xlu0 %v379
  %v381 = vpop.xlane.xlu0 %380
  %v382 = vsel %vm225, %v213, 0.0
  %383 = vadd.xlane.f32.xlu0 %v382
  %v384 = vpop.xlane.xlu0 %383
  %v385 = vsel %vm225, %v214, 0.0
  %386 = vadd.xlane.f32.xlu0 %v385
  %v387 = vpop.xlane.xlu0 %386
  %v388 = vsel %vm225, %v215, 0.0
  %389 = vadd.xlane.f32.xlu0 %v388
  %v390 = vpop.xlane.xlu0 %389
  %v391 = vsel %vm225, %v216, 0.0
  %392 = vadd.xlane.f32.xlu0 %v391
  %v393 = vpop.xlane.xlu0 %392
  %v394 = vsel %vm225, %v217, 0.0
  %395 = vadd.xlane.f32.xlu0 %v394
  %v396 = vpop.xlane.xlu0 %395
  %v397 = vsel %vm225, %v218, 0.0
  %398 = vadd.xlane.f32.xlu0 %v397
  %v399 = vpop.xlane.xlu0 %398
  %v400 = vsel %vm225, %v219, 0.0
  %401 = vadd.xlane.f32.xlu0 %v400
  %v402 = vpop.xlane.xlu0 %401
  %v403 = vsel %vm225, %v220, 0.0
  %404 = vadd.xlane.f32.xlu0 %v403
  %v405 = vpop.xlane.xlu0 %404
  %v406 = vsel %vm225, %v221, 0.0
  %407 = vadd.xlane.f32.xlu0 %v406
  %v408 = vpop.xlane.xlu0 %407
  %v409 = vsel %vm225, %v222, 0.0
  %410 = vadd.xlane.f32.xlu0 %v409
  %v411 = vpop.xlane.xlu0 %410
  %v412 = vsel %vm225, %v223, 0.0
  %413 = vadd.xlane.f32.xlu0 %v412
  %v414 = vpop.xlane.xlu0 %413
  %v415 = vsel %vm225, %v224, 0.0
  %416 = vadd.xlane.f32.xlu0 %v415
  %v417 = vpop.xlane.xlu0 %416
  %v418 = vld [vmem:[%s2] sm:$0xf]
  %v483 = vlaneseq
  %v484 = vand.u32 %v483, 127
  %v485 = vlaneseq
  %v486 = vshrl.u32 %v485, 7
  %v487 = vsub.s32 %v484, %v486
  %v488 = vrot.slane %v228, %v487
  %v489 = vadd.s32 %v484, 4294967288
  %v490 = vlaneseq
  %v491 = vshrl.u32 %v490, 7
  %v492 = vsub.s32 %v489, %v491
  %v493 = vrot.slane %v231, %v492
  %vm494 = vcmask 130112
  %v495 = vsel %vm494, %v493, %v488
  %v496 = vadd.s32 %v484, 4294967280
  %v497 = vlaneseq
  %v498 = vshrl.u32 %v497, 7
  %v499 = vsub.s32 %v496, %v498
  %v500 = vrot.slane %v234, %v499
  %vm501 = vcmask 195712
  %v502 = vsel %vm501, %v500, %v495
  %v503 = vadd.s32 %v484, 4294967272
  %v504 = vlaneseq
  %v505 = vshrl.u32 %v504, 7
  %v506 = vsub.s32 %v503, %v505
  %v507 = vrot.slane %v237, %v506
  %vm508 = vcmask 261312
  %v509 = vsel %vm508, %v507, %v502
  %v510 = vadd.s32 %v484, 4294967264
  %v511 = vlaneseq
  %v512 = vshrl.u32 %v511, 7
  %v513 = vsub.s32 %v510, %v512
  %v514 = vrot.slane %v240, %v513
  %vm515 = vcmask 326912
  %v516 = vsel %vm515, %v514, %v509
  %v517 = vadd.s32 %v484, 4294967256
  %v518 = vlaneseq
  %v519 = vshrl.u32 %v518, 7
  %v520 = vsub.s32 %v517, %v519
  %v521 = vrot.slane %v243, %v520
  %vm522 = vcmask 392512
  %v523 = vsel %vm522, %v521, %v516
  %v524 = vadd.s32 %v484, 4294967248
  %v525 = vlaneseq
  %v526 = vshrl.u32 %v525, 7
  %v527 = vsub.s32 %v524, %v526
  %v528 = vrot.slane %v246, %v527
  %vm529 = vcmask 458112
  %v530 = vsel %vm529, %v528, %v523
  %v531 = vadd.s32 %v484, 4294967240
  %v532 = vlaneseq
  %v533 = vshrl.u32 %v532, 7
  %v534 = vsub.s32 %v531, %v533
  %v535 = vrot.slane %v249, %v534
  %vm536 = vcmask 523712
  %v537 = vsel %vm536, %v535, %v530
  %v538 = vadd.s32 %v484, 4294967232
  %v539 = vlaneseq
  %v540 = vshrl.u32 %v539, 7
  %v541 = vsub.s32 %v538, %v540
  %v542 = vrot.slane %v252, %v541
  %vm543 = vcmask 589312
  %v544 = vsel %vm543, %v542, %v537
  %v545 = vadd.s32 %v484, 4294967224
  %v546 = vlaneseq
  %v547 = vshrl.u32 %v546, 7
  %v548 = vsub.s32 %v545, %v547
  %v549 = vrot.slane %v255, %v548
  %vm550 = vcmask 654912
  %v551 = vsel %vm550, %v549, %v544
  %v552 = vadd.s32 %v484, 4294967216
  %v553 = vlaneseq
  %v554 = vshrl.u32 %v553, 7
  %v555 = vsub.s32 %v552, %v554
  %v556 = vrot.slane %v258, %v555
  %vm557 = vcmask 720512
  %v558 = vsel %vm557, %v556, %v551
  %v559 = vadd.s32 %v484, 4294967208
  %v560 = vlaneseq
  %v561 = vshrl.u32 %v560, 7
  %v562 = vsub.s32 %v559, %v561
  %v563 = vrot.slane %v261, %v562
  %vm564 = vcmask 786112
  %v565 = vsel %vm564, %v563, %v558
  %v566 = vadd.s32 %v484, 4294967200
  %v567 = vlaneseq
  %v568 = vshrl.u32 %v567, 7
  %v569 = vsub.s32 %v566, %v568
  %v570 = vrot.slane %v264, %v569
  %vm571 = vcmask 851712
  %v572 = vsel %vm571, %v570, %v565
  %v573 = vadd.s32 %v484, 4294967192
  %v574 = vlaneseq
  %v575 = vshrl.u32 %v574, 7
  %v576 = vsub.s32 %v573, %v575
  %v577 = vrot.slane %v267, %v576
  %vm578 = vcmask 917312
  %v579 = vsel %vm578, %v577, %v572
  %v580 = vadd.s32 %v484, 4294967184
  %v581 = vlaneseq
  %v582 = vshrl.u32 %v581, 7
  %v583 = vsub.s32 %v580, %v582
  %v584 = vrot.slane %v270, %v583
  %vm585 = vcmask 982912
  %v586 = vsel %vm585, %v584, %v579
  %v587 = vadd.s32 %v484, 4294967176
  %v588 = vlaneseq
  %v589 = vshrl.u32 %v588, 7
  %v590 = vsub.s32 %v587, %v589
  %v591 = vrot.slane %v273, %v590
  %vm592 = vcmask 1048512
  %v593 = vsel %vm592, %v591, %v586
  %v594 = vlaneseq
  %v595 = vshrl.u32 %v594, 7
  %v596 = vsub.s32 %v484, %v595
  %v597 = vrot.slane %v276, %v596
  %v598 = vlaneseq
  %v599 = vshrl.u32 %v598, 7
  %v600 = vsub.s32 %v489, %v599
  %v601 = vrot.slane %v279, %v600
  %v602 = vsel %vm494, %v601, %v597
  %v603 = vlaneseq
  %v604 = vshrl.u32 %v603, 7
  %v605 = vsub.s32 %v496, %v604
  %v606 = vrot.slane %v282, %v605
  %v607 = vsel %vm501, %v606, %v602
  %v608 = vlaneseq
  %v609 = vshrl.u32 %v608, 7
  %v610 = vsub.s32 %v503, %v609
  %v611 = vrot.slane %v285, %v610
  %v612 = vsel %vm508, %v611, %v607
  %v613 = vlaneseq
  %v614 = vshrl.u32 %v613, 7
  %v615 = vsub.s32 %v510, %v614
  %v616 = vrot.slane %v288, %v615
  %v617 = vsel %vm515, %v616, %v612
  %v618 = vlaneseq
  %v619 = vshrl.u32 %v618, 7
  %v620 = vsub.s32 %v517, %v619
  %v621 = vrot.slane %v291, %v620
  %v622 = vsel %vm522, %v621, %v617
  %v623 = vlaneseq
  %v624 = vshrl.u32 %v623, 7
  %v625 = vsub.s32 %v524, %v624
  %v626 = vrot.slane %v294, %v625
  %v627 = vsel %vm529, %v626, %v622
  %v628 = vlaneseq
  %v629 = vshrl.u32 %v628, 7
  %v630 = vsub.s32 %v531, %v629
  %v631 = vrot.slane %v297, %v630
  %v632 = vsel %vm536, %v631, %v627
  %v633 = vlaneseq
  %v634 = vshrl.u32 %v633, 7
  %v635 = vsub.s32 %v538, %v634
  %v636 = vrot.slane %v300, %v635
  %v637 = vsel %vm543, %v636, %v632
  %v638 = vlaneseq
  %v639 = vshrl.u32 %v638, 7
  %v640 = vsub.s32 %v545, %v639
  %v641 = vrot.slane %v303, %v640
  %v642 = vsel %vm550, %v641, %v637
  %v643 = vlaneseq
  %v644 = vshrl.u32 %v643, 7
  %v645 = vsub.s32 %v552, %v644
  %v646 = vrot.slane %v306, %v645
  %v647 = vsel %vm557, %v646, %v642
  %v648 = vlaneseq
  %v649 = vshrl.u32 %v648, 7
  %v650 = vsub.s32 %v559, %v649
  %v651 = vrot.slane %v309, %v650
  %v652 = vsel %vm564, %v651, %v647
  %v653 = vlaneseq
  %v654 = vshrl.u32 %v653, 7
  %v655 = vsub.s32 %v566, %v654
  %v656 = vrot.slane %v312, %v655
  %v657 = vsel %vm571, %v656, %v652
  %v658 = vlaneseq
  %v659 = vshrl.u32 %v658, 7
  %v660 = vsub.s32 %v573, %v659
  %v661 = vrot.slane %v315, %v660
  %v662 = vsel %vm578, %v661, %v657
  %v663 = vlaneseq
  %v664 = vshrl.u32 %v663, 7
  %v665 = vsub.s32 %v580, %v664
  %v666 = vrot.slane %v318, %v665
  %v667 = vsel %vm585, %v666, %v662
  %v668 = vlaneseq
  %v669 = vshrl.u32 %v668, 7
  %v670 = vsub.s32 %v587, %v669
  %v671 = vrot.slane %v321, %v670
  %v672 = vsel %vm592, %v671, %v667
  %v673 = vlaneseq
  %v674 = vshrl.u32 %v673, 7
  %v675 = vsub.s32 %v484, %v674
  %v676 = vrot.slane %v324, %v675
  %v677 = vlaneseq
  %v678 = vshrl.u32 %v677, 7
  %v679 = vsub.s32 %v489, %v678
  %v680 = vrot.slane %v327, %v679
  %v681 = vsel %vm494, %v680, %v676
  %v682 = vlaneseq
  %v683 = vshrl.u32 %v682, 7
  %v684 = vsub.s32 %v496, %v683
  %v685 = vrot.slane %v330, %v684
  %v686 = vsel %vm501, %v685, %v681
  %v687 = vlaneseq
  %v688 = vshrl.u32 %v687, 7
  %v689 = vsub.s32 %v503, %v688
  %v690 = vrot.slane %v333, %v689
  %v691 = vsel %vm508, %v690, %v686
  %v692 = vlaneseq
  %v693 = vshrl.u32 %v692, 7
  %v694 = vsub.s32 %v510, %v693
  %v695 = vrot.slane %v336, %v694
  %v696 = vsel %vm515, %v695, %v691
  %v697 = vlaneseq
  %v698 = vshrl.u32 %v697, 7
  %v699 = vsub.s32 %v517, %v698
  %v700 = vrot.slane %v339, %v699
  %v701 = vsel %vm522, %v700, %v696
  %v702 = vlaneseq
  %v703 = vshrl.u32 %v702, 7
  %v704 = vsub.s32 %v524, %v703
  %v705 = vrot.slane %v342, %v704
  %v706 = vsel %vm529, %v705, %v701
  %v707 = vlaneseq
  %v708 = vshrl.u32 %v707, 7
  %v709 = vsub.s32 %v531, %v708
  %v710 = vrot.slane %v345, %v709
  %v711 = vsel %vm536, %v710, %v706
  %v712 = vlaneseq
  %v713 = vshrl.u32 %v712, 7
  %v714 = vsub.s32 %v538, %v713
  %v715 = vrot.slane %v348, %v714
  %v716 = vsel %vm543, %v715, %v711
  %v717 = vlaneseq
  %v718 = vshrl.u32 %v717, 7
  %v719 = vsub.s32 %v545, %v718
  %v720 = vrot.slane %v351, %v719
  %v721 = vsel %vm550, %v720, %v716
  %v722 = vlaneseq
  %v723 = vshrl.u32 %v722, 7
  %v724 = vsub.s32 %v552, %v723
  %v725 = vrot.slane %v354, %v724
  %v726 = vsel %vm557, %v725, %v721
  %v727 = vlaneseq
  %v728 = vshrl.u32 %v727, 7
  %v729 = vsub.s32 %v559, %v728
  %v730 = vrot.slane %v357, %v729
  %v731 = vsel %vm564, %v730, %v726
  %v732 = vlaneseq
  %v733 = vshrl.u32 %v732, 7
  %v734 = vsub.s32 %v566, %v733
  %v735 = vrot.slane %v360, %v734
  %v736 = vsel %vm571, %v735, %v731
  %v737 = vlaneseq
  %v738 = vshrl.u32 %v737, 7
  %v739 = vsub.s32 %v573, %v738
  %v740 = vrot.slane %v363, %v739
  %v741 = vsel %vm578, %v740, %v736
  %v742 = vlaneseq
  %v743 = vshrl.u32 %v742, 7
  %v744 = vsub.s32 %v580, %v743
  %v745 = vrot.slane %v366, %v744
  %v746 = vsel %vm585, %v745, %v741
  %v747 = vlaneseq
  %v748 = vshrl.u32 %v747, 7
  %v749 = vsub.s32 %v587, %v748
  %v750 = vrot.slane %v369, %v749
  %v751 = vsel %vm592, %v750, %v746
  %v752 = vlaneseq
  %v753 = vshrl.u32 %v752, 7
  %v754 = vsub.s32 %v484, %v753
  %v755 = vrot.slane %v372, %v754
  %v756 = vlaneseq
  %v757 = vshrl.u32 %v756, 7
  %v758 = vsub.s32 %v489, %v757
  %v759 = vrot.slane %v375, %v758
  %v760 = vsel %vm494, %v759, %v755
  %v761 = vlaneseq
  %v762 = vshrl.u32 %v761, 7
  %v763 = vsub.s32 %v496, %v762
  %v764 = vrot.slane %v378, %v763
  %v765 = vsel %vm501, %v764, %v760
  %v766 = vlaneseq
  %v767 = vshrl.u32 %v766, 7
  %v768 = vsub.s32 %v503, %v767
  %v769 = vrot.slane %v381, %v768
  %v770 = vsel %vm508, %v769, %v765
  %v771 = vlaneseq
  %v772 = vshrl.u32 %v771, 7
  %v773 = vsub.s32 %v510, %v772
  %v774 = vrot.slane %v384, %v773
  %v775 = vsel %vm515, %v774, %v770
  %v776 = vlaneseq
  %v777 = vshrl.u32 %v776, 7
  %v778 = vsub.s32 %v517, %v777
  %v779 = vrot.slane %v387, %v778
  %v780 = vsel %vm522, %v779, %v775
  %v781 = vlaneseq
  %v782 = vshrl.u32 %v781, 7
  %v783 = vsub.s32 %v524, %v782
  %v784 = vrot.slane %v390, %v783
  %v785 = vsel %vm529, %v784, %v780
  %v786 = vlaneseq
  %v787 = vshrl.u32 %v786, 7
  %v788 = vsub.s32 %v531, %v787
  %v789 = vrot.slane %v393, %v788
  %v790 = vsel %vm536, %v789, %v785
  %v791 = vlaneseq
  %v792 = vshrl.u32 %v791, 7
  %v793 = vsub.s32 %v538, %v792
  %v794 = vrot.slane %v396, %v793
  %v795 = vsel %vm543, %v794, %v790
  %v796 = vlaneseq
  %v797 = vshrl.u32 %v796, 7
  %v798 = vsub.s32 %v545, %v797
  %v799 = vrot.slane %v399, %v798
  %v800 = vsel %vm550, %v799, %v795
  %v801 = vlaneseq
  %v802 = vshrl.u32 %v801, 7
  %v803 = vsub.s32 %v552, %v802
  %v804 = vrot.slane %v402, %v803
  %v805 = vsel %vm557, %v804, %v800
  %v806 = vlaneseq
  %v807 = vshrl.u32 %v806, 7
  %v808 = vsub.s32 %v559, %v807
  %v809 = vrot.slane %v405, %v808
  %v810 = vsel %vm564, %v809, %v805
  %v811 = vlaneseq
  %v812 = vshrl.u32 %v811, 7
  %v813 = vsub.s32 %v566, %v812
  %v814 = vrot.slane %v408, %v813
  %v815 = vsel %vm571, %v814, %v810
  %v816 = vlaneseq
  %v817 = vshrl.u32 %v816, 7
  %v818 = vsub.s32 %v573, %v817
  %v819 = vrot.slane %v411, %v818
  %v820 = vsel %vm578, %v819, %v815
  %v821 = vlaneseq
  %v822 = vshrl.u32 %v821, 7
  %v823 = vsub.s32 %v580, %v822
  %v824 = vrot.slane %v414, %v823
  %v825 = vsel %vm585, %v824, %v820
  %v826 = vlaneseq
  %v827 = vshrl.u32 %v826, 7
  %v828 = vsub.s32 %v587, %v827
  %v829 = vrot.slane %v417, %v828
  %v830 = vsel %vm592, %v829, %v825
  %vm831 = vcmask 1041409
  %v832 = vsel %vm831, %v672, %v593
  %vm833 = vcmask 1042434
  %v834 = vsel %vm833, %v751, %v832
  %vm835 = vcmask 1043459
  %v836 = vsel %vm835, %v830, %v834
  %vm838 = vcmask 1043456
  %v839 = vsel %vm838, %v836, 0.0
  %840 = vadd.xlane.f32.xlu0 %v839
  %v841 = vpop.xlane.xlu0 %840
  %v842 = vadd.f32 %v418, %v841
  %vm843 = vcmask 3072
  %844 = vst.msk [vmem:[%s2] sm:$0xf] %vm843, %v842
  // Predicated region
  $region14: #{contrast_loss.16} parent=0 // pred_check
    _
  $region15: #{contrast_loss.16} parent=0 // pred_check_branch
    %846 = sbr.rel (0) target = $region17
  $region16: #{contrast_loss.16} parent=0 // pred_region
    _
  $region17: #{contrast_loss.16} parent=0 // pred_fallthru
    _
  // Predicated region
  $region18: #{contrast_loss.16} parent=0 // pred_check
    _
  $region19: #{contrast_loss.16} parent=0 // pred_check_branch
    %848 = sbr.rel (0) target = $region21
  $region20: #{contrast_loss.16} parent=0 // pred_region
    _
  $region21: #{contrast_loss.16} parent=0 // pred_fallthru
    _

// kernel: contrast_loss.12
$region0: #{contrast_loss.12}
  #allocation0 [shape = 'u32[]', space=smem, size = 0x4, offset = 0x4, fixed_abs, tag = 'smem constant byte address 0x4 - core index']
  #allocation1 [shape = 'u32[144,128]{1,0:T(1,128)}', space=vmem, size = 0x12000, scoped, tag = 'internal scratch']
  %s0 = inlined_call_operand.vmem [shape: bf16[160,144], index: 0, kind: input, shape index: {}]
  %s1 = inlined_call_operand.vmem [shape: bf16[144,16], index: 1, kind: input, shape index: {}]
  %s2 = inlined_call_operand.vmem [shape: f32[1,16], index: 2, kind: input, shape index: {}]
  %s3 = inlined_call_operand.vmem [shape: f32[160,16], index: 3, kind: output, shape index: {}]
  %s4 = sld [smem:[#allocation0]]
  $region22: #{contrast_loss.12} parent=0
    _
  %s6 = ssub.s32 1, %s4
  %s7 = scalar_select 0, %s6, %s4
  // Predicated region
  $region2: #{contrast_loss.12} parent=0 // pred_check
    _
  $region3: #{contrast_loss.12} parent=0 // pred_check_branch
    %9 = sbr.rel (0) target = $region5
  $region4: #{contrast_loss.12} parent=0 // pred_region
    _
  $region5: #{contrast_loss.12} parent=0 // pred_fallthru
    _
  // Predicated region
  $region6: #{contrast_loss.12} parent=0 // pred_check
    _
  $region7: #{contrast_loss.12} parent=0 // pred_check_branch
    %11 = sbr.rel (0) target = $region9
  $region8: #{contrast_loss.12} parent=0 // pred_region
    _
  $region9: #{contrast_loss.12} parent=0 // pred_fallthru
    _
  // Predicated region
  $region10: #{contrast_loss.12} parent=0 // pred_check
    _
  $region11: #{contrast_loss.12} parent=0 // pred_check_branch
    %13 = sbr.rel (0) target = $region13
  $region12: #{contrast_loss.12} parent=0 // pred_region
    _
  $region13: #{contrast_loss.12} parent=0 // pred_fallthru
    _
  %v15 = vld [vmem:[%s0] sm:$0xff]
  %v16 = vld [vmem:[%s0 + $0x8] sm:$0xff]
  %v17 = vld [vmem:[%s0 + $0x10] sm:$0xff]
  %v18 = vld [vmem:[%s0 + $0x18] sm:$0xff]
  %v19 = vld [vmem:[%s0 + $0x20] sm:$0xff]
  %v20 = vld [vmem:[%s0 + $0x28] sm:$0xff]
  %v21 = vld [vmem:[%s0 + $0x30] sm:$0xff]
  %v22 = vld [vmem:[%s0 + $0x38] sm:$0xff]
  %v23 = vld [vmem:[%s0 + $0x40] sm:$0xff]
  %v24 = vld [vmem:[%s0 + $0x48] sm:$0xff]
  %v25 = vld [vmem:[%s0 + $0x50] sm:$0xff]
  %v26 = vld [vmem:[%s0 + $0x58] sm:$0xff]
  %v27 = vld [vmem:[%s0 + $0x60] sm:$0xff]
  %v28 = vld [vmem:[%s0 + $0x68] sm:$0xff]
  %v29 = vld [vmem:[%s0 + $0x70] sm:$0xff]
  %v30 = vld [vmem:[%s0 + $0x78] sm:$0xff]
  %v31 = vld [vmem:[%s0 + $0x80] sm:$0xff]
  %v32 = vld [vmem:[%s0 + $0x88] sm:$0xff]
  %v33 = vld [vmem:[%s0 + $0x90] sm:$0xff]
  %v34 = vld [vmem:[%s0 + $0x98] sm:$0xff]
  %v35 = vld [vmem:[%s1] sm:$0xf]
  %v36 = vld [vmem:[%s1 + $0x4] sm:$0xf]
  %v37 = vld [vmem:[%s1 + $0x8] sm:$0xf]
  %v38 = vld [vmem:[%s1 + $0xc] sm:$0xf]
  %v39 = vld [vmem:[%s1 + $0x10] sm:$0xf]
  %v40 = vld [vmem:[%s1 + $0x14] sm:$0xf]
  %v41 = vld [vmem:[%s1 + $0x18] sm:$0xf]
  %v42 = vld [vmem:[%s1 + $0x1c] sm:$0xf]
  %v43 = vld [vmem:[%s1 + $0x20] sm:$0xf]
  %v44 = vld [vmem:[%s1 + $0x24] sm:$0xf]
  %v45 = vld [vmem:[%s1 + $0x28] sm:$0xf]
  %v46 = vld [vmem:[%s1 + $0x2c] sm:$0xf]
  %v47 = vld [vmem:[%s1 + $0x30] sm:$0xf]
  %v48 = vld [vmem:[%s1 + $0x34] sm:$0xf]
  %v49 = vld [vmem:[%s1 + $0x38] sm:$0xf]
  %v50 = vld [vmem:[%s1 + $0x3c] sm:$0xf]
  %v51 = vld [vmem:[%s1 + $0x40] sm:$0xf]
  %v52 = vld [vmem:[%s1 + $0x44] sm:$0xf]
  %v53 = vld [vmem:[%s2] sm:$0x1]
  %v55 = vlaneseq
  %v56 = vshrl.u32 %v55, 7
  %v57 = vsub.s32 0, %v56
  %v58 = vrot.slane %v53, %v57
  %v80 = vunpack.c.l.b16 %v15
  %v81 = vunpack.c.h.b16 %v15
  %v82 = vunpack.c.l.b16 %v16
  %v83 = vunpack.c.h.b16 %v16
  %v84 = vunpack.c.l.b16 %v17
  %v85 = vunpack.c.h.b16 %v17
  %v86 = vunpack.c.l.b16 %v18
  %v87 = vunpack.c.h.b16 %v18
  %v88 = vunpack.c.l.b16 %v19
  %v89 = vunpack.c.h.b16 %v19
  %v90 = vunpack.c.l.b16 %v20
  %v91 = vunpack.c.h.b16 %v20
  %v92 = vunpack.c.l.b16 %v21
  %v93 = vunpack.c.h.b16 %v21
  %v94 = vunpack.c.l.b16 %v22
  %v95 = vunpack.c.h.b16 %v22
  %v96 = vunpack.c.l.b16 %v23
  %v97 = vunpack.c.h.b16 %v23
  %v98 = vunpack.c.l.b16 %v24
  %v99 = vunpack.c.h.b16 %v24
  %v100 = vunpack.c.l.b16 %v25
  %v101 = vunpack.c.h.b16 %v25
  %v102 = vunpack.c.l.b16 %v26
  %v103 = vunpack.c.h.b16 %v26
  %v104 = vunpack.c.l.b16 %v27
  %v105 = vunpack.c.h.b16 %v27
  %v106 = vunpack.c.l.b16 %v28
  %v107 = vunpack.c.h.b16 %v28
  %v108 = vunpack.c.l.b16 %v29
  %v109 = vunpack.c.h.b16 %v29
  %v110 = vunpack.c.l.b16 %v30
  %v111 = vunpack.c.h.b16 %v30
  %v112 = vunpack.c.l.b16 %v31
  %v113 = vunpack.c.h.b16 %v31
  %v114 = vunpack.c.l.b16 %v32
  %v115 = vunpack.c.h.b16 %v32
  %v116 = vunpack.c.l.b16 %v33
  %v117 = vunpack.c.h.b16 %v33
  %v118 = vunpack.c.l.b16 %v34
  %v119 = vunpack.c.h.b16 %v34
  %v120 = vpack.c.b16 %v82, %v80
  %v121 = vpack.c.b16 %v83, %v81
  %v122 = vpack.c.b16 %v86, %v84
  %v123 = vpack.c.b16 %v87, %v85
  %v124 = vpack.c.b16 %v90, %v88
  %v125 = vpack.c.b16 %v91, %v89
  %v126 = vpack.c.b16 %v94, %v92
  %v127 = vpack.c.b16 %v95, %v93
  %v128 = vpack.c.b16 %v98, %v96
  %v129 = vpack.c.b16 %v99, %v97
  %v130 = vpack.c.b16 %v102, %v100
  %v131 = vpack.c.b16 %v103, %v101
  %v132 = vpack.c.b16 %v106, %v104
  %v133 = vpack.c.b16 %v107, %v105
  %v134 = vpack.c.b16 %v110, %v108
  %v135 = vpack.c.b16 %v111, %v109
  %v136 = vpack.c.b16 %v114, %v112
  %v137 = vpack.c.b16 %v115, %v113
  %v138 = vpack.c.b16 %v118, %v116
  %v139 = vpack.c.b16 %v119, %v117
  %v168 = vunpack.c.l.b16 %v35
  %v169 = vunpack.c.l.b16 %v36
  %v170 = vunpack.c.l.b16 %v37
  %v171 = vunpack.c.l.b16 %v38
  %v172 = vunpack.c.l.b16 %v39
  %v173 = vunpack.c.l.b16 %v40
  %v174 = vunpack.c.l.b16 %v41
  %v175 = vunpack.c.l.b16 %v42
  %v176 = vunpack.c.l.b16 %v43
  %v177 = vunpack.c.l.b16 %v44
  %v178 = vunpack.c.l.b16 %v45
  %v179 = vunpack.c.l.b16 %v46
  %v180 = vunpack.c.l.b16 %v47
  %v181 = vunpack.c.l.b16 %v48
  %v182 = vunpack.c.l.b16 %v49
  %v183 = vunpack.c.l.b16 %v50
  %v184 = vunpack.c.l.b16 %v51
  %v185 = vunpack.c.l.b16 %v52
  %v186 = vpack.c.b16 %v169, %v168
  %v187 = vpack.c.b16 %v171, %v170
  %v188 = vpack.c.b16 %v173, %v172
  %v189 = vpack.c.b16 %v175, %v174
  %v190 = vpack.c.b16 %v177, %v176
  %v191 = vpack.c.b16 %v179, %v178
  %v192 = vpack.c.b16 %v181, %v180
  %v193 = vpack.c.b16 %v183, %v182
  %v194 = vpack.c.b16 %v185, %v184
  %vm204 = vcmask 130048
  %v206 = vsel %vm204, %v121, 0
  %v209 = vsel %vm204, %v123, 0
  %v212 = vsel %vm204, %v125, 0
  %v215 = vsel %vm204, %v127, 0
  %v218 = vsel %vm204, %v129, 0
  %v221 = vsel %vm204, %v131, 0
  %v224 = vsel %vm204, %v133, 0
  %v227 = vsel %vm204, %v135, 0
  %v230 = vsel %vm204, %v137, 0
  %v233 = vsel %vm204, %v139, 0
  %235 = vmatprep.subr.bf16.mxu0 0
  %236 = vmatpush1.bf16.msra.mxu0 %v193
  %237 = vmatprep.subr.bf16.mxu0 0
  %238 = vmatpush1.bf16.msra.mxu0 %v192
  %239 = vmatprep.subr.bf16.mxu0 0
  %240 = vmatpush1.bf16.msra.mxu0 %v191
  %241 = vmatprep.subr.bf16.mxu0 0
  %242 = vmatpush1.bf16.msra.mxu0 %v190
  %243 = vmatprep.subr.bf16.mxu0 0
  %244 = vmatpush1.bf16.msra.mxu0 %v189
  %245 = vmatprep.subr.bf16.mxu0 0
  %246 = vmatpush1.bf16.msra.mxu0 %v188
  %247 = vmatprep.subr.bf16.mxu0 0
  %248 = vmatpush1.bf16.msra.mxu0 %v187
  %249 = vmatprep.subr.bf16.mxu0 0
  %250 = vmatpush1.bf16.msra.mxu0 %v186
  %251 = vmatprep.subr.bf16.mxu0 0
  %252 = vmatpush2.bf16.msra.mxu0 0
  %253 = vmatprep.subr.bf16.mxu0 0
  %254 = vmatpush2.bf16.msra.mxu0 0
  %255 = vmatprep.subr.bf16.mxu0 0
  %256 = vmatpush2.bf16.msra.mxu0 0
  %257 = vmatprep.subr.bf16.mxu0 0
  %258 = vmatpush2.bf16.msra.mxu0 0
  %259 = vmatprep.subr.bf16.mxu0 0
  %260 = vmatpush2.bf16.msra.mxu0 0
  %261 = vmatprep.subr.bf16.mxu0 0
  %262 = vmatpush2.bf16.msra.mxu0 0
  %263 = vmatprep.subr.bf16.mxu0 0
  %264 = vmatpush2.bf16.msra.mxu0 0
  %265 = vmatprep.subr.bf16.mxu0 0
  %266 = vmatpush2.bf16.msra.mxu0 %v194
  %267 = vmatprep.mubr.bf16.mxu0 %v206
  %268 = vmatmul.mubr.bf16.gmra.mxu0 %v120
  %v269 = vpop.f32.mrf.mxu0
  %v270 = vadd.f32 %v58, %v269
  %v271 = vpop.f32.mrf.mxu0
  %v272 = vpop.f32.mrf.mxu0
  %v273 = vadd.f32 %v58, %v272
  %v274 = vpop.f32.mrf.mxu0
  %275 = vmatprep.mubr.bf16.mxu0 %v209
  %276 = vmatmul.mubr.bf16.gmra.mxu0 %v122
  %v277 = vpop.f32.mrf.mxu0
  %v278 = vadd.f32 %v58, %v277
  %v279 = vpop.f32.mrf.mxu0
  %v280 = vpop.f32.mrf.mxu0
  %v281 = vadd.f32 %v58, %v280
  %v282 = vpop.f32.mrf.mxu0
  %283 = vmatprep.mubr.bf16.mxu0 %v212
  %284 = vmatmul.mubr.bf16.gmra.mxu0 %v124
  %v285 = vpop.f32.mrf.mxu0
  %v286 = vadd.f32 %v58, %v285
  %v287 = vpop.f32.mrf.mxu0
  %v288 = vpop.f32.mrf.mxu0
  %v289 = vadd.f32 %v58, %v288
  %v290 = vpop.f32.mrf.mxu0
  %291 = vmatprep.mubr.bf16.mxu0 %v215
  %292 = vmatmul.mubr.bf16.gmra.mxu0 %v126
  %v293 = vpop.f32.mrf.mxu0
  %v294 = vadd.f32 %v58, %v293
  %v295 = vpop.f32.mrf.mxu0
  %v296 = vpop.f32.mrf.mxu0
  %v297 = vadd.f32 %v58, %v296
  %v298 = vpop.f32.mrf.mxu0
  %299 = vmatprep.mubr.bf16.mxu0 %v218
  %300 = vmatmul.mubr.bf16.gmra.mxu0 %v128
  %v301 = vpop.f32.mrf.mxu0
  %v302 = vadd.f32 %v58, %v301
  %v303 = vpop.f32.mrf.mxu0
  %v304 = vpop.f32.mrf.mxu0
  %v305 = vadd.f32 %v58, %v304
  %v306 = vpop.f32.mrf.mxu0
  %307 = vmatprep.mubr.bf16.mxu0 %v221
  %308 = vmatmul.mubr.bf16.gmra.mxu0 %v130
  %v309 = vpop.f32.mrf.mxu0
  %v310 = vadd.f32 %v58, %v309
  %v311 = vpop.f32.mrf.mxu0
  %v312 = vpop.f32.mrf.mxu0
  %v313 = vadd.f32 %v58, %v312
  %v314 = vpop.f32.mrf.mxu0
  %315 = vmatprep.mubr.bf16.mxu0 %v224
  %316 = vmatmul.mubr.bf16.gmra.mxu0 %v132
  %v317 = vpop.f32.mrf.mxu0
  %v318 = vadd.f32 %v58, %v317
  %v319 = vpop.f32.mrf.mxu0
  %v320 = vpop.f32.mrf.mxu0
  %v321 = vadd.f32 %v58, %v320
  %v322 = vpop.f32.mrf.mxu0
  %323 = vmatprep.mubr.bf16.mxu0 %v227
  %324 = vmatmul.mubr.bf16.gmra.mxu0 %v134
  %v325 = vpop.f32.mrf.mxu0
  %v326 = vadd.f32 %v58, %v325
  %v327 = vpop.f32.mrf.mxu0
  %v328 = vpop.f32.mrf.mxu0
  %v329 = vadd.f32 %v58, %v328
  %v330 = vpop.f32.mrf.mxu0
  %331 = vmatprep.mubr.bf16.mxu0 %v230
  %332 = vmatmul.mubr.bf16.gmra.mxu0 %v136
  %v333 = vpop.f32.mrf.mxu0
  %v334 = vadd.f32 %v58, %v333
  %v335 = vpop.f32.mrf.mxu0
  %v336 = vpop.f32.mrf.mxu0
  %v337 = vadd.f32 %v58, %v336
  %v338 = vpop.f32.mrf.mxu0
  %339 = vmatprep.mubr.bf16.mxu0 %v233
  %340 = vmatmul.mubr.bf16.gmra.mxu0 %v138
  %v341 = vpop.f32.mrf.mxu0
  %v342 = vadd.f32 %v58, %v341
  %v343 = vpop.f32.mrf.mxu0
  %v344 = vpop.f32.mrf.mxu0
  %v345 = vadd.f32 %v58, %v344
  %v346 = vpop.f32.mrf.mxu0
  %347 = vdwg.mxu0
  %v348 = vmax.f32 %v270, 0.0
  %v349 = vmax.f32 %v273, 0.0
  %v350 = vmax.f32 %v278, 0.0
  %v351 = vmax.f32 %v281, 0.0
  %v352 = vmax.f32 %v286, 0.0
  %v353 = vmax.f32 %v289, 0.0
  %v354 = vmax.f32 %v294, 0.0
  %v355 = vmax.f32 %v297, 0.0
  %v356 = vmax.f32 %v302, 0.0
  %v357 = vmax.f32 %v305, 0.0
  %v358 = vmax.f32 %v310, 0.0
  %v359 = vmax.f32 %v313, 0.0
  %v360 = vmax.f32 %v318, 0.0
  %v361 = vmax.f32 %v321, 0.0
  %v362 = vmax.f32 %v326, 0.0
  %v363 = vmax.f32 %v329, 0.0
  %v364 = vmax.f32 %v334, 0.0
  %v365 = vmax.f32 %v337, 0.0
  %v366 = vmax.f32 %v342, 0.0
  %v367 = vmax.f32 %v345, 0.0
  %368 = vst.msk [vmem:[%s3] sm:$0xff] %vm204, %v348
  %369 = vst.msk [vmem:[%s3 + $0x8] sm:$0xff] %vm204, %v349
  %370 = vst.msk [vmem:[%s3 + $0x10] sm:$0xff] %vm204, %v350
  %371 = vst.msk [vmem:[%s3 + $0x18] sm:$0xff] %vm204, %v351
  %372 = vst.msk [vmem:[%s3 + $0x20] sm:$0xff] %vm204, %v352
  %373 = vst.msk [vmem:[%s3 + $0x28] sm:$0xff] %vm204, %v353
  %374 = vst.msk [vmem:[%s3 + $0x30] sm:$0xff] %vm204, %v354
  %375 = vst.msk [vmem:[%s3 + $0x38] sm:$0xff] %vm204, %v355
  %376 = vst.msk [vmem:[%s3 + $0x40] sm:$0xff] %vm204, %v356
  %377 = vst.msk [vmem:[%s3 + $0x48] sm:$0xff] %vm204, %v357
  %378 = vst.msk [vmem:[%s3 + $0x50] sm:$0xff] %vm204, %v358
  %379 = vst.msk [vmem:[%s3 + $0x58] sm:$0xff] %vm204, %v359
  %380 = vst.msk [vmem:[%s3 + $0x60] sm:$0xff] %vm204, %v360
  %381 = vst.msk [vmem:[%s3 + $0x68] sm:$0xff] %vm204, %v361
  %382 = vst.msk [vmem:[%s3 + $0x70] sm:$0xff] %vm204, %v362
  %383 = vst.msk [vmem:[%s3 + $0x78] sm:$0xff] %vm204, %v363
  %384 = vst.msk [vmem:[%s3 + $0x80] sm:$0xff] %vm204, %v364
  %385 = vst.msk [vmem:[%s3 + $0x88] sm:$0xff] %vm204, %v365
  %386 = vst.msk [vmem:[%s3 + $0x90] sm:$0xff] %vm204, %v366
  %387 = vst.msk [vmem:[%s3 + $0x98] sm:$0xff] %vm204, %v367
  // Predicated region
  $region14: #{contrast_loss.12} parent=0 // pred_check
    _
  $region15: #{contrast_loss.12} parent=0 // pred_check_branch
    %389 = sbr.rel (0) target = $region17
  $region16: #{contrast_loss.12} parent=0 // pred_region
    _
  $region17: #{contrast_loss.12} parent=0 // pred_fallthru
    _
  // Predicated region
  $region18: #{contrast_loss.12} parent=0 // pred_check
    _
  $region19: #{contrast_loss.12} parent=0 // pred_check_branch
    %391 = sbr.rel (0) target = $region21
  $region20: #{contrast_loss.12} parent=0 // pred_region
    _
  $region21: #{contrast_loss.12} parent=0 // pred_fallthru
    _

// kernel: contrast_loss.17
$region0: #{contrast_loss.17}
  #allocation0 [shape = 'u32[]', space=smem, size = 0x4, offset = 0x4, fixed_abs, tag = 'smem constant byte address 0x4 - core index']
  #allocation1 [shape = 'u32[144,128]{1,0:T(1,128)}', space=vmem, size = 0x12000, scoped, tag = 'internal scratch']
  %s0 = inlined_call_operand.vmem [shape: f32[32,16], index: 0, kind: input, shape index: {}]
  %s1 = inlined_call_operand.vmem [shape: f32[4,32,16], index: 1, kind: input, shape index: {}]
  %s2 = inlined_call_operand.vmem [shape: f32[4,1], index: 2, kind: output, shape index: {}]
  %s3 = sld [smem:[#allocation0]]
  $region22: #{contrast_loss.17} parent=0
    _
  %s5 = ssub.s32 1, %s3
  %s6 = scalar_select 0, %s5, %s3
  // Predicated region
  $region2: #{contrast_loss.17} parent=0 // pred_check
    _
  $region3: #{contrast_loss.17} parent=0 // pred_check_branch
    %8 = sbr.rel (0) target = $region5
  $region4: #{contrast_loss.17} parent=0 // pred_region
    _
  $region5: #{contrast_loss.17} parent=0 // pred_fallthru
    _
  // Predicated region
  $region6: #{contrast_loss.17} parent=0 // pred_check
    _
  $region7: #{contrast_loss.17} parent=0 // pred_check_branch
    %10 = sbr.rel (0) target = $region9
  $region8: #{contrast_loss.17} parent=0 // pred_region
    _
  $region9: #{contrast_loss.17} parent=0 // pred_fallthru
    _
  %p11 = scmp.eq.s32.totalorder 0, 0
  // Predicated region
  $region10: #{contrast_loss.17} parent=0 // pred_check
    %p12 = pneg %p11
  $region11: #{contrast_loss.17} parent=0 // pred_check_branch
    %14 = sbr.rel (%p12) target = $region13
  $region12: #{contrast_loss.17} parent=0 // pred_region
    %vm15 = vcmask 3072
    %16 = vst.msk [vmem:[%s2] sm:$0xf] %vm15, 0.0
  $region13: #{contrast_loss.17} parent=0 // pred_fallthru
    _
  %v17 = vld [vmem:[%s1] sm:$0xff]
  %v18 = vld [vmem:[%s1 + $0x8] sm:$0xff]
  %v19 = vld [vmem:[%s1 + $0x10] sm:$0xff]
  %v20 = vld [vmem:[%s1 + $0x18] sm:$0xff]
  %v21 = vld [vmem:[%s1 + $0x20] sm:$0xff]
  %v22 = vld [vmem:[%s1 + $0x28] sm:$0xff]
  %v23 = vld [vmem:[%s1 + $0x30] sm:$0xff]
  %v24 = vld [vmem:[%s1 + $0x38] sm:$0xff]
  %v25 = vld [vmem:[%s1 + $0x40] sm:$0xff]
  %v26 = vld [vmem:[%s1 + $0x48] sm:$0xff]
  %v27 = vld [vmem:[%s1 + $0x50] sm:$0xff]
  %v28 = vld [vmem:[%s1 + $0x58] sm:$0xff]
  %v29 = vld [vmem:[%s1 + $0x60] sm:$0xff]
  %v30 = vld [vmem:[%s1 + $0x68] sm:$0xff]
  %v31 = vld [vmem:[%s1 + $0x70] sm:$0xff]
  %v32 = vld [vmem:[%s1 + $0x78] sm:$0xff]
  %v33 = vld [vmem:[%s0] sm:$0xff]
  %v34 = vld [vmem:[%s0 + $0x8] sm:$0xff]
  %v35 = vld [vmem:[%s0 + $0x10] sm:$0xff]
  %v36 = vld [vmem:[%s0 + $0x18] sm:$0xff]
  %v37 = vsub.f32 %v17, %v33
  %v38 = vsub.f32 %v18, %v34
  %v39 = vsub.f32 %v19, %v35
  %v40 = vsub.f32 %v20, %v36
  %v41 = vsub.f32 %v21, %v33
  %v42 = vsub.f32 %v22, %v34
  %v43 = vsub.f32 %v23, %v35
  %v44 = vsub.f32 %v24, %v36
  %v45 = vsub.f32 %v25, %v33
  %v46 = vsub.f32 %v26, %v34
  %v47 = vsub.f32 %v27, %v35
  %v48 = vsub.f32 %v28, %v36
  %v49 = vsub.f32 %v29, %v33
  %v50 = vsub.f32 %v30, %v34
  %v51 = vsub.f32 %v31, %v35
  %v52 = vsub.f32 %v32, %v36
  %v53 = vand.u32 2147483647, %v37
  %v54 = vand.u32 2147483647, %v38
  %v55 = vand.u32 2147483647, %v39
  %v56 = vand.u32 2147483647, %v40
  %v57 = vand.u32 2147483647, %v41
  %v58 = vand.u32 2147483647, %v42
  %v59 = vand.u32 2147483647, %v43
  %v60 = vand.u32 2147483647, %v44
  %v61 = vand.u32 2147483647, %v45
  %v62 = vand.u32 2147483647, %v46
  %v63 = vand.u32 2147483647, %v47
  %v64 = vand.u32 2147483647, %v48
  %v65 = vand.u32 2147483647, %v49
  %v66 = vand.u32 2147483647, %v50
  %v67 = vand.u32 2147483647, %v51
  %v68 = vand.u32 2147483647, %v52
  %vm69 = vcmask 130048
  %v70 = vsel %vm69, %v53, 0.0
  %71 = vadd.xlane.f32.xlu0 %v70
  %v72 = vpop.xlane.xlu0 %71
  %v73 = vsel %vm69, %v54, 0.0
  %74 = vadd.xlane.f32.xlu0 %v73
  %v75 = vpop.xlane.xlu0 %74
  %v76 = vsel %vm69, %v55, 0.0
  %77 = vadd.xlane.f32.xlu0 %v76
  %v78 = vpop.xlane.xlu0 %77
  %v79 = vsel %vm69, %v56, 0.0
  %80 = vadd.xlane.f32.xlu0 %v79
  %v81 = vpop.xlane.xlu0 %80
  %v82 = vsel %vm69, %v57, 0.0
  %83 = vadd.xlane.f32.xlu0 %v82
  %v84 = vpop.xlane.xlu0 %83
  %v85 = vsel %vm69, %v58, 0.0
  %86 = vadd.xlane.f32.xlu0 %v85
  %v87 = vpop.xlane.xlu0 %86
  %v88 = vsel %vm69, %v59, 0.0
  %89 = vadd.xlane.f32.xlu0 %v88
  %v90 = vpop.xlane.xlu0 %89
  %v91 = vsel %vm69, %v60, 0.0
  %92 = vadd.xlane.f32.xlu0 %v91
  %v93 = vpop.xlane.xlu0 %92
  %v94 = vsel %vm69, %v61, 0.0
  %95 = vadd.xlane.f32.xlu0 %v94
  %v96 = vpop.xlane.xlu0 %95
  %v97 = vsel %vm69, %v62, 0.0
  %98 = vadd.xlane.f32.xlu0 %v97
  %v99 = vpop.xlane.xlu0 %98
  %v100 = vsel %vm69, %v63, 0.0
  %101 = vadd.xlane.f32.xlu0 %v100
  %v102 = vpop.xlane.xlu0 %101
  %v103 = vsel %vm69, %v64, 0.0
  %104 = vadd.xlane.f32.xlu0 %v103
  %v105 = vpop.xlane.xlu0 %104
  %v106 = vsel %vm69, %v65, 0.0
  %107 = vadd.xlane.f32.xlu0 %v106
  %v108 = vpop.xlane.xlu0 %107
  %v109 = vsel %vm69, %v66, 0.0
  %110 = vadd.xlane.f32.xlu0 %v109
  %v111 = vpop.xlane.xlu0 %110
  %v112 = vsel %vm69, %v67, 0.0
  %113 = vadd.xlane.f32.xlu0 %v112
  %v114 = vpop.xlane.xlu0 %113
  %v115 = vsel %vm69, %v68, 0.0
  %116 = vadd.xlane.f32.xlu0 %v115
  %v117 = vpop.xlane.xlu0 %116
  %v118 = vld [vmem:[%s2] sm:$0xf]
  %v135 = vlaneseq
  %v136 = vand.u32 %v135, 127
  %v137 = vlaneseq
  %v138 = vshrl.u32 %v137, 7
  %v139 = vsub.s32 %v136, %v138
  %v140 = vrot.slane %v72, %v139
  %v141 = vadd.s32 %v136, 4294967288
  %v142 = vlaneseq
  %v143 = vshrl.u32 %v142, 7
  %v144 = vsub.s32 %v141, %v143
  %v145 = vrot.slane %v75, %v144
  %vm146 = vcmask 130112
  %v147 = vsel %vm146, %v145, %v140
  %v148 = vadd.s32 %v136, 4294967280
  %v149 = vlaneseq
  %v150 = vshrl.u32 %v149, 7
  %v151 = vsub.s32 %v148, %v150
  %v152 = vrot.slane %v78, %v151
  %vm153 = vcmask 195712
  %v154 = vsel %vm153, %v152, %v147
  %v155 = vadd.s32 %v136, 4294967272
  %v156 = vlaneseq
  %v157 = vshrl.u32 %v156, 7
  %v158 = vsub.s32 %v155, %v157
  %v159 = vrot.slane %v81, %v158
  %vm160 = vcmask 261312
  %v161 = vsel %vm160, %v159, %v154
  %v162 = vlaneseq
  %v163 = vshrl.u32 %v162, 7
  %v164 = vsub.s32 %v136, %v163
  %v165 = vrot.slane %v84, %v164
  %v166 = vlaneseq
  %v167 = vshrl.u32 %v166, 7
  %v168 = vsub.s32 %v141, %v167
  %v169 = vrot.slane %v87, %v168
  %v170 = vsel %vm146, %v169, %v165
  %v171 = vlaneseq
  %v172 = vshrl.u32 %v171, 7
  %v173 = vsub.s32 %v148, %v172
  %v174 = vrot.slane %v90, %v173
  %v175 = vsel %vm153, %v174, %v170
  %v176 = vlaneseq
  %v177 = vshrl.u32 %v176, 7
  %v178 = vsub.s32 %v155, %v177
  %v179 = vrot.slane %v93, %v178
  %v180 = vsel %vm160, %v179, %v175
  %v181 = vlaneseq
  %v182 = vshrl.u32 %v181, 7
  %v183 = vsub.s32 %v136, %v182
  %v184 = vrot.slane %v96, %v183
  %v185 = vlaneseq
  %v186 = vshrl.u32 %v185, 7
  %v187 = vsub.s32 %v141, %v186
  %v188 = vrot.slane %v99, %v187
  %v189 = vsel %vm146, %v188, %v184
  %v190 = vlaneseq
  %v191 = vshrl.u32 %v190, 7
  %v192 = vsub.s32 %v148, %v191
  %v193 = vrot.slane %v102, %v192
  %v194 = vsel %vm153, %v193, %v189
  %v195 = vlaneseq
  %v196 = vshrl.u32 %v195, 7
  %v197 = vsub.s32 %v155, %v196
  %v198 = vrot.slane %v105, %v197
  %v199 = vsel %vm160, %v198, %v194
  %v200 = vlaneseq
  %v201 = vshrl.u32 %v200, 7
  %v202 = vsub.s32 %v136, %v201
  %v203 = vrot.slane %v108, %v202
  %v204 = vlaneseq
  %v205 = vshrl.u32 %v204, 7
  %v206 = vsub.s32 %v141, %v205
  %v207 = vrot.slane %v111, %v206
  %v208 = vsel %vm146, %v207, %v203
  %v209 = vlaneseq
  %v210 = vshrl.u32 %v209, 7
  %v211 = vsub.s32 %v148, %v210
  %v212 = vrot.slane %v114, %v211
  %v213 = vsel %vm153, %v212, %v208
  %v214 = vlaneseq
  %v215 = vshrl.u32 %v214, 7
  %v216 = vsub.s32 %v155, %v215
  %v217 = vrot.slane %v117, %v216
  %v218 = vsel %vm160, %v217, %v213
  %vm219 = vcmask 1041409
  %v220 = vsel %vm219, %v180, %v161
  %vm221 = vcmask 1042434
  %v222 = vsel %vm221, %v199, %v220
  %vm223 = vcmask 1043459
  %v224 = vsel %vm223, %v218, %v222
  %vm226 = vcmask 257024
  %v227 = vsel %vm226, %v224, 0.0
  %228 = vadd.xlane.f32.xlu0 %v227
  %v229 = vpop.xlane.xlu0 %228
  %v230 = vadd.f32 %v118, %v229
  %vm231 = vcmask 3072
  %232 = vst.msk [vmem:[%s2] sm:$0xf] %vm231, %v230
  // Predicated region
  $region14: #{contrast_loss.17} parent=0 // pred_check
    _
  $region15: #{contrast_loss.17} parent=0 // pred_check_branch
    %234 = sbr.rel (0) target = $region17
  $region16: #{contrast_loss.17} parent=0 // pred_region
    _
  $region17: #{contrast_loss.17} parent=0 // pred_fallthru
    _
  // Predicated region
  $region18: #{contrast_loss.17} parent=0 // pred_check
    _
  $region19: #{contrast_loss.17} parent=0 // pred_check_branch
    %236 = sbr.rel (0) target = $region21
  $region20: #{contrast_loss.17} parent=0 // pred_region
    _
  $region21: #{contrast_loss.17} parent=0 // pred_fallthru
    _

// kernel: contrast_loss.18
$region0: #{contrast_loss.18}
  #allocation0 [shape = 'u32[]', space=smem, size = 0x4, offset = 0x4, fixed_abs, tag = 'smem constant byte address 0x4 - core index']
  #allocation1 [shape = 'u32[144,128]{1,0:T(1,128)}', space=vmem, size = 0x12000, scoped, tag = 'internal scratch']
  %s0 = inlined_call_operand.vmem [shape: f32[8,32], index: 0, kind: input, shape index: {}]
  %s1 = inlined_call_operand.vmem [shape: f32[4,8,32], index: 1, kind: input, shape index: {}]
  %s2 = inlined_call_operand.vmem [shape: f32[4,1], index: 2, kind: output, shape index: {}]
  %s3 = sld [smem:[#allocation0]]
  $region22: #{contrast_loss.18} parent=0
    _
  %s5 = ssub.s32 1, %s3
  %s6 = scalar_select 0, %s5, %s3
  // Predicated region
  $region2: #{contrast_loss.18} parent=0 // pred_check
    _
  $region3: #{contrast_loss.18} parent=0 // pred_check_branch
    %8 = sbr.rel (0) target = $region5
  $region4: #{contrast_loss.18} parent=0 // pred_region
    _
  $region5: #{contrast_loss.18} parent=0 // pred_fallthru
    _
  // Predicated region
  $region6: #{contrast_loss.18} parent=0 // pred_check
    _
  $region7: #{contrast_loss.18} parent=0 // pred_check_branch
    %10 = sbr.rel (0) target = $region9
  $region8: #{contrast_loss.18} parent=0 // pred_region
    _
  $region9: #{contrast_loss.18} parent=0 // pred_fallthru
    _
  %p11 = scmp.eq.s32.totalorder 0, 0
  // Predicated region
  $region10: #{contrast_loss.18} parent=0 // pred_check
    %p12 = pneg %p11
  $region11: #{contrast_loss.18} parent=0 // pred_check_branch
    %14 = sbr.rel (%p12) target = $region13
  $region12: #{contrast_loss.18} parent=0 // pred_region
    %vm15 = vcmask 3072
    %16 = vst.msk [vmem:[%s2] sm:$0xf] %vm15, 0.0
  $region13: #{contrast_loss.18} parent=0 // pred_fallthru
    _
  %v17 = vld [vmem:[%s1] sm:$0xff]
  %v18 = vld [vmem:[%s1 + $0x8] sm:$0xff]
  %v19 = vld [vmem:[%s1 + $0x10] sm:$0xff]
  %v20 = vld [vmem:[%s1 + $0x18] sm:$0xff]
  %v21 = vld [vmem:[%s0] sm:$0xff]
  %v22 = vsub.f32 %v17, %v21
  %v23 = vsub.f32 %v18, %v21
  %v24 = vsub.f32 %v19, %v21
  %v25 = vsub.f32 %v20, %v21
  %v26 = vand.u32 2147483647, %v22
  %v27 = vand.u32 2147483647, %v23
  %v28 = vand.u32 2147483647, %v24
  %v29 = vand.u32 2147483647, %v25
  %vm30 = vcmask 261120
  %v31 = vsel %vm30, %v26, 0.0
  %32 = vadd.xlane.f32.xlu0 %v31
  %v33 = vpop.xlane.xlu0 %32
  %v34 = vsel %vm30, %v27, 0.0
  %35 = vadd.xlane.f32.xlu0 %v34
  %v36 = vpop.xlane.xlu0 %35
  %v37 = vsel %vm30, %v28, 0.0
  %38 = vadd.xlane.f32.xlu0 %v37
  %v39 = vpop.xlane.xlu0 %38
  %v40 = vsel %vm30, %v29, 0.0
  %41 = vadd.xlane.f32.xlu0 %v40
  %v42 = vpop.xlane.xlu0 %41
  %v43 = vld [vmem:[%s2] sm:$0xf]
  %v48 = vlaneseq
  %v49 = vand.u32 %v48, 127
  %v50 = vlaneseq
  %v51 = vshrl.u32 %v50, 7
  %v52 = vsub.s32 %v49, %v51
  %v53 = vrot.slane %v33, %v52
  %v54 = vlaneseq
  %v55 = vshrl.u32 %v54, 7
  %v56 = vsub.s32 %v49, %v55
  %v57 = vrot.slane %v36, %v56
  %v58 = vlaneseq
  %v59 = vshrl.u32 %v58, 7
  %v60 = vsub.s32 %v49, %v59
  %v61 = vrot.slane %v39, %v60
  %v62 = vlaneseq
  %v63 = vshrl.u32 %v62, 7
  %v64 = vsub.s32 %v49, %v63
  %v65 = vrot.slane %v42, %v64
  %vm66 = vcmask 1041409
  %v67 = vsel %vm66, %v57, %v53
  %vm68 = vcmask 1042434
  %v69 = vsel %vm68, %v61, %v67
  %vm70 = vcmask 1043459
  %v71 = vsel %vm70, %v65, %v69
  %vm73 = vcmask 60416
  %v74 = vsel %vm73, %v71, 0.0
  %75 = vadd.xlane.f32.xlu0 %v74
  %v76 = vpop.xlane.xlu0 %75
  %v77 = vadd.f32 %v43, %v76
  %vm78 = vcmask 3072
  %79 = vst.msk [vmem:[%s2] sm:$0xf] %vm78, %v77
  // Predicated region
  $region14: #{contrast_loss.18} parent=0 // pred_check
    _
  $region15: #{contrast_loss.18} parent=0 // pred_check_branch
    %81 = sbr.rel (0) target = $region17
  $region16: #{contrast_loss.18} parent=0 // pred_region
    _
  $region17: #{contrast_loss.18} parent=0 // pred_fallthru
    _
  // Predicated region
  $region18: #{contrast_loss.18} parent=0 // pred_check
    _
  $region19: #{contrast_loss.18} parent=0 // pred_check_branch
    %83 = sbr.rel (0) target = $region21
  $region20: #{contrast_loss.18} parent=0 // pred_region
    _
  $region21: #{contrast_loss.18} parent=0 // pred_fallthru
    _

// kernel: contrast_loss.13
$region0: #{contrast_loss.13}
  #allocation0 [shape = 'u32[]', space=smem, size = 0x4, offset = 0x4, fixed_abs, tag = 'smem constant byte address 0x4 - core index']
  #allocation1 [shape = 'u32[144,128]{1,0:T(1,128)}', space=vmem, size = 0x12000, scoped, tag = 'internal scratch']
  %s0 = inlined_call_operand.vmem [shape: bf16[40,144], index: 0, kind: input, shape index: {}]
  %s1 = inlined_call_operand.vmem [shape: bf16[144,32], index: 1, kind: input, shape index: {}]
  %s2 = inlined_call_operand.vmem [shape: f32[1,32], index: 2, kind: input, shape index: {}]
  %s3 = inlined_call_operand.vmem [shape: f32[40,32], index: 3, kind: output, shape index: {}]
  %s4 = sld [smem:[#allocation0]]
  $region22: #{contrast_loss.13} parent=0
    _
  %s6 = ssub.s32 1, %s4
  %s7 = scalar_select 0, %s6, %s4
  // Predicated region
  $region2: #{contrast_loss.13} parent=0 // pred_check
    _
  $region3: #{contrast_loss.13} parent=0 // pred_check_branch
    %9 = sbr.rel (0) target = $region5
  $region4: #{contrast_loss.13} parent=0 // pred_region
    _
  $region5: #{contrast_loss.13} parent=0 // pred_fallthru
    _
  // Predicated region
  $region6: #{contrast_loss.13} parent=0 // pred_check
    _
  $region7: #{contrast_loss.13} parent=0 // pred_check_branch
    %11 = sbr.rel (0) target = $region9
  $region8: #{contrast_loss.13} parent=0 // pred_region
    _
  $region9: #{contrast_loss.13} parent=0 // pred_fallthru
    _
  // Predicated region
  $region10: #{contrast_loss.13} parent=0 // pred_check
    _
  $region11: #{contrast_loss.13} parent=0 // pred_check_branch
    %13 = sbr.rel (0) target = $region13
  $region12: #{contrast_loss.13} parent=0 // pred_region
    _
  $region13: #{contrast_loss.13} parent=0 // pred_fallthru
    _
  %v15 = vld [vmem:[%s0] sm:$0xff]
  %v16 = vld [vmem:[%s0 + $0x8] sm:$0xff]
  %v17 = vld [vmem:[%s0 + $0x10] sm:$0xff]
  %v18 = vld [vmem:[%s0 + $0x18] sm:$0xff]
  %v19 = vld [vmem:[%s0 + $0x20] sm:$0xff]
  %v20 = vld [vmem:[%s1] sm:$0xf]
  %v21 = vld [vmem:[%s1 + $0x4] sm:$0xf]
  %v22 = vld [vmem:[%s1 + $0x8] sm:$0xf]
  %v23 = vld [vmem:[%s1 + $0xc] sm:$0xf]
  %v24 = vld [vmem:[%s1 + $0x10] sm:$0xf]
  %v25 = vld [vmem:[%s1 + $0x14] sm:$0xf]
  %v26 = vld [vmem:[%s1 + $0x18] sm:$0xf]
  %v27 = vld [vmem:[%s1 + $0x1c] sm:$0xf]
  %v28 = vld [vmem:[%s1 + $0x20] sm:$0xf]
  %v29 = vld [vmem:[%s1 + $0x24] sm:$0xf]
  %v30 = vld [vmem:[%s1 + $0x28] sm:$0xf]
  %v31 = vld [vmem:[%s1 + $0x2c] sm:$0xf]
  %v32 = vld [vmem:[%s1 + $0x30] sm:$0xf]
  %v33 = vld [vmem:[%s1 + $0x34] sm:$0xf]
  %v34 = vld [vmem:[%s1 + $0x38] sm:$0xf]
  %v35 = vld [vmem:[%s1 + $0x3c] sm:$0xf]
  %v36 = vld [vmem:[%s1 + $0x40] sm:$0xf]
  %v37 = vld [vmem:[%s1 + $0x44] sm:$0xf]
  %v38 = vld [vmem:[%s2] sm:$0x1]
  %v40 = vlaneseq
  %v41 = vshrl.u32 %v40, 7
  %v42 = vsub.s32 0, %v41
  %v43 = vrot.slane %v38, %v42
  %v50 = vunpack.c.l.b16 %v15
  %v51 = vunpack.c.h.b16 %v15
  %v52 = vunpack.c.l.b16 %v16
  %v53 = vunpack.c.h.b16 %v16
  %v54 = vunpack.c.l.b16 %v17
  %v55 = vunpack.c.h.b16 %v17
  %v56 = vunpack.c.l.b16 %v18
  %v57 = vunpack.c.h.b16 %v18
  %v58 = vunpack.c.l.b16 %v19
  %v59 = vunpack.c.h.b16 %v19
  %v60 = vpack.c.b16 %v52, %v50
  %v61 = vpack.c.b16 %v53, %v51
  %v62 = vpack.c.b16 %v56, %v54
  %v63 = vpack.c.b16 %v57, %v55
  %v64 = vpack.c.b16 %v58, %v58
  %v65 = vpack.c.b16 %v59, %v59
  %v87 = vunpack.c.l.b16 %v20
  %v88 = vunpack.c.l.b16 %v21
  %v89 = vunpack.c.l.b16 %v22
  %v90 = vunpack.c.l.b16 %v23
  %v91 = vunpack.c.l.b16 %v24
  %v92 = vunpack.c.l.b16 %v25
  %v93 = vunpack.c.l.b16 %v26
  %v94 = vunpack.c.l.b16 %v27
  %v95 = vunpack.c.l.b16 %v28
  %v96 = vunpack.c.l.b16 %v29
  %v97 = vunpack.c.l.b16 %v30
  %v98 = vunpack.c.l.b16 %v31
  %v99 = vunpack.c.l.b16 %v32
  %v100 = vunpack.c.l.b16 %v33
  %v101 = vunpack.c.l.b16 %v34
  %v102 = vunpack.c.l.b16 %v35
  %v103 = vunpack.c.l.b16 %v36
  %v104 = vunpack.c.l.b16 %v37
  %v105 = vpack.c.b16 %v88, %v87
  %v106 = vpack.c.b16 %v90, %v89
  %v107 = vpack.c.b16 %v92, %v91
  %v108 = vpack.c.b16 %v94, %v93
  %v109 = vpack.c.b16 %v96, %v95
  %v110 = vpack.c.b16 %v98, %v97
  %v111 = vpack.c.b16 %v100, %v99
  %v112 = vpack.c.b16 %v102, %v101
  %v113 = vpack.c.b16 %v104, %v103
  %vm123 = vcmask 130048
  %v125 = vsel %vm123, %v61, 0
  %v128 = vsel %vm123, %v63, 0
  %v131 = vsel %vm123, %v65, 0
  %133 = vmatprep.subr.bf16.mxu0 0
  %134 = vmatpush1.bf16.msra.mxu0 %v112
  %135 = vmatprep.subr.bf16.mxu0 0
  %136 = vmatpush1.bf16.msra.mxu0 %v111
  %137 = vmatprep.subr.bf16.mxu0 0
  %138 = vmatpush1.bf16.msra.mxu0 %v110
  %139 = vmatprep.subr.bf16.mxu0 0
  %140 = vmatpush1.bf16.msra.mxu0 %v109
  %141 = vmatprep.subr.bf16.mxu0 0
  %142 = vmatpush1.bf16.msra.mxu0 %v108
  %143 = vmatprep.subr.bf16.mxu0 0
  %144 = vmatpush1.bf16.msra.mxu0 %v107
  %145 = vmatprep.subr.bf16.mxu0 0
  %146 = vmatpush1.bf16.msra.mxu0 %v106
  %147 = vmatprep.subr.bf16.mxu0 0
  %148 = vmatpush1.bf16.msra.mxu0 %v105
  %149 = vmatprep.subr.bf16.mxu0 0
  %150 = vmatpush2.bf16.msra.mxu0 0
  %151 = vmatprep.subr.bf16.mxu0 0
  %152 = vmatpush2.bf16.msra.mxu0 0
  %153 = vmatprep.subr.bf16.mxu0 0
  %154 = vmatpush2.bf16.msra.mxu0 0
  %155 = vmatprep.subr.bf16.mxu0 0
  %156 = vmatpush2.bf16.msra.mxu0 0
  %157 = vmatprep.subr.bf16.mxu0 0
  %158 = vmatpush2.bf16.msra.mxu0 0
  %159 = vmatprep.subr.bf16.mxu0 0
  %160 = vmatpush2.bf16.msra.mxu0 0
  %161 = vmatprep.subr.bf16.mxu0 0
  %162 = vmatpush2.bf16.msra.mxu0 0
  %163 = vmatprep.subr.bf16.mxu0 0
  %164 = vmatpush2.bf16.msra.mxu0 %v113
  %165 = vmatprep.mubr.bf16.mxu0 %v125
  %166 = vmatmul.mubr.bf16.gmra.mxu0 %v60
  %v167 = vpop.f32.mrf.mxu0
  %v168 = vadd.f32 %v43, %v167
  %v169 = vpop.f32.mrf.mxu0
  %v170 = vpop.f32.mrf.mxu0
  %v171 = vadd.f32 %v43, %v170
  %v172 = vpop.f32.mrf.mxu0
  %173 = vmatprep.mubr.bf16.mxu0 %v128
  %174 = vmatmul.mubr.bf16.gmra.mxu0 %v62
  %v175 = vpop.f32.mrf.mxu0
  %v176 = vadd.f32 %v43, %v175
  %v177 = vpop.f32.mrf.mxu0
  %v178 = vpop.f32.mrf.mxu0
  %v179 = vadd.f32 %v43, %v178
  %v180 = vpop.f32.mrf.mxu0
  %181 = vmatprep.mubr.bf16.mxu0 %v131
  %182 = vmatmul.mubr.bf16.gmra.mxu0 %v64
  %v183 = vpop.f32.mrf.mxu0
  %v184 = vadd.f32 %v43, %v183
  %v185 = vpop.f32.mrf.mxu0
  %v186 = vpop.f32.mrf.mxu0
  %v187 = vpop.f32.mrf.mxu0
  %188 = vdwg.mxu0
  %v189 = vmax.f32 %v168, 0.0
  %v190 = vmax.f32 %v171, 0.0
  %v191 = vmax.f32 %v176, 0.0
  %v192 = vmax.f32 %v179, 0.0
  %v193 = vmax.f32 %v184, 0.0
  %vm194 = vcmask 261120
  %195 = vst.msk [vmem:[%s3] sm:$0xff] %vm194, %v189
  %196 = vst.msk [vmem:[%s3 + $0x8] sm:$0xff] %vm194, %v190
  %197 = vst.msk [vmem:[%s3 + $0x10] sm:$0xff] %vm194, %v191
  %198 = vst.msk [vmem:[%s3 + $0x18] sm:$0xff] %vm194, %v192
  %199 = vst.msk [vmem:[%s3 + $0x20] sm:$0xff] %vm194, %v193
  // Predicated region
  $region14: #{contrast_loss.13} parent=0 // pred_check
    _
  $region15: #{contrast_loss.13} parent=0 // pred_check_branch
    %201 = sbr.rel (0) target = $region17
  $region16: #{contrast_loss.13} parent=0 // pred_region
    _
  $region17: #{contrast_loss.13} parent=0 // pred_fallthru
    _
  // Predicated region
  $region18: #{contrast_loss.13} parent=0 // pred_check
    _
  $region19: #{contrast_loss.13} parent=0 // pred_check_branch
    %203 = sbr.rel (0) target = $region21
  $region20: #{contrast_loss.13} parent=0 // pred_region
    _
  $region21: #{contrast_loss.13} parent=0 // pred_fallthru
    _

// kernel: contrast_loss.14
$region0: #{contrast_loss.14}
  #allocation0 [shape = 'u32[]', space=smem, size = 0x4, offset = 0x4, fixed_abs, tag = 'smem constant byte address 0x4 - core index']
  #allocation1 [shape = 'u32[144,128]{1,0:T(1,128)}', space=vmem, size = 0x12000, scoped, tag = 'internal scratch']
  %s0 = inlined_call_operand.vmem [shape: bf16[16,288], index: 0, kind: input, shape index: {}]
  %s1 = inlined_call_operand.vmem [shape: bf16[288,32], index: 1, kind: input, shape index: {}]
  %s2 = inlined_call_operand.vmem [shape: f32[1,32], index: 2, kind: input, shape index: {}]
  %s3 = inlined_call_operand.vmem [shape: f32[16,32], index: 3, kind: output, shape index: {}]
  %s4 = sld [smem:[#allocation0]]
  $region22: #{contrast_loss.14} parent=0
    _
  %s6 = ssub.s32 1, %s4
  %s7 = scalar_select 0, %s6, %s4
  // Predicated region
  $region2: #{contrast_loss.14} parent=0 // pred_check
    _
  $region3: #{contrast_loss.14} parent=0 // pred_check_branch
    %9 = sbr.rel (0) target = $region5
  $region4: #{contrast_loss.14} parent=0 // pred_region
    _
  $region5: #{contrast_loss.14} parent=0 // pred_fallthru
    _
  // Predicated region
  $region6: #{contrast_loss.14} parent=0 // pred_check
    _
  $region7: #{contrast_loss.14} parent=0 // pred_check_branch
    %11 = sbr.rel (0) target = $region9
  $region8: #{contrast_loss.14} parent=0 // pred_region
    _
  $region9: #{contrast_loss.14} parent=0 // pred_fallthru
    _
  // Predicated region
  $region10: #{contrast_loss.14} parent=0 // pred_check
    _
  $region11: #{contrast_loss.14} parent=0 // pred_check_branch
    %13 = sbr.rel (0) target = $region13
  $region12: #{contrast_loss.14} parent=0 // pred_region
    _
  $region13: #{contrast_loss.14} parent=0 // pred_fallthru
    _
  %v15 = vld [vmem:[%s0] sm:$0xff]
  %v16 = vld [vmem:[%s0 + $0x8] sm:$0xf]
  %v17 = vld [vmem:[%s0 + $0xc] sm:$0xff]
  %v18 = vld [vmem:[%s0 + $0x14] sm:$0xf]
  %v19 = vld [vmem:[%s1] sm:$0xf]
  %v20 = vld [vmem:[%s1 + $0x4] sm:$0xf]
  %v21 = vld [vmem:[%s1 + $0x8] sm:$0xf]
  %v22 = vld [vmem:[%s1 + $0xc] sm:$0xf]
  %v23 = vld [vmem:[%s1 + $0x10] sm:$0xf]
  %v24 = vld [vmem:[%s1 + $0x14] sm:$0xf]
  %v25 = vld [vmem:[%s1 + $0x18] sm:$0xf]
  %v26 = vld [vmem:[%s1 + $0x1c] sm:$0xf]
  %v27 = vld [vmem:[%s1 + $0x20] sm:$0xf]
  %v28 = vld [vmem:[%s1 + $0x24] sm:$0xf]
  %v29 = vld [vmem:[%s1 + $0x28] sm:$0xf]
  %v30 = vld [vmem:[%s1 + $0x2c] sm:$0xf]
  %v31 = vld [vmem:[%s1 + $0x30] sm:$0xf]
  %v32 = vld [vmem:[%s1 + $0x34] sm:$0xf]
  %v33 = vld [vmem:[%s1 + $0x38] sm:$0xf]
  %v34 = vld [vmem:[%s1 + $0x3c] sm:$0xf]
  %v35 = vld [vmem:[%s1 + $0x40] sm:$0xf]
  %v36 = vld [vmem:[%s1 + $0x44] sm:$0xf]
  %v37 = vld [vmem:[%s1 + $0x48] sm:$0xf]
  %v38 = vld [vmem:[%s1 + $0x4c] sm:$0xf]
  %v39 = vld [vmem:[%s1 + $0x50] sm:$0xf]
  %v40 = vld [vmem:[%s1 + $0x54] sm:$0xf]
  %v41 = vld [vmem:[%s1 + $0x58] sm:$0xf]
  %v42 = vld [vmem:[%s1 + $0x5c] sm:$0xf]
  %v43 = vld [vmem:[%s1 + $0x60] sm:$0xf]
  %v44 = vld [vmem:[%s1 + $0x64] sm:$0xf]
  %v45 = vld [vmem:[%s1 + $0x68] sm:$0xf]
  %v46 = vld [vmem:[%s1 + $0x6c] sm:$0xf]
  %v47 = vld [vmem:[%s1 + $0x70] sm:$0xf]
  %v48 = vld [vmem:[%s1 + $0x74] sm:$0xf]
  %v49 = vld [vmem:[%s1 + $0x78] sm:$0xf]
  %v50 = vld [vmem:[%s1 + $0x7c] sm:$0xf]
  %v51 = vld [vmem:[%s1 + $0x80] sm:$0xf]
  %v52 = vld [vmem:[%s1 + $0x84] sm:$0xf]
  %v53 = vld [vmem:[%s1 + $0x88] sm:$0xf]
  %v54 = vld [vmem:[%s1 + $0x8c] sm:$0xf]
  %v55 = vld [vmem:[%s2] sm:$0x1]
  %v57 = vlaneseq
  %v58 = vshrl.u32 %v57, 7
  %v59 = vsub.s32 0, %v58
  %v60 = vrot.slane %v55, %v59
  %v66 = vunpack.c.l.b16 %v15
  %v67 = vunpack.c.h.b16 %v15
  %v68 = vunpack.c.l.b16 %v16
  %v69 = vunpack.c.l.b16 %v17
  %v70 = vunpack.c.h.b16 %v17
  %v71 = vunpack.c.l.b16 %v18
  %v72 = vpack.c.b16 %v69, %v66
  %v73 = vpack.c.b16 %v70, %v67
  %v74 = vpack.c.b16 %v71, %v68
  %v113 = vunpack.c.l.b16 %v19
  %v114 = vunpack.c.l.b16 %v20
  %v115 = vunpack.c.l.b16 %v21
  %v116 = vunpack.c.l.b16 %v22
  %v117 = vunpack.c.l.b16 %v23
  %v118 = vunpack.c.l.b16 %v24
  %v119 = vunpack.c.l.b16 %v25
  %v120 = vunpack.c.l.b16 %v26
  %v121 = vunpack.c.l.b16 %v27
  %v122 = vunpack.c.l.b16 %v28
  %v123 = vunpack.c.l.b16 %v29
  %v124 = vunpack.c.l.b16 %v30
  %v125 = vunpack.c.l.b16 %v31
  %v126 = vunpack.c.l.b16 %v32
  %v127 = vunpack.c.l.b16 %v33
  %v128 = vunpack.c.l.b16 %v34
  %v129 = vunpack.c.l.b16 %v35
  %v130 = vunpack.c.l.b16 %v36
  %v131 = vunpack.c.l.b16 %v37
  %v132 = vunpack.c.l.b16 %v38
  %v133 = vunpack.c.l.b16 %v39
  %v134 = vunpack.c.l.b16 %v40
  %v135 = vunpack.c.l.b16 %v41
  %v136 = vunpack.c.l.b16 %v42
  %v137 = vunpack.c.l.b16 %v43
  %v138 = vunpack.c.l.b16 %v44
  %v139 = vunpack.c.l.b16 %v45
  %v140 = vunpack.c.l.b16 %v46
  %v141 = vunpack.c.l.b16 %v47
  %v142 = vunpack.c.l.b16 %v48
  %v143 = vunpack.c.l.b16 %v49
  %v144 = vunpack.c.l.b16 %v50
  %v145 = vunpack.c.l.b16 %v51
  %v146 = vunpack.c.l.b16 %v52
  %v147 = vunpack.c.l.b16 %v53
  %v148 = vunpack.c.l.b16 %v54
  %v149 = vpack.c.b16 %v114, %v113
  %v150 = vpack.c.b16 %v116, %v115
  %v151 = vpack.c.b16 %v118, %v117
  %v152 = vpack.c.b16 %v120, %v119
  %v153 = vpack.c.b16 %v122, %v121
  %v154 = vpack.c.b16 %v124, %v123
  %v155 = vpack.c.b16 %v126, %v125
  %v156 = vpack.c.b16 %v128, %v127
  %v157 = vpack.c.b16 %v130, %v129
  %v158 = vpack.c.b16 %v132, %v131
  %v159 = vpack.c.b16 %v134, %v133
  %v160 = vpack.c.b16 %v136, %v135
  %v161 = vpack.c.b16 %v138, %v137
  %v162 = vpack.c.b16 %v140, %v139
  %v163 = vpack.c.b16 %v142, %v141
  %v164 = vpack.c.b16 %v144, %v143
  %v165 = vpack.c.b16 %v146, %v145
  %v166 = vpack.c.b16 %v148, %v147
  %vm185 = vcmask 261120
  %v187 = vsel %vm185, %v74, 0
  %189 = vmatprep.subr.bf16.mxu0 0
  %190 = vmatpush1.bf16.msra.mxu0 %v156
  %191 = vmatprep.subr.bf16.mxu0 0
  %192 = vmatpush1.bf16.msra.mxu0 %v155
  %193 = vmatprep.subr.bf16.mxu0 0
  %194 = vmatpush1.bf16.msra.mxu0 %v154
  %195 = vmatprep.subr.bf16.mxu0 0
  %196 = vmatpush1.bf16.msra.mxu0 %v153
  %197 = vmatprep.subr.bf16.mxu0 0
  %198 = vmatpush1.bf16.msra.mxu0 %v152
  %199 = vmatprep.subr.bf16.mxu0 0
  %200 = vmatpush1.bf16.msra.mxu0 %v151
  %201 = vmatprep.subr.bf16.mxu0 0
  %202 = vmatpush1.bf16.msra.mxu0 %v150
  %203 = vmatprep.subr.bf16.mxu0 0
  %204 = vmatpush1.bf16.msra.mxu0 %v149
  %205 = vmatprep.subr.bf16.mxu0 0
  %206 = vmatpush2.bf16.msra.mxu0 %v164
  %207 = vmatprep.subr.bf16.mxu0 0
  %208 = vmatpush2.bf16.msra.mxu0 %v163
  %209 = vmatprep.subr.bf16.mxu0 0
  %210 = vmatpush2.bf16.msra.mxu0 %v162
  %211 = vmatprep.subr.bf16.mxu0 0
  %212 = vmatpush2.bf16.msra.mxu0 %v161
  %213 = vmatprep.subr.bf16.mxu0 0
  %214 = vmatpush2.bf16.msra.mxu0 %v160
  %215 = vmatprep.subr.bf16.mxu0 0
  %216 = vmatpush2.bf16.msra.mxu0 %v159
  %217 = vmatprep.subr.bf16.mxu0 0
  %218 = vmatpush2.bf16.msra.mxu0 %v158
  %219 = vmatprep.subr.bf16.mxu0 0
  %220 = vmatpush2.bf16.msra.mxu0 %v157
  %221 = vmatprep.mubr.bf16.mxu0 %v73
  %222 = vmatmul.mubr.bf16.gmra.mxu0 %v72
  %v223 = vpop.f32.mrf.mxu0
  %v224 = vadd.f32 %v60, %v223
  %v225 = vpop.f32.mrf.mxu0
  %v226 = vpop.f32.mrf.mxu0
  %v227 = vadd.f32 %v60, %v226
  %v228 = vpop.f32.mrf.mxu0
  %229 = vdwg.mxu0
  %230 = vmatprep.subr.bf16.mxu0 0
  %231 = vmatpush1.bf16.msra.mxu0 0
  %232 = vmatprep.subr.bf16.mxu0 0
  %233 = vmatpush1.bf16.msra.mxu0 0
  %234 = vmatprep.subr.bf16.mxu0 0
  %235 = vmatpush1.bf16.msra.mxu0 0
  %236 = vmatprep.subr.bf16.mxu0 0
  %237 = vmatpush1.bf16.msra.mxu0 0
  %238 = vmatprep.subr.bf16.mxu0 0
  %239 = vmatpush1.bf16.msra.mxu0 0
  %240 = vmatprep.subr.bf16.mxu0 0
  %241 = vmatpush1.bf16.msra.mxu0 0
  %242 = vmatprep.subr.bf16.mxu0 0
  %243 = vmatpush1.bf16.msra.mxu0 %v166
  %244 = vmatprep.subr.bf16.mxu0 0
  %245 = vmatpush1.bf16.msra.mxu0 %v165
  %246 = vmatprep.subr.bf16.mxu0 0
  %247 = vmatpush2.bf16.msra.mxu0 0
  %248 = vmatprep.subr.bf16.mxu0 0
  %249 = vmatpush2.bf16.msra.mxu0 0
  %250 = vmatprep.subr.bf16.mxu0 0
  %251 = vmatpush2.bf16.msra.mxu0 0
  %252 = vmatprep.subr.bf16.mxu0 0
  %253 = vmatpush2.bf16.msra.mxu0 0
  %254 = vmatprep.subr.bf16.mxu0 0
  %255 = vmatpush2.bf16.msra.mxu0 0
  %256 = vmatprep.subr.bf16.mxu0 0
  %257 = vmatpush2.bf16.msra.mxu0 0
  %258 = vmatprep.subr.bf16.mxu0 0
  %259 = vmatpush2.bf16.msra.mxu0 0
  %260 = vmatprep.subr.bf16.mxu0 0
  %261 = vmatpush2.bf16.msra.mxu0 0
  %262 = vmatprep.mubr.bf16.mxu0 0
  %263 = vmatmul.mubr.bf16.gmra.mxu0 %v187
  %v264 = vpop.f32.mrf.mxu0
  %v265 = vadd.f32 %v224, %v264
  %v266 = vpop.f32.mrf.mxu0
  %v267 = vpop.f32.mrf.mxu0
  %v268 = vadd.f32 %v227, %v267
  %v269 = vpop.f32.mrf.mxu0
  %270 = vdwg.mxu0
  %v271 = vmax.f32 %v265, 0.0
  %v272 = vmax.f32 %v268, 0.0
  %273 = vst.msk [vmem:[%s3] sm:$0xff] %vm185, %v271
  %274 = vst.msk [vmem:[%s3 + $0x8] sm:$0xff] %vm185, %v272
  // Predicated region
  $region14: #{contrast_loss.14} parent=0 // pred_check
    _
  $region15: #{contrast_loss.14} parent=0 // pred_check_branch
    %276 = sbr.rel (0) target = $region17
  $region16: #{contrast_loss.14} parent=0 // pred_region
    _
  $region17: #{contrast_loss.14} parent=0 // pred_fallthru
    _
  // Predicated region
  $region18: #{contrast_loss.14} parent=0 // pred_check
    _
  $region19: #{contrast_loss.14} parent=0 // pred_check_branch
    %278 = sbr.rel (0) target = $region21
  $region20: #{contrast_loss.14} parent=0 // pred_region
    _
  $region21: #{contrast_loss.14} parent=0 // pred_fallthru
    _

</llo_original>
